<compile_context>
chip_gen: v5e
topology: v5e:2x2
jax: 0.10.0
libtpu: 0.0.40
codegen_flags: <defaults>
</compile_context>

<pallas_src>
import jax
import jax.numpy as jnp
from jax.experimental import pallas as pl
from jax.experimental.pallas import tpu as pltpu


# ----------------------------------------------------------------------------
# In-kernel helpers (trace-time; operate on VMEM values / refs)
# ----------------------------------------------------------------------------
def _maxpool2x2(y):
    """2x2 max pool, stride 2, on [Bt, H, W, C] (one axis at a time)."""
    Bt, H, W, C = y.shape
    y = y.reshape(Bt, H // 2, 2, W, C).max(axis=2)
    y = y.reshape(Bt, H // 2, W // 2, 2, C).max(axis=3)
    return y


def _conv3x3_mxu(y, w_ref, sb_ref, pad_ref):
    """3x3 'same' conv + folded BatchNorm + ReLU on the MXU.

    y       : [Bt, H, W, Cin]        bf16 activation (VMEM value)
    w_ref   : [9, Cin, Cout]         bf16 taps, row t = dy*3 + dx
    sb_ref  : [2, Cout]              f32 folded BN scale / bias
    pad_ref : [Bt, H+2, 8+W+1, Cin]  bf16 scratch.  The interior lives at
              sublane offset 8 so the store below is tile-aligned; columns
              7 and 8+W are the (zero) halo columns, rows 0 and H+1 the halo rows.
    """
    Bt, H, W, Cin = y.shape
    Cout = w_ref.shape[-1]

    pad_ref[...] = jnp.zeros(pad_ref.shape, pad_ref.dtype)
    pad_ref[:, 1:H + 1, 8:8 + W, :] = y
    xp = pad_ref[...]                                   # [Bt, H+2, 8+W+1, Cin]

    acc = jnp.zeros((Bt * H * W, Cout), jnp.float32)
    for dy in range(3):
        for dx in range(3):
            xs = xp[:, dy:dy + H, 7 + dx:7 + dx + W, :].reshape(Bt * H * W, Cin)
            acc = acc + jnp.dot(xs, w_ref[dy * 3 + dx],
                                preferred_element_type=jnp.float32)
    yo = jnp.maximum(acc * sb_ref[0] + sb_ref[1], 0.0)  # folded BN + ReLU (f32)
    return yo.astype(jnp.bfloat16).reshape(Bt, H, W, Cout)


# ----------------------------------------------------------------------------
# Fused network kernel
# ----------------------------------------------------------------------------
def _fused_cnn_kernel(x_ref, w1_ref, sb1_ref, w2_ref, sb2_ref, w3_ref, sb3_ref,
                      fw1_ref, fb1_ref, fw2_ref, fb2_ref, o_ref,
                      pad2_ref, pad3_ref):
    f32, bf16 = jnp.float32, jnp.bfloat16
    Bt = x_ref.shape[0]

    # ---- conv1: 3x3, 1 -> 32, folded BN + ReLU, 2x2 maxpool ------------------
    # Cin == 1: each tap is a trivial VPU broadcast FMA; the MXU is kept for the
    # wide conv2/conv3/FC matmuls.
    x = x_ref[...].astype(f32)                           # [Bt, 18, 18, 1] (pre-padded)
    acc = jnp.zeros((Bt, 16, 16, 32), f32)
    for dy in range(3):
        for dx in range(3):
            xs = x[:, dy:dy + 16, dx:dx + 16, :]         # [Bt, 16, 16, 1]
            acc = acc + xs * w1_ref[dy * 3 + dx].astype(f32)   # bcast with [1, 32]
    y = jnp.maximum(acc * sb1_ref[0] + sb1_ref[1], 0.0)
    y = _maxpool2x2(y.astype(bf16))                      # [Bt, 8, 8, 32]

    # ---- conv2: 3x3, 32 -> 64, BN + ReLU, maxpool ----------------------------
    y = _conv3x3_mxu(y, w2_ref, sb2_ref, pad2_ref)       # [Bt, 8, 8, 64]
    y = _maxpool2x2(y)                                   # [Bt, 4, 4, 64]

    # ---- conv3: 3x3, 64 -> 128, BN + ReLU (no pool) --------------------------
    y = _conv3x3_mxu(y, w3_ref, sb3_ref, pad3_ref)       # [Bt, 4, 4, 128]

    # ---- fc head: flatten (h, w, c) via aligned 128-lane concat, then MLP ----
    # fw1's rows were permuted at init so this (h, w, c) order matches torch's
    # (c, h, w) x.view(B, -1) flatten.
    xflat = jnp.concatenate(
        [y[:, h, w, :] for h in range(4) for w in range(4)], axis=-1)   # [Bt, 2048] bf16
    h1 = jnp.dot(xflat, fw1_ref[...], preferred_element_type=f32)       # [Bt, 256]
    h1 = jnp.maximum(h1 + fb1_ref[...], 0.0)
    out = jnp.dot(h1.astype(bf16), fw2_ref[...], preferred_element_type=f32)
    o_ref[...] = (out + fb2_ref[...]).astype(o_ref.dtype)               # [Bt, nc]


# ----------------------------------------------------------------------------
# Host wrapper
# ----------------------------------------------------------------------------
def simple_cnn_sb_forward(x_nchw, p):
    B = x_nchw.shape[0]
    num_classes = p['fw2'].shape[-1]

    # NCHW -> NHWC (free: C == 1 makes it a pure reshape) and pad the 3x3 halo
    # of the tiny network input once; all other halos are built in VMEM.
    x = jnp.transpose(x_nchw, (0, 2, 3, 1))
    x = jnp.pad(x, ((0, 0), (1, 1), (1, 1), (0, 0)))     # [B, 18, 18, 1]

    # Batch tile: whole batch for small B, else 8-image tiles (second-minor
    # output block dim must be a multiple of 8 or equal the full dim).
    Bt = 8 if (B % 8 == 0 and B > 8) else B
    grid = (B // Bt,)

    def wspec(shape):
        return pl.BlockSpec(shape, lambda b, _s=shape: (0,) * len(_s))

    kernel = pl.pallas_call(
        _fused_cnn_kernel,
        out_shape=jax.ShapeDtypeStruct((B, num_classes), jnp.float32),
        grid=grid,
        in_specs=[
            pl.BlockSpec((Bt, 18, 18, 1), lambda b: (b, 0, 0, 0)),   # padded input
            wspec((9, 1, 32)),   wspec((2, 32)),                     # conv1
            wspec((9, 32, 64)),  wspec((2, 64)),                     # conv2
            wspec((9, 64, 128)), wspec((2, 128)),                    # conv3
            wspec((2048, 256)),  wspec((1, 256)),                    # fc1
            wspec((256, num_classes)), wspec((1, num_classes)),      # fc2
        ],
        out_specs=pl.BlockSpec((Bt, num_classes), lambda b: (b, 0)),
        scratch_shapes=[
            pltpu.VMEM((Bt, 10, 8 + 8 + 1, 32), jnp.bfloat16),   # conv2 halo buffer
            pltpu.VMEM((Bt, 6, 8 + 4 + 1, 64), jnp.bfloat16),    # conv3 halo buffer
        ],
        compiler_params=pltpu.CompilerParams(
            dimension_semantics=("parallel",)),
    )
    return kernel(x, p['w1'], p['sb1'], p['w2'], p['sb2'], p['w3'], p['sb3'],
                  p['fw1'], p['fb1'], p['fw2'], p['fb2'])


# ----------------------------------------------------------------------------
# Deterministic parameter init (shapes match SimpleCNNsb.__init__, eval mode)
# ----------------------------------------------------------------------------
def init_params(key, num_classes=3):
    keys = iter(jax.random.split(key, 32))
    eps = 1e-5

    def conv_block(cin, cout):
        w = 0.05 * jax.random.normal(next(keys), (3, 3, cin, cout), jnp.float32)
        b = 0.05 * jax.random.normal(next(keys), (cout,), jnp.float32)
        gamma = 1.0 + 0.1 * jax.random.normal(next(keys), (cout,), jnp.float32)
        beta = 0.1 * jax.random.normal(next(keys), (cout,), jnp.float32)
        mean = 0.1 * jax.random.normal(next(keys), (cout,), jnp.float32)
        var = jnp.abs(1.0 + 0.1 * jax.random.normal(next(keys), (cout,), jnp.float32))
        # Fold conv bias + eval-mode BatchNorm into one per-channel scale/bias.
        scale = gamma / jnp.sqrt(var + eps)
        bias = beta + scale * (b - mean)
        # Tap-major layout used by the kernel: row t = dy*3 + dx.
        return (w.reshape(9, cin, cout).astype(jnp.bfloat16),
                jnp.stack([scale, bias], axis=0))

    p = {}
    p['w1'], p['sb1'] = conv_block(1, 32)
    p['w2'], p['sb2'] = conv_block(32, 64)
    p['w3'], p['sb3'] = conv_block(64, 128)

    # fc1: torch flattens the NCHW conv3 output as (c, h, w); the kernel flattens
    # its NHWC activation as (h, w, c).  Fold that permutation into the weight
    # rows once at init -> zero runtime cost.
    fw1 = 0.02 * jax.random.normal(next(keys), (128 * 4 * 4, 256), jnp.float32)
    r = jnp.arange(128 * 4 * 4)
    perm = (r % 128) * 16 + (r // 128)      # kernel row (h*4+w)*128+c -> torch row c*16+(h*4+w)
    p['fw1'] = fw1[perm].astype(jnp.bfloat16)
    p['fb1'] = (0.02 * jax.random.normal(next(keys), (256,), jnp.float32)).reshape(1, 256)
    p['fw2'] = (0.02 * jax.random.normal(next(keys), (256, num_classes),
                                         jnp.float32)).astype(jnp.bfloat16)
    p['fb2'] = (0.02 * jax.random.normal(next(keys), (num_classes,),
                                         jnp.float32)).reshape(1, num_classes)
    return p


if __name__ == "__main__":
    key = jax.random.PRNGKey(0)
    kx, kp = jax.random.split(key)

    # PyTorch NCHW input; spatial 16x16 so the 128*4*4 FC input size matches.
    x = jax.random.normal(kx, (2, 1, 16, 16), jnp.float32)
    params = init_params(kp, num_classes=3)

    fwd = jax.jit(simple_cnn_sb_forward)
    out = jax.block_until_ready(fwd(x, params))
    assert out.shape == (2, 3) and out.dtype == jnp.float32
    assert bool(jnp.all(jnp.isfinite(out)))
    print("KERNEL_OK")
</pallas_src>

<mosaic_0001>
module attributes {stable_mosaic.version = 11 : i64} {
  func.func @_fused_cnn_kernel(%arg0: i32, %arg1: memref<2x18x18x1xf32, #tpu.memory_space<vmem>>, %arg2: memref<9x1x32xbf16, #tpu.memory_space<vmem>>, %arg3: memref<2x32xf32, #tpu.memory_space<vmem>>, %arg4: memref<9x32x64xbf16, #tpu.memory_space<vmem>>, %arg5: memref<2x64xf32, #tpu.memory_space<vmem>>, %arg6: memref<9x64x128xbf16, #tpu.memory_space<vmem>>, %arg7: memref<2x128xf32, #tpu.memory_space<vmem>>, %arg8: memref<2048x256xbf16, #tpu.memory_space<vmem>>, %arg9: memref<1x256xf32, #tpu.memory_space<vmem>>, %arg10: memref<256x3xbf16, #tpu.memory_space<vmem>>, %arg11: memref<1x3xf32, #tpu.memory_space<vmem>>, %arg12: memref<2x3xf32, #tpu.memory_space<vmem>>, %arg13: memref<2x10x17x32xbf16, #tpu.memory_space<vmem>>, %arg14: memref<2x6x13x64xbf16, #tpu.memory_space<vmem>>) attributes {dimension_semantics = [#tpu.dimension_semantics<parallel>], iteration_bounds = array<i64: 1>, scalar_prefetch = 0 : i64, scratch_operands = 2 : i64, tpu.core_type = #tpu.core_type<tc>, window_params = [{transform_indices = @transform_0, window_bounds = array<i64: 2, 18, 18, 1>}, {pipeline_mode = #tpu.pipeline_mode<synchronous>, transform_indices = @transform_1, window_bounds = array<i64: 9, 1, 32>}, {pipeline_mode = #tpu.pipeline_mode<synchronous>, transform_indices = @transform_2, window_bounds = array<i64: 2, 32>}, {pipeline_mode = #tpu.pipeline_mode<synchronous>, transform_indices = @transform_3, window_bounds = array<i64: 9, 32, 64>}, {pipeline_mode = #tpu.pipeline_mode<synchronous>, transform_indices = @transform_4, window_bounds = array<i64: 2, 64>}, {pipeline_mode = #tpu.pipeline_mode<synchronous>, transform_indices = @transform_5, window_bounds = array<i64: 9, 64, 128>}, {pipeline_mode = #tpu.pipeline_mode<synchronous>, transform_indices = @transform_6, window_bounds = array<i64: 2, 128>}, {pipeline_mode = #tpu.pipeline_mode<synchronous>, transform_indices = @transform_7, window_bounds = array<i64: 2048, 256>}, {pipeline_mode = #tpu.pipeline_mode<synchronous>, transform_indices = @transform_8, window_bounds = array<i64: 1, 256>}, {pipeline_mode = #tpu.pipeline_mode<synchronous>, transform_indices = @transform_9, window_bounds = array<i64: 256, 3>}, {pipeline_mode = #tpu.pipeline_mode<synchronous>, transform_indices = @transform_10, window_bounds = array<i64: 1, 3>}, {transform_indices = @transform_11, window_bounds = array<i64: 2, 3>}]} {
    %c0 = arith.constant 0 : index
    %c0_0 = arith.constant 0 : index
    %c0_1 = arith.constant 0 : index
    %c0_2 = arith.constant 0 : index
    %0 = vector.load %arg1[%c0, %c0_0, %c0_1, %c0_2] : memref<2x18x18x1xf32, #tpu.memory_space<vmem>>, vector<2x18x18x1xf32>
    %cst = arith.constant 0.000000e+00 : f32
    %1 = vector.broadcast %cst : f32 to vector<2x16x16x32xf32>
    %2 = vector.extract_strided_slice %0 {offsets = [0, 0, 0, 0], sizes = [2, 16, 16, 1], strides = [1, 1, 1, 1]} : vector<2x18x18x1xf32> to vector<2x16x16x1xf32>
    %c0_3 = arith.constant 0 : index
    %c0_4 = arith.constant 0 : index
    %c0_5 = arith.constant 0 : index
    %3 = vector.load %arg2[%c0_3, %c0_4, %c0_5] : memref<9x1x32xbf16, #tpu.memory_space<vmem>>, vector<1x1x32xbf16>
    %4 = vector.shape_cast %3 : vector<1x1x32xbf16> to vector<1x32xbf16>
    %5 = arith.extf %4 : vector<1x32xbf16> to vector<1x32xf32>
    %6 = vector.shape_cast %5 : vector<1x32xf32> to vector<1x1x1x32xf32>
    %7 = vector.broadcast %2 : vector<2x16x16x1xf32> to vector<2x16x16x32xf32>
    %8 = vector.broadcast %6 : vector<1x1x1x32xf32> to vector<2x16x16x32xf32>
    %9 = arith.mulf %7, %8 : vector<2x16x16x32xf32>
    %10 = arith.addf %1, %9 : vector<2x16x16x32xf32>
    %11 = vector.extract_strided_slice %0 {offsets = [0, 0, 1, 0], sizes = [2, 16, 16, 1], strides = [1, 1, 1, 1]} : vector<2x18x18x1xf32> to vector<2x16x16x1xf32>
    %c1 = arith.constant 1 : index
    %c0_6 = arith.constant 0 : index
    %c0_7 = arith.constant 0 : index
    %12 = vector.load %arg2[%c1, %c0_6, %c0_7] : memref<9x1x32xbf16, #tpu.memory_space<vmem>>, vector<1x1x32xbf16>
    %13 = vector.shape_cast %12 : vector<1x1x32xbf16> to vector<1x32xbf16>
    %14 = arith.extf %13 : vector<1x32xbf16> to vector<1x32xf32>
    %15 = vector.shape_cast %14 : vector<1x32xf32> to vector<1x1x1x32xf32>
    %16 = vector.broadcast %11 : vector<2x16x16x1xf32> to vector<2x16x16x32xf32>
    %17 = vector.broadcast %15 : vector<1x1x1x32xf32> to vector<2x16x16x32xf32>
    %18 = arith.mulf %16, %17 : vector<2x16x16x32xf32>
    %19 = arith.addf %10, %18 : vector<2x16x16x32xf32>
    %20 = vector.extract_strided_slice %0 {offsets = [0, 0, 2, 0], sizes = [2, 16, 16, 1], strides = [1, 1, 1, 1]} : vector<2x18x18x1xf32> to vector<2x16x16x1xf32>
    %c2 = arith.constant 2 : index
    %c0_8 = arith.constant 0 : index
    %c0_9 = arith.constant 0 : index
    %21 = vector.load %arg2[%c2, %c0_8, %c0_9] : memref<9x1x32xbf16, #tpu.memory_space<vmem>>, vector<1x1x32xbf16>
    %22 = vector.shape_cast %21 : vector<1x1x32xbf16> to vector<1x32xbf16>
    %23 = arith.extf %22 : vector<1x32xbf16> to vector<1x32xf32>
    %24 = vector.shape_cast %23 : vector<1x32xf32> to vector<1x1x1x32xf32>
    %25 = vector.broadcast %20 : vector<2x16x16x1xf32> to vector<2x16x16x32xf32>
    %26 = vector.broadcast %24 : vector<1x1x1x32xf32> to vector<2x16x16x32xf32>
    %27 = arith.mulf %25, %26 : vector<2x16x16x32xf32>
    %28 = arith.addf %19, %27 : vector<2x16x16x32xf32>
    %29 = vector.extract_strided_slice %0 {offsets = [0, 1, 0, 0], sizes = [2, 16, 16, 1], strides = [1, 1, 1, 1]} : vector<2x18x18x1xf32> to vector<2x16x16x1xf32>
    %c3 = arith.constant 3 : index
    %c0_10 = arith.constant 0 : index
    %c0_11 = arith.constant 0 : index
    %30 = vector.load %arg2[%c3, %c0_10, %c0_11] : memref<9x1x32xbf16, #tpu.memory_space<vmem>>, vector<1x1x32xbf16>
    %31 = vector.shape_cast %30 : vector<1x1x32xbf16> to vector<1x32xbf16>
    %32 = arith.extf %31 : vector<1x32xbf16> to vector<1x32xf32>
    %33 = vector.shape_cast %32 : vector<1x32xf32> to vector<1x1x1x32xf32>
    %34 = vector.broadcast %29 : vector<2x16x16x1xf32> to vector<2x16x16x32xf32>
    %35 = vector.broadcast %33 : vector<1x1x1x32xf32> to vector<2x16x16x32xf32>
    %36 = arith.mulf %34, %35 : vector<2x16x16x32xf32>
    %37 = arith.addf %28, %36 : vector<2x16x16x32xf32>
    %38 = vector.extract_strided_slice %0 {offsets = [0, 1, 1, 0], sizes = [2, 16, 16, 1], strides = [1, 1, 1, 1]} : vector<2x18x18x1xf32> to vector<2x16x16x1xf32>
    %c4 = arith.constant 4 : index
    %c0_12 = arith.constant 0 : index
    %c0_13 = arith.constant 0 : index
    %39 = vector.load %arg2[%c4, %c0_12, %c0_13] : memref<9x1x32xbf16, #tpu.memory_space<vmem>>, vector<1x1x32xbf16>
    %40 = vector.shape_cast %39 : vector<1x1x32xbf16> to vector<1x32xbf16>
    %41 = arith.extf %40 : vector<1x32xbf16> to vector<1x32xf32>
    %42 = vector.shape_cast %41 : vector<1x32xf32> to vector<1x1x1x32xf32>
    %43 = vector.broadcast %38 : vector<2x16x16x1xf32> to vector<2x16x16x32xf32>
    %44 = vector.broadcast %42 : vector<1x1x1x32xf32> to vector<2x16x16x32xf32>
    %45 = arith.mulf %43, %44 : vector<2x16x16x32xf32>
    %46 = arith.addf %37, %45 : vector<2x16x16x32xf32>
    %47 = vector.extract_strided_slice %0 {offsets = [0, 1, 2, 0], sizes = [2, 16, 16, 1], strides = [1, 1, 1, 1]} : vector<2x18x18x1xf32> to vector<2x16x16x1xf32>
    %c5 = arith.constant 5 : index
    %c0_14 = arith.constant 0 : index
    %c0_15 = arith.constant 0 : index
    %48 = vector.load %arg2[%c5, %c0_14, %c0_15] : memref<9x1x32xbf16, #tpu.memory_space<vmem>>, vector<1x1x32xbf16>
    %49 = vector.shape_cast %48 : vector<1x1x32xbf16> to vector<1x32xbf16>
    %50 = arith.extf %49 : vector<1x32xbf16> to vector<1x32xf32>
    %51 = vector.shape_cast %50 : vector<1x32xf32> to vector<1x1x1x32xf32>
    %52 = vector.broadcast %47 : vector<2x16x16x1xf32> to vector<2x16x16x32xf32>
    %53 = vector.broadcast %51 : vector<1x1x1x32xf32> to vector<2x16x16x32xf32>
    %54 = arith.mulf %52, %53 : vector<2x16x16x32xf32>
    %55 = arith.addf %46, %54 : vector<2x16x16x32xf32>
    %56 = vector.extract_strided_slice %0 {offsets = [0, 2, 0, 0], sizes = [2, 16, 16, 1], strides = [1, 1, 1, 1]} : vector<2x18x18x1xf32> to vector<2x16x16x1xf32>
    %c6 = arith.constant 6 : index
    %c0_16 = arith.constant 0 : index
    %c0_17 = arith.constant 0 : index
    %57 = vector.load %arg2[%c6, %c0_16, %c0_17] : memref<9x1x32xbf16, #tpu.memory_space<vmem>>, vector<1x1x32xbf16>
    %58 = vector.shape_cast %57 : vector<1x1x32xbf16> to vector<1x32xbf16>
    %59 = arith.extf %58 : vector<1x32xbf16> to vector<1x32xf32>
    %60 = vector.shape_cast %59 : vector<1x32xf32> to vector<1x1x1x32xf32>
    %61 = vector.broadcast %56 : vector<2x16x16x1xf32> to vector<2x16x16x32xf32>
    %62 = vector.broadcast %60 : vector<1x1x1x32xf32> to vector<2x16x16x32xf32>
    %63 = arith.mulf %61, %62 : vector<2x16x16x32xf32>
    %64 = arith.addf %55, %63 : vector<2x16x16x32xf32>
    %65 = vector.extract_strided_slice %0 {offsets = [0, 2, 1, 0], sizes = [2, 16, 16, 1], strides = [1, 1, 1, 1]} : vector<2x18x18x1xf32> to vector<2x16x16x1xf32>
    %c7 = arith.constant 7 : index
    %c0_18 = arith.constant 0 : index
    %c0_19 = arith.constant 0 : index
    %66 = vector.load %arg2[%c7, %c0_18, %c0_19] : memref<9x1x32xbf16, #tpu.memory_space<vmem>>, vector<1x1x32xbf16>
    %67 = vector.shape_cast %66 : vector<1x1x32xbf16> to vector<1x32xbf16>
    %68 = arith.extf %67 : vector<1x32xbf16> to vector<1x32xf32>
    %69 = vector.shape_cast %68 : vector<1x32xf32> to vector<1x1x1x32xf32>
    %70 = vector.broadcast %65 : vector<2x16x16x1xf32> to vector<2x16x16x32xf32>
    %71 = vector.broadcast %69 : vector<1x1x1x32xf32> to vector<2x16x16x32xf32>
    %72 = arith.mulf %70, %71 : vector<2x16x16x32xf32>
    %73 = arith.addf %64, %72 : vector<2x16x16x32xf32>
    %74 = vector.extract_strided_slice %0 {offsets = [0, 2, 2, 0], sizes = [2, 16, 16, 1], strides = [1, 1, 1, 1]} : vector<2x18x18x1xf32> to vector<2x16x16x1xf32>
    %c8 = arith.constant 8 : index
    %c0_20 = arith.constant 0 : index
    %c0_21 = arith.constant 0 : index
    %75 = vector.load %arg2[%c8, %c0_20, %c0_21] : memref<9x1x32xbf16, #tpu.memory_space<vmem>>, vector<1x1x32xbf16>
    %76 = vector.shape_cast %75 : vector<1x1x32xbf16> to vector<1x32xbf16>
    %77 = arith.extf %76 : vector<1x32xbf16> to vector<1x32xf32>
    %78 = vector.shape_cast %77 : vector<1x32xf32> to vector<1x1x1x32xf32>
    %79 = vector.broadcast %74 : vector<2x16x16x1xf32> to vector<2x16x16x32xf32>
    %80 = vector.broadcast %78 : vector<1x1x1x32xf32> to vector<2x16x16x32xf32>
    %81 = arith.mulf %79, %80 : vector<2x16x16x32xf32>
    %82 = arith.addf %73, %81 : vector<2x16x16x32xf32>
    %c0_22 = arith.constant 0 : index
    %c0_23 = arith.constant 0 : index
    %83 = vector.load %arg3[%c0_22, %c0_23] : memref<2x32xf32, #tpu.memory_space<vmem>>, vector<1x32xf32>
    %84 = vector.shape_cast %83 : vector<1x32xf32> to vector<32xf32>
    %85 = vector.shape_cast %84 : vector<32xf32> to vector<1x1x1x32xf32>
    %86 = vector.broadcast %85 : vector<1x1x1x32xf32> to vector<2x16x16x32xf32>
    %87 = arith.mulf %82, %86 : vector<2x16x16x32xf32>
    %c1_24 = arith.constant 1 : index
    %c0_25 = arith.constant 0 : index
    %88 = vector.load %arg3[%c1_24, %c0_25] : memref<2x32xf32, #tpu.memory_space<vmem>>, vector<1x32xf32>
    %89 = vector.shape_cast %88 : vector<1x32xf32> to vector<32xf32>
    %90 = vector.shape_cast %89 : vector<32xf32> to vector<1x1x1x32xf32>
    %91 = vector.broadcast %90 : vector<1x1x1x32xf32> to vector<2x16x16x32xf32>
    %92 = arith.addf %87, %91 : vector<2x16x16x32xf32>
    %cst_26 = arith.constant 0.000000e+00 : f32
    %93 = vector.broadcast %cst_26 : f32 to vector<2x16x16x32xf32>
    %94 = arith.maximumf %92, %93 : vector<2x16x16x32xf32>
    %95 = arith.truncf %94 : vector<2x16x16x32xf32> to vector<2x16x16x32xbf16>
    %96 = vector.shape_cast %95 : vector<2x16x16x32xbf16> to vector<2x8x2x16x32xbf16>
    %cst_27 = arith.constant dense<0xFF80> : vector<2x8x16x32xbf16>
    %97 = vector.multi_reduction <maximumf>, %96, %cst_27 [2] : vector<2x8x2x16x32xbf16> to vector<2x8x16x32xbf16>
    %98 = vector.shape_cast %97 : vector<2x8x16x32xbf16> to vector<2x8x8x2x32xbf16>
    %cst_28 = arith.constant dense<0xFF80> : vector<2x8x8x32xbf16>
    %99 = vector.multi_reduction <maximumf>, %98, %cst_28 [3] : vector<2x8x8x2x32xbf16> to vector<2x8x8x32xbf16>
    %cst_29 = arith.constant 0.000000e+00 : bf16
    %100 = vector.broadcast %cst_29 : bf16 to vector<2x10x17x32xbf16>
    %c0_30 = arith.constant 0 : index
    %c0_31 = arith.constant 0 : index
    %c0_32 = arith.constant 0 : index
    %c0_33 = arith.constant 0 : index
    %101 = vector.load %arg13[%c0_30, %c0_31, %c0_32, %c0_33] : memref<2x10x17x32xbf16, #tpu.memory_space<vmem>>, vector<2x10x17x32xbf16>
    tpu.vector_store %arg13[%c0_30, %c0_31, %c0_32, %c0_33], %100 {strides = array<i32>} : memref<2x10x17x32xbf16, #tpu.memory_space<vmem>>, vector<2x10x17x32xbf16>,
    %c0_34 = arith.constant 0 : index
    %c1_35 = arith.constant 1 : index
    %c8_36 = arith.constant 8 : index
    %c0_37 = arith.constant 0 : index
    %102 = vector.load %arg13[%c0_34, %c1_35, %c8_36, %c0_37] : memref<2x10x17x32xbf16, #tpu.memory_space<vmem>>, vector<2x8x8x32xbf16>
    tpu.vector_store %arg13[%c0_34, %c1_35, %c8_36, %c0_37], %99 {strides = array<i32>} : memref<2x10x17x32xbf16, #tpu.memory_space<vmem>>, vector<2x8x8x32xbf16>,
    %c0_38 = arith.constant 0 : index
    %c0_39 = arith.constant 0 : index
    %c0_40 = arith.constant 0 : index
    %c0_41 = arith.constant 0 : index
    %103 = vector.load %arg13[%c0_38, %c0_39, %c0_40, %c0_41] : memref<2x10x17x32xbf16, #tpu.memory_space<vmem>>, vector<2x10x17x32xbf16>
    %cst_42 = arith.constant 0.000000e+00 : f32
    %104 = vector.broadcast %cst_42 : f32 to vector<128x64xf32>
    %105 = vector.extract_strided_slice %103 {offsets = [0, 0, 7, 0], sizes = [2, 8, 8, 32], strides = [1, 1, 1, 1]} : vector<2x10x17x32xbf16> to vector<2x8x8x32xbf16>
    %106 = vector.shape_cast %105 : vector<2x8x8x32xbf16> to vector<128x32xbf16>
    %c0_43 = arith.constant 0 : index
    %c0_44 = arith.constant 0 : index
    %c0_45 = arith.constant 0 : index
    %107 = vector.load %arg4[%c0_43, %c0_44, %c0_45] : memref<9x32x64xbf16, #tpu.memory_space<vmem>>, vector<1x32x64xbf16>
    %108 = vector.shape_cast %107 : vector<1x32x64xbf16> to vector<32x64xbf16>
    %cst_46 = arith.constant dense<0.000000e+00> : vector<128x64xf32>
    %109 = tpu.matmul %106, %108, %cst_46 {dimension_numbers = #tpu.dot_dimension_numbers<[1], [0], [0], [1], [0, 0, 1, 1], [], []>} : vector<128x32xbf16>, vector<32x64xbf16>, vector<128x64xf32> -> vector<128x64xf32>
    %110 = arith.addf %104, %109 : vector<128x64xf32>
    %111 = vector.extract_strided_slice %103 {offsets = [0, 0, 8, 0], sizes = [2, 8, 8, 32], strides = [1, 1, 1, 1]} : vector<2x10x17x32xbf16> to vector<2x8x8x32xbf16>
    %112 = vector.shape_cast %111 : vector<2x8x8x32xbf16> to vector<128x32xbf16>
    %c1_47 = arith.constant 1 : index
    %c0_48 = arith.constant 0 : index
    %c0_49 = arith.constant 0 : index
    %113 = vector.load %arg4[%c1_47, %c0_48, %c0_49] : memref<9x32x64xbf16, #tpu.memory_space<vmem>>, vector<1x32x64xbf16>
    %114 = vector.shape_cast %113 : vector<1x32x64xbf16> to vector<32x64xbf16>
    %cst_50 = arith.constant dense<0.000000e+00> : vector<128x64xf32>
    %115 = tpu.matmul %112, %114, %cst_50 {dimension_numbers = #tpu.dot_dimension_numbers<[1], [0], [0], [1], [0, 0, 1, 1], [], []>} : vector<128x32xbf16>, vector<32x64xbf16>, vector<128x64xf32> -> vector<128x64xf32>
    %116 = arith.addf %110, %115 : vector<128x64xf32>
    %117 = vector.extract_strided_slice %103 {offsets = [0, 0, 9, 0], sizes = [2, 8, 8, 32], strides = [1, 1, 1, 1]} : vector<2x10x17x32xbf16> to vector<2x8x8x32xbf16>
    %118 = vector.shape_cast %117 : vector<2x8x8x32xbf16> to vector<128x32xbf16>
    %c2_51 = arith.constant 2 : index
    %c0_52 = arith.constant 0 : index
    %c0_53 = arith.constant 0 : index
    %119 = vector.load %arg4[%c2_51, %c0_52, %c0_53] : memref<9x32x64xbf16, #tpu.memory_space<vmem>>, vector<1x32x64xbf16>
    %120 = vector.shape_cast %119 : vector<1x32x64xbf16> to vector<32x64xbf16>
    %cst_54 = arith.constant dense<0.000000e+00> : vector<128x64xf32>
    %121 = tpu.matmul %118, %120, %cst_54 {dimension_numbers = #tpu.dot_dimension_numbers<[1], [0], [0], [1], [0, 0, 1, 1], [], []>} : vector<128x32xbf16>, vector<32x64xbf16>, vector<128x64xf32> -> vector<128x64xf32>
    %122 = arith.addf %116, %121 : vector<128x64xf32>
    %123 = vector.extract_strided_slice %103 {offsets = [0, 1, 7, 0], sizes = [2, 8, 8, 32], strides = [1, 1, 1, 1]} : vector<2x10x17x32xbf16> to vector<2x8x8x32xbf16>
    %124 = vector.shape_cast %123 : vector<2x8x8x32xbf16> to vector<128x32xbf16>
    %c3_55 = arith.constant 3 : index
    %c0_56 = arith.constant 0 : index
    %c0_57 = arith.constant 0 : index
    %125 = vector.load %arg4[%c3_55, %c0_56, %c0_57] : memref<9x32x64xbf16, #tpu.memory_space<vmem>>, vector<1x32x64xbf16>
    %126 = vector.shape_cast %125 : vector<1x32x64xbf16> to vector<32x64xbf16>
    %cst_58 = arith.constant dense<0.000000e+00> : vector<128x64xf32>
    %127 = tpu.matmul %124, %126, %cst_58 {dimension_numbers = #tpu.dot_dimension_numbers<[1], [0], [0], [1], [0, 0, 1, 1], [], []>} : vector<128x32xbf16>, vector<32x64xbf16>, vector<128x64xf32> -> vector<128x64xf32>
    %128 = arith.addf %122, %127 : vector<128x64xf32>
    %129 = vector.extract_strided_slice %103 {offsets = [0, 1, 8, 0], sizes = [2, 8, 8, 32], strides = [1, 1, 1, 1]} : vector<2x10x17x32xbf16> to vector<2x8x8x32xbf16>
    %130 = vector.shape_cast %129 : vector<2x8x8x32xbf16> to vector<128x32xbf16>
    %c4_59 = arith.constant 4 : index
    %c0_60 = arith.constant 0 : index
    %c0_61 = arith.constant 0 : index
    %131 = vector.load %arg4[%c4_59, %c0_60, %c0_61] : memref<9x32x64xbf16, #tpu.memory_space<vmem>>, vector<1x32x64xbf16>
    %132 = vector.shape_cast %131 : vector<1x32x64xbf16> to vector<32x64xbf16>
    %cst_62 = arith.constant dense<0.000000e+00> : vector<128x64xf32>
    %133 = tpu.matmul %130, %132, %cst_62 {dimension_numbers = #tpu.dot_dimension_numbers<[1], [0], [0], [1], [0, 0, 1, 1], [], []>} : vector<128x32xbf16>, vector<32x64xbf16>, vector<128x64xf32> -> vector<128x64xf32>
    %134 = arith.addf %128, %133 : vector<128x64xf32>
    %135 = vector.extract_strided_slice %103 {offsets = [0, 1, 9, 0], sizes = [2, 8, 8, 32], strides = [1, 1, 1, 1]} : vector<2x10x17x32xbf16> to vector<2x8x8x32xbf16>
    %136 = vector.shape_cast %135 : vector<2x8x8x32xbf16> to vector<128x32xbf16>
    %c5_63 = arith.constant 5 : index
    %c0_64 = arith.constant 0 : index
    %c0_65 = arith.constant 0 : index
    %137 = vector.load %arg4[%c5_63, %c0_64, %c0_65] : memref<9x32x64xbf16, #tpu.memory_space<vmem>>, vector<1x32x64xbf16>
    %138 = vector.shape_cast %137 : vector<1x32x64xbf16> to vector<32x64xbf16>
    %cst_66 = arith.constant dense<0.000000e+00> : vector<128x64xf32>
    %139 = tpu.matmul %136, %138, %cst_66 {dimension_numbers = #tpu.dot_dimension_numbers<[1], [0], [0], [1], [0, 0, 1, 1], [], []>} : vector<128x32xbf16>, vector<32x64xbf16>, vector<128x64xf32> -> vector<128x64xf32>
    %140 = arith.addf %134, %139 : vector<128x64xf32>
    %141 = vector.extract_strided_slice %103 {offsets = [0, 2, 7, 0], sizes = [2, 8, 8, 32], strides = [1, 1, 1, 1]} : vector<2x10x17x32xbf16> to vector<2x8x8x32xbf16>
    %142 = vector.shape_cast %141 : vector<2x8x8x32xbf16> to vector<128x32xbf16>
    %c6_67 = arith.constant 6 : index
    %c0_68 = arith.constant 0 : index
    %c0_69 = arith.constant 0 : index
    %143 = vector.load %arg4[%c6_67, %c0_68, %c0_69] : memref<9x32x64xbf16, #tpu.memory_space<vmem>>, vector<1x32x64xbf16>
    %144 = vector.shape_cast %143 : vector<1x32x64xbf16> to vector<32x64xbf16>
    %cst_70 = arith.constant dense<0.000000e+00> : vector<128x64xf32>
    %145 = tpu.matmul %142, %144, %cst_70 {dimension_numbers = #tpu.dot_dimension_numbers<[1], [0], [0], [1], [0, 0, 1, 1], [], []>} : vector<128x32xbf16>, vector<32x64xbf16>, vector<128x64xf32> -> vector<128x64xf32>
    %146 = arith.addf %140, %145 : vector<128x64xf32>
    %147 = vector.extract_strided_slice %103 {offsets = [0, 2, 8, 0], sizes = [2, 8, 8, 32], strides = [1, 1, 1, 1]} : vector<2x10x17x32xbf16> to vector<2x8x8x32xbf16>
    %148 = vector.shape_cast %147 : vector<2x8x8x32xbf16> to vector<128x32xbf16>
    %c7_71 = arith.constant 7 : index
    %c0_72 = arith.constant 0 : index
    %c0_73 = arith.constant 0 : index
    %149 = vector.load %arg4[%c7_71, %c0_72, %c0_73] : memref<9x32x64xbf16, #tpu.memory_space<vmem>>, vector<1x32x64xbf16>
    %150 = vector.shape_cast %149 : vector<1x32x64xbf16> to vector<32x64xbf16>
    %cst_74 = arith.constant dense<0.000000e+00> : vector<128x64xf32>
    %151 = tpu.matmul %148, %150, %cst_74 {dimension_numbers = #tpu.dot_dimension_numbers<[1], [0], [0], [1], [0, 0, 1, 1], [], []>} : vector<128x32xbf16>, vector<32x64xbf16>, vector<128x64xf32> -> vector<128x64xf32>
    %152 = arith.addf %146, %151 : vector<128x64xf32>
    %153 = vector.extract_strided_slice %103 {offsets = [0, 2, 9, 0], sizes = [2, 8, 8, 32], strides = [1, 1, 1, 1]} : vector<2x10x17x32xbf16> to vector<2x8x8x32xbf16>
    %154 = vector.shape_cast %153 : vector<2x8x8x32xbf16> to vector<128x32xbf16>
    %c8_75 = arith.constant 8 : index
    %c0_76 = arith.constant 0 : index
    %c0_77 = arith.constant 0 : index
    %155 = vector.load %arg4[%c8_75, %c0_76, %c0_77] : memref<9x32x64xbf16, #tpu.memory_space<vmem>>, vector<1x32x64xbf16>
    %156 = vector.shape_cast %155 : vector<1x32x64xbf16> to vector<32x64xbf16>
    %cst_78 = arith.constant dense<0.000000e+00> : vector<128x64xf32>
    %157 = tpu.matmul %154, %156, %cst_78 {dimension_numbers = #tpu.dot_dimension_numbers<[1], [0], [0], [1], [0, 0, 1, 1], [], []>} : vector<128x32xbf16>, vector<32x64xbf16>, vector<128x64xf32> -> vector<128x64xf32>
    %158 = arith.addf %152, %157 : vector<128x64xf32>
    %c0_79 = arith.constant 0 : index
    %c0_80 = arith.constant 0 : index
    %159 = vector.load %arg5[%c0_79, %c0_80] : memref<2x64xf32, #tpu.memory_space<vmem>>, vector<1x64xf32>
    %160 = vector.shape_cast %159 : vector<1x64xf32> to vector<64xf32>
    %161 = vector.shape_cast %160 : vector<64xf32> to vector<1x64xf32>
    %162 = vector.broadcast %161 : vector<1x64xf32> to vector<128x64xf32>
    %163 = arith.mulf %158, %162 : vector<128x64xf32>
    %c1_81 = arith.constant 1 : index
    %c0_82 = arith.constant 0 : index
    %164 = vector.load %arg5[%c1_81, %c0_82] : memref<2x64xf32, #tpu.memory_space<vmem>>, vector<1x64xf32>
    %165 = vector.shape_cast %164 : vector<1x64xf32> to vector<64xf32>
    %166 = vector.shape_cast %165 : vector<64xf32> to vector<1x64xf32>
    %167 = vector.broadcast %166 : vector<1x64xf32> to vector<128x64xf32>
    %168 = arith.addf %163, %167 : vector<128x64xf32>
    %cst_83 = arith.constant 0.000000e+00 : f32
    %169 = vector.broadcast %cst_83 : f32 to vector<128x64xf32>
    %170 = arith.maximumf %168, %169 : vector<128x64xf32>
    %171 = arith.truncf %170 : vector<128x64xf32> to vector<128x64xbf16>
    %172 = vector.shape_cast %171 : vector<128x64xbf16> to vector<2x8x8x64xbf16>
    %173 = vector.shape_cast %172 : vector<2x8x8x64xbf16> to vector<2x4x2x8x64xbf16>
    %cst_84 = arith.constant dense<0xFF80> : vector<2x4x8x64xbf16>
    %174 = vector.multi_reduction <maximumf>, %173, %cst_84 [2] : vector<2x4x2x8x64xbf16> to vector<2x4x8x64xbf16>
    %175 = vector.shape_cast %174 : vector<2x4x8x64xbf16> to vector<2x4x4x2x64xbf16>
    %cst_85 = arith.constant dense<0xFF80> : vector<2x4x4x64xbf16>
    %176 = vector.multi_reduction <maximumf>, %175, %cst_85 [3] : vector<2x4x4x2x64xbf16> to vector<2x4x4x64xbf16>
    %cst_86 = arith.constant 0.000000e+00 : bf16
    %177 = vector.broadcast %cst_86 : bf16 to vector<2x6x13x64xbf16>
    %c0_87 = arith.constant 0 : index
    %c0_88 = arith.constant 0 : index
    %c0_89 = arith.constant 0 : index
    %c0_90 = arith.constant 0 : index
    %178 = vector.load %arg14[%c0_87, %c0_88, %c0_89, %c0_90] : memref<2x6x13x64xbf16, #tpu.memory_space<vmem>>, vector<2x6x13x64xbf16>
    tpu.vector_store %arg14[%c0_87, %c0_88, %c0_89, %c0_90], %177 {strides = array<i32>} : memref<2x6x13x64xbf16, #tpu.memory_space<vmem>>, vector<2x6x13x64xbf16>,
    %c0_91 = arith.constant 0 : index
    %c1_92 = arith.constant 1 : index
    %c8_93 = arith.constant 8 : index
    %c0_94 = arith.constant 0 : index
    %179 = vector.load %arg14[%c0_91, %c1_92, %c8_93, %c0_94] : memref<2x6x13x64xbf16, #tpu.memory_space<vmem>>, vector<2x4x4x64xbf16>
    tpu.vector_store %arg14[%c0_91, %c1_92, %c8_93, %c0_94], %176 {strides = array<i32>} : memref<2x6x13x64xbf16, #tpu.memory_space<vmem>>, vector<2x4x4x64xbf16>,
    %c0_95 = arith.constant 0 : index
    %c0_96 = arith.constant 0 : index
    %c0_97 = arith.constant 0 : index
    %c0_98 = arith.constant 0 : index
    %180 = vector.load %arg14[%c0_95, %c0_96, %c0_97, %c0_98] : memref<2x6x13x64xbf16, #tpu.memory_space<vmem>>, vector<2x6x13x64xbf16>
    %cst_99 = arith.constant 0.000000e+00 : f32
    %181 = vector.broadcast %cst_99 : f32 to vector<32x128xf32>
    %182 = vector.extract_strided_slice %180 {offsets = [0, 0, 7, 0], sizes = [2, 4, 4, 64], strides = [1, 1, 1, 1]} : vector<2x6x13x64xbf16> to vector<2x4x4x64xbf16>
    %183 = vector.shape_cast %182 : vector<2x4x4x64xbf16> to vector<32x64xbf16>
    %c0_100 = arith.constant 0 : index
    %c0_101 = arith.constant 0 : index
    %c0_102 = arith.constant 0 : index
    %184 = vector.load %arg6[%c0_100, %c0_101, %c0_102] : memref<9x64x128xbf16, #tpu.memory_space<vmem>>, vector<1x64x128xbf16>
    %185 = vector.shape_cast %184 : vector<1x64x128xbf16> to vector<64x128xbf16>
    %cst_103 = arith.constant dense<0.000000e+00> : vector<32x128xf32>
    %186 = tpu.matmul %183, %185, %cst_103 {dimension_numbers = #tpu.dot_dimension_numbers<[1], [0], [0], [1], [0, 0, 1, 1], [], []>} : vector<32x64xbf16>, vector<64x128xbf16>, vector<32x128xf32> -> vector<32x128xf32>
    %187 = arith.addf %181, %186 : vector<32x128xf32>
    %188 = vector.extract_strided_slice %180 {offsets = [0, 0, 8, 0], sizes = [2, 4, 4, 64], strides = [1, 1, 1, 1]} : vector<2x6x13x64xbf16> to vector<2x4x4x64xbf16>
    %189 = vector.shape_cast %188 : vector<2x4x4x64xbf16> to vector<32x64xbf16>
    %c1_104 = arith.constant 1 : index
    %c0_105 = arith.constant 0 : index
    %c0_106 = arith.constant 0 : index
    %190 = vector.load %arg6[%c1_104, %c0_105, %c0_106] : memref<9x64x128xbf16, #tpu.memory_space<vmem>>, vector<1x64x128xbf16>
    %191 = vector.shape_cast %190 : vector<1x64x128xbf16> to vector<64x128xbf16>
    %cst_107 = arith.constant dense<0.000000e+00> : vector<32x128xf32>
    %192 = tpu.matmul %189, %191, %cst_107 {dimension_numbers = #tpu.dot_dimension_numbers<[1], [0], [0], [1], [0, 0, 1, 1], [], []>} : vector<32x64xbf16>, vector<64x128xbf16>, vector<32x128xf32> -> vector<32x128xf32>
    %193 = arith.addf %187, %192 : vector<32x128xf32>
    %194 = vector.extract_strided_slice %180 {offsets = [0, 0, 9, 0], sizes = [2, 4, 4, 64], strides = [1, 1, 1, 1]} : vector<2x6x13x64xbf16> to vector<2x4x4x64xbf16>
    %195 = vector.shape_cast %194 : vector<2x4x4x64xbf16> to vector<32x64xbf16>
    %c2_108 = arith.constant 2 : index
    %c0_109 = arith.constant 0 : index
    %c0_110 = arith.constant 0 : index
    %196 = vector.load %arg6[%c2_108, %c0_109, %c0_110] : memref<9x64x128xbf16, #tpu.memory_space<vmem>>, vector<1x64x128xbf16>
    %197 = vector.shape_cast %196 : vector<1x64x128xbf16> to vector<64x128xbf16>
    %cst_111 = arith.constant dense<0.000000e+00> : vector<32x128xf32>
    %198 = tpu.matmul %195, %197, %cst_111 {dimension_numbers = #tpu.dot_dimension_numbers<[1], [0], [0], [1], [0, 0, 1, 1], [], []>} : vector<32x64xbf16>, vector<64x128xbf16>, vector<32x128xf32> -> vector<32x128xf32>
    %199 = arith.addf %193, %198 : vector<32x128xf32>
    %200 = vector.extract_strided_slice %180 {offsets = [0, 1, 7, 0], sizes = [2, 4, 4, 64], strides = [1, 1, 1, 1]} : vector<2x6x13x64xbf16> to vector<2x4x4x64xbf16>
    %201 = vector.shape_cast %200 : vector<2x4x4x64xbf16> to vector<32x64xbf16>
    %c3_112 = arith.constant 3 : index
    %c0_113 = arith.constant 0 : index
    %c0_114 = arith.constant 0 : index
    %202 = vector.load %arg6[%c3_112, %c0_113, %c0_114] : memref<9x64x128xbf16, #tpu.memory_space<vmem>>, vector<1x64x128xbf16>
    %203 = vector.shape_cast %202 : vector<1x64x128xbf16> to vector<64x128xbf16>
    %cst_115 = arith.constant dense<0.000000e+00> : vector<32x128xf32>
    %204 = tpu.matmul %201, %203, %cst_115 {dimension_numbers = #tpu.dot_dimension_numbers<[1], [0], [0], [1], [0, 0, 1, 1], [], []>} : vector<32x64xbf16>, vector<64x128xbf16>, vector<32x128xf32> -> vector<32x128xf32>
    %205 = arith.addf %199, %204 : vector<32x128xf32>
    %206 = vector.extract_strided_slice %180 {offsets = [0, 1, 8, 0], sizes = [2, 4, 4, 64], strides = [1, 1, 1, 1]} : vector<2x6x13x64xbf16> to vector<2x4x4x64xbf16>
    %207 = vector.shape_cast %206 : vector<2x4x4x64xbf16> to vector<32x64xbf16>
    %c4_116 = arith.constant 4 : index
    %c0_117 = arith.constant 0 : index
    %c0_118 = arith.constant 0 : index
    %208 = vector.load %arg6[%c4_116, %c0_117, %c0_118] : memref<9x64x128xbf16, #tpu.memory_space<vmem>>, vector<1x64x128xbf16>
    %209 = vector.shape_cast %208 : vector<1x64x128xbf16> to vector<64x128xbf16>
    %cst_119 = arith.constant dense<0.000000e+00> : vector<32x128xf32>
    %210 = tpu.matmul %207, %209, %cst_119 {dimension_numbers = #tpu.dot_dimension_numbers<[1], [0], [0], [1], [0, 0, 1, 1], [], []>} : vector<32x64xbf16>, vector<64x128xbf16>, vector<32x128xf32> -> vector<32x128xf32>
    %211 = arith.addf %205, %210 : vector<32x128xf32>
    %212 = vector.extract_strided_slice %180 {offsets = [0, 1, 9, 0], sizes = [2, 4, 4, 64], strides = [1, 1, 1, 1]} : vector<2x6x13x64xbf16> to vector<2x4x4x64xbf16>
    %213 = vector.shape_cast %212 : vector<2x4x4x64xbf16> to vector<32x64xbf16>
    %c5_120 = arith.constant 5 : index
    %c0_121 = arith.constant 0 : index
    %c0_122 = arith.constant 0 : index
    %214 = vector.load %arg6[%c5_120, %c0_121, %c0_122] : memref<9x64x128xbf16, #tpu.memory_space<vmem>>, vector<1x64x128xbf16>
    %215 = vector.shape_cast %214 : vector<1x64x128xbf16> to vector<64x128xbf16>
    %cst_123 = arith.constant dense<0.000000e+00> : vector<32x128xf32>
    %216 = tpu.matmul %213, %215, %cst_123 {dimension_numbers = #tpu.dot_dimension_numbers<[1], [0], [0], [1], [0, 0, 1, 1], [], []>} : vector<32x64xbf16>, vector<64x128xbf16>, vector<32x128xf32> -> vector<32x128xf32>
    %217 = arith.addf %211, %216 : vector<32x128xf32>
    %218 = vector.extract_strided_slice %180 {offsets = [0, 2, 7, 0], sizes = [2, 4, 4, 64], strides = [1, 1, 1, 1]} : vector<2x6x13x64xbf16> to vector<2x4x4x64xbf16>
    %219 = vector.shape_cast %218 : vector<2x4x4x64xbf16> to vector<32x64xbf16>
    %c6_124 = arith.constant 6 : index
    %c0_125 = arith.constant 0 : index
    %c0_126 = arith.constant 0 : index
    %220 = vector.load %arg6[%c6_124, %c0_125, %c0_126] : memref<9x64x128xbf16, #tpu.memory_space<vmem>>, vector<1x64x128xbf16>
    %221 = vector.shape_cast %220 : vector<1x64x128xbf16> to vector<64x128xbf16>
    %cst_127 = arith.constant dense<0.000000e+00> : vector<32x128xf32>
    %222 = tpu.matmul %219, %221, %cst_127 {dimension_numbers = #tpu.dot_dimension_numbers<[1], [0], [0], [1], [0, 0, 1, 1], [], []>} : vector<32x64xbf16>, vector<64x128xbf16>, vector<32x128xf32> -> vector<32x128xf32>
    %223 = arith.addf %217, %222 : vector<32x128xf32>
    %224 = vector.extract_strided_slice %180 {offsets = [0, 2, 8, 0], sizes = [2, 4, 4, 64], strides = [1, 1, 1, 1]} : vector<2x6x13x64xbf16> to vector<2x4x4x64xbf16>
    %225 = vector.shape_cast %224 : vector<2x4x4x64xbf16> to vector<32x64xbf16>
    %c7_128 = arith.constant 7 : index
    %c0_129 = arith.constant 0 : index
    %c0_130 = arith.constant 0 : index
    %226 = vector.load %arg6[%c7_128, %c0_129, %c0_130] : memref<9x64x128xbf16, #tpu.memory_space<vmem>>, vector<1x64x128xbf16>
    %227 = vector.shape_cast %226 : vector<1x64x128xbf16> to vector<64x128xbf16>
    %cst_131 = arith.constant dense<0.000000e+00> : vector<32x128xf32>
    %228 = tpu.matmul %225, %227, %cst_131 {dimension_numbers = #tpu.dot_dimension_numbers<[1], [0], [0], [1], [0, 0, 1, 1], [], []>} : vector<32x64xbf16>, vector<64x128xbf16>, vector<32x128xf32> -> vector<32x128xf32>
    %229 = arith.addf %223, %228 : vector<32x128xf32>
    %230 = vector.extract_strided_slice %180 {offsets = [0, 2, 9, 0], sizes = [2, 4, 4, 64], strides = [1, 1, 1, 1]} : vector<2x6x13x64xbf16> to vector<2x4x4x64xbf16>
    %231 = vector.shape_cast %230 : vector<2x4x4x64xbf16> to vector<32x64xbf16>
    %c8_132 = arith.constant 8 : index
    %c0_133 = arith.constant 0 : index
    %c0_134 = arith.constant 0 : index
    %232 = vector.load %arg6[%c8_132, %c0_133, %c0_134] : memref<9x64x128xbf16, #tpu.memory_space<vmem>>, vector<1x64x128xbf16>
    %233 = vector.shape_cast %232 : vector<1x64x128xbf16> to vector<64x128xbf16>
    %cst_135 = arith.constant dense<0.000000e+00> : vector<32x128xf32>
    %234 = tpu.matmul %231, %233, %cst_135 {dimension_numbers = #tpu.dot_dimension_numbers<[1], [0], [0], [1], [0, 0, 1, 1], [], []>} : vector<32x64xbf16>, vector<64x128xbf16>, vector<32x128xf32> -> vector<32x128xf32>
    %235 = arith.addf %229, %234 : vector<32x128xf32>
    %c0_136 = arith.constant 0 : index
    %c0_137 = arith.constant 0 : index
    %236 = vector.load %arg7[%c0_136, %c0_137] : memref<2x128xf32, #tpu.memory_space<vmem>>, vector<1x128xf32>
    %237 = vector.shape_cast %236 : vector<1x128xf32> to vector<128xf32>
    %238 = vector.shape_cast %237 : vector<128xf32> to vector<1x128xf32>
    %239 = vector.broadcast %238 : vector<1x128xf32> to vector<32x128xf32>
    %240 = arith.mulf %235, %239 : vector<32x128xf32>
    %c1_138 = arith.constant 1 : index
    %c0_139 = arith.constant 0 : index
    %241 = vector.load %arg7[%c1_138, %c0_139] : memref<2x128xf32, #tpu.memory_space<vmem>>, vector<1x128xf32>
    %242 = vector.shape_cast %241 : vector<1x128xf32> to vector<128xf32>
    %243 = vector.shape_cast %242 : vector<128xf32> to vector<1x128xf32>
    %244 = vector.broadcast %243 : vector<1x128xf32> to vector<32x128xf32>
    %245 = arith.addf %240, %244 : vector<32x128xf32>
    %cst_140 = arith.constant 0.000000e+00 : f32
    %246 = vector.broadcast %cst_140 : f32 to vector<32x128xf32>
    %247 = arith.maximumf %245, %246 : vector<32x128xf32>
    %248 = arith.truncf %247 : vector<32x128xf32> to vector<32x128xbf16>
    %249 = vector.shape_cast %248 : vector<32x128xbf16> to vector<2x4x4x128xbf16>
    %250 = vector.extract_strided_slice %249 {offsets = [0, 0, 0, 0], sizes = [2, 1, 1, 128], strides = [1, 1, 1, 1]} : vector<2x4x4x128xbf16> to vector<2x1x1x128xbf16>
    %251 = vector.shape_cast %250 : vector<2x1x1x128xbf16> to vector<2x128xbf16>
    %252 = vector.extract_strided_slice %249 {offsets = [0, 0, 1, 0], sizes = [2, 1, 1, 128], strides = [1, 1, 1, 1]} : vector<2x4x4x128xbf16> to vector<2x1x1x128xbf16>
    %253 = vector.shape_cast %252 : vector<2x1x1x128xbf16> to vector<2x128xbf16>
    %254 = vector.extract_strided_slice %249 {offsets = [0, 0, 2, 0], sizes = [2, 1, 1, 128], strides = [1, 1, 1, 1]} : vector<2x4x4x128xbf16> to vector<2x1x1x128xbf16>
    %255 = vector.shape_cast %254 : vector<2x1x1x128xbf16> to vector<2x128xbf16>
    %256 = vector.extract_strided_slice %249 {offsets = [0, 0, 3, 0], sizes = [2, 1, 1, 128], strides = [1, 1, 1, 1]} : vector<2x4x4x128xbf16> to vector<2x1x1x128xbf16>
    %257 = vector.shape_cast %256 : vector<2x1x1x128xbf16> to vector<2x128xbf16>
    %258 = vector.extract_strided_slice %249 {offsets = [0, 1, 0, 0], sizes = [2, 1, 1, 128], strides = [1, 1, 1, 1]} : vector<2x4x4x128xbf16> to vector<2x1x1x128xbf16>
    %259 = vector.shape_cast %258 : vector<2x1x1x128xbf16> to vector<2x128xbf16>
    %260 = vector.extract_strided_slice %249 {offsets = [0, 1, 1, 0], sizes = [2, 1, 1, 128], strides = [1, 1, 1, 1]} : vector<2x4x4x128xbf16> to vector<2x1x1x128xbf16>
    %261 = vector.shape_cast %260 : vector<2x1x1x128xbf16> to vector<2x128xbf16>
    %262 = vector.extract_strided_slice %249 {offsets = [0, 1, 2, 0], sizes = [2, 1, 1, 128], strides = [1, 1, 1, 1]} : vector<2x4x4x128xbf16> to vector<2x1x1x128xbf16>
    %263 = vector.shape_cast %262 : vector<2x1x1x128xbf16> to vector<2x128xbf16>
    %264 = vector.extract_strided_slice %249 {offsets = [0, 1, 3, 0], sizes = [2, 1, 1, 128], strides = [1, 1, 1, 1]} : vector<2x4x4x128xbf16> to vector<2x1x1x128xbf16>
    %265 = vector.shape_cast %264 : vector<2x1x1x128xbf16> to vector<2x128xbf16>
    %266 = vector.extract_strided_slice %249 {offsets = [0, 2, 0, 0], sizes = [2, 1, 1, 128], strides = [1, 1, 1, 1]} : vector<2x4x4x128xbf16> to vector<2x1x1x128xbf16>
    %267 = vector.shape_cast %266 : vector<2x1x1x128xbf16> to vector<2x128xbf16>
    %268 = vector.extract_strided_slice %249 {offsets = [0, 2, 1, 0], sizes = [2, 1, 1, 128], strides = [1, 1, 1, 1]} : vector<2x4x4x128xbf16> to vector<2x1x1x128xbf16>
    %269 = vector.shape_cast %268 : vector<2x1x1x128xbf16> to vector<2x128xbf16>
    %270 = vector.extract_strided_slice %249 {offsets = [0, 2, 2, 0], sizes = [2, 1, 1, 128], strides = [1, 1, 1, 1]} : vector<2x4x4x128xbf16> to vector<2x1x1x128xbf16>
    %271 = vector.shape_cast %270 : vector<2x1x1x128xbf16> to vector<2x128xbf16>
    %272 = vector.extract_strided_slice %249 {offsets = [0, 2, 3, 0], sizes = [2, 1, 1, 128], strides = [1, 1, 1, 1]} : vector<2x4x4x128xbf16> to vector<2x1x1x128xbf16>
    %273 = vector.shape_cast %272 : vector<2x1x1x128xbf16> to vector<2x128xbf16>
    %274 = vector.extract_strided_slice %249 {offsets = [0, 3, 0, 0], sizes = [2, 1, 1, 128], strides = [1, 1, 1, 1]} : vector<2x4x4x128xbf16> to vector<2x1x1x128xbf16>
    %275 = vector.shape_cast %274 : vector<2x1x1x128xbf16> to vector<2x128xbf16>
    %276 = vector.extract_strided_slice %249 {offsets = [0, 3, 1, 0], sizes = [2, 1, 1, 128], strides = [1, 1, 1, 1]} : vector<2x4x4x128xbf16> to vector<2x1x1x128xbf16>
    %277 = vector.shape_cast %276 : vector<2x1x1x128xbf16> to vector<2x128xbf16>
    %278 = vector.extract_strided_slice %249 {offsets = [0, 3, 2, 0], sizes = [2, 1, 1, 128], strides = [1, 1, 1, 1]} : vector<2x4x4x128xbf16> to vector<2x1x1x128xbf16>
    %279 = vector.shape_cast %278 : vector<2x1x1x128xbf16> to vector<2x128xbf16>
    %280 = vector.extract_strided_slice %249 {offsets = [0, 3, 3, 0], sizes = [2, 1, 1, 128], strides = [1, 1, 1, 1]} : vector<2x4x4x128xbf16> to vector<2x1x1x128xbf16>
    %281 = vector.shape_cast %280 : vector<2x1x1x128xbf16> to vector<2x128xbf16>
    %282 = tpu.concatenate %251, %253, %255, %257, %259, %261, %263, %265, %267, %269, %271, %273, %275, %277, %279, %281 in 1 : vector<2x128xbf16>, vector<2x128xbf16>, vector<2x128xbf16>, vector<2x128xbf16>, vector<2x128xbf16>, vector<2x128xbf16>, vector<2x128xbf16>, vector<2x128xbf16>, vector<2x128xbf16>, vector<2x128xbf16>, vector<2x128xbf16>, vector<2x128xbf16>, vector<2x128xbf16>, vector<2x128xbf16>, vector<2x128xbf16>, vector<2x128xbf16> -> vector<2x2048xbf16>
    %c0_141 = arith.constant 0 : index
    %c0_142 = arith.constant 0 : index
    %283 = vector.load %arg8[%c0_141, %c0_142] : memref<2048x256xbf16, #tpu.memory_space<vmem>>, vector<2048x256xbf16>
    %cst_143 = arith.constant dense<0.000000e+00> : vector<2x256xf32>
    %284 = tpu.matmul %282, %283, %cst_143 {dimension_numbers = #tpu.dot_dimension_numbers<[1], [0], [0], [1], [0, 0, 1, 1], [], []>} : vector<2x2048xbf16>, vector<2048x256xbf16>, vector<2x256xf32> -> vector<2x256xf32>
    %c0_144 = arith.constant 0 : index
    %c0_145 = arith.constant 0 : index
    %285 = vector.load %arg9[%c0_144, %c0_145] : memref<1x256xf32, #tpu.memory_space<vmem>>, vector<1x256xf32>
    %286 = vector.broadcast %285 : vector<1x256xf32> to vector<2x256xf32>
    %287 = arith.addf %284, %286 : vector<2x256xf32>
    %cst_146 = arith.constant 0.000000e+00 : f32
    %288 = vector.broadcast %cst_146 : f32 to vector<2x256xf32>
    %289 = arith.maximumf %287, %288 : vector<2x256xf32>
    %290 = arith.truncf %289 : vector<2x256xf32> to vector<2x256xbf16>
    %c0_147 = arith.constant 0 : index
    %c0_148 = arith.constant 0 : index
    %291 = vector.load %arg10[%c0_147, %c0_148] : memref<256x3xbf16, #tpu.memory_space<vmem>>, vector<256x3xbf16>
    %cst_149 = arith.constant dense<0.000000e+00> : vector<2x3xf32>
    %292 = tpu.matmul %290, %291, %cst_149 {dimension_numbers = #tpu.dot_dimension_numbers<[1], [0], [0], [1], [0, 0, 1, 1], [], []>} : vector<2x256xbf16>, vector<256x3xbf16>, vector<2x3xf32> -> vector<2x3xf32>
    %c0_150 = arith.constant 0 : index
    %c0_151 = arith.constant 0 : index
    %293 = vector.load %arg11[%c0_150, %c0_151] : memref<1x3xf32, #tpu.memory_space<vmem>>, vector<1x3xf32>
    %294 = vector.broadcast %293 : vector<1x3xf32> to vector<2x3xf32>
    %295 = arith.addf %292, %294 : vector<2x3xf32>
    %c0_152 = arith.constant 0 : index
    %c0_153 = arith.constant 0 : index
    %296 = vector.load %arg12[%c0_152, %c0_153] : memref<2x3xf32, #tpu.memory_space<vmem>>, vector<2x3xf32>
    tpu.vector_store %arg12[%c0_152, %c0_153], %295 {strides = array<i32>} : memref<2x3xf32, #tpu.memory_space<vmem>>, vector<2x3xf32>,
    return
  }
  func.func @transform_0(%arg0: i32) -> (i32, i32, i32, i32) {
    %c0_i32 = arith.constant 0 : i32
    %c0_i32_0 = arith.constant 0 : i32
    %c0_i32_1 = arith.constant 0 : i32
    %c0_i32_2 = arith.constant 0 : i32
    return %arg0, %c0_i32, %c0_i32_0, %c0_i32_1 : i32, i32, i32, i32
  }
  func.func @transform_1(%arg0: i32) -> (i32, i32, i32) {
    %c0_i32 = arith.constant 0 : i32
    %c0_i32_0 = arith.constant 0 : i32
    %c0_i32_1 = arith.constant 0 : i32
    %c0_i32_2 = arith.constant 0 : i32
    return %c0_i32, %c0_i32_0, %c0_i32_1 : i32, i32, i32
  }
  func.func @transform_2(%arg0: i32) -> (i32, i32) {
    %c0_i32 = arith.constant 0 : i32
    %c0_i32_0 = arith.constant 0 : i32
    %c0_i32_1 = arith.constant 0 : i32
    return %c0_i32, %c0_i32_0 : i32, i32
  }
  func.func @transform_3(%arg0: i32) -> (i32, i32, i32) {
    %c0_i32 = arith.constant 0 : i32
    %c0_i32_0 = arith.constant 0 : i32
    %c0_i32_1 = arith.constant 0 : i32
    %c0_i32_2 = arith.constant 0 : i32
    return %c0_i32, %c0_i32_0, %c0_i32_1 : i32, i32, i32
  }
  func.func @transform_4(%arg0: i32) -> (i32, i32) {
    %c0_i32 = arith.constant 0 : i32
    %c0_i32_0 = arith.constant 0 : i32
    %c0_i32_1 = arith.constant 0 : i32
    return %c0_i32, %c0_i32_0 : i32, i32
  }
  func.func @transform_5(%arg0: i32) -> (i32, i32, i32) {
    %c0_i32 = arith.constant 0 : i32
    %c0_i32_0 = arith.constant 0 : i32
    %c0_i32_1 = arith.constant 0 : i32
    %c0_i32_2 = arith.constant 0 : i32
    return %c0_i32, %c0_i32_0, %c0_i32_1 : i32, i32, i32
  }
  func.func @transform_6(%arg0: i32) -> (i32, i32) {
    %c0_i32 = arith.constant 0 : i32
    %c0_i32_0 = arith.constant 0 : i32
    %c0_i32_1 = arith.constant 0 : i32
    return %c0_i32, %c0_i32_0 : i32, i32
  }
  func.func @transform_7(%arg0: i32) -> (i32, i32) {
    %c0_i32 = arith.constant 0 : i32
    %c0_i32_0 = arith.constant 0 : i32
    %c0_i32_1 = arith.constant 0 : i32
    return %c0_i32, %c0_i32_0 : i32, i32
  }
  func.func @transform_8(%arg0: i32) -> (i32, i32) {
    %c0_i32 = arith.constant 0 : i32
    %c0_i32_0 = arith.constant 0 : i32
    %c0_i32_1 = arith.constant 0 : i32
    return %c0_i32, %c0_i32_0 : i32, i32
  }
  func.func @transform_9(%arg0: i32) -> (i32, i32) {
    %c0_i32 = arith.constant 0 : i32
    %c0_i32_0 = arith.constant 0 : i32
    %c0_i32_1 = arith.constant 0 : i32
    return %c0_i32, %c0_i32_0 : i32, i32
  }
  func.func @transform_10(%arg0: i32) -> (i32, i32) {
    %c0_i32 = arith.constant 0 : i32
    %c0_i32_0 = arith.constant 0 : i32
    %c0_i32_1 = arith.constant 0 : i32
    return %c0_i32, %c0_i32_0 : i32, i32
  }
  func.func @transform_11(%arg0: i32) -> (i32, i32) {
    %c0_i32 = arith.constant 0 : i32
    %c0_i32_0 = arith.constant 0 : i32
    return %arg0, %c0_i32 : i32, i32
  }
}

</mosaic_0001>

<llo_original>
// kernel: simple_cnn_sb_forward.1
$region0: #{simple_cnn_sb_forward.1}
  #allocation0 [shape = 'u32[]', space=smem, size = 0x4, offset = 0x4, fixed_abs, tag = 'smem constant byte address 0x4 - core index']
  #allocation1 [shape = 'u32[72,128]{1,0:T(1,128)}', space=vmem, size = 0x9000, scoped, tag = 'internal scratch']
  #allocation2 [shape = 'bf16[2,10,17,32]{3,2,1,0:T(8,128)(2,1)}', space=vmem, size = 0x1e000, scoped, tag = 'scratch operand']
  #allocation3 [shape = 'bf16[2,6,13,64]{3,2,1,0:T(8,128)(2,1)}', space=vmem, size = 0xc000, scoped, tag = 'scratch operand']
  %s0 = inlined_call_operand.vmem [shape: f32[2,18,18,1], index: 0, kind: input, shape index: {}]
  %s1 = inlined_call_operand.vmem [shape: bf16[9,1,32], index: 1, kind: input, shape index: {}]
  %s2 = inlined_call_operand.vmem [shape: f32[2,32], index: 2, kind: input, shape index: {}]
  %s3 = inlined_call_operand.vmem [shape: bf16[9,32,64], index: 3, kind: input, shape index: {}]
  %s4 = inlined_call_operand.vmem [shape: f32[2,64], index: 4, kind: input, shape index: {}]
  %s5 = inlined_call_operand.vmem [shape: bf16[9,64,128], index: 5, kind: input, shape index: {}]
  %s6 = inlined_call_operand.vmem [shape: f32[2,128], index: 6, kind: input, shape index: {}]
  %s7 = inlined_call_operand.hbm [shape: bf16[2048,256], index: 7, kind: input, shape index: {}]
  %s8 = inlined_call_operand.vmem [shape: f32[1,256], index: 8, kind: input, shape index: {}]
  %s9 = inlined_call_operand.vmem [shape: bf16[256,3], index: 9, kind: input, shape index: {}]
  %s10 = inlined_call_operand.vmem [shape: f32[1,3], index: 10, kind: input, shape index: {}]
  %s11 = inlined_call_operand.hbm [shape: f32[2,3], index: 11, kind: output, shape index: {}]
  %s12 = sld [smem:[#allocation0]]
  $region58: #{simple_cnn_sb_forward.1} parent=0
    _
  %s14 = ssub.s32 1, %s12
  %s15 = scalar_select 0, %s14, %s12
  $region1: #{simple_cnn_sb_forward.1} parent=0
    #allocation4 [shape = 'u8[1048576]{0}', space=vmem, size = 0x100000, scoped, tag = 'input window, operand 7, single buffered']
    #allocation5 [shape = 's32[1]{0}', space=sflag, size = 0x4, scoped, tag = 'scoped memory for simple_cnn_sb_forward.1']
    #allocation6 [shape = 's32[1]{0}', space=sflag, size = 0x4, scoped, tag = 'scoped memory for simple_cnn_sb_forward.1']
    #allocation7 [shape = 'u8[1024]{0}', space=vmem, size = 0x400, scoped, tag = 'output window, operand 0, single buffered']
    %16 = vsyncpa [#allocation5], 0
    %17 = vsyncpa [#allocation6], 0
    // Predicated region
    $region2: #{simple_cnn_sb_forward.1} parent=1 // pred_check
      _
    $region3: #{simple_cnn_sb_forward.1} parent=1 // pred_check_branch
      %19 = sbr.rel (0) target = $region5
    $region4: #{simple_cnn_sb_forward.1} parent=1 // pred_region
      _
    $region5: #{simple_cnn_sb_forward.1} parent=1 // pred_fallthru
      _
    // Predicated region
    $region6: #{simple_cnn_sb_forward.1} parent=1 // pred_check
      _
    $region7: #{simple_cnn_sb_forward.1} parent=1 // pred_check_branch
      %21 = sbr.rel (0) target = $region9
    $region8: #{simple_cnn_sb_forward.1} parent=1 // pred_region
      _
    $region9: #{simple_cnn_sb_forward.1} parent=1 // pred_fallthru
      _
    // Predicated region
    $region10: #{simple_cnn_sb_forward.1} parent=1 // pred_check
      _
    $region11: #{simple_cnn_sb_forward.1} parent=1 // pred_check_branch
      %23 = sbr.rel (0) target = $region13
    $region12: #{simple_cnn_sb_forward.1} parent=1 // pred_region
      _
    $region13: #{simple_cnn_sb_forward.1} parent=1 // pred_fallthru
      _
    // Predicated region
    $region14: #{simple_cnn_sb_forward.1} parent=1 // pred_check
      _
    $region15: #{simple_cnn_sb_forward.1} parent=1 // pred_check_branch
      %25 = sbr.rel (0) target = $region17
    $region16: #{simple_cnn_sb_forward.1} parent=1 // pred_region
      _
    $region17: #{simple_cnn_sb_forward.1} parent=1 // pred_fallthru
      _
    // Predicated region
    $region18: #{simple_cnn_sb_forward.1} parent=1 // pred_check
      _
    $region19: #{simple_cnn_sb_forward.1} parent=1 // pred_check_branch
      %27 = sbr.rel (0) target = $region21
    $region20: #{simple_cnn_sb_forward.1} parent=1 // pred_region
      _
    $region21: #{simple_cnn_sb_forward.1} parent=1 // pred_fallthru
      _
    // Predicated region
    $region22: #{simple_cnn_sb_forward.1} parent=1 // pred_check
      _
    $region23: #{simple_cnn_sb_forward.1} parent=1 // pred_check_branch
      %29 = sbr.rel (0) target = $region25
    $region24: #{simple_cnn_sb_forward.1} parent=1 // pred_region
      _
    $region25: #{simple_cnn_sb_forward.1} parent=1 // pred_fallthru
      _
    // Predicated region
    $region26: #{simple_cnn_sb_forward.1} parent=1 // pred_check
      _
    $region27: #{simple_cnn_sb_forward.1} parent=1 // pred_check_branch
      %31 = sbr.rel (0) target = $region29
    $region28: #{simple_cnn_sb_forward.1} parent=1 // pred_region
      _
    $region29: #{simple_cnn_sb_forward.1} parent=1 // pred_fallthru
      _
    // Predicated region
    $region30: #{simple_cnn_sb_forward.1} parent=1 // pred_check
      _
    $region31: #{simple_cnn_sb_forward.1} parent=1 // pred_check_branch
      %33 = sbr.rel (0) target = $region33
    $region32: #{simple_cnn_sb_forward.1} parent=1 // pred_region
      %35 = vsyncadd [#allocation5], 0
      %s36 = sshll.u32 %s7, 4
      %s37 = int_to_ptr.hbm [resolvable:$true] %s36
      %s38 = sshll.u32 [#allocation4], 4
      %s39 = int_to_ptr.vmem [resolvable:$true] %s38
      %44 = dma.hbm_to_vmem [thread:$0]  %s37, 32768, %s39, [#allocation5], 128, 128, 8
    $region33: #{simple_cnn_sb_forward.1} parent=1 // pred_fallthru
      _
    // Predicated region
    $region34: #{simple_cnn_sb_forward.1} parent=1 // pred_check
      _
    $region35: #{simple_cnn_sb_forward.1} parent=1 // pred_check_branch
      %46 = sbr.rel (0) target = $region37
    $region36: #{simple_cnn_sb_forward.1} parent=1 // pred_region
      _
    $region37: #{simple_cnn_sb_forward.1} parent=1 // pred_fallthru
      _
    // Predicated region
    $region38: #{simple_cnn_sb_forward.1} parent=1 // pred_check
      _
    $region39: #{simple_cnn_sb_forward.1} parent=1 // pred_check_branch
      %48 = sbr.rel (0) target = $region41
    $region40: #{simple_cnn_sb_forward.1} parent=1 // pred_region
      _
    $region41: #{simple_cnn_sb_forward.1} parent=1 // pred_fallthru
      _
    // Predicated region
    $region42: #{simple_cnn_sb_forward.1} parent=1 // pred_check
      _
    $region43: #{simple_cnn_sb_forward.1} parent=1 // pred_check_branch
      %50 = sbr.rel (0) target = $region45
    $region44: #{simple_cnn_sb_forward.1} parent=1 // pred_region
      _
    $region45: #{simple_cnn_sb_forward.1} parent=1 // pred_fallthru
      _
    // Predicated region
    $region46: #{simple_cnn_sb_forward.1} parent=1 // pred_check
      _
    $region47: #{simple_cnn_sb_forward.1} parent=1 // pred_check_branch
      %52 = sbr.rel (0) target = $region49
    $region48: #{simple_cnn_sb_forward.1} parent=1 // pred_region
      %54 = dma.done [#allocation5], 32768
    $region49: #{simple_cnn_sb_forward.1} parent=1 // pred_fallthru
      _
    %v56 = vld [vmem:[%s0] sm:$0xff]
    %v57 = vld [vmem:[%s0 + $0x8] sm:$0xff]
    %v58 = vld [vmem:[%s0 + $0x10] sm:$0x3]
    %v59 = vld [vmem:[%s0 + $0x18] sm:$0xff]
    %v60 = vld [vmem:[%s0 + $0x20] sm:$0xff]
    %v61 = vld [vmem:[%s0 + $0x28] sm:$0x3]
    %v62 = vld [vmem:[%s0 + $0x30] sm:$0xff]
    %v63 = vld [vmem:[%s0 + $0x38] sm:$0xff]
    %v64 = vld [vmem:[%s0 + $0x40] sm:$0x3]
    %v65 = vld [vmem:[%s0 + $0x48] sm:$0xff]
    %v66 = vld [vmem:[%s0 + $0x50] sm:$0xff]
    %v67 = vld [vmem:[%s0 + $0x58] sm:$0x3]
    %v68 = vld [vmem:[%s0 + $0x60] sm:$0xff]
    %v69 = vld [vmem:[%s0 + $0x68] sm:$0xff]
    %v70 = vld [vmem:[%s0 + $0x70] sm:$0x3]
    %v71 = vld [vmem:[%s0 + $0x78] sm:$0xff]
    %v72 = vld [vmem:[%s0 + $0x80] sm:$0xff]
    %v73 = vld [vmem:[%s0 + $0x88] sm:$0x3]
    %v74 = vld [vmem:[%s0 + $0x90] sm:$0xff]
    %v75 = vld [vmem:[%s0 + $0x98] sm:$0xff]
    %v76 = vld [vmem:[%s0 + $0xa0] sm:$0x3]
    %v77 = vld [vmem:[%s0 + $0xa8] sm:$0xff]
    %v78 = vld [vmem:[%s0 + $0xb0] sm:$0xff]
    %v79 = vld [vmem:[%s0 + $0xb8] sm:$0x3]
    %v80 = vld [vmem:[%s0 + $0xc0] sm:$0xff]
    %v81 = vld [vmem:[%s0 + $0xc8] sm:$0xff]
    %v82 = vld [vmem:[%s0 + $0xd0] sm:$0x3]
    %v83 = vld [vmem:[%s0 + $0xd8] sm:$0xff]
    %v84 = vld [vmem:[%s0 + $0xe0] sm:$0xff]
    %v85 = vld [vmem:[%s0 + $0xe8] sm:$0x3]
    %v86 = vld [vmem:[%s0 + $0xf0] sm:$0xff]
    %v87 = vld [vmem:[%s0 + $0xf8] sm:$0xff]
    %v88 = vld [vmem:[%s0 + $0x100] sm:$0x3]
    %v89 = vld [vmem:[%s0 + $0x108] sm:$0xff]
    %v90 = vld [vmem:[%s0 + $0x110] sm:$0xff]
    %v91 = vld [vmem:[%s0 + $0x118] sm:$0x3]
    %v92 = vld [vmem:[%s0 + $0x120] sm:$0xff]
    %v93 = vld [vmem:[%s0 + $0x128] sm:$0xff]
    %v94 = vld [vmem:[%s0 + $0x130] sm:$0x3]
    %v95 = vld [vmem:[%s0 + $0x138] sm:$0xff]
    %v96 = vld [vmem:[%s0 + $0x140] sm:$0xff]
    %v97 = vld [vmem:[%s0 + $0x148] sm:$0x3]
    %v98 = vld [vmem:[%s0 + $0x150] sm:$0xff]
    %v99 = vld [vmem:[%s0 + $0x158] sm:$0xff]
    %v100 = vld [vmem:[%s0 + $0x160] sm:$0x3]
    %v101 = vld [vmem:[%s0 + $0x168] sm:$0xff]
    %v102 = vld [vmem:[%s0 + $0x170] sm:$0xff]
    %v103 = vld [vmem:[%s0 + $0x178] sm:$0x3]
    %v104 = vld [vmem:[%s0 + $0x180] sm:$0xff]
    %v105 = vld [vmem:[%s0 + $0x188] sm:$0xff]
    %v106 = vld [vmem:[%s0 + $0x190] sm:$0x3]
    %v107 = vld [vmem:[%s0 + $0x198] sm:$0xff]
    %v108 = vld [vmem:[%s0 + $0x1a0] sm:$0xff]
    %v109 = vld [vmem:[%s0 + $0x1a8] sm:$0x3]
    %v110 = vld [vmem:[%s0 + $0x1b0] sm:$0xff]
    %v111 = vld [vmem:[%s0 + $0x1b8] sm:$0xff]
    %v112 = vld [vmem:[%s0 + $0x1c0] sm:$0x3]
    %v113 = vld [vmem:[%s0 + $0x1c8] sm:$0xff]
    %v114 = vld [vmem:[%s0 + $0x1d0] sm:$0xff]
    %v115 = vld [vmem:[%s0 + $0x1d8] sm:$0x3]
    %v116 = vld [vmem:[%s0 + $0x1e0] sm:$0xff]
    %v117 = vld [vmem:[%s0 + $0x1e8] sm:$0xff]
    %v118 = vld [vmem:[%s0 + $0x1f0] sm:$0x3]
    %v119 = vld [vmem:[%s0 + $0x1f8] sm:$0xff]
    %v120 = vld [vmem:[%s0 + $0x200] sm:$0xff]
    %v121 = vld [vmem:[%s0 + $0x208] sm:$0x3]
    %v122 = vld [vmem:[%s0 + $0x210] sm:$0xff]
    %v123 = vld [vmem:[%s0 + $0x218] sm:$0xff]
    %v124 = vld [vmem:[%s0 + $0x220] sm:$0x3]
    %v125 = vld [vmem:[%s0 + $0x228] sm:$0xff]
    %v126 = vld [vmem:[%s0 + $0x230] sm:$0xff]
    %v127 = vld [vmem:[%s0 + $0x238] sm:$0x3]
    %v128 = vld [vmem:[%s0 + $0x240] sm:$0xff]
    %v129 = vld [vmem:[%s0 + $0x248] sm:$0xff]
    %v130 = vld [vmem:[%s0 + $0x250] sm:$0x3]
    %v131 = vld [vmem:[%s0 + $0x258] sm:$0xff]
    %v132 = vld [vmem:[%s0 + $0x260] sm:$0xff]
    %v133 = vld [vmem:[%s0 + $0x268] sm:$0x3]
    %v134 = vld [vmem:[%s0 + $0x270] sm:$0xff]
    %v135 = vld [vmem:[%s0 + $0x278] sm:$0xff]
    %v136 = vld [vmem:[%s0 + $0x280] sm:$0x3]
    %v137 = vld [vmem:[%s0 + $0x288] sm:$0xff]
    %v138 = vld [vmem:[%s0 + $0x290] sm:$0xff]
    %v139 = vld [vmem:[%s0 + $0x298] sm:$0x3]
    %v140 = vld [vmem:[%s0 + $0x2a0] sm:$0xff]
    %v141 = vld [vmem:[%s0 + $0x2a8] sm:$0xff]
    %v142 = vld [vmem:[%s0 + $0x2b0] sm:$0x3]
    %v143 = vld [vmem:[%s0 + $0x2b8] sm:$0xff]
    %v144 = vld [vmem:[%s0 + $0x2c0] sm:$0xff]
    %v145 = vld [vmem:[%s0 + $0x2c8] sm:$0x3]
    %v146 = vld [vmem:[%s0 + $0x2d0] sm:$0xff]
    %v147 = vld [vmem:[%s0 + $0x2d8] sm:$0xff]
    %v148 = vld [vmem:[%s0 + $0x2e0] sm:$0x3]
    %v149 = vld [vmem:[%s0 + $0x2e8] sm:$0xff]
    %v150 = vld [vmem:[%s0 + $0x2f0] sm:$0xff]
    %v151 = vld [vmem:[%s0 + $0x2f8] sm:$0x3]
    %v152 = vld [vmem:[%s0 + $0x300] sm:$0xff]
    %v153 = vld [vmem:[%s0 + $0x308] sm:$0xff]
    %v154 = vld [vmem:[%s0 + $0x310] sm:$0x3]
    %v155 = vld [vmem:[%s0 + $0x318] sm:$0xff]
    %v156 = vld [vmem:[%s0 + $0x320] sm:$0xff]
    %v157 = vld [vmem:[%s0 + $0x328] sm:$0x3]
    %v158 = vld [vmem:[%s0 + $0x330] sm:$0xff]
    %v159 = vld [vmem:[%s0 + $0x338] sm:$0xff]
    %v160 = vld [vmem:[%s0 + $0x340] sm:$0x3]
    %v161 = vld [vmem:[%s0 + $0x348] sm:$0xff]
    %v162 = vld [vmem:[%s0 + $0x350] sm:$0xff]
    %v163 = vld [vmem:[%s0 + $0x358] sm:$0x3]
    %v164 = vld [vmem:[%s1] sm:$0x1]
    %v165 = vunpack.c.l.bf16 %v164
    %167 = vset.pattern.permute.xlu0 0
    %168 = vperm.xlu0 %167, %v56
    %v169 = vpop.permute.xlu0 %168
    %172 = vset.pattern.permute.xlu0 0
    %173 = vperm.xlu0 %172, %v57
    %v174 = vpop.permute.xlu0 %173
    %177 = vset.pattern.permute.xlu0 0
    %178 = vperm.xlu0 %177, %v59
    %v179 = vpop.permute.xlu0 %178
    %182 = vset.pattern.permute.xlu0 0
    %183 = vperm.xlu0 %182, %v60
    %v184 = vpop.permute.xlu0 %183
    %187 = vset.pattern.permute.xlu0 0
    %188 = vperm.xlu0 %187, %v62
    %v189 = vpop.permute.xlu0 %188
    %192 = vset.pattern.permute.xlu0 0
    %193 = vperm.xlu0 %192, %v63
    %v194 = vpop.permute.xlu0 %193
    %197 = vset.pattern.permute.xlu0 0
    %198 = vperm.xlu0 %197, %v65
    %v199 = vpop.permute.xlu0 %198
    %202 = vset.pattern.permute.xlu0 0
    %203 = vperm.xlu0 %202, %v66
    %v204 = vpop.permute.xlu0 %203
    %207 = vset.pattern.permute.xlu0 0
    %208 = vperm.xlu0 %207, %v68
    %v209 = vpop.permute.xlu0 %208
    %212 = vset.pattern.permute.xlu0 0
    %213 = vperm.xlu0 %212, %v69
    %v214 = vpop.permute.xlu0 %213
    %217 = vset.pattern.permute.xlu0 0
    %218 = vperm.xlu0 %217, %v71
    %v219 = vpop.permute.xlu0 %218
    %222 = vset.pattern.permute.xlu0 0
    %223 = vperm.xlu0 %222, %v72
    %v224 = vpop.permute.xlu0 %223
    %227 = vset.pattern.permute.xlu0 0
    %228 = vperm.xlu0 %227, %v74
    %v229 = vpop.permute.xlu0 %228
    %232 = vset.pattern.permute.xlu0 0
    %233 = vperm.xlu0 %232, %v75
    %v234 = vpop.permute.xlu0 %233
    %237 = vset.pattern.permute.xlu0 0
    %238 = vperm.xlu0 %237, %v77
    %v239 = vpop.permute.xlu0 %238
    %242 = vset.pattern.permute.xlu0 0
    %243 = vperm.xlu0 %242, %v78
    %v244 = vpop.permute.xlu0 %243
    %247 = vset.pattern.permute.xlu0 0
    %248 = vperm.xlu0 %247, %v80
    %v249 = vpop.permute.xlu0 %248
    %252 = vset.pattern.permute.xlu0 0
    %253 = vperm.xlu0 %252, %v81
    %v254 = vpop.permute.xlu0 %253
    %257 = vset.pattern.permute.xlu0 0
    %258 = vperm.xlu0 %257, %v83
    %v259 = vpop.permute.xlu0 %258
    %262 = vset.pattern.permute.xlu0 0
    %263 = vperm.xlu0 %262, %v84
    %v264 = vpop.permute.xlu0 %263
    %267 = vset.pattern.permute.xlu0 0
    %268 = vperm.xlu0 %267, %v86
    %v269 = vpop.permute.xlu0 %268
    %272 = vset.pattern.permute.xlu0 0
    %273 = vperm.xlu0 %272, %v87
    %v274 = vpop.permute.xlu0 %273
    %277 = vset.pattern.permute.xlu0 0
    %278 = vperm.xlu0 %277, %v89
    %v279 = vpop.permute.xlu0 %278
    %282 = vset.pattern.permute.xlu0 0
    %283 = vperm.xlu0 %282, %v90
    %v284 = vpop.permute.xlu0 %283
    %287 = vset.pattern.permute.xlu0 0
    %288 = vperm.xlu0 %287, %v92
    %v289 = vpop.permute.xlu0 %288
    %292 = vset.pattern.permute.xlu0 0
    %293 = vperm.xlu0 %292, %v93
    %v294 = vpop.permute.xlu0 %293
    %297 = vset.pattern.permute.xlu0 0
    %298 = vperm.xlu0 %297, %v95
    %v299 = vpop.permute.xlu0 %298
    %302 = vset.pattern.permute.xlu0 0
    %303 = vperm.xlu0 %302, %v96
    %v304 = vpop.permute.xlu0 %303
    %307 = vset.pattern.permute.xlu0 0
    %308 = vperm.xlu0 %307, %v98
    %v309 = vpop.permute.xlu0 %308
    %312 = vset.pattern.permute.xlu0 0
    %313 = vperm.xlu0 %312, %v99
    %v314 = vpop.permute.xlu0 %313
    %317 = vset.pattern.permute.xlu0 0
    %318 = vperm.xlu0 %317, %v101
    %v319 = vpop.permute.xlu0 %318
    %322 = vset.pattern.permute.xlu0 0
    %323 = vperm.xlu0 %322, %v102
    %v324 = vpop.permute.xlu0 %323
    %327 = vset.pattern.permute.xlu0 0
    %328 = vperm.xlu0 %327, %v110
    %v329 = vpop.permute.xlu0 %328
    %332 = vset.pattern.permute.xlu0 0
    %333 = vperm.xlu0 %332, %v111
    %v334 = vpop.permute.xlu0 %333
    %337 = vset.pattern.permute.xlu0 0
    %338 = vperm.xlu0 %337, %v113
    %v339 = vpop.permute.xlu0 %338
    %342 = vset.pattern.permute.xlu0 0
    %343 = vperm.xlu0 %342, %v114
    %v344 = vpop.permute.xlu0 %343
    %347 = vset.pattern.permute.xlu0 0
    %348 = vperm.xlu0 %347, %v116
    %v349 = vpop.permute.xlu0 %348
    %352 = vset.pattern.permute.xlu0 0
    %353 = vperm.xlu0 %352, %v117
    %v354 = vpop.permute.xlu0 %353
    %357 = vset.pattern.permute.xlu0 0
    %358 = vperm.xlu0 %357, %v119
    %v359 = vpop.permute.xlu0 %358
    %362 = vset.pattern.permute.xlu0 0
    %363 = vperm.xlu0 %362, %v120
    %v364 = vpop.permute.xlu0 %363
    %367 = vset.pattern.permute.xlu0 0
    %368 = vperm.xlu0 %367, %v122
    %v369 = vpop.permute.xlu0 %368
    %372 = vset.pattern.permute.xlu0 0
    %373 = vperm.xlu0 %372, %v123
    %v374 = vpop.permute.xlu0 %373
    %377 = vset.pattern.permute.xlu0 0
    %378 = vperm.xlu0 %377, %v125
    %v379 = vpop.permute.xlu0 %378
    %382 = vset.pattern.permute.xlu0 0
    %383 = vperm.xlu0 %382, %v126
    %v384 = vpop.permute.xlu0 %383
    %387 = vset.pattern.permute.xlu0 0
    %388 = vperm.xlu0 %387, %v128
    %v389 = vpop.permute.xlu0 %388
    %392 = vset.pattern.permute.xlu0 0
    %393 = vperm.xlu0 %392, %v129
    %v394 = vpop.permute.xlu0 %393
    %397 = vset.pattern.permute.xlu0 0
    %398 = vperm.xlu0 %397, %v131
    %v399 = vpop.permute.xlu0 %398
    %402 = vset.pattern.permute.xlu0 0
    %403 = vperm.xlu0 %402, %v132
    %v404 = vpop.permute.xlu0 %403
    %407 = vset.pattern.permute.xlu0 0
    %408 = vperm.xlu0 %407, %v134
    %v409 = vpop.permute.xlu0 %408
    %412 = vset.pattern.permute.xlu0 0
    %413 = vperm.xlu0 %412, %v135
    %v414 = vpop.permute.xlu0 %413
    %417 = vset.pattern.permute.xlu0 0
    %418 = vperm.xlu0 %417, %v137
    %v419 = vpop.permute.xlu0 %418
    %422 = vset.pattern.permute.xlu0 0
    %423 = vperm.xlu0 %422, %v138
    %v424 = vpop.permute.xlu0 %423
    %427 = vset.pattern.permute.xlu0 0
    %428 = vperm.xlu0 %427, %v140
    %v429 = vpop.permute.xlu0 %428
    %432 = vset.pattern.permute.xlu0 0
    %433 = vperm.xlu0 %432, %v141
    %v434 = vpop.permute.xlu0 %433
    %437 = vset.pattern.permute.xlu0 0
    %438 = vperm.xlu0 %437, %v143
    %v439 = vpop.permute.xlu0 %438
    %442 = vset.pattern.permute.xlu0 0
    %443 = vperm.xlu0 %442, %v144
    %v444 = vpop.permute.xlu0 %443
    %447 = vset.pattern.permute.xlu0 0
    %448 = vperm.xlu0 %447, %v146
    %v449 = vpop.permute.xlu0 %448
    %452 = vset.pattern.permute.xlu0 0
    %453 = vperm.xlu0 %452, %v147
    %v454 = vpop.permute.xlu0 %453
    %457 = vset.pattern.permute.xlu0 0
    %458 = vperm.xlu0 %457, %v149
    %v459 = vpop.permute.xlu0 %458
    %462 = vset.pattern.permute.xlu0 0
    %463 = vperm.xlu0 %462, %v150
    %v464 = vpop.permute.xlu0 %463
    %467 = vset.pattern.permute.xlu0 0
    %468 = vperm.xlu0 %467, %v152
    %v469 = vpop.permute.xlu0 %468
    %472 = vset.pattern.permute.xlu0 0
    %473 = vperm.xlu0 %472, %v153
    %v474 = vpop.permute.xlu0 %473
    %477 = vset.pattern.permute.xlu0 0
    %478 = vperm.xlu0 %477, %v155
    %v479 = vpop.permute.xlu0 %478
    %482 = vset.pattern.permute.xlu0 0
    %483 = vperm.xlu0 %482, %v156
    %v484 = vpop.permute.xlu0 %483
    %v486 = vperm.slane %v165, 0
    %v487 = vmul.f32 %v169, %v486
    %v488 = vmul.f32 %v174, %v486
    %v489 = vmul.f32 %v179, %v486
    %v490 = vmul.f32 %v184, %v486
    %v491 = vmul.f32 %v189, %v486
    %v492 = vmul.f32 %v194, %v486
    %v493 = vmul.f32 %v199, %v486
    %v494 = vmul.f32 %v204, %v486
    %v495 = vmul.f32 %v209, %v486
    %v496 = vmul.f32 %v214, %v486
    %v497 = vmul.f32 %v219, %v486
    %v498 = vmul.f32 %v224, %v486
    %v499 = vmul.f32 %v229, %v486
    %v500 = vmul.f32 %v234, %v486
    %v501 = vmul.f32 %v239, %v486
    %v502 = vmul.f32 %v244, %v486
    %v503 = vmul.f32 %v249, %v486
    %v504 = vmul.f32 %v254, %v486
    %v505 = vmul.f32 %v259, %v486
    %v506 = vmul.f32 %v264, %v486
    %v507 = vmul.f32 %v269, %v486
    %v508 = vmul.f32 %v274, %v486
    %v509 = vmul.f32 %v279, %v486
    %v510 = vmul.f32 %v284, %v486
    %v511 = vmul.f32 %v289, %v486
    %v512 = vmul.f32 %v294, %v486
    %v513 = vmul.f32 %v299, %v486
    %v514 = vmul.f32 %v304, %v486
    %v515 = vmul.f32 %v309, %v486
    %v516 = vmul.f32 %v314, %v486
    %v517 = vmul.f32 %v319, %v486
    %v518 = vmul.f32 %v324, %v486
    %v519 = vmul.f32 %v329, %v486
    %v520 = vmul.f32 %v334, %v486
    %v521 = vmul.f32 %v339, %v486
    %v522 = vmul.f32 %v344, %v486
    %v523 = vmul.f32 %v349, %v486
    %v524 = vmul.f32 %v354, %v486
    %v525 = vmul.f32 %v359, %v486
    %v526 = vmul.f32 %v364, %v486
    %v527 = vmul.f32 %v369, %v486
    %v528 = vmul.f32 %v374, %v486
    %v529 = vmul.f32 %v379, %v486
    %v530 = vmul.f32 %v384, %v486
    %v531 = vmul.f32 %v389, %v486
    %v532 = vmul.f32 %v394, %v486
    %v533 = vmul.f32 %v399, %v486
    %v534 = vmul.f32 %v404, %v486
    %v535 = vmul.f32 %v409, %v486
    %v536 = vmul.f32 %v414, %v486
    %v537 = vmul.f32 %v419, %v486
    %v538 = vmul.f32 %v424, %v486
    %v539 = vmul.f32 %v429, %v486
    %v540 = vmul.f32 %v434, %v486
    %v541 = vmul.f32 %v439, %v486
    %v542 = vmul.f32 %v444, %v486
    %v543 = vmul.f32 %v449, %v486
    %v544 = vmul.f32 %v454, %v486
    %v545 = vmul.f32 %v459, %v486
    %v546 = vmul.f32 %v464, %v486
    %v547 = vmul.f32 %v469, %v486
    %v548 = vmul.f32 %v474, %v486
    %v549 = vmul.f32 %v479, %v486
    %v550 = vmul.f32 %v484, %v486
    %v551 = vadd.f32 %v487, 0.0
    %v552 = vadd.f32 %v488, 0.0
    %v553 = vadd.f32 %v489, 0.0
    %v554 = vadd.f32 %v490, 0.0
    %v555 = vadd.f32 %v491, 0.0
    %v556 = vadd.f32 %v492, 0.0
    %v557 = vadd.f32 %v493, 0.0
    %v558 = vadd.f32 %v494, 0.0
    %v559 = vadd.f32 %v495, 0.0
    %v560 = vadd.f32 %v496, 0.0
    %v561 = vadd.f32 %v497, 0.0
    %v562 = vadd.f32 %v498, 0.0
    %v563 = vadd.f32 %v499, 0.0
    %v564 = vadd.f32 %v500, 0.0
    %v565 = vadd.f32 %v501, 0.0
    %v566 = vadd.f32 %v502, 0.0
    %v567 = vadd.f32 %v503, 0.0
    %v568 = vadd.f32 %v504, 0.0
    %v569 = vadd.f32 %v505, 0.0
    %v570 = vadd.f32 %v506, 0.0
    %v571 = vadd.f32 %v507, 0.0
    %v572 = vadd.f32 %v508, 0.0
    %v573 = vadd.f32 %v509, 0.0
    %v574 = vadd.f32 %v510, 0.0
    %v575 = vadd.f32 %v511, 0.0
    %v576 = vadd.f32 %v512, 0.0
    %v577 = vadd.f32 %v513, 0.0
    %v578 = vadd.f32 %v514, 0.0
    %v579 = vadd.f32 %v515, 0.0
    %v580 = vadd.f32 %v516, 0.0
    %v581 = vadd.f32 %v517, 0.0
    %v582 = vadd.f32 %v518, 0.0
    %v583 = vadd.f32 %v519, 0.0
    %v584 = vadd.f32 %v520, 0.0
    %v585 = vadd.f32 %v521, 0.0
    %v586 = vadd.f32 %v522, 0.0
    %v587 = vadd.f32 %v523, 0.0
    %v588 = vadd.f32 %v524, 0.0
    %v589 = vadd.f32 %v525, 0.0
    %v590 = vadd.f32 %v526, 0.0
    %v591 = vadd.f32 %v527, 0.0
    %v592 = vadd.f32 %v528, 0.0
    %v593 = vadd.f32 %v529, 0.0
    %v594 = vadd.f32 %v530, 0.0
    %v595 = vadd.f32 %v531, 0.0
    %v596 = vadd.f32 %v532, 0.0
    %v597 = vadd.f32 %v533, 0.0
    %v598 = vadd.f32 %v534, 0.0
    %v599 = vadd.f32 %v535, 0.0
    %v600 = vadd.f32 %v536, 0.0
    %v601 = vadd.f32 %v537, 0.0
    %v602 = vadd.f32 %v538, 0.0
    %v603 = vadd.f32 %v539, 0.0
    %v604 = vadd.f32 %v540, 0.0
    %v605 = vadd.f32 %v541, 0.0
    %v606 = vadd.f32 %v542, 0.0
    %v607 = vadd.f32 %v543, 0.0
    %v608 = vadd.f32 %v544, 0.0
    %v609 = vadd.f32 %v545, 0.0
    %v610 = vadd.f32 %v546, 0.0
    %v611 = vadd.f32 %v547, 0.0
    %v612 = vadd.f32 %v548, 0.0
    %v613 = vadd.f32 %v549, 0.0
    %v614 = vadd.f32 %v550, 0.0
    %s615 = scalar_lea.vmem %s1, 1
    %v616 = vld [vmem:[%s615] sm:$0x1]
    %v617 = vunpack.c.l.bf16 %v616
    %619 = vset.pattern.permute.xlu0 0
    %620 = vperm.xlu0 %619, %v58
    %v621 = vpop.permute.xlu0 %620
    %624 = vset.pattern.permute.xlu0 0
    %625 = vperm.xlu0 %624, %v61
    %v626 = vpop.permute.xlu0 %625
    %629 = vset.pattern.permute.xlu0 0
    %630 = vperm.xlu0 %629, %v64
    %v631 = vpop.permute.xlu0 %630
    %634 = vset.pattern.permute.xlu0 0
    %635 = vperm.xlu0 %634, %v67
    %v636 = vpop.permute.xlu0 %635
    %639 = vset.pattern.permute.xlu0 0
    %640 = vperm.xlu0 %639, %v70
    %v641 = vpop.permute.xlu0 %640
    %644 = vset.pattern.permute.xlu0 0
    %645 = vperm.xlu0 %644, %v73
    %v646 = vpop.permute.xlu0 %645
    %649 = vset.pattern.permute.xlu0 0
    %650 = vperm.xlu0 %649, %v76
    %v651 = vpop.permute.xlu0 %650
    %654 = vset.pattern.permute.xlu0 0
    %655 = vperm.xlu0 %654, %v79
    %v656 = vpop.permute.xlu0 %655
    %659 = vset.pattern.permute.xlu0 0
    %660 = vperm.xlu0 %659, %v82
    %v661 = vpop.permute.xlu0 %660
    %664 = vset.pattern.permute.xlu0 0
    %665 = vperm.xlu0 %664, %v85
    %v666 = vpop.permute.xlu0 %665
    %669 = vset.pattern.permute.xlu0 0
    %670 = vperm.xlu0 %669, %v88
    %v671 = vpop.permute.xlu0 %670
    %674 = vset.pattern.permute.xlu0 0
    %675 = vperm.xlu0 %674, %v91
    %v676 = vpop.permute.xlu0 %675
    %679 = vset.pattern.permute.xlu0 0
    %680 = vperm.xlu0 %679, %v94
    %v681 = vpop.permute.xlu0 %680
    %684 = vset.pattern.permute.xlu0 0
    %685 = vperm.xlu0 %684, %v97
    %v686 = vpop.permute.xlu0 %685
    %689 = vset.pattern.permute.xlu0 0
    %690 = vperm.xlu0 %689, %v100
    %v691 = vpop.permute.xlu0 %690
    %694 = vset.pattern.permute.xlu0 0
    %695 = vperm.xlu0 %694, %v103
    %v696 = vpop.permute.xlu0 %695
    %699 = vset.pattern.permute.xlu0 0
    %700 = vperm.xlu0 %699, %v112
    %v701 = vpop.permute.xlu0 %700
    %704 = vset.pattern.permute.xlu0 0
    %705 = vperm.xlu0 %704, %v115
    %v706 = vpop.permute.xlu0 %705
    %709 = vset.pattern.permute.xlu0 0
    %710 = vperm.xlu0 %709, %v118
    %v711 = vpop.permute.xlu0 %710
    %714 = vset.pattern.permute.xlu0 0
    %715 = vperm.xlu0 %714, %v121
    %v716 = vpop.permute.xlu0 %715
    %719 = vset.pattern.permute.xlu0 0
    %720 = vperm.xlu0 %719, %v124
    %v721 = vpop.permute.xlu0 %720
    %724 = vset.pattern.permute.xlu0 0
    %725 = vperm.xlu0 %724, %v127
    %v726 = vpop.permute.xlu0 %725
    %729 = vset.pattern.permute.xlu0 0
    %730 = vperm.xlu0 %729, %v130
    %v731 = vpop.permute.xlu0 %730
    %734 = vset.pattern.permute.xlu0 0
    %735 = vperm.xlu0 %734, %v133
    %v736 = vpop.permute.xlu0 %735
    %739 = vset.pattern.permute.xlu0 0
    %740 = vperm.xlu0 %739, %v136
    %v741 = vpop.permute.xlu0 %740
    %744 = vset.pattern.permute.xlu0 0
    %745 = vperm.xlu0 %744, %v139
    %v746 = vpop.permute.xlu0 %745
    %749 = vset.pattern.permute.xlu0 0
    %750 = vperm.xlu0 %749, %v142
    %v751 = vpop.permute.xlu0 %750
    %754 = vset.pattern.permute.xlu0 0
    %755 = vperm.xlu0 %754, %v145
    %v756 = vpop.permute.xlu0 %755
    %759 = vset.pattern.permute.xlu0 0
    %760 = vperm.xlu0 %759, %v148
    %v761 = vpop.permute.xlu0 %760
    %764 = vset.pattern.permute.xlu0 0
    %765 = vperm.xlu0 %764, %v151
    %v766 = vpop.permute.xlu0 %765
    %769 = vset.pattern.permute.xlu0 0
    %770 = vperm.xlu0 %769, %v154
    %v771 = vpop.permute.xlu0 %770
    %774 = vset.pattern.permute.xlu0 0
    %775 = vperm.xlu0 %774, %v157
    %v776 = vpop.permute.xlu0 %775
    %v778 = vperm.slane %v617, 0
    %v779 = vmul.f32 %v169, %v778
    %v780 = vmul.f32 %v174, %v778
    %v781 = vmul.f32 %v621, %v778
    %v782 = vmul.f32 %v179, %v778
    %v783 = vmul.f32 %v184, %v778
    %v784 = vmul.f32 %v626, %v778
    %v785 = vmul.f32 %v189, %v778
    %v786 = vmul.f32 %v194, %v778
    %v787 = vmul.f32 %v631, %v778
    %v788 = vmul.f32 %v199, %v778
    %v789 = vmul.f32 %v204, %v778
    %v790 = vmul.f32 %v636, %v778
    %v791 = vmul.f32 %v209, %v778
    %v792 = vmul.f32 %v214, %v778
    %v793 = vmul.f32 %v641, %v778
    %v794 = vmul.f32 %v219, %v778
    %v795 = vmul.f32 %v224, %v778
    %v796 = vmul.f32 %v646, %v778
    %v797 = vmul.f32 %v229, %v778
    %v798 = vmul.f32 %v234, %v778
    %v799 = vmul.f32 %v651, %v778
    %v800 = vmul.f32 %v239, %v778
    %v801 = vmul.f32 %v244, %v778
    %v802 = vmul.f32 %v656, %v778
    %v803 = vmul.f32 %v249, %v778
    %v804 = vmul.f32 %v254, %v778
    %v805 = vmul.f32 %v661, %v778
    %v806 = vmul.f32 %v259, %v778
    %v807 = vmul.f32 %v264, %v778
    %v808 = vmul.f32 %v666, %v778
    %v809 = vmul.f32 %v269, %v778
    %v810 = vmul.f32 %v274, %v778
    %v811 = vmul.f32 %v671, %v778
    %v812 = vmul.f32 %v279, %v778
    %v813 = vmul.f32 %v284, %v778
    %v814 = vmul.f32 %v676, %v778
    %v815 = vmul.f32 %v289, %v778
    %v816 = vmul.f32 %v294, %v778
    %v817 = vmul.f32 %v681, %v778
    %v818 = vmul.f32 %v299, %v778
    %v819 = vmul.f32 %v304, %v778
    %v820 = vmul.f32 %v686, %v778
    %v821 = vmul.f32 %v309, %v778
    %v822 = vmul.f32 %v314, %v778
    %v823 = vmul.f32 %v691, %v778
    %v824 = vmul.f32 %v319, %v778
    %v825 = vmul.f32 %v324, %v778
    %v826 = vmul.f32 %v696, %v778
    %v827 = vmul.f32 %v329, %v778
    %v828 = vmul.f32 %v334, %v778
    %v829 = vmul.f32 %v701, %v778
    %v830 = vmul.f32 %v339, %v778
    %v831 = vmul.f32 %v344, %v778
    %v832 = vmul.f32 %v706, %v778
    %v833 = vmul.f32 %v349, %v778
    %v834 = vmul.f32 %v354, %v778
    %v835 = vmul.f32 %v711, %v778
    %v836 = vmul.f32 %v359, %v778
    %v837 = vmul.f32 %v364, %v778
    %v838 = vmul.f32 %v716, %v778
    %v839 = vmul.f32 %v369, %v778
    %v840 = vmul.f32 %v374, %v778
    %v841 = vmul.f32 %v721, %v778
    %v842 = vmul.f32 %v379, %v778
    %v843 = vmul.f32 %v384, %v778
    %v844 = vmul.f32 %v726, %v778
    %v845 = vmul.f32 %v389, %v778
    %v846 = vmul.f32 %v394, %v778
    %v847 = vmul.f32 %v731, %v778
    %v848 = vmul.f32 %v399, %v778
    %v849 = vmul.f32 %v404, %v778
    %v850 = vmul.f32 %v736, %v778
    %v851 = vmul.f32 %v409, %v778
    %v852 = vmul.f32 %v414, %v778
    %v853 = vmul.f32 %v741, %v778
    %v854 = vmul.f32 %v419, %v778
    %v855 = vmul.f32 %v424, %v778
    %v856 = vmul.f32 %v746, %v778
    %v857 = vmul.f32 %v429, %v778
    %v858 = vmul.f32 %v434, %v778
    %v859 = vmul.f32 %v751, %v778
    %v860 = vmul.f32 %v439, %v778
    %v861 = vmul.f32 %v444, %v778
    %v862 = vmul.f32 %v756, %v778
    %v863 = vmul.f32 %v449, %v778
    %v864 = vmul.f32 %v454, %v778
    %v865 = vmul.f32 %v761, %v778
    %v866 = vmul.f32 %v459, %v778
    %v867 = vmul.f32 %v464, %v778
    %v868 = vmul.f32 %v766, %v778
    %v869 = vmul.f32 %v469, %v778
    %v870 = vmul.f32 %v474, %v778
    %v871 = vmul.f32 %v771, %v778
    %v872 = vmul.f32 %v479, %v778
    %v873 = vmul.f32 %v484, %v778
    %v874 = vmul.f32 %v776, %v778
    %vm971 = vcmask 1046528
    %v972 = vrot.slane %v779, 1
    %v973 = vrot.slane %v780, 1
    %v974 = vsel %vm971, %v972, %v973
    %v975 = vrot.slane %v781, 1
    %v976 = vsel %vm971, %v973, %v975
    %v977 = vrot.slane %v782, 1
    %v978 = vrot.slane %v783, 1
    %v979 = vsel %vm971, %v977, %v978
    %v980 = vrot.slane %v784, 1
    %v981 = vsel %vm971, %v978, %v980
    %v982 = vrot.slane %v785, 1
    %v983 = vrot.slane %v786, 1
    %v984 = vsel %vm971, %v982, %v983
    %v985 = vrot.slane %v787, 1
    %v986 = vsel %vm971, %v983, %v985
    %v987 = vrot.slane %v788, 1
    %v988 = vrot.slane %v789, 1
    %v989 = vsel %vm971, %v987, %v988
    %v990 = vrot.slane %v790, 1
    %v991 = vsel %vm971, %v988, %v990
    %v992 = vrot.slane %v791, 1
    %v993 = vrot.slane %v792, 1
    %v994 = vsel %vm971, %v992, %v993
    %v995 = vrot.slane %v793, 1
    %v996 = vsel %vm971, %v993, %v995
    %v997 = vrot.slane %v794, 1
    %v998 = vrot.slane %v795, 1
    %v999 = vsel %vm971, %v997, %v998
    %v1000 = vrot.slane %v796, 1
    %v1001 = vsel %vm971, %v998, %v1000
    %v1002 = vrot.slane %v797, 1
    %v1003 = vrot.slane %v798, 1
    %v1004 = vsel %vm971, %v1002, %v1003
    %v1005 = vrot.slane %v799, 1
    %v1006 = vsel %vm971, %v1003, %v1005
    %v1007 = vrot.slane %v800, 1
    %v1008 = vrot.slane %v801, 1
    %v1009 = vsel %vm971, %v1007, %v1008
    %v1010 = vrot.slane %v802, 1
    %v1011 = vsel %vm971, %v1008, %v1010
    %v1012 = vrot.slane %v803, 1
    %v1013 = vrot.slane %v804, 1
    %v1014 = vsel %vm971, %v1012, %v1013
    %v1015 = vrot.slane %v805, 1
    %v1016 = vsel %vm971, %v1013, %v1015
    %v1017 = vrot.slane %v806, 1
    %v1018 = vrot.slane %v807, 1
    %v1019 = vsel %vm971, %v1017, %v1018
    %v1020 = vrot.slane %v808, 1
    %v1021 = vsel %vm971, %v1018, %v1020
    %v1022 = vrot.slane %v809, 1
    %v1023 = vrot.slane %v810, 1
    %v1024 = vsel %vm971, %v1022, %v1023
    %v1025 = vrot.slane %v811, 1
    %v1026 = vsel %vm971, %v1023, %v1025
    %v1027 = vrot.slane %v812, 1
    %v1028 = vrot.slane %v813, 1
    %v1029 = vsel %vm971, %v1027, %v1028
    %v1030 = vrot.slane %v814, 1
    %v1031 = vsel %vm971, %v1028, %v1030
    %v1032 = vrot.slane %v815, 1
    %v1033 = vrot.slane %v816, 1
    %v1034 = vsel %vm971, %v1032, %v1033
    %v1035 = vrot.slane %v817, 1
    %v1036 = vsel %vm971, %v1033, %v1035
    %v1037 = vrot.slane %v818, 1
    %v1038 = vrot.slane %v819, 1
    %v1039 = vsel %vm971, %v1037, %v1038
    %v1040 = vrot.slane %v820, 1
    %v1041 = vsel %vm971, %v1038, %v1040
    %v1042 = vrot.slane %v821, 1
    %v1043 = vrot.slane %v822, 1
    %v1044 = vsel %vm971, %v1042, %v1043
    %v1045 = vrot.slane %v823, 1
    %v1046 = vsel %vm971, %v1043, %v1045
    %v1047 = vrot.slane %v824, 1
    %v1048 = vrot.slane %v825, 1
    %v1049 = vsel %vm971, %v1047, %v1048
    %v1050 = vrot.slane %v826, 1
    %v1051 = vsel %vm971, %v1048, %v1050
    %v1052 = vrot.slane %v827, 1
    %v1053 = vrot.slane %v828, 1
    %v1054 = vsel %vm971, %v1052, %v1053
    %v1055 = vrot.slane %v829, 1
    %v1056 = vsel %vm971, %v1053, %v1055
    %v1057 = vrot.slane %v830, 1
    %v1058 = vrot.slane %v831, 1
    %v1059 = vsel %vm971, %v1057, %v1058
    %v1060 = vrot.slane %v832, 1
    %v1061 = vsel %vm971, %v1058, %v1060
    %v1062 = vrot.slane %v833, 1
    %v1063 = vrot.slane %v834, 1
    %v1064 = vsel %vm971, %v1062, %v1063
    %v1065 = vrot.slane %v835, 1
    %v1066 = vsel %vm971, %v1063, %v1065
    %v1067 = vrot.slane %v836, 1
    %v1068 = vrot.slane %v837, 1
    %v1069 = vsel %vm971, %v1067, %v1068
    %v1070 = vrot.slane %v838, 1
    %v1071 = vsel %vm971, %v1068, %v1070
    %v1072 = vrot.slane %v839, 1
    %v1073 = vrot.slane %v840, 1
    %v1074 = vsel %vm971, %v1072, %v1073
    %v1075 = vrot.slane %v841, 1
    %v1076 = vsel %vm971, %v1073, %v1075
    %v1077 = vrot.slane %v842, 1
    %v1078 = vrot.slane %v843, 1
    %v1079 = vsel %vm971, %v1077, %v1078
    %v1080 = vrot.slane %v844, 1
    %v1081 = vsel %vm971, %v1078, %v1080
    %v1082 = vrot.slane %v845, 1
    %v1083 = vrot.slane %v846, 1
    %v1084 = vsel %vm971, %v1082, %v1083
    %v1085 = vrot.slane %v847, 1
    %v1086 = vsel %vm971, %v1083, %v1085
    %v1087 = vrot.slane %v848, 1
    %v1088 = vrot.slane %v849, 1
    %v1089 = vsel %vm971, %v1087, %v1088
    %v1090 = vrot.slane %v850, 1
    %v1091 = vsel %vm971, %v1088, %v1090
    %v1092 = vrot.slane %v851, 1
    %v1093 = vrot.slane %v852, 1
    %v1094 = vsel %vm971, %v1092, %v1093
    %v1095 = vrot.slane %v853, 1
    %v1096 = vsel %vm971, %v1093, %v1095
    %v1097 = vrot.slane %v854, 1
    %v1098 = vrot.slane %v855, 1
    %v1099 = vsel %vm971, %v1097, %v1098
    %v1100 = vrot.slane %v856, 1
    %v1101 = vsel %vm971, %v1098, %v1100
    %v1102 = vrot.slane %v857, 1
    %v1103 = vrot.slane %v858, 1
    %v1104 = vsel %vm971, %v1102, %v1103
    %v1105 = vrot.slane %v859, 1
    %v1106 = vsel %vm971, %v1103, %v1105
    %v1107 = vrot.slane %v860, 1
    %v1108 = vrot.slane %v861, 1
    %v1109 = vsel %vm971, %v1107, %v1108
    %v1110 = vrot.slane %v862, 1
    %v1111 = vsel %vm971, %v1108, %v1110
    %v1112 = vrot.slane %v863, 1
    %v1113 = vrot.slane %v864, 1
    %v1114 = vsel %vm971, %v1112, %v1113
    %v1115 = vrot.slane %v865, 1
    %v1116 = vsel %vm971, %v1113, %v1115
    %v1117 = vrot.slane %v866, 1
    %v1118 = vrot.slane %v867, 1
    %v1119 = vsel %vm971, %v1117, %v1118
    %v1120 = vrot.slane %v868, 1
    %v1121 = vsel %vm971, %v1118, %v1120
    %v1122 = vrot.slane %v869, 1
    %v1123 = vrot.slane %v870, 1
    %v1124 = vsel %vm971, %v1122, %v1123
    %v1125 = vrot.slane %v871, 1
    %v1126 = vsel %vm971, %v1123, %v1125
    %v1127 = vrot.slane %v872, 1
    %v1128 = vrot.slane %v873, 1
    %v1129 = vsel %vm971, %v1127, %v1128
    %v1130 = vrot.slane %v874, 1
    %v1131 = vsel %vm971, %v1128, %v1130
    %v1196 = vadd.f32 %v551, %v974
    %v1197 = vadd.f32 %v552, %v976
    %v1198 = vadd.f32 %v553, %v979
    %v1199 = vadd.f32 %v554, %v981
    %v1200 = vadd.f32 %v555, %v984
    %v1201 = vadd.f32 %v556, %v986
    %v1202 = vadd.f32 %v557, %v989
    %v1203 = vadd.f32 %v558, %v991
    %v1204 = vadd.f32 %v559, %v994
    %v1205 = vadd.f32 %v560, %v996
    %v1206 = vadd.f32 %v561, %v999
    %v1207 = vadd.f32 %v562, %v1001
    %v1208 = vadd.f32 %v563, %v1004
    %v1209 = vadd.f32 %v564, %v1006
    %v1210 = vadd.f32 %v565, %v1009
    %v1211 = vadd.f32 %v566, %v1011
    %v1212 = vadd.f32 %v567, %v1014
    %v1213 = vadd.f32 %v568, %v1016
    %v1214 = vadd.f32 %v569, %v1019
    %v1215 = vadd.f32 %v570, %v1021
    %v1216 = vadd.f32 %v571, %v1024
    %v1217 = vadd.f32 %v572, %v1026
    %v1218 = vadd.f32 %v573, %v1029
    %v1219 = vadd.f32 %v574, %v1031
    %v1220 = vadd.f32 %v575, %v1034
    %v1221 = vadd.f32 %v576, %v1036
    %v1222 = vadd.f32 %v577, %v1039
    %v1223 = vadd.f32 %v578, %v1041
    %v1224 = vadd.f32 %v579, %v1044
    %v1225 = vadd.f32 %v580, %v1046
    %v1226 = vadd.f32 %v581, %v1049
    %v1227 = vadd.f32 %v582, %v1051
    %v1228 = vadd.f32 %v583, %v1054
    %v1229 = vadd.f32 %v584, %v1056
    %v1230 = vadd.f32 %v585, %v1059
    %v1231 = vadd.f32 %v586, %v1061
    %v1232 = vadd.f32 %v587, %v1064
    %v1233 = vadd.f32 %v588, %v1066
    %v1234 = vadd.f32 %v589, %v1069
    %v1235 = vadd.f32 %v590, %v1071
    %v1236 = vadd.f32 %v591, %v1074
    %v1237 = vadd.f32 %v592, %v1076
    %v1238 = vadd.f32 %v593, %v1079
    %v1239 = vadd.f32 %v594, %v1081
    %v1240 = vadd.f32 %v595, %v1084
    %v1241 = vadd.f32 %v596, %v1086
    %v1242 = vadd.f32 %v597, %v1089
    %v1243 = vadd.f32 %v598, %v1091
    %v1244 = vadd.f32 %v599, %v1094
    %v1245 = vadd.f32 %v600, %v1096
    %v1246 = vadd.f32 %v601, %v1099
    %v1247 = vadd.f32 %v602, %v1101
    %v1248 = vadd.f32 %v603, %v1104
    %v1249 = vadd.f32 %v604, %v1106
    %v1250 = vadd.f32 %v605, %v1109
    %v1251 = vadd.f32 %v606, %v1111
    %v1252 = vadd.f32 %v607, %v1114
    %v1253 = vadd.f32 %v608, %v1116
    %v1254 = vadd.f32 %v609, %v1119
    %v1255 = vadd.f32 %v610, %v1121
    %v1256 = vadd.f32 %v611, %v1124
    %v1257 = vadd.f32 %v612, %v1126
    %v1258 = vadd.f32 %v613, %v1129
    %v1259 = vadd.f32 %v614, %v1131
    %s1260 = scalar_lea.vmem %s1, 2
    %v1261 = vld [vmem:[%s1260] sm:$0x1]
    %v1262 = vunpack.c.l.bf16 %v1261
    %v1263 = vperm.slane %v1262, 0
    %v1264 = vmul.f32 %v169, %v1263
    %v1265 = vmul.f32 %v174, %v1263
    %v1266 = vmul.f32 %v621, %v1263
    %v1267 = vmul.f32 %v179, %v1263
    %v1268 = vmul.f32 %v184, %v1263
    %v1269 = vmul.f32 %v626, %v1263
    %v1270 = vmul.f32 %v189, %v1263
    %v1271 = vmul.f32 %v194, %v1263
    %v1272 = vmul.f32 %v631, %v1263
    %v1273 = vmul.f32 %v199, %v1263
    %v1274 = vmul.f32 %v204, %v1263
    %v1275 = vmul.f32 %v636, %v1263
    %v1276 = vmul.f32 %v209, %v1263
    %v1277 = vmul.f32 %v214, %v1263
    %v1278 = vmul.f32 %v641, %v1263
    %v1279 = vmul.f32 %v219, %v1263
    %v1280 = vmul.f32 %v224, %v1263
    %v1281 = vmul.f32 %v646, %v1263
    %v1282 = vmul.f32 %v229, %v1263
    %v1283 = vmul.f32 %v234, %v1263
    %v1284 = vmul.f32 %v651, %v1263
    %v1285 = vmul.f32 %v239, %v1263
    %v1286 = vmul.f32 %v244, %v1263
    %v1287 = vmul.f32 %v656, %v1263
    %v1288 = vmul.f32 %v249, %v1263
    %v1289 = vmul.f32 %v254, %v1263
    %v1290 = vmul.f32 %v661, %v1263
    %v1291 = vmul.f32 %v259, %v1263
    %v1292 = vmul.f32 %v264, %v1263
    %v1293 = vmul.f32 %v666, %v1263
    %v1294 = vmul.f32 %v269, %v1263
    %v1295 = vmul.f32 %v274, %v1263
    %v1296 = vmul.f32 %v671, %v1263
    %v1297 = vmul.f32 %v279, %v1263
    %v1298 = vmul.f32 %v284, %v1263
    %v1299 = vmul.f32 %v676, %v1263
    %v1300 = vmul.f32 %v289, %v1263
    %v1301 = vmul.f32 %v294, %v1263
    %v1302 = vmul.f32 %v681, %v1263
    %v1303 = vmul.f32 %v299, %v1263
    %v1304 = vmul.f32 %v304, %v1263
    %v1305 = vmul.f32 %v686, %v1263
    %v1306 = vmul.f32 %v309, %v1263
    %v1307 = vmul.f32 %v314, %v1263
    %v1308 = vmul.f32 %v691, %v1263
    %v1309 = vmul.f32 %v319, %v1263
    %v1310 = vmul.f32 %v324, %v1263
    %v1311 = vmul.f32 %v696, %v1263
    %v1312 = vmul.f32 %v329, %v1263
    %v1313 = vmul.f32 %v334, %v1263
    %v1314 = vmul.f32 %v701, %v1263
    %v1315 = vmul.f32 %v339, %v1263
    %v1316 = vmul.f32 %v344, %v1263
    %v1317 = vmul.f32 %v706, %v1263
    %v1318 = vmul.f32 %v349, %v1263
    %v1319 = vmul.f32 %v354, %v1263
    %v1320 = vmul.f32 %v711, %v1263
    %v1321 = vmul.f32 %v359, %v1263
    %v1322 = vmul.f32 %v364, %v1263
    %v1323 = vmul.f32 %v716, %v1263
    %v1324 = vmul.f32 %v369, %v1263
    %v1325 = vmul.f32 %v374, %v1263
    %v1326 = vmul.f32 %v721, %v1263
    %v1327 = vmul.f32 %v379, %v1263
    %v1328 = vmul.f32 %v384, %v1263
    %v1329 = vmul.f32 %v726, %v1263
    %v1330 = vmul.f32 %v389, %v1263
    %v1331 = vmul.f32 %v394, %v1263
    %v1332 = vmul.f32 %v731, %v1263
    %v1333 = vmul.f32 %v399, %v1263
    %v1334 = vmul.f32 %v404, %v1263
    %v1335 = vmul.f32 %v736, %v1263
    %v1336 = vmul.f32 %v409, %v1263
    %v1337 = vmul.f32 %v414, %v1263
    %v1338 = vmul.f32 %v741, %v1263
    %v1339 = vmul.f32 %v419, %v1263
    %v1340 = vmul.f32 %v424, %v1263
    %v1341 = vmul.f32 %v746, %v1263
    %v1342 = vmul.f32 %v429, %v1263
    %v1343 = vmul.f32 %v434, %v1263
    %v1344 = vmul.f32 %v751, %v1263
    %v1345 = vmul.f32 %v439, %v1263
    %v1346 = vmul.f32 %v444, %v1263
    %v1347 = vmul.f32 %v756, %v1263
    %v1348 = vmul.f32 %v449, %v1263
    %v1349 = vmul.f32 %v454, %v1263
    %v1350 = vmul.f32 %v761, %v1263
    %v1351 = vmul.f32 %v459, %v1263
    %v1352 = vmul.f32 %v464, %v1263
    %v1353 = vmul.f32 %v766, %v1263
    %v1354 = vmul.f32 %v469, %v1263
    %v1355 = vmul.f32 %v474, %v1263
    %v1356 = vmul.f32 %v771, %v1263
    %v1357 = vmul.f32 %v479, %v1263
    %v1358 = vmul.f32 %v484, %v1263
    %v1359 = vmul.f32 %v776, %v1263
    %vm1456 = vcmask 1045504
    %v1457 = vrot.slane %v1264, 2
    %v1458 = vrot.slane %v1265, 2
    %v1459 = vsel %vm1456, %v1457, %v1458
    %v1460 = vrot.slane %v1266, 2
    %v1461 = vsel %vm1456, %v1458, %v1460
    %v1462 = vrot.slane %v1267, 2
    %v1463 = vrot.slane %v1268, 2
    %v1464 = vsel %vm1456, %v1462, %v1463
    %v1465 = vrot.slane %v1269, 2
    %v1466 = vsel %vm1456, %v1463, %v1465
    %v1467 = vrot.slane %v1270, 2
    %v1468 = vrot.slane %v1271, 2
    %v1469 = vsel %vm1456, %v1467, %v1468
    %v1470 = vrot.slane %v1272, 2
    %v1471 = vsel %vm1456, %v1468, %v1470
    %v1472 = vrot.slane %v1273, 2
    %v1473 = vrot.slane %v1274, 2
    %v1474 = vsel %vm1456, %v1472, %v1473
    %v1475 = vrot.slane %v1275, 2
    %v1476 = vsel %vm1456, %v1473, %v1475
    %v1477 = vrot.slane %v1276, 2
    %v1478 = vrot.slane %v1277, 2
    %v1479 = vsel %vm1456, %v1477, %v1478
    %v1480 = vrot.slane %v1278, 2
    %v1481 = vsel %vm1456, %v1478, %v1480
    %v1482 = vrot.slane %v1279, 2
    %v1483 = vrot.slane %v1280, 2
    %v1484 = vsel %vm1456, %v1482, %v1483
    %v1485 = vrot.slane %v1281, 2
    %v1486 = vsel %vm1456, %v1483, %v1485
    %v1487 = vrot.slane %v1282, 2
    %v1488 = vrot.slane %v1283, 2
    %v1489 = vsel %vm1456, %v1487, %v1488
    %v1490 = vrot.slane %v1284, 2
    %v1491 = vsel %vm1456, %v1488, %v1490
    %v1492 = vrot.slane %v1285, 2
    %v1493 = vrot.slane %v1286, 2
    %v1494 = vsel %vm1456, %v1492, %v1493
    %v1495 = vrot.slane %v1287, 2
    %v1496 = vsel %vm1456, %v1493, %v1495
    %v1497 = vrot.slane %v1288, 2
    %v1498 = vrot.slane %v1289, 2
    %v1499 = vsel %vm1456, %v1497, %v1498
    %v1500 = vrot.slane %v1290, 2
    %v1501 = vsel %vm1456, %v1498, %v1500
    %v1502 = vrot.slane %v1291, 2
    %v1503 = vrot.slane %v1292, 2
    %v1504 = vsel %vm1456, %v1502, %v1503
    %v1505 = vrot.slane %v1293, 2
    %v1506 = vsel %vm1456, %v1503, %v1505
    %v1507 = vrot.slane %v1294, 2
    %v1508 = vrot.slane %v1295, 2
    %v1509 = vsel %vm1456, %v1507, %v1508
    %v1510 = vrot.slane %v1296, 2
    %v1511 = vsel %vm1456, %v1508, %v1510
    %v1512 = vrot.slane %v1297, 2
    %v1513 = vrot.slane %v1298, 2
    %v1514 = vsel %vm1456, %v1512, %v1513
    %v1515 = vrot.slane %v1299, 2
    %v1516 = vsel %vm1456, %v1513, %v1515
    %v1517 = vrot.slane %v1300, 2
    %v1518 = vrot.slane %v1301, 2
    %v1519 = vsel %vm1456, %v1517, %v1518
    %v1520 = vrot.slane %v1302, 2
    %v1521 = vsel %vm1456, %v1518, %v1520
    %v1522 = vrot.slane %v1303, 2
    %v1523 = vrot.slane %v1304, 2
    %v1524 = vsel %vm1456, %v1522, %v1523
    %v1525 = vrot.slane %v1305, 2
    %v1526 = vsel %vm1456, %v1523, %v1525
    %v1527 = vrot.slane %v1306, 2
    %v1528 = vrot.slane %v1307, 2
    %v1529 = vsel %vm1456, %v1527, %v1528
    %v1530 = vrot.slane %v1308, 2
    %v1531 = vsel %vm1456, %v1528, %v1530
    %v1532 = vrot.slane %v1309, 2
    %v1533 = vrot.slane %v1310, 2
    %v1534 = vsel %vm1456, %v1532, %v1533
    %v1535 = vrot.slane %v1311, 2
    %v1536 = vsel %vm1456, %v1533, %v1535
    %v1537 = vrot.slane %v1312, 2
    %v1538 = vrot.slane %v1313, 2
    %v1539 = vsel %vm1456, %v1537, %v1538
    %v1540 = vrot.slane %v1314, 2
    %v1541 = vsel %vm1456, %v1538, %v1540
    %v1542 = vrot.slane %v1315, 2
    %v1543 = vrot.slane %v1316, 2
    %v1544 = vsel %vm1456, %v1542, %v1543
    %v1545 = vrot.slane %v1317, 2
    %v1546 = vsel %vm1456, %v1543, %v1545
    %v1547 = vrot.slane %v1318, 2
    %v1548 = vrot.slane %v1319, 2
    %v1549 = vsel %vm1456, %v1547, %v1548
    %v1550 = vrot.slane %v1320, 2
    %v1551 = vsel %vm1456, %v1548, %v1550
    %v1552 = vrot.slane %v1321, 2
    %v1553 = vrot.slane %v1322, 2
    %v1554 = vsel %vm1456, %v1552, %v1553
    %v1555 = vrot.slane %v1323, 2
    %v1556 = vsel %vm1456, %v1553, %v1555
    %v1557 = vrot.slane %v1324, 2
    %v1558 = vrot.slane %v1325, 2
    %v1559 = vsel %vm1456, %v1557, %v1558
    %v1560 = vrot.slane %v1326, 2
    %v1561 = vsel %vm1456, %v1558, %v1560
    %v1562 = vrot.slane %v1327, 2
    %v1563 = vrot.slane %v1328, 2
    %v1564 = vsel %vm1456, %v1562, %v1563
    %v1565 = vrot.slane %v1329, 2
    %v1566 = vsel %vm1456, %v1563, %v1565
    %v1567 = vrot.slane %v1330, 2
    %v1568 = vrot.slane %v1331, 2
    %v1569 = vsel %vm1456, %v1567, %v1568
    %v1570 = vrot.slane %v1332, 2
    %v1571 = vsel %vm1456, %v1568, %v1570
    %v1572 = vrot.slane %v1333, 2
    %v1573 = vrot.slane %v1334, 2
    %v1574 = vsel %vm1456, %v1572, %v1573
    %v1575 = vrot.slane %v1335, 2
    %v1576 = vsel %vm1456, %v1573, %v1575
    %v1577 = vrot.slane %v1336, 2
    %v1578 = vrot.slane %v1337, 2
    %v1579 = vsel %vm1456, %v1577, %v1578
    %v1580 = vrot.slane %v1338, 2
    %v1581 = vsel %vm1456, %v1578, %v1580
    %v1582 = vrot.slane %v1339, 2
    %v1583 = vrot.slane %v1340, 2
    %v1584 = vsel %vm1456, %v1582, %v1583
    %v1585 = vrot.slane %v1341, 2
    %v1586 = vsel %vm1456, %v1583, %v1585
    %v1587 = vrot.slane %v1342, 2
    %v1588 = vrot.slane %v1343, 2
    %v1589 = vsel %vm1456, %v1587, %v1588
    %v1590 = vrot.slane %v1344, 2
    %v1591 = vsel %vm1456, %v1588, %v1590
    %v1592 = vrot.slane %v1345, 2
    %v1593 = vrot.slane %v1346, 2
    %v1594 = vsel %vm1456, %v1592, %v1593
    %v1595 = vrot.slane %v1347, 2
    %v1596 = vsel %vm1456, %v1593, %v1595
    %v1597 = vrot.slane %v1348, 2
    %v1598 = vrot.slane %v1349, 2
    %v1599 = vsel %vm1456, %v1597, %v1598
    %v1600 = vrot.slane %v1350, 2
    %v1601 = vsel %vm1456, %v1598, %v1600
    %v1602 = vrot.slane %v1351, 2
    %v1603 = vrot.slane %v1352, 2
    %v1604 = vsel %vm1456, %v1602, %v1603
    %v1605 = vrot.slane %v1353, 2
    %v1606 = vsel %vm1456, %v1603, %v1605
    %v1607 = vrot.slane %v1354, 2
    %v1608 = vrot.slane %v1355, 2
    %v1609 = vsel %vm1456, %v1607, %v1608
    %v1610 = vrot.slane %v1356, 2
    %v1611 = vsel %vm1456, %v1608, %v1610
    %v1612 = vrot.slane %v1357, 2
    %v1613 = vrot.slane %v1358, 2
    %v1614 = vsel %vm1456, %v1612, %v1613
    %v1615 = vrot.slane %v1359, 2
    %v1616 = vsel %vm1456, %v1613, %v1615
    %v1681 = vadd.f32 %v1196, %v1459
    %v1682 = vadd.f32 %v1197, %v1461
    %v1683 = vadd.f32 %v1198, %v1464
    %v1684 = vadd.f32 %v1199, %v1466
    %v1685 = vadd.f32 %v1200, %v1469
    %v1686 = vadd.f32 %v1201, %v1471
    %v1687 = vadd.f32 %v1202, %v1474
    %v1688 = vadd.f32 %v1203, %v1476
    %v1689 = vadd.f32 %v1204, %v1479
    %v1690 = vadd.f32 %v1205, %v1481
    %v1691 = vadd.f32 %v1206, %v1484
    %v1692 = vadd.f32 %v1207, %v1486
    %v1693 = vadd.f32 %v1208, %v1489
    %v1694 = vadd.f32 %v1209, %v1491
    %v1695 = vadd.f32 %v1210, %v1494
    %v1696 = vadd.f32 %v1211, %v1496
    %v1697 = vadd.f32 %v1212, %v1499
    %v1698 = vadd.f32 %v1213, %v1501
    %v1699 = vadd.f32 %v1214, %v1504
    %v1700 = vadd.f32 %v1215, %v1506
    %v1701 = vadd.f32 %v1216, %v1509
    %v1702 = vadd.f32 %v1217, %v1511
    %v1703 = vadd.f32 %v1218, %v1514
    %v1704 = vadd.f32 %v1219, %v1516
    %v1705 = vadd.f32 %v1220, %v1519
    %v1706 = vadd.f32 %v1221, %v1521
    %v1707 = vadd.f32 %v1222, %v1524
    %v1708 = vadd.f32 %v1223, %v1526
    %v1709 = vadd.f32 %v1224, %v1529
    %v1710 = vadd.f32 %v1225, %v1531
    %v1711 = vadd.f32 %v1226, %v1534
    %v1712 = vadd.f32 %v1227, %v1536
    %v1713 = vadd.f32 %v1228, %v1539
    %v1714 = vadd.f32 %v1229, %v1541
    %v1715 = vadd.f32 %v1230, %v1544
    %v1716 = vadd.f32 %v1231, %v1546
    %v1717 = vadd.f32 %v1232, %v1549
    %v1718 = vadd.f32 %v1233, %v1551
    %v1719 = vadd.f32 %v1234, %v1554
    %v1720 = vadd.f32 %v1235, %v1556
    %v1721 = vadd.f32 %v1236, %v1559
    %v1722 = vadd.f32 %v1237, %v1561
    %v1723 = vadd.f32 %v1238, %v1564
    %v1724 = vadd.f32 %v1239, %v1566
    %v1725 = vadd.f32 %v1240, %v1569
    %v1726 = vadd.f32 %v1241, %v1571
    %v1727 = vadd.f32 %v1242, %v1574
    %v1728 = vadd.f32 %v1243, %v1576
    %v1729 = vadd.f32 %v1244, %v1579
    %v1730 = vadd.f32 %v1245, %v1581
    %v1731 = vadd.f32 %v1246, %v1584
    %v1732 = vadd.f32 %v1247, %v1586
    %v1733 = vadd.f32 %v1248, %v1589
    %v1734 = vadd.f32 %v1249, %v1591
    %v1735 = vadd.f32 %v1250, %v1594
    %v1736 = vadd.f32 %v1251, %v1596
    %v1737 = vadd.f32 %v1252, %v1599
    %v1738 = vadd.f32 %v1253, %v1601
    %v1739 = vadd.f32 %v1254, %v1604
    %v1740 = vadd.f32 %v1255, %v1606
    %v1741 = vadd.f32 %v1256, %v1609
    %v1742 = vadd.f32 %v1257, %v1611
    %v1743 = vadd.f32 %v1258, %v1614
    %v1744 = vadd.f32 %v1259, %v1616
    %s1745 = scalar_lea.vmem %s1, 3
    %v1746 = vld [vmem:[%s1745] sm:$0x1]
    %v1747 = vunpack.c.l.bf16 %v1746
    %1749 = vset.pattern.permute.xlu0 0
    %1750 = vperm.xlu0 %1749, %v104
    %v1751 = vpop.permute.xlu0 %1750
    %1754 = vset.pattern.permute.xlu0 0
    %1755 = vperm.xlu0 %1754, %v105
    %v1756 = vpop.permute.xlu0 %1755
    %1759 = vset.pattern.permute.xlu0 0
    %1760 = vperm.xlu0 %1759, %v158
    %v1761 = vpop.permute.xlu0 %1760
    %1764 = vset.pattern.permute.xlu0 0
    %1765 = vperm.xlu0 %1764, %v159
    %v1766 = vpop.permute.xlu0 %1765
    %v1768 = vperm.slane %v1747, 0
    %v1769 = vmul.f32 %v179, %v1768
    %v1770 = vmul.f32 %v184, %v1768
    %v1771 = vmul.f32 %v189, %v1768
    %v1772 = vmul.f32 %v194, %v1768
    %v1773 = vmul.f32 %v199, %v1768
    %v1774 = vmul.f32 %v204, %v1768
    %v1775 = vmul.f32 %v209, %v1768
    %v1776 = vmul.f32 %v214, %v1768
    %v1777 = vmul.f32 %v219, %v1768
    %v1778 = vmul.f32 %v224, %v1768
    %v1779 = vmul.f32 %v229, %v1768
    %v1780 = vmul.f32 %v234, %v1768
    %v1781 = vmul.f32 %v239, %v1768
    %v1782 = vmul.f32 %v244, %v1768
    %v1783 = vmul.f32 %v249, %v1768
    %v1784 = vmul.f32 %v254, %v1768
    %v1785 = vmul.f32 %v259, %v1768
    %v1786 = vmul.f32 %v264, %v1768
    %v1787 = vmul.f32 %v269, %v1768
    %v1788 = vmul.f32 %v274, %v1768
    %v1789 = vmul.f32 %v279, %v1768
    %v1790 = vmul.f32 %v284, %v1768
    %v1791 = vmul.f32 %v289, %v1768
    %v1792 = vmul.f32 %v294, %v1768
    %v1793 = vmul.f32 %v299, %v1768
    %v1794 = vmul.f32 %v304, %v1768
    %v1795 = vmul.f32 %v309, %v1768
    %v1796 = vmul.f32 %v314, %v1768
    %v1797 = vmul.f32 %v319, %v1768
    %v1798 = vmul.f32 %v324, %v1768
    %v1799 = vmul.f32 %v1751, %v1768
    %v1800 = vmul.f32 %v1756, %v1768
    %v1801 = vmul.f32 %v339, %v1768
    %v1802 = vmul.f32 %v344, %v1768
    %v1803 = vmul.f32 %v349, %v1768
    %v1804 = vmul.f32 %v354, %v1768
    %v1805 = vmul.f32 %v359, %v1768
    %v1806 = vmul.f32 %v364, %v1768
    %v1807 = vmul.f32 %v369, %v1768
    %v1808 = vmul.f32 %v374, %v1768
    %v1809 = vmul.f32 %v379, %v1768
    %v1810 = vmul.f32 %v384, %v1768
    %v1811 = vmul.f32 %v389, %v1768
    %v1812 = vmul.f32 %v394, %v1768
    %v1813 = vmul.f32 %v399, %v1768
    %v1814 = vmul.f32 %v404, %v1768
    %v1815 = vmul.f32 %v409, %v1768
    %v1816 = vmul.f32 %v414, %v1768
    %v1817 = vmul.f32 %v419, %v1768
    %v1818 = vmul.f32 %v424, %v1768
    %v1819 = vmul.f32 %v429, %v1768
    %v1820 = vmul.f32 %v434, %v1768
    %v1821 = vmul.f32 %v439, %v1768
    %v1822 = vmul.f32 %v444, %v1768
    %v1823 = vmul.f32 %v449, %v1768
    %v1824 = vmul.f32 %v454, %v1768
    %v1825 = vmul.f32 %v459, %v1768
    %v1826 = vmul.f32 %v464, %v1768
    %v1827 = vmul.f32 %v469, %v1768
    %v1828 = vmul.f32 %v474, %v1768
    %v1829 = vmul.f32 %v479, %v1768
    %v1830 = vmul.f32 %v484, %v1768
    %v1831 = vmul.f32 %v1761, %v1768
    %v1832 = vmul.f32 %v1766, %v1768
    %v1833 = vadd.f32 %v1681, %v1769
    %v1834 = vadd.f32 %v1682, %v1770
    %v1835 = vadd.f32 %v1683, %v1771
    %v1836 = vadd.f32 %v1684, %v1772
    %v1837 = vadd.f32 %v1685, %v1773
    %v1838 = vadd.f32 %v1686, %v1774
    %v1839 = vadd.f32 %v1687, %v1775
    %v1840 = vadd.f32 %v1688, %v1776
    %v1841 = vadd.f32 %v1689, %v1777
    %v1842 = vadd.f32 %v1690, %v1778
    %v1843 = vadd.f32 %v1691, %v1779
    %v1844 = vadd.f32 %v1692, %v1780
    %v1845 = vadd.f32 %v1693, %v1781
    %v1846 = vadd.f32 %v1694, %v1782
    %v1847 = vadd.f32 %v1695, %v1783
    %v1848 = vadd.f32 %v1696, %v1784
    %v1849 = vadd.f32 %v1697, %v1785
    %v1850 = vadd.f32 %v1698, %v1786
    %v1851 = vadd.f32 %v1699, %v1787
    %v1852 = vadd.f32 %v1700, %v1788
    %v1853 = vadd.f32 %v1701, %v1789
    %v1854 = vadd.f32 %v1702, %v1790
    %v1855 = vadd.f32 %v1703, %v1791
    %v1856 = vadd.f32 %v1704, %v1792
    %v1857 = vadd.f32 %v1705, %v1793
    %v1858 = vadd.f32 %v1706, %v1794
    %v1859 = vadd.f32 %v1707, %v1795
    %v1860 = vadd.f32 %v1708, %v1796
    %v1861 = vadd.f32 %v1709, %v1797
    %v1862 = vadd.f32 %v1710, %v1798
    %v1863 = vadd.f32 %v1711, %v1799
    %v1864 = vadd.f32 %v1712, %v1800
    %v1865 = vadd.f32 %v1713, %v1801
    %v1866 = vadd.f32 %v1714, %v1802
    %v1867 = vadd.f32 %v1715, %v1803
    %v1868 = vadd.f32 %v1716, %v1804
    %v1869 = vadd.f32 %v1717, %v1805
    %v1870 = vadd.f32 %v1718, %v1806
    %v1871 = vadd.f32 %v1719, %v1807
    %v1872 = vadd.f32 %v1720, %v1808
    %v1873 = vadd.f32 %v1721, %v1809
    %v1874 = vadd.f32 %v1722, %v1810
    %v1875 = vadd.f32 %v1723, %v1811
    %v1876 = vadd.f32 %v1724, %v1812
    %v1877 = vadd.f32 %v1725, %v1813
    %v1878 = vadd.f32 %v1726, %v1814
    %v1879 = vadd.f32 %v1727, %v1815
    %v1880 = vadd.f32 %v1728, %v1816
    %v1881 = vadd.f32 %v1729, %v1817
    %v1882 = vadd.f32 %v1730, %v1818
    %v1883 = vadd.f32 %v1731, %v1819
    %v1884 = vadd.f32 %v1732, %v1820
    %v1885 = vadd.f32 %v1733, %v1821
    %v1886 = vadd.f32 %v1734, %v1822
    %v1887 = vadd.f32 %v1735, %v1823
    %v1888 = vadd.f32 %v1736, %v1824
    %v1889 = vadd.f32 %v1737, %v1825
    %v1890 = vadd.f32 %v1738, %v1826
    %v1891 = vadd.f32 %v1739, %v1827
    %v1892 = vadd.f32 %v1740, %v1828
    %v1893 = vadd.f32 %v1741, %v1829
    %v1894 = vadd.f32 %v1742, %v1830
    %v1895 = vadd.f32 %v1743, %v1831
    %v1896 = vadd.f32 %v1744, %v1832
    %s1897 = scalar_lea.vmem %s1, 4
    %v1898 = vld [vmem:[%s1897] sm:$0x1]
    %v1899 = vunpack.c.l.bf16 %v1898
    %1901 = vset.pattern.permute.xlu0 0
    %1902 = vperm.xlu0 %1901, %v106
    %v1903 = vpop.permute.xlu0 %1902
    %1906 = vset.pattern.permute.xlu0 0
    %1907 = vperm.xlu0 %1906, %v160
    %v1908 = vpop.permute.xlu0 %1907
    %v1910 = vperm.slane %v1899, 0
    %v1911 = vmul.f32 %v179, %v1910
    %v1912 = vmul.f32 %v184, %v1910
    %v1913 = vmul.f32 %v626, %v1910
    %v1914 = vmul.f32 %v189, %v1910
    %v1915 = vmul.f32 %v194, %v1910
    %v1916 = vmul.f32 %v631, %v1910
    %v1917 = vmul.f32 %v199, %v1910
    %v1918 = vmul.f32 %v204, %v1910
    %v1919 = vmul.f32 %v636, %v1910
    %v1920 = vmul.f32 %v209, %v1910
    %v1921 = vmul.f32 %v214, %v1910
    %v1922 = vmul.f32 %v641, %v1910
    %v1923 = vmul.f32 %v219, %v1910
    %v1924 = vmul.f32 %v224, %v1910
    %v1925 = vmul.f32 %v646, %v1910
    %v1926 = vmul.f32 %v229, %v1910
    %v1927 = vmul.f32 %v234, %v1910
    %v1928 = vmul.f32 %v651, %v1910
    %v1929 = vmul.f32 %v239, %v1910
    %v1930 = vmul.f32 %v244, %v1910
    %v1931 = vmul.f32 %v656, %v1910
    %v1932 = vmul.f32 %v249, %v1910
    %v1933 = vmul.f32 %v254, %v1910
    %v1934 = vmul.f32 %v661, %v1910
    %v1935 = vmul.f32 %v259, %v1910
    %v1936 = vmul.f32 %v264, %v1910
    %v1937 = vmul.f32 %v666, %v1910
    %v1938 = vmul.f32 %v269, %v1910
    %v1939 = vmul.f32 %v274, %v1910
    %v1940 = vmul.f32 %v671, %v1910
    %v1941 = vmul.f32 %v279, %v1910
    %v1942 = vmul.f32 %v284, %v1910
    %v1943 = vmul.f32 %v676, %v1910
    %v1944 = vmul.f32 %v289, %v1910
    %v1945 = vmul.f32 %v294, %v1910
    %v1946 = vmul.f32 %v681, %v1910
    %v1947 = vmul.f32 %v299, %v1910
    %v1948 = vmul.f32 %v304, %v1910
    %v1949 = vmul.f32 %v686, %v1910
    %v1950 = vmul.f32 %v309, %v1910
    %v1951 = vmul.f32 %v314, %v1910
    %v1952 = vmul.f32 %v691, %v1910
    %v1953 = vmul.f32 %v319, %v1910
    %v1954 = vmul.f32 %v324, %v1910
    %v1955 = vmul.f32 %v696, %v1910
    %v1956 = vmul.f32 %v1751, %v1910
    %v1957 = vmul.f32 %v1756, %v1910
    %v1958 = vmul.f32 %v1903, %v1910
    %v1959 = vmul.f32 %v339, %v1910
    %v1960 = vmul.f32 %v344, %v1910
    %v1961 = vmul.f32 %v706, %v1910
    %v1962 = vmul.f32 %v349, %v1910
    %v1963 = vmul.f32 %v354, %v1910
    %v1964 = vmul.f32 %v711, %v1910
    %v1965 = vmul.f32 %v359, %v1910
    %v1966 = vmul.f32 %v364, %v1910
    %v1967 = vmul.f32 %v716, %v1910
    %v1968 = vmul.f32 %v369, %v1910
    %v1969 = vmul.f32 %v374, %v1910
    %v1970 = vmul.f32 %v721, %v1910
    %v1971 = vmul.f32 %v379, %v1910
    %v1972 = vmul.f32 %v384, %v1910
    %v1973 = vmul.f32 %v726, %v1910
    %v1974 = vmul.f32 %v389, %v1910
    %v1975 = vmul.f32 %v394, %v1910
    %v1976 = vmul.f32 %v731, %v1910
    %v1977 = vmul.f32 %v399, %v1910
    %v1978 = vmul.f32 %v404, %v1910
    %v1979 = vmul.f32 %v736, %v1910
    %v1980 = vmul.f32 %v409, %v1910
    %v1981 = vmul.f32 %v414, %v1910
    %v1982 = vmul.f32 %v741, %v1910
    %v1983 = vmul.f32 %v419, %v1910
    %v1984 = vmul.f32 %v424, %v1910
    %v1985 = vmul.f32 %v746, %v1910
    %v1986 = vmul.f32 %v429, %v1910
    %v1987 = vmul.f32 %v434, %v1910
    %v1988 = vmul.f32 %v751, %v1910
    %v1989 = vmul.f32 %v439, %v1910
    %v1990 = vmul.f32 %v444, %v1910
    %v1991 = vmul.f32 %v756, %v1910
    %v1992 = vmul.f32 %v449, %v1910
    %v1993 = vmul.f32 %v454, %v1910
    %v1994 = vmul.f32 %v761, %v1910
    %v1995 = vmul.f32 %v459, %v1910
    %v1996 = vmul.f32 %v464, %v1910
    %v1997 = vmul.f32 %v766, %v1910
    %v1998 = vmul.f32 %v469, %v1910
    %v1999 = vmul.f32 %v474, %v1910
    %v2000 = vmul.f32 %v771, %v1910
    %v2001 = vmul.f32 %v479, %v1910
    %v2002 = vmul.f32 %v484, %v1910
    %v2003 = vmul.f32 %v776, %v1910
    %v2004 = vmul.f32 %v1761, %v1910
    %v2005 = vmul.f32 %v1766, %v1910
    %v2006 = vmul.f32 %v1908, %v1910
    %v2103 = vrot.slane %v1911, 1
    %v2104 = vrot.slane %v1912, 1
    %v2105 = vsel %vm971, %v2103, %v2104
    %v2106 = vrot.slane %v1913, 1
    %v2107 = vsel %vm971, %v2104, %v2106
    %v2108 = vrot.slane %v1914, 1
    %v2109 = vrot.slane %v1915, 1
    %v2110 = vsel %vm971, %v2108, %v2109
    %v2111 = vrot.slane %v1916, 1
    %v2112 = vsel %vm971, %v2109, %v2111
    %v2113 = vrot.slane %v1917, 1
    %v2114 = vrot.slane %v1918, 1
    %v2115 = vsel %vm971, %v2113, %v2114
    %v2116 = vrot.slane %v1919, 1
    %v2117 = vsel %vm971, %v2114, %v2116
    %v2118 = vrot.slane %v1920, 1
    %v2119 = vrot.slane %v1921, 1
    %v2120 = vsel %vm971, %v2118, %v2119
    %v2121 = vrot.slane %v1922, 1
    %v2122 = vsel %vm971, %v2119, %v2121
    %v2123 = vrot.slane %v1923, 1
    %v2124 = vrot.slane %v1924, 1
    %v2125 = vsel %vm971, %v2123, %v2124
    %v2126 = vrot.slane %v1925, 1
    %v2127 = vsel %vm971, %v2124, %v2126
    %v2128 = vrot.slane %v1926, 1
    %v2129 = vrot.slane %v1927, 1
    %v2130 = vsel %vm971, %v2128, %v2129
    %v2131 = vrot.slane %v1928, 1
    %v2132 = vsel %vm971, %v2129, %v2131
    %v2133 = vrot.slane %v1929, 1
    %v2134 = vrot.slane %v1930, 1
    %v2135 = vsel %vm971, %v2133, %v2134
    %v2136 = vrot.slane %v1931, 1
    %v2137 = vsel %vm971, %v2134, %v2136
    %v2138 = vrot.slane %v1932, 1
    %v2139 = vrot.slane %v1933, 1
    %v2140 = vsel %vm971, %v2138, %v2139
    %v2141 = vrot.slane %v1934, 1
    %v2142 = vsel %vm971, %v2139, %v2141
    %v2143 = vrot.slane %v1935, 1
    %v2144 = vrot.slane %v1936, 1
    %v2145 = vsel %vm971, %v2143, %v2144
    %v2146 = vrot.slane %v1937, 1
    %v2147 = vsel %vm971, %v2144, %v2146
    %v2148 = vrot.slane %v1938, 1
    %v2149 = vrot.slane %v1939, 1
    %v2150 = vsel %vm971, %v2148, %v2149
    %v2151 = vrot.slane %v1940, 1
    %v2152 = vsel %vm971, %v2149, %v2151
    %v2153 = vrot.slane %v1941, 1
    %v2154 = vrot.slane %v1942, 1
    %v2155 = vsel %vm971, %v2153, %v2154
    %v2156 = vrot.slane %v1943, 1
    %v2157 = vsel %vm971, %v2154, %v2156
    %v2158 = vrot.slane %v1944, 1
    %v2159 = vrot.slane %v1945, 1
    %v2160 = vsel %vm971, %v2158, %v2159
    %v2161 = vrot.slane %v1946, 1
    %v2162 = vsel %vm971, %v2159, %v2161
    %v2163 = vrot.slane %v1947, 1
    %v2164 = vrot.slane %v1948, 1
    %v2165 = vsel %vm971, %v2163, %v2164
    %v2166 = vrot.slane %v1949, 1
    %v2167 = vsel %vm971, %v2164, %v2166
    %v2168 = vrot.slane %v1950, 1
    %v2169 = vrot.slane %v1951, 1
    %v2170 = vsel %vm971, %v2168, %v2169
    %v2171 = vrot.slane %v1952, 1
    %v2172 = vsel %vm971, %v2169, %v2171
    %v2173 = vrot.slane %v1953, 1
    %v2174 = vrot.slane %v1954, 1
    %v2175 = vsel %vm971, %v2173, %v2174
    %v2176 = vrot.slane %v1955, 1
    %v2177 = vsel %vm971, %v2174, %v2176
    %v2178 = vrot.slane %v1956, 1
    %v2179 = vrot.slane %v1957, 1
    %v2180 = vsel %vm971, %v2178, %v2179
    %v2181 = vrot.slane %v1958, 1
    %v2182 = vsel %vm971, %v2179, %v2181
    %v2183 = vrot.slane %v1959, 1
    %v2184 = vrot.slane %v1960, 1
    %v2185 = vsel %vm971, %v2183, %v2184
    %v2186 = vrot.slane %v1961, 1
    %v2187 = vsel %vm971, %v2184, %v2186
    %v2188 = vrot.slane %v1962, 1
    %v2189 = vrot.slane %v1963, 1
    %v2190 = vsel %vm971, %v2188, %v2189
    %v2191 = vrot.slane %v1964, 1
    %v2192 = vsel %vm971, %v2189, %v2191
    %v2193 = vrot.slane %v1965, 1
    %v2194 = vrot.slane %v1966, 1
    %v2195 = vsel %vm971, %v2193, %v2194
    %v2196 = vrot.slane %v1967, 1
    %v2197 = vsel %vm971, %v2194, %v2196
    %v2198 = vrot.slane %v1968, 1
    %v2199 = vrot.slane %v1969, 1
    %v2200 = vsel %vm971, %v2198, %v2199
    %v2201 = vrot.slane %v1970, 1
    %v2202 = vsel %vm971, %v2199, %v2201
    %v2203 = vrot.slane %v1971, 1
    %v2204 = vrot.slane %v1972, 1
    %v2205 = vsel %vm971, %v2203, %v2204
    %v2206 = vrot.slane %v1973, 1
    %v2207 = vsel %vm971, %v2204, %v2206
    %v2208 = vrot.slane %v1974, 1
    %v2209 = vrot.slane %v1975, 1
    %v2210 = vsel %vm971, %v2208, %v2209
    %v2211 = vrot.slane %v1976, 1
    %v2212 = vsel %vm971, %v2209, %v2211
    %v2213 = vrot.slane %v1977, 1
    %v2214 = vrot.slane %v1978, 1
    %v2215 = vsel %vm971, %v2213, %v2214
    %v2216 = vrot.slane %v1979, 1
    %v2217 = vsel %vm971, %v2214, %v2216
    %v2218 = vrot.slane %v1980, 1
    %v2219 = vrot.slane %v1981, 1
    %v2220 = vsel %vm971, %v2218, %v2219
    %v2221 = vrot.slane %v1982, 1
    %v2222 = vsel %vm971, %v2219, %v2221
    %v2223 = vrot.slane %v1983, 1
    %v2224 = vrot.slane %v1984, 1
    %v2225 = vsel %vm971, %v2223, %v2224
    %v2226 = vrot.slane %v1985, 1
    %v2227 = vsel %vm971, %v2224, %v2226
    %v2228 = vrot.slane %v1986, 1
    %v2229 = vrot.slane %v1987, 1
    %v2230 = vsel %vm971, %v2228, %v2229
    %v2231 = vrot.slane %v1988, 1
    %v2232 = vsel %vm971, %v2229, %v2231
    %v2233 = vrot.slane %v1989, 1
    %v2234 = vrot.slane %v1990, 1
    %v2235 = vsel %vm971, %v2233, %v2234
    %v2236 = vrot.slane %v1991, 1
    %v2237 = vsel %vm971, %v2234, %v2236
    %v2238 = vrot.slane %v1992, 1
    %v2239 = vrot.slane %v1993, 1
    %v2240 = vsel %vm971, %v2238, %v2239
    %v2241 = vrot.slane %v1994, 1
    %v2242 = vsel %vm971, %v2239, %v2241
    %v2243 = vrot.slane %v1995, 1
    %v2244 = vrot.slane %v1996, 1
    %v2245 = vsel %vm971, %v2243, %v2244
    %v2246 = vrot.slane %v1997, 1
    %v2247 = vsel %vm971, %v2244, %v2246
    %v2248 = vrot.slane %v1998, 1
    %v2249 = vrot.slane %v1999, 1
    %v2250 = vsel %vm971, %v2248, %v2249
    %v2251 = vrot.slane %v2000, 1
    %v2252 = vsel %vm971, %v2249, %v2251
    %v2253 = vrot.slane %v2001, 1
    %v2254 = vrot.slane %v2002, 1
    %v2255 = vsel %vm971, %v2253, %v2254
    %v2256 = vrot.slane %v2003, 1
    %v2257 = vsel %vm971, %v2254, %v2256
    %v2258 = vrot.slane %v2004, 1
    %v2259 = vrot.slane %v2005, 1
    %v2260 = vsel %vm971, %v2258, %v2259
    %v2261 = vrot.slane %v2006, 1
    %v2262 = vsel %vm971, %v2259, %v2261
    %v2327 = vadd.f32 %v1833, %v2105
    %v2328 = vadd.f32 %v1834, %v2107
    %v2329 = vadd.f32 %v1835, %v2110
    %v2330 = vadd.f32 %v1836, %v2112
    %v2331 = vadd.f32 %v1837, %v2115
    %v2332 = vadd.f32 %v1838, %v2117
    %v2333 = vadd.f32 %v1839, %v2120
    %v2334 = vadd.f32 %v1840, %v2122
    %v2335 = vadd.f32 %v1841, %v2125
    %v2336 = vadd.f32 %v1842, %v2127
    %v2337 = vadd.f32 %v1843, %v2130
    %v2338 = vadd.f32 %v1844, %v2132
    %v2339 = vadd.f32 %v1845, %v2135
    %v2340 = vadd.f32 %v1846, %v2137
    %v2341 = vadd.f32 %v1847, %v2140
    %v2342 = vadd.f32 %v1848, %v2142
    %v2343 = vadd.f32 %v1849, %v2145
    %v2344 = vadd.f32 %v1850, %v2147
    %v2345 = vadd.f32 %v1851, %v2150
    %v2346 = vadd.f32 %v1852, %v2152
    %v2347 = vadd.f32 %v1853, %v2155
    %v2348 = vadd.f32 %v1854, %v2157
    %v2349 = vadd.f32 %v1855, %v2160
    %v2350 = vadd.f32 %v1856, %v2162
    %v2351 = vadd.f32 %v1857, %v2165
    %v2352 = vadd.f32 %v1858, %v2167
    %v2353 = vadd.f32 %v1859, %v2170
    %v2354 = vadd.f32 %v1860, %v2172
    %v2355 = vadd.f32 %v1861, %v2175
    %v2356 = vadd.f32 %v1862, %v2177
    %v2357 = vadd.f32 %v1863, %v2180
    %v2358 = vadd.f32 %v1864, %v2182
    %v2359 = vadd.f32 %v1865, %v2185
    %v2360 = vadd.f32 %v1866, %v2187
    %v2361 = vadd.f32 %v1867, %v2190
    %v2362 = vadd.f32 %v1868, %v2192
    %v2363 = vadd.f32 %v1869, %v2195
    %v2364 = vadd.f32 %v1870, %v2197
    %v2365 = vadd.f32 %v1871, %v2200
    %v2366 = vadd.f32 %v1872, %v2202
    %v2367 = vadd.f32 %v1873, %v2205
    %v2368 = vadd.f32 %v1874, %v2207
    %v2369 = vadd.f32 %v1875, %v2210
    %v2370 = vadd.f32 %v1876, %v2212
    %v2371 = vadd.f32 %v1877, %v2215
    %v2372 = vadd.f32 %v1878, %v2217
    %v2373 = vadd.f32 %v1879, %v2220
    %v2374 = vadd.f32 %v1880, %v2222
    %v2375 = vadd.f32 %v1881, %v2225
    %v2376 = vadd.f32 %v1882, %v2227
    %v2377 = vadd.f32 %v1883, %v2230
    %v2378 = vadd.f32 %v1884, %v2232
    %v2379 = vadd.f32 %v1885, %v2235
    %v2380 = vadd.f32 %v1886, %v2237
    %v2381 = vadd.f32 %v1887, %v2240
    %v2382 = vadd.f32 %v1888, %v2242
    %v2383 = vadd.f32 %v1889, %v2245
    %v2384 = vadd.f32 %v1890, %v2247
    %v2385 = vadd.f32 %v1891, %v2250
    %v2386 = vadd.f32 %v1892, %v2252
    %v2387 = vadd.f32 %v1893, %v2255
    %v2388 = vadd.f32 %v1894, %v2257
    %v2389 = vadd.f32 %v1895, %v2260
    %v2390 = vadd.f32 %v1896, %v2262
    %s2391 = scalar_lea.vmem %s1, 5
    %v2392 = vld [vmem:[%s2391] sm:$0x1]
    %v2393 = vunpack.c.l.bf16 %v2392
    %v2394 = vperm.slane %v2393, 0
    %v2395 = vmul.f32 %v179, %v2394
    %v2396 = vmul.f32 %v184, %v2394
    %v2397 = vmul.f32 %v626, %v2394
    %v2398 = vmul.f32 %v189, %v2394
    %v2399 = vmul.f32 %v194, %v2394
    %v2400 = vmul.f32 %v631, %v2394
    %v2401 = vmul.f32 %v199, %v2394
    %v2402 = vmul.f32 %v204, %v2394
    %v2403 = vmul.f32 %v636, %v2394
    %v2404 = vmul.f32 %v209, %v2394
    %v2405 = vmul.f32 %v214, %v2394
    %v2406 = vmul.f32 %v641, %v2394
    %v2407 = vmul.f32 %v219, %v2394
    %v2408 = vmul.f32 %v224, %v2394
    %v2409 = vmul.f32 %v646, %v2394
    %v2410 = vmul.f32 %v229, %v2394
    %v2411 = vmul.f32 %v234, %v2394
    %v2412 = vmul.f32 %v651, %v2394
    %v2413 = vmul.f32 %v239, %v2394
    %v2414 = vmul.f32 %v244, %v2394
    %v2415 = vmul.f32 %v656, %v2394
    %v2416 = vmul.f32 %v249, %v2394
    %v2417 = vmul.f32 %v254, %v2394
    %v2418 = vmul.f32 %v661, %v2394
    %v2419 = vmul.f32 %v259, %v2394
    %v2420 = vmul.f32 %v264, %v2394
    %v2421 = vmul.f32 %v666, %v2394
    %v2422 = vmul.f32 %v269, %v2394
    %v2423 = vmul.f32 %v274, %v2394
    %v2424 = vmul.f32 %v671, %v2394
    %v2425 = vmul.f32 %v279, %v2394
    %v2426 = vmul.f32 %v284, %v2394
    %v2427 = vmul.f32 %v676, %v2394
    %v2428 = vmul.f32 %v289, %v2394
    %v2429 = vmul.f32 %v294, %v2394
    %v2430 = vmul.f32 %v681, %v2394
    %v2431 = vmul.f32 %v299, %v2394
    %v2432 = vmul.f32 %v304, %v2394
    %v2433 = vmul.f32 %v686, %v2394
    %v2434 = vmul.f32 %v309, %v2394
    %v2435 = vmul.f32 %v314, %v2394
    %v2436 = vmul.f32 %v691, %v2394
    %v2437 = vmul.f32 %v319, %v2394
    %v2438 = vmul.f32 %v324, %v2394
    %v2439 = vmul.f32 %v696, %v2394
    %v2440 = vmul.f32 %v1751, %v2394
    %v2441 = vmul.f32 %v1756, %v2394
    %v2442 = vmul.f32 %v1903, %v2394
    %v2443 = vmul.f32 %v339, %v2394
    %v2444 = vmul.f32 %v344, %v2394
    %v2445 = vmul.f32 %v706, %v2394
    %v2446 = vmul.f32 %v349, %v2394
    %v2447 = vmul.f32 %v354, %v2394
    %v2448 = vmul.f32 %v711, %v2394
    %v2449 = vmul.f32 %v359, %v2394
    %v2450 = vmul.f32 %v364, %v2394
    %v2451 = vmul.f32 %v716, %v2394
    %v2452 = vmul.f32 %v369, %v2394
    %v2453 = vmul.f32 %v374, %v2394
    %v2454 = vmul.f32 %v721, %v2394
    %v2455 = vmul.f32 %v379, %v2394
    %v2456 = vmul.f32 %v384, %v2394
    %v2457 = vmul.f32 %v726, %v2394
    %v2458 = vmul.f32 %v389, %v2394
    %v2459 = vmul.f32 %v394, %v2394
    %v2460 = vmul.f32 %v731, %v2394
    %v2461 = vmul.f32 %v399, %v2394
    %v2462 = vmul.f32 %v404, %v2394
    %v2463 = vmul.f32 %v736, %v2394
    %v2464 = vmul.f32 %v409, %v2394
    %v2465 = vmul.f32 %v414, %v2394
    %v2466 = vmul.f32 %v741, %v2394
    %v2467 = vmul.f32 %v419, %v2394
    %v2468 = vmul.f32 %v424, %v2394
    %v2469 = vmul.f32 %v746, %v2394
    %v2470 = vmul.f32 %v429, %v2394
    %v2471 = vmul.f32 %v434, %v2394
    %v2472 = vmul.f32 %v751, %v2394
    %v2473 = vmul.f32 %v439, %v2394
    %v2474 = vmul.f32 %v444, %v2394
    %v2475 = vmul.f32 %v756, %v2394
    %v2476 = vmul.f32 %v449, %v2394
    %v2477 = vmul.f32 %v454, %v2394
    %v2478 = vmul.f32 %v761, %v2394
    %v2479 = vmul.f32 %v459, %v2394
    %v2480 = vmul.f32 %v464, %v2394
    %v2481 = vmul.f32 %v766, %v2394
    %v2482 = vmul.f32 %v469, %v2394
    %v2483 = vmul.f32 %v474, %v2394
    %v2484 = vmul.f32 %v771, %v2394
    %v2485 = vmul.f32 %v479, %v2394
    %v2486 = vmul.f32 %v484, %v2394
    %v2487 = vmul.f32 %v776, %v2394
    %v2488 = vmul.f32 %v1761, %v2394
    %v2489 = vmul.f32 %v1766, %v2394
    %v2490 = vmul.f32 %v1908, %v2394
    %v2587 = vrot.slane %v2395, 2
    %v2588 = vrot.slane %v2396, 2
    %v2589 = vsel %vm1456, %v2587, %v2588
    %v2590 = vrot.slane %v2397, 2
    %v2591 = vsel %vm1456, %v2588, %v2590
    %v2592 = vrot.slane %v2398, 2
    %v2593 = vrot.slane %v2399, 2
    %v2594 = vsel %vm1456, %v2592, %v2593
    %v2595 = vrot.slane %v2400, 2
    %v2596 = vsel %vm1456, %v2593, %v2595
    %v2597 = vrot.slane %v2401, 2
    %v2598 = vrot.slane %v2402, 2
    %v2599 = vsel %vm1456, %v2597, %v2598
    %v2600 = vrot.slane %v2403, 2
    %v2601 = vsel %vm1456, %v2598, %v2600
    %v2602 = vrot.slane %v2404, 2
    %v2603 = vrot.slane %v2405, 2
    %v2604 = vsel %vm1456, %v2602, %v2603
    %v2605 = vrot.slane %v2406, 2
    %v2606 = vsel %vm1456, %v2603, %v2605
    %v2607 = vrot.slane %v2407, 2
    %v2608 = vrot.slane %v2408, 2
    %v2609 = vsel %vm1456, %v2607, %v2608
    %v2610 = vrot.slane %v2409, 2
    %v2611 = vsel %vm1456, %v2608, %v2610
    %v2612 = vrot.slane %v2410, 2
    %v2613 = vrot.slane %v2411, 2
    %v2614 = vsel %vm1456, %v2612, %v2613
    %v2615 = vrot.slane %v2412, 2
    %v2616 = vsel %vm1456, %v2613, %v2615
    %v2617 = vrot.slane %v2413, 2
    %v2618 = vrot.slane %v2414, 2
    %v2619 = vsel %vm1456, %v2617, %v2618
    %v2620 = vrot.slane %v2415, 2
    %v2621 = vsel %vm1456, %v2618, %v2620
    %v2622 = vrot.slane %v2416, 2
    %v2623 = vrot.slane %v2417, 2
    %v2624 = vsel %vm1456, %v2622, %v2623
    %v2625 = vrot.slane %v2418, 2
    %v2626 = vsel %vm1456, %v2623, %v2625
    %v2627 = vrot.slane %v2419, 2
    %v2628 = vrot.slane %v2420, 2
    %v2629 = vsel %vm1456, %v2627, %v2628
    %v2630 = vrot.slane %v2421, 2
    %v2631 = vsel %vm1456, %v2628, %v2630
    %v2632 = vrot.slane %v2422, 2
    %v2633 = vrot.slane %v2423, 2
    %v2634 = vsel %vm1456, %v2632, %v2633
    %v2635 = vrot.slane %v2424, 2
    %v2636 = vsel %vm1456, %v2633, %v2635
    %v2637 = vrot.slane %v2425, 2
    %v2638 = vrot.slane %v2426, 2
    %v2639 = vsel %vm1456, %v2637, %v2638
    %v2640 = vrot.slane %v2427, 2
    %v2641 = vsel %vm1456, %v2638, %v2640
    %v2642 = vrot.slane %v2428, 2
    %v2643 = vrot.slane %v2429, 2
    %v2644 = vsel %vm1456, %v2642, %v2643
    %v2645 = vrot.slane %v2430, 2
    %v2646 = vsel %vm1456, %v2643, %v2645
    %v2647 = vrot.slane %v2431, 2
    %v2648 = vrot.slane %v2432, 2
    %v2649 = vsel %vm1456, %v2647, %v2648
    %v2650 = vrot.slane %v2433, 2
    %v2651 = vsel %vm1456, %v2648, %v2650
    %v2652 = vrot.slane %v2434, 2
    %v2653 = vrot.slane %v2435, 2
    %v2654 = vsel %vm1456, %v2652, %v2653
    %v2655 = vrot.slane %v2436, 2
    %v2656 = vsel %vm1456, %v2653, %v2655
    %v2657 = vrot.slane %v2437, 2
    %v2658 = vrot.slane %v2438, 2
    %v2659 = vsel %vm1456, %v2657, %v2658
    %v2660 = vrot.slane %v2439, 2
    %v2661 = vsel %vm1456, %v2658, %v2660
    %v2662 = vrot.slane %v2440, 2
    %v2663 = vrot.slane %v2441, 2
    %v2664 = vsel %vm1456, %v2662, %v2663
    %v2665 = vrot.slane %v2442, 2
    %v2666 = vsel %vm1456, %v2663, %v2665
    %v2667 = vrot.slane %v2443, 2
    %v2668 = vrot.slane %v2444, 2
    %v2669 = vsel %vm1456, %v2667, %v2668
    %v2670 = vrot.slane %v2445, 2
    %v2671 = vsel %vm1456, %v2668, %v2670
    %v2672 = vrot.slane %v2446, 2
    %v2673 = vrot.slane %v2447, 2
    %v2674 = vsel %vm1456, %v2672, %v2673
    %v2675 = vrot.slane %v2448, 2
    %v2676 = vsel %vm1456, %v2673, %v2675
    %v2677 = vrot.slane %v2449, 2
    %v2678 = vrot.slane %v2450, 2
    %v2679 = vsel %vm1456, %v2677, %v2678
    %v2680 = vrot.slane %v2451, 2
    %v2681 = vsel %vm1456, %v2678, %v2680
    %v2682 = vrot.slane %v2452, 2
    %v2683 = vrot.slane %v2453, 2
    %v2684 = vsel %vm1456, %v2682, %v2683
    %v2685 = vrot.slane %v2454, 2
    %v2686 = vsel %vm1456, %v2683, %v2685
    %v2687 = vrot.slane %v2455, 2
    %v2688 = vrot.slane %v2456, 2
    %v2689 = vsel %vm1456, %v2687, %v2688
    %v2690 = vrot.slane %v2457, 2
    %v2691 = vsel %vm1456, %v2688, %v2690
    %v2692 = vrot.slane %v2458, 2
    %v2693 = vrot.slane %v2459, 2
    %v2694 = vsel %vm1456, %v2692, %v2693
    %v2695 = vrot.slane %v2460, 2
    %v2696 = vsel %vm1456, %v2693, %v2695
    %v2697 = vrot.slane %v2461, 2
    %v2698 = vrot.slane %v2462, 2
    %v2699 = vsel %vm1456, %v2697, %v2698
    %v2700 = vrot.slane %v2463, 2
    %v2701 = vsel %vm1456, %v2698, %v2700
    %v2702 = vrot.slane %v2464, 2
    %v2703 = vrot.slane %v2465, 2
    %v2704 = vsel %vm1456, %v2702, %v2703
    %v2705 = vrot.slane %v2466, 2
    %v2706 = vsel %vm1456, %v2703, %v2705
    %v2707 = vrot.slane %v2467, 2
    %v2708 = vrot.slane %v2468, 2
    %v2709 = vsel %vm1456, %v2707, %v2708
    %v2710 = vrot.slane %v2469, 2
    %v2711 = vsel %vm1456, %v2708, %v2710
    %v2712 = vrot.slane %v2470, 2
    %v2713 = vrot.slane %v2471, 2
    %v2714 = vsel %vm1456, %v2712, %v2713
    %v2715 = vrot.slane %v2472, 2
    %v2716 = vsel %vm1456, %v2713, %v2715
    %v2717 = vrot.slane %v2473, 2
    %v2718 = vrot.slane %v2474, 2
    %v2719 = vsel %vm1456, %v2717, %v2718
    %v2720 = vrot.slane %v2475, 2
    %v2721 = vsel %vm1456, %v2718, %v2720
    %v2722 = vrot.slane %v2476, 2
    %v2723 = vrot.slane %v2477, 2
    %v2724 = vsel %vm1456, %v2722, %v2723
    %v2725 = vrot.slane %v2478, 2
    %v2726 = vsel %vm1456, %v2723, %v2725
    %v2727 = vrot.slane %v2479, 2
    %v2728 = vrot.slane %v2480, 2
    %v2729 = vsel %vm1456, %v2727, %v2728
    %v2730 = vrot.slane %v2481, 2
    %v2731 = vsel %vm1456, %v2728, %v2730
    %v2732 = vrot.slane %v2482, 2
    %v2733 = vrot.slane %v2483, 2
    %v2734 = vsel %vm1456, %v2732, %v2733
    %v2735 = vrot.slane %v2484, 2
    %v2736 = vsel %vm1456, %v2733, %v2735
    %v2737 = vrot.slane %v2485, 2
    %v2738 = vrot.slane %v2486, 2
    %v2739 = vsel %vm1456, %v2737, %v2738
    %v2740 = vrot.slane %v2487, 2
    %v2741 = vsel %vm1456, %v2738, %v2740
    %v2742 = vrot.slane %v2488, 2
    %v2743 = vrot.slane %v2489, 2
    %v2744 = vsel %vm1456, %v2742, %v2743
    %v2745 = vrot.slane %v2490, 2
    %v2746 = vsel %vm1456, %v2743, %v2745
    %v2811 = vadd.f32 %v2327, %v2589
    %v2812 = vadd.f32 %v2328, %v2591
    %v2813 = vadd.f32 %v2329, %v2594
    %v2814 = vadd.f32 %v2330, %v2596
    %v2815 = vadd.f32 %v2331, %v2599
    %v2816 = vadd.f32 %v2332, %v2601
    %v2817 = vadd.f32 %v2333, %v2604
    %v2818 = vadd.f32 %v2334, %v2606
    %v2819 = vadd.f32 %v2335, %v2609
    %v2820 = vadd.f32 %v2336, %v2611
    %v2821 = vadd.f32 %v2337, %v2614
    %v2822 = vadd.f32 %v2338, %v2616
    %v2823 = vadd.f32 %v2339, %v2619
    %v2824 = vadd.f32 %v2340, %v2621
    %v2825 = vadd.f32 %v2341, %v2624
    %v2826 = vadd.f32 %v2342, %v2626
    %v2827 = vadd.f32 %v2343, %v2629
    %v2828 = vadd.f32 %v2344, %v2631
    %v2829 = vadd.f32 %v2345, %v2634
    %v2830 = vadd.f32 %v2346, %v2636
    %v2831 = vadd.f32 %v2347, %v2639
    %v2832 = vadd.f32 %v2348, %v2641
    %v2833 = vadd.f32 %v2349, %v2644
    %v2834 = vadd.f32 %v2350, %v2646
    %v2835 = vadd.f32 %v2351, %v2649
    %v2836 = vadd.f32 %v2352, %v2651
    %v2837 = vadd.f32 %v2353, %v2654
    %v2838 = vadd.f32 %v2354, %v2656
    %v2839 = vadd.f32 %v2355, %v2659
    %v2840 = vadd.f32 %v2356, %v2661
    %v2841 = vadd.f32 %v2357, %v2664
    %v2842 = vadd.f32 %v2358, %v2666
    %v2843 = vadd.f32 %v2359, %v2669
    %v2844 = vadd.f32 %v2360, %v2671
    %v2845 = vadd.f32 %v2361, %v2674
    %v2846 = vadd.f32 %v2362, %v2676
    %v2847 = vadd.f32 %v2363, %v2679
    %v2848 = vadd.f32 %v2364, %v2681
    %v2849 = vadd.f32 %v2365, %v2684
    %v2850 = vadd.f32 %v2366, %v2686
    %v2851 = vadd.f32 %v2367, %v2689
    %v2852 = vadd.f32 %v2368, %v2691
    %v2853 = vadd.f32 %v2369, %v2694
    %v2854 = vadd.f32 %v2370, %v2696
    %v2855 = vadd.f32 %v2371, %v2699
    %v2856 = vadd.f32 %v2372, %v2701
    %v2857 = vadd.f32 %v2373, %v2704
    %v2858 = vadd.f32 %v2374, %v2706
    %v2859 = vadd.f32 %v2375, %v2709
    %v2860 = vadd.f32 %v2376, %v2711
    %v2861 = vadd.f32 %v2377, %v2714
    %v2862 = vadd.f32 %v2378, %v2716
    %v2863 = vadd.f32 %v2379, %v2719
    %v2864 = vadd.f32 %v2380, %v2721
    %v2865 = vadd.f32 %v2381, %v2724
    %v2866 = vadd.f32 %v2382, %v2726
    %v2867 = vadd.f32 %v2383, %v2729
    %v2868 = vadd.f32 %v2384, %v2731
    %v2869 = vadd.f32 %v2385, %v2734
    %v2870 = vadd.f32 %v2386, %v2736
    %v2871 = vadd.f32 %v2387, %v2739
    %v2872 = vadd.f32 %v2388, %v2741
    %v2873 = vadd.f32 %v2389, %v2744
    %v2874 = vadd.f32 %v2390, %v2746
    %s2875 = scalar_lea.vmem %s1, 6
    %v2876 = vld [vmem:[%s2875] sm:$0x1]
    %v2877 = vunpack.c.l.bf16 %v2876
    %2879 = vset.pattern.permute.xlu0 0
    %2880 = vperm.xlu0 %2879, %v107
    %v2881 = vpop.permute.xlu0 %2880
    %2884 = vset.pattern.permute.xlu0 0
    %2885 = vperm.xlu0 %2884, %v108
    %v2886 = vpop.permute.xlu0 %2885
    %2889 = vset.pattern.permute.xlu0 0
    %2890 = vperm.xlu0 %2889, %v161
    %v2891 = vpop.permute.xlu0 %2890
    %2894 = vset.pattern.permute.xlu0 0
    %2895 = vperm.xlu0 %2894, %v162
    %v2896 = vpop.permute.xlu0 %2895
    %v2898 = vperm.slane %v2877, 0
    %v2899 = vmul.f32 %v189, %v2898
    %v2900 = vmul.f32 %v194, %v2898
    %v2901 = vmul.f32 %v199, %v2898
    %v2902 = vmul.f32 %v204, %v2898
    %v2903 = vmul.f32 %v209, %v2898
    %v2904 = vmul.f32 %v214, %v2898
    %v2905 = vmul.f32 %v219, %v2898
    %v2906 = vmul.f32 %v224, %v2898
    %v2907 = vmul.f32 %v229, %v2898
    %v2908 = vmul.f32 %v234, %v2898
    %v2909 = vmul.f32 %v239, %v2898
    %v2910 = vmul.f32 %v244, %v2898
    %v2911 = vmul.f32 %v249, %v2898
    %v2912 = vmul.f32 %v254, %v2898
    %v2913 = vmul.f32 %v259, %v2898
    %v2914 = vmul.f32 %v264, %v2898
    %v2915 = vmul.f32 %v269, %v2898
    %v2916 = vmul.f32 %v274, %v2898
    %v2917 = vmul.f32 %v279, %v2898
    %v2918 = vmul.f32 %v284, %v2898
    %v2919 = vmul.f32 %v289, %v2898
    %v2920 = vmul.f32 %v294, %v2898
    %v2921 = vmul.f32 %v299, %v2898
    %v2922 = vmul.f32 %v304, %v2898
    %v2923 = vmul.f32 %v309, %v2898
    %v2924 = vmul.f32 %v314, %v2898
    %v2925 = vmul.f32 %v319, %v2898
    %v2926 = vmul.f32 %v324, %v2898
    %v2927 = vmul.f32 %v1751, %v2898
    %v2928 = vmul.f32 %v1756, %v2898
    %v2929 = vmul.f32 %v2881, %v2898
    %v2930 = vmul.f32 %v2886, %v2898
    %v2931 = vmul.f32 %v349, %v2898
    %v2932 = vmul.f32 %v354, %v2898
    %v2933 = vmul.f32 %v359, %v2898
    %v2934 = vmul.f32 %v364, %v2898
    %v2935 = vmul.f32 %v369, %v2898
    %v2936 = vmul.f32 %v374, %v2898
    %v2937 = vmul.f32 %v379, %v2898
    %v2938 = vmul.f32 %v384, %v2898
    %v2939 = vmul.f32 %v389, %v2898
    %v2940 = vmul.f32 %v394, %v2898
    %v2941 = vmul.f32 %v399, %v2898
    %v2942 = vmul.f32 %v404, %v2898
    %v2943 = vmul.f32 %v409, %v2898
    %v2944 = vmul.f32 %v414, %v2898
    %v2945 = vmul.f32 %v419, %v2898
    %v2946 = vmul.f32 %v424, %v2898
    %v2947 = vmul.f32 %v429, %v2898
    %v2948 = vmul.f32 %v434, %v2898
    %v2949 = vmul.f32 %v439, %v2898
    %v2950 = vmul.f32 %v444, %v2898
    %v2951 = vmul.f32 %v449, %v2898
    %v2952 = vmul.f32 %v454, %v2898
    %v2953 = vmul.f32 %v459, %v2898
    %v2954 = vmul.f32 %v464, %v2898
    %v2955 = vmul.f32 %v469, %v2898
    %v2956 = vmul.f32 %v474, %v2898
    %v2957 = vmul.f32 %v479, %v2898
    %v2958 = vmul.f32 %v484, %v2898
    %v2959 = vmul.f32 %v1761, %v2898
    %v2960 = vmul.f32 %v1766, %v2898
    %v2961 = vmul.f32 %v2891, %v2898
    %v2962 = vmul.f32 %v2896, %v2898
    %v2963 = vadd.f32 %v2811, %v2899
    %v2964 = vadd.f32 %v2812, %v2900
    %v2965 = vadd.f32 %v2813, %v2901
    %v2966 = vadd.f32 %v2814, %v2902
    %v2967 = vadd.f32 %v2815, %v2903
    %v2968 = vadd.f32 %v2816, %v2904
    %v2969 = vadd.f32 %v2817, %v2905
    %v2970 = vadd.f32 %v2818, %v2906
    %v2971 = vadd.f32 %v2819, %v2907
    %v2972 = vadd.f32 %v2820, %v2908
    %v2973 = vadd.f32 %v2821, %v2909
    %v2974 = vadd.f32 %v2822, %v2910
    %v2975 = vadd.f32 %v2823, %v2911
    %v2976 = vadd.f32 %v2824, %v2912
    %v2977 = vadd.f32 %v2825, %v2913
    %v2978 = vadd.f32 %v2826, %v2914
    %v2979 = vadd.f32 %v2827, %v2915
    %v2980 = vadd.f32 %v2828, %v2916
    %v2981 = vadd.f32 %v2829, %v2917
    %v2982 = vadd.f32 %v2830, %v2918
    %v2983 = vadd.f32 %v2831, %v2919
    %v2984 = vadd.f32 %v2832, %v2920
    %v2985 = vadd.f32 %v2833, %v2921
    %v2986 = vadd.f32 %v2834, %v2922
    %v2987 = vadd.f32 %v2835, %v2923
    %v2988 = vadd.f32 %v2836, %v2924
    %v2989 = vadd.f32 %v2837, %v2925
    %v2990 = vadd.f32 %v2838, %v2926
    %v2991 = vadd.f32 %v2839, %v2927
    %v2992 = vadd.f32 %v2840, %v2928
    %v2993 = vadd.f32 %v2841, %v2929
    %v2994 = vadd.f32 %v2842, %v2930
    %v2995 = vadd.f32 %v2843, %v2931
    %v2996 = vadd.f32 %v2844, %v2932
    %v2997 = vadd.f32 %v2845, %v2933
    %v2998 = vadd.f32 %v2846, %v2934
    %v2999 = vadd.f32 %v2847, %v2935
    %v3000 = vadd.f32 %v2848, %v2936
    %v3001 = vadd.f32 %v2849, %v2937
    %v3002 = vadd.f32 %v2850, %v2938
    %v3003 = vadd.f32 %v2851, %v2939
    %v3004 = vadd.f32 %v2852, %v2940
    %v3005 = vadd.f32 %v2853, %v2941
    %v3006 = vadd.f32 %v2854, %v2942
    %v3007 = vadd.f32 %v2855, %v2943
    %v3008 = vadd.f32 %v2856, %v2944
    %v3009 = vadd.f32 %v2857, %v2945
    %v3010 = vadd.f32 %v2858, %v2946
    %v3011 = vadd.f32 %v2859, %v2947
    %v3012 = vadd.f32 %v2860, %v2948
    %v3013 = vadd.f32 %v2861, %v2949
    %v3014 = vadd.f32 %v2862, %v2950
    %v3015 = vadd.f32 %v2863, %v2951
    %v3016 = vadd.f32 %v2864, %v2952
    %v3017 = vadd.f32 %v2865, %v2953
    %v3018 = vadd.f32 %v2866, %v2954
    %v3019 = vadd.f32 %v2867, %v2955
    %v3020 = vadd.f32 %v2868, %v2956
    %v3021 = vadd.f32 %v2869, %v2957
    %v3022 = vadd.f32 %v2870, %v2958
    %v3023 = vadd.f32 %v2871, %v2959
    %v3024 = vadd.f32 %v2872, %v2960
    %v3025 = vadd.f32 %v2873, %v2961
    %v3026 = vadd.f32 %v2874, %v2962
    %s3027 = scalar_lea.vmem %s1, 7
    %v3028 = vld [vmem:[%s3027] sm:$0x1]
    %v3029 = vunpack.c.l.bf16 %v3028
    %3031 = vset.pattern.permute.xlu0 0
    %3032 = vperm.xlu0 %3031, %v109
    %v3033 = vpop.permute.xlu0 %3032
    %3036 = vset.pattern.permute.xlu0 0
    %3037 = vperm.xlu0 %3036, %v163
    %v3038 = vpop.permute.xlu0 %3037
    %v3040 = vperm.slane %v3029, 0
    %v3041 = vmul.f32 %v189, %v3040
    %v3042 = vmul.f32 %v194, %v3040
    %v3043 = vmul.f32 %v631, %v3040
    %v3044 = vmul.f32 %v199, %v3040
    %v3045 = vmul.f32 %v204, %v3040
    %v3046 = vmul.f32 %v636, %v3040
    %v3047 = vmul.f32 %v209, %v3040
    %v3048 = vmul.f32 %v214, %v3040
    %v3049 = vmul.f32 %v641, %v3040
    %v3050 = vmul.f32 %v219, %v3040
    %v3051 = vmul.f32 %v224, %v3040
    %v3052 = vmul.f32 %v646, %v3040
    %v3053 = vmul.f32 %v229, %v3040
    %v3054 = vmul.f32 %v234, %v3040
    %v3055 = vmul.f32 %v651, %v3040
    %v3056 = vmul.f32 %v239, %v3040
    %v3057 = vmul.f32 %v244, %v3040
    %v3058 = vmul.f32 %v656, %v3040
    %v3059 = vmul.f32 %v249, %v3040
    %v3060 = vmul.f32 %v254, %v3040
    %v3061 = vmul.f32 %v661, %v3040
    %v3062 = vmul.f32 %v259, %v3040
    %v3063 = vmul.f32 %v264, %v3040
    %v3064 = vmul.f32 %v666, %v3040
    %v3065 = vmul.f32 %v269, %v3040
    %v3066 = vmul.f32 %v274, %v3040
    %v3067 = vmul.f32 %v671, %v3040
    %v3068 = vmul.f32 %v279, %v3040
    %v3069 = vmul.f32 %v284, %v3040
    %v3070 = vmul.f32 %v676, %v3040
    %v3071 = vmul.f32 %v289, %v3040
    %v3072 = vmul.f32 %v294, %v3040
    %v3073 = vmul.f32 %v681, %v3040
    %v3074 = vmul.f32 %v299, %v3040
    %v3075 = vmul.f32 %v304, %v3040
    %v3076 = vmul.f32 %v686, %v3040
    %v3077 = vmul.f32 %v309, %v3040
    %v3078 = vmul.f32 %v314, %v3040
    %v3079 = vmul.f32 %v691, %v3040
    %v3080 = vmul.f32 %v319, %v3040
    %v3081 = vmul.f32 %v324, %v3040
    %v3082 = vmul.f32 %v696, %v3040
    %v3083 = vmul.f32 %v1751, %v3040
    %v3084 = vmul.f32 %v1756, %v3040
    %v3085 = vmul.f32 %v1903, %v3040
    %v3086 = vmul.f32 %v2881, %v3040
    %v3087 = vmul.f32 %v2886, %v3040
    %v3088 = vmul.f32 %v3033, %v3040
    %v3089 = vmul.f32 %v349, %v3040
    %v3090 = vmul.f32 %v354, %v3040
    %v3091 = vmul.f32 %v711, %v3040
    %v3092 = vmul.f32 %v359, %v3040
    %v3093 = vmul.f32 %v364, %v3040
    %v3094 = vmul.f32 %v716, %v3040
    %v3095 = vmul.f32 %v369, %v3040
    %v3096 = vmul.f32 %v374, %v3040
    %v3097 = vmul.f32 %v721, %v3040
    %v3098 = vmul.f32 %v379, %v3040
    %v3099 = vmul.f32 %v384, %v3040
    %v3100 = vmul.f32 %v726, %v3040
    %v3101 = vmul.f32 %v389, %v3040
    %v3102 = vmul.f32 %v394, %v3040
    %v3103 = vmul.f32 %v731, %v3040
    %v3104 = vmul.f32 %v399, %v3040
    %v3105 = vmul.f32 %v404, %v3040
    %v3106 = vmul.f32 %v736, %v3040
    %v3107 = vmul.f32 %v409, %v3040
    %v3108 = vmul.f32 %v414, %v3040
    %v3109 = vmul.f32 %v741, %v3040
    %v3110 = vmul.f32 %v419, %v3040
    %v3111 = vmul.f32 %v424, %v3040
    %v3112 = vmul.f32 %v746, %v3040
    %v3113 = vmul.f32 %v429, %v3040
    %v3114 = vmul.f32 %v434, %v3040
    %v3115 = vmul.f32 %v751, %v3040
    %v3116 = vmul.f32 %v439, %v3040
    %v3117 = vmul.f32 %v444, %v3040
    %v3118 = vmul.f32 %v756, %v3040
    %v3119 = vmul.f32 %v449, %v3040
    %v3120 = vmul.f32 %v454, %v3040
    %v3121 = vmul.f32 %v761, %v3040
    %v3122 = vmul.f32 %v459, %v3040
    %v3123 = vmul.f32 %v464, %v3040
    %v3124 = vmul.f32 %v766, %v3040
    %v3125 = vmul.f32 %v469, %v3040
    %v3126 = vmul.f32 %v474, %v3040
    %v3127 = vmul.f32 %v771, %v3040
    %v3128 = vmul.f32 %v479, %v3040
    %v3129 = vmul.f32 %v484, %v3040
    %v3130 = vmul.f32 %v776, %v3040
    %v3131 = vmul.f32 %v1761, %v3040
    %v3132 = vmul.f32 %v1766, %v3040
    %v3133 = vmul.f32 %v1908, %v3040
    %v3134 = vmul.f32 %v2891, %v3040
    %v3135 = vmul.f32 %v2896, %v3040
    %v3136 = vmul.f32 %v3038, %v3040
    %v3233 = vrot.slane %v3041, 1
    %v3234 = vrot.slane %v3042, 1
    %v3235 = vsel %vm971, %v3233, %v3234
    %v3236 = vrot.slane %v3043, 1
    %v3237 = vsel %vm971, %v3234, %v3236
    %v3238 = vrot.slane %v3044, 1
    %v3239 = vrot.slane %v3045, 1
    %v3240 = vsel %vm971, %v3238, %v3239
    %v3241 = vrot.slane %v3046, 1
    %v3242 = vsel %vm971, %v3239, %v3241
    %v3243 = vrot.slane %v3047, 1
    %v3244 = vrot.slane %v3048, 1
    %v3245 = vsel %vm971, %v3243, %v3244
    %v3246 = vrot.slane %v3049, 1
    %v3247 = vsel %vm971, %v3244, %v3246
    %v3248 = vrot.slane %v3050, 1
    %v3249 = vrot.slane %v3051, 1
    %v3250 = vsel %vm971, %v3248, %v3249
    %v3251 = vrot.slane %v3052, 1
    %v3252 = vsel %vm971, %v3249, %v3251
    %v3253 = vrot.slane %v3053, 1
    %v3254 = vrot.slane %v3054, 1
    %v3255 = vsel %vm971, %v3253, %v3254
    %v3256 = vrot.slane %v3055, 1
    %v3257 = vsel %vm971, %v3254, %v3256
    %v3258 = vrot.slane %v3056, 1
    %v3259 = vrot.slane %v3057, 1
    %v3260 = vsel %vm971, %v3258, %v3259
    %v3261 = vrot.slane %v3058, 1
    %v3262 = vsel %vm971, %v3259, %v3261
    %v3263 = vrot.slane %v3059, 1
    %v3264 = vrot.slane %v3060, 1
    %v3265 = vsel %vm971, %v3263, %v3264
    %v3266 = vrot.slane %v3061, 1
    %v3267 = vsel %vm971, %v3264, %v3266
    %v3268 = vrot.slane %v3062, 1
    %v3269 = vrot.slane %v3063, 1
    %v3270 = vsel %vm971, %v3268, %v3269
    %v3271 = vrot.slane %v3064, 1
    %v3272 = vsel %vm971, %v3269, %v3271
    %v3273 = vrot.slane %v3065, 1
    %v3274 = vrot.slane %v3066, 1
    %v3275 = vsel %vm971, %v3273, %v3274
    %v3276 = vrot.slane %v3067, 1
    %v3277 = vsel %vm971, %v3274, %v3276
    %v3278 = vrot.slane %v3068, 1
    %v3279 = vrot.slane %v3069, 1
    %v3280 = vsel %vm971, %v3278, %v3279
    %v3281 = vrot.slane %v3070, 1
    %v3282 = vsel %vm971, %v3279, %v3281
    %v3283 = vrot.slane %v3071, 1
    %v3284 = vrot.slane %v3072, 1
    %v3285 = vsel %vm971, %v3283, %v3284
    %v3286 = vrot.slane %v3073, 1
    %v3287 = vsel %vm971, %v3284, %v3286
    %v3288 = vrot.slane %v3074, 1
    %v3289 = vrot.slane %v3075, 1
    %v3290 = vsel %vm971, %v3288, %v3289
    %v3291 = vrot.slane %v3076, 1
    %v3292 = vsel %vm971, %v3289, %v3291
    %v3293 = vrot.slane %v3077, 1
    %v3294 = vrot.slane %v3078, 1
    %v3295 = vsel %vm971, %v3293, %v3294
    %v3296 = vrot.slane %v3079, 1
    %v3297 = vsel %vm971, %v3294, %v3296
    %v3298 = vrot.slane %v3080, 1
    %v3299 = vrot.slane %v3081, 1
    %v3300 = vsel %vm971, %v3298, %v3299
    %v3301 = vrot.slane %v3082, 1
    %v3302 = vsel %vm971, %v3299, %v3301
    %v3303 = vrot.slane %v3083, 1
    %v3304 = vrot.slane %v3084, 1
    %v3305 = vsel %vm971, %v3303, %v3304
    %v3306 = vrot.slane %v3085, 1
    %v3307 = vsel %vm971, %v3304, %v3306
    %v3308 = vrot.slane %v3086, 1
    %v3309 = vrot.slane %v3087, 1
    %v3310 = vsel %vm971, %v3308, %v3309
    %v3311 = vrot.slane %v3088, 1
    %v3312 = vsel %vm971, %v3309, %v3311
    %v3313 = vrot.slane %v3089, 1
    %v3314 = vrot.slane %v3090, 1
    %v3315 = vsel %vm971, %v3313, %v3314
    %v3316 = vrot.slane %v3091, 1
    %v3317 = vsel %vm971, %v3314, %v3316
    %v3318 = vrot.slane %v3092, 1
    %v3319 = vrot.slane %v3093, 1
    %v3320 = vsel %vm971, %v3318, %v3319
    %v3321 = vrot.slane %v3094, 1
    %v3322 = vsel %vm971, %v3319, %v3321
    %v3323 = vrot.slane %v3095, 1
    %v3324 = vrot.slane %v3096, 1
    %v3325 = vsel %vm971, %v3323, %v3324
    %v3326 = vrot.slane %v3097, 1
    %v3327 = vsel %vm971, %v3324, %v3326
    %v3328 = vrot.slane %v3098, 1
    %v3329 = vrot.slane %v3099, 1
    %v3330 = vsel %vm971, %v3328, %v3329
    %v3331 = vrot.slane %v3100, 1
    %v3332 = vsel %vm971, %v3329, %v3331
    %v3333 = vrot.slane %v3101, 1
    %v3334 = vrot.slane %v3102, 1
    %v3335 = vsel %vm971, %v3333, %v3334
    %v3336 = vrot.slane %v3103, 1
    %v3337 = vsel %vm971, %v3334, %v3336
    %v3338 = vrot.slane %v3104, 1
    %v3339 = vrot.slane %v3105, 1
    %v3340 = vsel %vm971, %v3338, %v3339
    %v3341 = vrot.slane %v3106, 1
    %v3342 = vsel %vm971, %v3339, %v3341
    %v3343 = vrot.slane %v3107, 1
    %v3344 = vrot.slane %v3108, 1
    %v3345 = vsel %vm971, %v3343, %v3344
    %v3346 = vrot.slane %v3109, 1
    %v3347 = vsel %vm971, %v3344, %v3346
    %v3348 = vrot.slane %v3110, 1
    %v3349 = vrot.slane %v3111, 1
    %v3350 = vsel %vm971, %v3348, %v3349
    %v3351 = vrot.slane %v3112, 1
    %v3352 = vsel %vm971, %v3349, %v3351
    %v3353 = vrot.slane %v3113, 1
    %v3354 = vrot.slane %v3114, 1
    %v3355 = vsel %vm971, %v3353, %v3354
    %v3356 = vrot.slane %v3115, 1
    %v3357 = vsel %vm971, %v3354, %v3356
    %v3358 = vrot.slane %v3116, 1
    %v3359 = vrot.slane %v3117, 1
    %v3360 = vsel %vm971, %v3358, %v3359
    %v3361 = vrot.slane %v3118, 1
    %v3362 = vsel %vm971, %v3359, %v3361
    %v3363 = vrot.slane %v3119, 1
    %v3364 = vrot.slane %v3120, 1
    %v3365 = vsel %vm971, %v3363, %v3364
    %v3366 = vrot.slane %v3121, 1
    %v3367 = vsel %vm971, %v3364, %v3366
    %v3368 = vrot.slane %v3122, 1
    %v3369 = vrot.slane %v3123, 1
    %v3370 = vsel %vm971, %v3368, %v3369
    %v3371 = vrot.slane %v3124, 1
    %v3372 = vsel %vm971, %v3369, %v3371
    %v3373 = vrot.slane %v3125, 1
    %v3374 = vrot.slane %v3126, 1
    %v3375 = vsel %vm971, %v3373, %v3374
    %v3376 = vrot.slane %v3127, 1
    %v3377 = vsel %vm971, %v3374, %v3376
    %v3378 = vrot.slane %v3128, 1
    %v3379 = vrot.slane %v3129, 1
    %v3380 = vsel %vm971, %v3378, %v3379
    %v3381 = vrot.slane %v3130, 1
    %v3382 = vsel %vm971, %v3379, %v3381
    %v3383 = vrot.slane %v3131, 1
    %v3384 = vrot.slane %v3132, 1
    %v3385 = vsel %vm971, %v3383, %v3384
    %v3386 = vrot.slane %v3133, 1
    %v3387 = vsel %vm971, %v3384, %v3386
    %v3388 = vrot.slane %v3134, 1
    %v3389 = vrot.slane %v3135, 1
    %v3390 = vsel %vm971, %v3388, %v3389
    %v3391 = vrot.slane %v3136, 1
    %v3392 = vsel %vm971, %v3389, %v3391
    %v3457 = vadd.f32 %v2963, %v3235
    %v3458 = vadd.f32 %v2964, %v3237
    %v3459 = vadd.f32 %v2965, %v3240
    %v3460 = vadd.f32 %v2966, %v3242
    %v3461 = vadd.f32 %v2967, %v3245
    %v3462 = vadd.f32 %v2968, %v3247
    %v3463 = vadd.f32 %v2969, %v3250
    %v3464 = vadd.f32 %v2970, %v3252
    %v3465 = vadd.f32 %v2971, %v3255
    %v3466 = vadd.f32 %v2972, %v3257
    %v3467 = vadd.f32 %v2973, %v3260
    %v3468 = vadd.f32 %v2974, %v3262
    %v3469 = vadd.f32 %v2975, %v3265
    %v3470 = vadd.f32 %v2976, %v3267
    %v3471 = vadd.f32 %v2977, %v3270
    %v3472 = vadd.f32 %v2978, %v3272
    %v3473 = vadd.f32 %v2979, %v3275
    %v3474 = vadd.f32 %v2980, %v3277
    %v3475 = vadd.f32 %v2981, %v3280
    %v3476 = vadd.f32 %v2982, %v3282
    %v3477 = vadd.f32 %v2983, %v3285
    %v3478 = vadd.f32 %v2984, %v3287
    %v3479 = vadd.f32 %v2985, %v3290
    %v3480 = vadd.f32 %v2986, %v3292
    %v3481 = vadd.f32 %v2987, %v3295
    %v3482 = vadd.f32 %v2988, %v3297
    %v3483 = vadd.f32 %v2989, %v3300
    %v3484 = vadd.f32 %v2990, %v3302
    %v3485 = vadd.f32 %v2991, %v3305
    %v3486 = vadd.f32 %v2992, %v3307
    %v3487 = vadd.f32 %v2993, %v3310
    %v3488 = vadd.f32 %v2994, %v3312
    %v3489 = vadd.f32 %v2995, %v3315
    %v3490 = vadd.f32 %v2996, %v3317
    %v3491 = vadd.f32 %v2997, %v3320
    %v3492 = vadd.f32 %v2998, %v3322
    %v3493 = vadd.f32 %v2999, %v3325
    %v3494 = vadd.f32 %v3000, %v3327
    %v3495 = vadd.f32 %v3001, %v3330
    %v3496 = vadd.f32 %v3002, %v3332
    %v3497 = vadd.f32 %v3003, %v3335
    %v3498 = vadd.f32 %v3004, %v3337
    %v3499 = vadd.f32 %v3005, %v3340
    %v3500 = vadd.f32 %v3006, %v3342
    %v3501 = vadd.f32 %v3007, %v3345
    %v3502 = vadd.f32 %v3008, %v3347
    %v3503 = vadd.f32 %v3009, %v3350
    %v3504 = vadd.f32 %v3010, %v3352
    %v3505 = vadd.f32 %v3011, %v3355
    %v3506 = vadd.f32 %v3012, %v3357
    %v3507 = vadd.f32 %v3013, %v3360
    %v3508 = vadd.f32 %v3014, %v3362
    %v3509 = vadd.f32 %v3015, %v3365
    %v3510 = vadd.f32 %v3016, %v3367
    %v3511 = vadd.f32 %v3017, %v3370
    %v3512 = vadd.f32 %v3018, %v3372
    %v3513 = vadd.f32 %v3019, %v3375
    %v3514 = vadd.f32 %v3020, %v3377
    %v3515 = vadd.f32 %v3021, %v3380
    %v3516 = vadd.f32 %v3022, %v3382
    %v3517 = vadd.f32 %v3023, %v3385
    %v3518 = vadd.f32 %v3024, %v3387
    %v3519 = vadd.f32 %v3025, %v3390
    %v3520 = vadd.f32 %v3026, %v3392
    %s3521 = scalar_lea.vmem %s1, 8
    %v3522 = vld [vmem:[%s3521] sm:$0x1]
    %v3523 = vunpack.c.l.bf16 %v3522
    %v3524 = vperm.slane %v3523, 0
    %v3525 = vmul.f32 %v189, %v3524
    %v3526 = vmul.f32 %v194, %v3524
    %v3527 = vmul.f32 %v631, %v3524
    %v3528 = vmul.f32 %v199, %v3524
    %v3529 = vmul.f32 %v204, %v3524
    %v3530 = vmul.f32 %v636, %v3524
    %v3531 = vmul.f32 %v209, %v3524
    %v3532 = vmul.f32 %v214, %v3524
    %v3533 = vmul.f32 %v641, %v3524
    %v3534 = vmul.f32 %v219, %v3524
    %v3535 = vmul.f32 %v224, %v3524
    %v3536 = vmul.f32 %v646, %v3524
    %v3537 = vmul.f32 %v229, %v3524
    %v3538 = vmul.f32 %v234, %v3524
    %v3539 = vmul.f32 %v651, %v3524
    %v3540 = vmul.f32 %v239, %v3524
    %v3541 = vmul.f32 %v244, %v3524
    %v3542 = vmul.f32 %v656, %v3524
    %v3543 = vmul.f32 %v249, %v3524
    %v3544 = vmul.f32 %v254, %v3524
    %v3545 = vmul.f32 %v661, %v3524
    %v3546 = vmul.f32 %v259, %v3524
    %v3547 = vmul.f32 %v264, %v3524
    %v3548 = vmul.f32 %v666, %v3524
    %v3549 = vmul.f32 %v269, %v3524
    %v3550 = vmul.f32 %v274, %v3524
    %v3551 = vmul.f32 %v671, %v3524
    %v3552 = vmul.f32 %v279, %v3524
    %v3553 = vmul.f32 %v284, %v3524
    %v3554 = vmul.f32 %v676, %v3524
    %v3555 = vmul.f32 %v289, %v3524
    %v3556 = vmul.f32 %v294, %v3524
    %v3557 = vmul.f32 %v681, %v3524
    %v3558 = vmul.f32 %v299, %v3524
    %v3559 = vmul.f32 %v304, %v3524
    %v3560 = vmul.f32 %v686, %v3524
    %v3561 = vmul.f32 %v309, %v3524
    %v3562 = vmul.f32 %v314, %v3524
    %v3563 = vmul.f32 %v691, %v3524
    %v3564 = vmul.f32 %v319, %v3524
    %v3565 = vmul.f32 %v324, %v3524
    %v3566 = vmul.f32 %v696, %v3524
    %v3567 = vmul.f32 %v1751, %v3524
    %v3568 = vmul.f32 %v1756, %v3524
    %v3569 = vmul.f32 %v1903, %v3524
    %v3570 = vmul.f32 %v2881, %v3524
    %v3571 = vmul.f32 %v2886, %v3524
    %v3572 = vmul.f32 %v3033, %v3524
    %v3573 = vmul.f32 %v349, %v3524
    %v3574 = vmul.f32 %v354, %v3524
    %v3575 = vmul.f32 %v711, %v3524
    %v3576 = vmul.f32 %v359, %v3524
    %v3577 = vmul.f32 %v364, %v3524
    %v3578 = vmul.f32 %v716, %v3524
    %v3579 = vmul.f32 %v369, %v3524
    %v3580 = vmul.f32 %v374, %v3524
    %v3581 = vmul.f32 %v721, %v3524
    %v3582 = vmul.f32 %v379, %v3524
    %v3583 = vmul.f32 %v384, %v3524
    %v3584 = vmul.f32 %v726, %v3524
    %v3585 = vmul.f32 %v389, %v3524
    %v3586 = vmul.f32 %v394, %v3524
    %v3587 = vmul.f32 %v731, %v3524
    %v3588 = vmul.f32 %v399, %v3524
    %v3589 = vmul.f32 %v404, %v3524
    %v3590 = vmul.f32 %v736, %v3524
    %v3591 = vmul.f32 %v409, %v3524
    %v3592 = vmul.f32 %v414, %v3524
    %v3593 = vmul.f32 %v741, %v3524
    %v3594 = vmul.f32 %v419, %v3524
    %v3595 = vmul.f32 %v424, %v3524
    %v3596 = vmul.f32 %v746, %v3524
    %v3597 = vmul.f32 %v429, %v3524
    %v3598 = vmul.f32 %v434, %v3524
    %v3599 = vmul.f32 %v751, %v3524
    %v3600 = vmul.f32 %v439, %v3524
    %v3601 = vmul.f32 %v444, %v3524
    %v3602 = vmul.f32 %v756, %v3524
    %v3603 = vmul.f32 %v449, %v3524
    %v3604 = vmul.f32 %v454, %v3524
    %v3605 = vmul.f32 %v761, %v3524
    %v3606 = vmul.f32 %v459, %v3524
    %v3607 = vmul.f32 %v464, %v3524
    %v3608 = vmul.f32 %v766, %v3524
    %v3609 = vmul.f32 %v469, %v3524
    %v3610 = vmul.f32 %v474, %v3524
    %v3611 = vmul.f32 %v771, %v3524
    %v3612 = vmul.f32 %v479, %v3524
    %v3613 = vmul.f32 %v484, %v3524
    %v3614 = vmul.f32 %v776, %v3524
    %v3615 = vmul.f32 %v1761, %v3524
    %v3616 = vmul.f32 %v1766, %v3524
    %v3617 = vmul.f32 %v1908, %v3524
    %v3618 = vmul.f32 %v2891, %v3524
    %v3619 = vmul.f32 %v2896, %v3524
    %v3620 = vmul.f32 %v3038, %v3524
    %v3717 = vrot.slane %v3525, 2
    %v3718 = vrot.slane %v3526, 2
    %v3719 = vsel %vm1456, %v3717, %v3718
    %v3720 = vrot.slane %v3527, 2
    %v3721 = vsel %vm1456, %v3718, %v3720
    %v3722 = vrot.slane %v3528, 2
    %v3723 = vrot.slane %v3529, 2
    %v3724 = vsel %vm1456, %v3722, %v3723
    %v3725 = vrot.slane %v3530, 2
    %v3726 = vsel %vm1456, %v3723, %v3725
    %v3727 = vrot.slane %v3531, 2
    %v3728 = vrot.slane %v3532, 2
    %v3729 = vsel %vm1456, %v3727, %v3728
    %v3730 = vrot.slane %v3533, 2
    %v3731 = vsel %vm1456, %v3728, %v3730
    %v3732 = vrot.slane %v3534, 2
    %v3733 = vrot.slane %v3535, 2
    %v3734 = vsel %vm1456, %v3732, %v3733
    %v3735 = vrot.slane %v3536, 2
    %v3736 = vsel %vm1456, %v3733, %v3735
    %v3737 = vrot.slane %v3537, 2
    %v3738 = vrot.slane %v3538, 2
    %v3739 = vsel %vm1456, %v3737, %v3738
    %v3740 = vrot.slane %v3539, 2
    %v3741 = vsel %vm1456, %v3738, %v3740
    %v3742 = vrot.slane %v3540, 2
    %v3743 = vrot.slane %v3541, 2
    %v3744 = vsel %vm1456, %v3742, %v3743
    %v3745 = vrot.slane %v3542, 2
    %v3746 = vsel %vm1456, %v3743, %v3745
    %v3747 = vrot.slane %v3543, 2
    %v3748 = vrot.slane %v3544, 2
    %v3749 = vsel %vm1456, %v3747, %v3748
    %v3750 = vrot.slane %v3545, 2
    %v3751 = vsel %vm1456, %v3748, %v3750
    %v3752 = vrot.slane %v3546, 2
    %v3753 = vrot.slane %v3547, 2
    %v3754 = vsel %vm1456, %v3752, %v3753
    %v3755 = vrot.slane %v3548, 2
    %v3756 = vsel %vm1456, %v3753, %v3755
    %v3757 = vrot.slane %v3549, 2
    %v3758 = vrot.slane %v3550, 2
    %v3759 = vsel %vm1456, %v3757, %v3758
    %v3760 = vrot.slane %v3551, 2
    %v3761 = vsel %vm1456, %v3758, %v3760
    %v3762 = vrot.slane %v3552, 2
    %v3763 = vrot.slane %v3553, 2
    %v3764 = vsel %vm1456, %v3762, %v3763
    %v3765 = vrot.slane %v3554, 2
    %v3766 = vsel %vm1456, %v3763, %v3765
    %v3767 = vrot.slane %v3555, 2
    %v3768 = vrot.slane %v3556, 2
    %v3769 = vsel %vm1456, %v3767, %v3768
    %v3770 = vrot.slane %v3557, 2
    %v3771 = vsel %vm1456, %v3768, %v3770
    %v3772 = vrot.slane %v3558, 2
    %v3773 = vrot.slane %v3559, 2
    %v3774 = vsel %vm1456, %v3772, %v3773
    %v3775 = vrot.slane %v3560, 2
    %v3776 = vsel %vm1456, %v3773, %v3775
    %v3777 = vrot.slane %v3561, 2
    %v3778 = vrot.slane %v3562, 2
    %v3779 = vsel %vm1456, %v3777, %v3778
    %v3780 = vrot.slane %v3563, 2
    %v3781 = vsel %vm1456, %v3778, %v3780
    %v3782 = vrot.slane %v3564, 2
    %v3783 = vrot.slane %v3565, 2
    %v3784 = vsel %vm1456, %v3782, %v3783
    %v3785 = vrot.slane %v3566, 2
    %v3786 = vsel %vm1456, %v3783, %v3785
    %v3787 = vrot.slane %v3567, 2
    %v3788 = vrot.slane %v3568, 2
    %v3789 = vsel %vm1456, %v3787, %v3788
    %v3790 = vrot.slane %v3569, 2
    %v3791 = vsel %vm1456, %v3788, %v3790
    %v3792 = vrot.slane %v3570, 2
    %v3793 = vrot.slane %v3571, 2
    %v3794 = vsel %vm1456, %v3792, %v3793
    %v3795 = vrot.slane %v3572, 2
    %v3796 = vsel %vm1456, %v3793, %v3795
    %v3797 = vrot.slane %v3573, 2
    %v3798 = vrot.slane %v3574, 2
    %v3799 = vsel %vm1456, %v3797, %v3798
    %v3800 = vrot.slane %v3575, 2
    %v3801 = vsel %vm1456, %v3798, %v3800
    %v3802 = vrot.slane %v3576, 2
    %v3803 = vrot.slane %v3577, 2
    %v3804 = vsel %vm1456, %v3802, %v3803
    %v3805 = vrot.slane %v3578, 2
    %v3806 = vsel %vm1456, %v3803, %v3805
    %v3807 = vrot.slane %v3579, 2
    %v3808 = vrot.slane %v3580, 2
    %v3809 = vsel %vm1456, %v3807, %v3808
    %v3810 = vrot.slane %v3581, 2
    %v3811 = vsel %vm1456, %v3808, %v3810
    %v3812 = vrot.slane %v3582, 2
    %v3813 = vrot.slane %v3583, 2
    %v3814 = vsel %vm1456, %v3812, %v3813
    %v3815 = vrot.slane %v3584, 2
    %v3816 = vsel %vm1456, %v3813, %v3815
    %v3817 = vrot.slane %v3585, 2
    %v3818 = vrot.slane %v3586, 2
    %v3819 = vsel %vm1456, %v3817, %v3818
    %v3820 = vrot.slane %v3587, 2
    %v3821 = vsel %vm1456, %v3818, %v3820
    %v3822 = vrot.slane %v3588, 2
    %v3823 = vrot.slane %v3589, 2
    %v3824 = vsel %vm1456, %v3822, %v3823
    %v3825 = vrot.slane %v3590, 2
    %v3826 = vsel %vm1456, %v3823, %v3825
    %v3827 = vrot.slane %v3591, 2
    %v3828 = vrot.slane %v3592, 2
    %v3829 = vsel %vm1456, %v3827, %v3828
    %v3830 = vrot.slane %v3593, 2
    %v3831 = vsel %vm1456, %v3828, %v3830
    %v3832 = vrot.slane %v3594, 2
    %v3833 = vrot.slane %v3595, 2
    %v3834 = vsel %vm1456, %v3832, %v3833
    %v3835 = vrot.slane %v3596, 2
    %v3836 = vsel %vm1456, %v3833, %v3835
    %v3837 = vrot.slane %v3597, 2
    %v3838 = vrot.slane %v3598, 2
    %v3839 = vsel %vm1456, %v3837, %v3838
    %v3840 = vrot.slane %v3599, 2
    %v3841 = vsel %vm1456, %v3838, %v3840
    %v3842 = vrot.slane %v3600, 2
    %v3843 = vrot.slane %v3601, 2
    %v3844 = vsel %vm1456, %v3842, %v3843
    %v3845 = vrot.slane %v3602, 2
    %v3846 = vsel %vm1456, %v3843, %v3845
    %v3847 = vrot.slane %v3603, 2
    %v3848 = vrot.slane %v3604, 2
    %v3849 = vsel %vm1456, %v3847, %v3848
    %v3850 = vrot.slane %v3605, 2
    %v3851 = vsel %vm1456, %v3848, %v3850
    %v3852 = vrot.slane %v3606, 2
    %v3853 = vrot.slane %v3607, 2
    %v3854 = vsel %vm1456, %v3852, %v3853
    %v3855 = vrot.slane %v3608, 2
    %v3856 = vsel %vm1456, %v3853, %v3855
    %v3857 = vrot.slane %v3609, 2
    %v3858 = vrot.slane %v3610, 2
    %v3859 = vsel %vm1456, %v3857, %v3858
    %v3860 = vrot.slane %v3611, 2
    %v3861 = vsel %vm1456, %v3858, %v3860
    %v3862 = vrot.slane %v3612, 2
    %v3863 = vrot.slane %v3613, 2
    %v3864 = vsel %vm1456, %v3862, %v3863
    %v3865 = vrot.slane %v3614, 2
    %v3866 = vsel %vm1456, %v3863, %v3865
    %v3867 = vrot.slane %v3615, 2
    %v3868 = vrot.slane %v3616, 2
    %v3869 = vsel %vm1456, %v3867, %v3868
    %v3870 = vrot.slane %v3617, 2
    %v3871 = vsel %vm1456, %v3868, %v3870
    %v3872 = vrot.slane %v3618, 2
    %v3873 = vrot.slane %v3619, 2
    %v3874 = vsel %vm1456, %v3872, %v3873
    %v3875 = vrot.slane %v3620, 2
    %v3876 = vsel %vm1456, %v3873, %v3875
    %v3941 = vadd.f32 %v3457, %v3719
    %v3942 = vadd.f32 %v3458, %v3721
    %v3943 = vadd.f32 %v3459, %v3724
    %v3944 = vadd.f32 %v3460, %v3726
    %v3945 = vadd.f32 %v3461, %v3729
    %v3946 = vadd.f32 %v3462, %v3731
    %v3947 = vadd.f32 %v3463, %v3734
    %v3948 = vadd.f32 %v3464, %v3736
    %v3949 = vadd.f32 %v3465, %v3739
    %v3950 = vadd.f32 %v3466, %v3741
    %v3951 = vadd.f32 %v3467, %v3744
    %v3952 = vadd.f32 %v3468, %v3746
    %v3953 = vadd.f32 %v3469, %v3749
    %v3954 = vadd.f32 %v3470, %v3751
    %v3955 = vadd.f32 %v3471, %v3754
    %v3956 = vadd.f32 %v3472, %v3756
    %v3957 = vadd.f32 %v3473, %v3759
    %v3958 = vadd.f32 %v3474, %v3761
    %v3959 = vadd.f32 %v3475, %v3764
    %v3960 = vadd.f32 %v3476, %v3766
    %v3961 = vadd.f32 %v3477, %v3769
    %v3962 = vadd.f32 %v3478, %v3771
    %v3963 = vadd.f32 %v3479, %v3774
    %v3964 = vadd.f32 %v3480, %v3776
    %v3965 = vadd.f32 %v3481, %v3779
    %v3966 = vadd.f32 %v3482, %v3781
    %v3967 = vadd.f32 %v3483, %v3784
    %v3968 = vadd.f32 %v3484, %v3786
    %v3969 = vadd.f32 %v3485, %v3789
    %v3970 = vadd.f32 %v3486, %v3791
    %v3971 = vadd.f32 %v3487, %v3794
    %v3972 = vadd.f32 %v3488, %v3796
    %v3973 = vadd.f32 %v3489, %v3799
    %v3974 = vadd.f32 %v3490, %v3801
    %v3975 = vadd.f32 %v3491, %v3804
    %v3976 = vadd.f32 %v3492, %v3806
    %v3977 = vadd.f32 %v3493, %v3809
    %v3978 = vadd.f32 %v3494, %v3811
    %v3979 = vadd.f32 %v3495, %v3814
    %v3980 = vadd.f32 %v3496, %v3816
    %v3981 = vadd.f32 %v3497, %v3819
    %v3982 = vadd.f32 %v3498, %v3821
    %v3983 = vadd.f32 %v3499, %v3824
    %v3984 = vadd.f32 %v3500, %v3826
    %v3985 = vadd.f32 %v3501, %v3829
    %v3986 = vadd.f32 %v3502, %v3831
    %v3987 = vadd.f32 %v3503, %v3834
    %v3988 = vadd.f32 %v3504, %v3836
    %v3989 = vadd.f32 %v3505, %v3839
    %v3990 = vadd.f32 %v3506, %v3841
    %v3991 = vadd.f32 %v3507, %v3844
    %v3992 = vadd.f32 %v3508, %v3846
    %v3993 = vadd.f32 %v3509, %v3849
    %v3994 = vadd.f32 %v3510, %v3851
    %v3995 = vadd.f32 %v3511, %v3854
    %v3996 = vadd.f32 %v3512, %v3856
    %v3997 = vadd.f32 %v3513, %v3859
    %v3998 = vadd.f32 %v3514, %v3861
    %v3999 = vadd.f32 %v3515, %v3864
    %v4000 = vadd.f32 %v3516, %v3866
    %v4001 = vadd.f32 %v3517, %v3869
    %v4002 = vadd.f32 %v3518, %v3871
    %v4003 = vadd.f32 %v3519, %v3874
    %v4004 = vadd.f32 %v3520, %v3876
    %v4005 = vld [vmem:[%s2] sm:$0x1]
    %v4006 = vperm.slane %v4005, 0
    %v4007 = vmul.f32 %v3941, %v4006
    %v4008 = vmul.f32 %v3942, %v4006
    %v4009 = vmul.f32 %v3943, %v4006
    %v4010 = vmul.f32 %v3944, %v4006
    %v4011 = vmul.f32 %v3945, %v4006
    %v4012 = vmul.f32 %v3946, %v4006
    %v4013 = vmul.f32 %v3947, %v4006
    %v4014 = vmul.f32 %v3948, %v4006
    %v4015 = vmul.f32 %v3949, %v4006
    %v4016 = vmul.f32 %v3950, %v4006
    %v4017 = vmul.f32 %v3951, %v4006
    %v4018 = vmul.f32 %v3952, %v4006
    %v4019 = vmul.f32 %v3953, %v4006
    %v4020 = vmul.f32 %v3954, %v4006
    %v4021 = vmul.f32 %v3955, %v4006
    %v4022 = vmul.f32 %v3956, %v4006
    %v4023 = vmul.f32 %v3957, %v4006
    %v4024 = vmul.f32 %v3958, %v4006
    %v4025 = vmul.f32 %v3959, %v4006
    %v4026 = vmul.f32 %v3960, %v4006
    %v4027 = vmul.f32 %v3961, %v4006
    %v4028 = vmul.f32 %v3962, %v4006
    %v4029 = vmul.f32 %v3963, %v4006
    %v4030 = vmul.f32 %v3964, %v4006
    %v4031 = vmul.f32 %v3965, %v4006
    %v4032 = vmul.f32 %v3966, %v4006
    %v4033 = vmul.f32 %v3967, %v4006
    %v4034 = vmul.f32 %v3968, %v4006
    %v4035 = vmul.f32 %v3969, %v4006
    %v4036 = vmul.f32 %v3970, %v4006
    %v4037 = vmul.f32 %v3971, %v4006
    %v4038 = vmul.f32 %v3972, %v4006
    %v4039 = vmul.f32 %v3973, %v4006
    %v4040 = vmul.f32 %v3974, %v4006
    %v4041 = vmul.f32 %v3975, %v4006
    %v4042 = vmul.f32 %v3976, %v4006
    %v4043 = vmul.f32 %v3977, %v4006
    %v4044 = vmul.f32 %v3978, %v4006
    %v4045 = vmul.f32 %v3979, %v4006
    %v4046 = vmul.f32 %v3980, %v4006
    %v4047 = vmul.f32 %v3981, %v4006
    %v4048 = vmul.f32 %v3982, %v4006
    %v4049 = vmul.f32 %v3983, %v4006
    %v4050 = vmul.f32 %v3984, %v4006
    %v4051 = vmul.f32 %v3985, %v4006
    %v4052 = vmul.f32 %v3986, %v4006
    %v4053 = vmul.f32 %v3987, %v4006
    %v4054 = vmul.f32 %v3988, %v4006
    %v4055 = vmul.f32 %v3989, %v4006
    %v4056 = vmul.f32 %v3990, %v4006
    %v4057 = vmul.f32 %v3991, %v4006
    %v4058 = vmul.f32 %v3992, %v4006
    %v4059 = vmul.f32 %v3993, %v4006
    %v4060 = vmul.f32 %v3994, %v4006
    %v4061 = vmul.f32 %v3995, %v4006
    %v4062 = vmul.f32 %v3996, %v4006
    %v4063 = vmul.f32 %v3997, %v4006
    %v4064 = vmul.f32 %v3998, %v4006
    %v4065 = vmul.f32 %v3999, %v4006
    %v4066 = vmul.f32 %v4000, %v4006
    %v4067 = vmul.f32 %v4001, %v4006
    %v4068 = vmul.f32 %v4002, %v4006
    %v4069 = vmul.f32 %v4003, %v4006
    %v4070 = vmul.f32 %v4004, %v4006
    %v4071 = vld [vmem:[%s2 + $0x1] sm:$0x1]
    %v4072 = vperm.slane %v4071, 0
    %v4073 = vadd.f32 %v4007, %v4072
    %v4074 = vadd.f32 %v4008, %v4072
    %v4075 = vadd.f32 %v4009, %v4072
    %v4076 = vadd.f32 %v4010, %v4072
    %v4077 = vadd.f32 %v4011, %v4072
    %v4078 = vadd.f32 %v4012, %v4072
    %v4079 = vadd.f32 %v4013, %v4072
    %v4080 = vadd.f32 %v4014, %v4072
    %v4081 = vadd.f32 %v4015, %v4072
    %v4082 = vadd.f32 %v4016, %v4072
    %v4083 = vadd.f32 %v4017, %v4072
    %v4084 = vadd.f32 %v4018, %v4072
    %v4085 = vadd.f32 %v4019, %v4072
    %v4086 = vadd.f32 %v4020, %v4072
    %v4087 = vadd.f32 %v4021, %v4072
    %v4088 = vadd.f32 %v4022, %v4072
    %v4089 = vadd.f32 %v4023, %v4072
    %v4090 = vadd.f32 %v4024, %v4072
    %v4091 = vadd.f32 %v4025, %v4072
    %v4092 = vadd.f32 %v4026, %v4072
    %v4093 = vadd.f32 %v4027, %v4072
    %v4094 = vadd.f32 %v4028, %v4072
    %v4095 = vadd.f32 %v4029, %v4072
    %v4096 = vadd.f32 %v4030, %v4072
    %v4097 = vadd.f32 %v4031, %v4072
    %v4098 = vadd.f32 %v4032, %v4072
    %v4099 = vadd.f32 %v4033, %v4072
    %v4100 = vadd.f32 %v4034, %v4072
    %v4101 = vadd.f32 %v4035, %v4072
    %v4102 = vadd.f32 %v4036, %v4072
    %v4103 = vadd.f32 %v4037, %v4072
    %v4104 = vadd.f32 %v4038, %v4072
    %v4105 = vadd.f32 %v4039, %v4072
    %v4106 = vadd.f32 %v4040, %v4072
    %v4107 = vadd.f32 %v4041, %v4072
    %v4108 = vadd.f32 %v4042, %v4072
    %v4109 = vadd.f32 %v4043, %v4072
    %v4110 = vadd.f32 %v4044, %v4072
    %v4111 = vadd.f32 %v4045, %v4072
    %v4112 = vadd.f32 %v4046, %v4072
    %v4113 = vadd.f32 %v4047, %v4072
    %v4114 = vadd.f32 %v4048, %v4072
    %v4115 = vadd.f32 %v4049, %v4072
    %v4116 = vadd.f32 %v4050, %v4072
    %v4117 = vadd.f32 %v4051, %v4072
    %v4118 = vadd.f32 %v4052, %v4072
    %v4119 = vadd.f32 %v4053, %v4072
    %v4120 = vadd.f32 %v4054, %v4072
    %v4121 = vadd.f32 %v4055, %v4072
    %v4122 = vadd.f32 %v4056, %v4072
    %v4123 = vadd.f32 %v4057, %v4072
    %v4124 = vadd.f32 %v4058, %v4072
    %v4125 = vadd.f32 %v4059, %v4072
    %v4126 = vadd.f32 %v4060, %v4072
    %v4127 = vadd.f32 %v4061, %v4072
    %v4128 = vadd.f32 %v4062, %v4072
    %v4129 = vadd.f32 %v4063, %v4072
    %v4130 = vadd.f32 %v4064, %v4072
    %v4131 = vadd.f32 %v4065, %v4072
    %v4132 = vadd.f32 %v4066, %v4072
    %v4133 = vadd.f32 %v4067, %v4072
    %v4134 = vadd.f32 %v4068, %v4072
    %v4135 = vadd.f32 %v4069, %v4072
    %v4136 = vadd.f32 %v4070, %v4072
    %v4137 = vmax.f32 %v4073, 0.0
    %v4138 = vmax.f32 %v4074, 0.0
    %v4139 = vmax.f32 %v4075, 0.0
    %v4140 = vmax.f32 %v4076, 0.0
    %v4141 = vmax.f32 %v4077, 0.0
    %v4142 = vmax.f32 %v4078, 0.0
    %v4143 = vmax.f32 %v4079, 0.0
    %v4144 = vmax.f32 %v4080, 0.0
    %v4145 = vmax.f32 %v4081, 0.0
    %v4146 = vmax.f32 %v4082, 0.0
    %v4147 = vmax.f32 %v4083, 0.0
    %v4148 = vmax.f32 %v4084, 0.0
    %v4149 = vmax.f32 %v4085, 0.0
    %v4150 = vmax.f32 %v4086, 0.0
    %v4151 = vmax.f32 %v4087, 0.0
    %v4152 = vmax.f32 %v4088, 0.0
    %v4153 = vmax.f32 %v4089, 0.0
    %v4154 = vmax.f32 %v4090, 0.0
    %v4155 = vmax.f32 %v4091, 0.0
    %v4156 = vmax.f32 %v4092, 0.0
    %v4157 = vmax.f32 %v4093, 0.0
    %v4158 = vmax.f32 %v4094, 0.0
    %v4159 = vmax.f32 %v4095, 0.0
    %v4160 = vmax.f32 %v4096, 0.0
    %v4161 = vmax.f32 %v4097, 0.0
    %v4162 = vmax.f32 %v4098, 0.0
    %v4163 = vmax.f32 %v4099, 0.0
    %v4164 = vmax.f32 %v4100, 0.0
    %v4165 = vmax.f32 %v4101, 0.0
    %v4166 = vmax.f32 %v4102, 0.0
    %v4167 = vmax.f32 %v4103, 0.0
    %v4168 = vmax.f32 %v4104, 0.0
    %v4169 = vmax.f32 %v4105, 0.0
    %v4170 = vmax.f32 %v4106, 0.0
    %v4171 = vmax.f32 %v4107, 0.0
    %v4172 = vmax.f32 %v4108, 0.0
    %v4173 = vmax.f32 %v4109, 0.0
    %v4174 = vmax.f32 %v4110, 0.0
    %v4175 = vmax.f32 %v4111, 0.0
    %v4176 = vmax.f32 %v4112, 0.0
    %v4177 = vmax.f32 %v4113, 0.0
    %v4178 = vmax.f32 %v4114, 0.0
    %v4179 = vmax.f32 %v4115, 0.0
    %v4180 = vmax.f32 %v4116, 0.0
    %v4181 = vmax.f32 %v4117, 0.0
    %v4182 = vmax.f32 %v4118, 0.0
    %v4183 = vmax.f32 %v4119, 0.0
    %v4184 = vmax.f32 %v4120, 0.0
    %v4185 = vmax.f32 %v4121, 0.0
    %v4186 = vmax.f32 %v4122, 0.0
    %v4187 = vmax.f32 %v4123, 0.0
    %v4188 = vmax.f32 %v4124, 0.0
    %v4189 = vmax.f32 %v4125, 0.0
    %v4190 = vmax.f32 %v4126, 0.0
    %v4191 = vmax.f32 %v4127, 0.0
    %v4192 = vmax.f32 %v4128, 0.0
    %v4193 = vmax.f32 %v4129, 0.0
    %v4194 = vmax.f32 %v4130, 0.0
    %v4195 = vmax.f32 %v4131, 0.0
    %v4196 = vmax.f32 %v4132, 0.0
    %v4197 = vmax.f32 %v4133, 0.0
    %v4198 = vmax.f32 %v4134, 0.0
    %v4199 = vmax.f32 %v4135, 0.0
    %v4200 = vmax.f32 %v4136, 0.0
    %v4201 = vpack.c.bf16 %v4137, %v4137
    %v4202 = vpack.c.bf16 %v4138, %v4138
    %v4203 = vpack.c.bf16 %v4139, %v4139
    %v4204 = vpack.c.bf16 %v4140, %v4140
    %v4205 = vpack.c.bf16 %v4141, %v4141
    %v4206 = vpack.c.bf16 %v4142, %v4142
    %v4207 = vpack.c.bf16 %v4143, %v4143
    %v4208 = vpack.c.bf16 %v4144, %v4144
    %v4209 = vpack.c.bf16 %v4145, %v4145
    %v4210 = vpack.c.bf16 %v4146, %v4146
    %v4211 = vpack.c.bf16 %v4147, %v4147
    %v4212 = vpack.c.bf16 %v4148, %v4148
    %v4213 = vpack.c.bf16 %v4149, %v4149
    %v4214 = vpack.c.bf16 %v4150, %v4150
    %v4215 = vpack.c.bf16 %v4151, %v4151
    %v4216 = vpack.c.bf16 %v4152, %v4152
    %v4217 = vpack.c.bf16 %v4153, %v4153
    %v4218 = vpack.c.bf16 %v4154, %v4154
    %v4219 = vpack.c.bf16 %v4155, %v4155
    %v4220 = vpack.c.bf16 %v4156, %v4156
    %v4221 = vpack.c.bf16 %v4157, %v4157
    %v4222 = vpack.c.bf16 %v4158, %v4158
    %v4223 = vpack.c.bf16 %v4159, %v4159
    %v4224 = vpack.c.bf16 %v4160, %v4160
    %v4225 = vpack.c.bf16 %v4161, %v4161
    %v4226 = vpack.c.bf16 %v4162, %v4162
    %v4227 = vpack.c.bf16 %v4163, %v4163
    %v4228 = vpack.c.bf16 %v4164, %v4164
    %v4229 = vpack.c.bf16 %v4165, %v4165
    %v4230 = vpack.c.bf16 %v4166, %v4166
    %v4231 = vpack.c.bf16 %v4167, %v4167
    %v4232 = vpack.c.bf16 %v4168, %v4168
    %v4233 = vpack.c.bf16 %v4169, %v4169
    %v4234 = vpack.c.bf16 %v4170, %v4170
    %v4235 = vpack.c.bf16 %v4171, %v4171
    %v4236 = vpack.c.bf16 %v4172, %v4172
    %v4237 = vpack.c.bf16 %v4173, %v4173
    %v4238 = vpack.c.bf16 %v4174, %v4174
    %v4239 = vpack.c.bf16 %v4175, %v4175
    %v4240 = vpack.c.bf16 %v4176, %v4176
    %v4241 = vpack.c.bf16 %v4177, %v4177
    %v4242 = vpack.c.bf16 %v4178, %v4178
    %v4243 = vpack.c.bf16 %v4179, %v4179
    %v4244 = vpack.c.bf16 %v4180, %v4180
    %v4245 = vpack.c.bf16 %v4181, %v4181
    %v4246 = vpack.c.bf16 %v4182, %v4182
    %v4247 = vpack.c.bf16 %v4183, %v4183
    %v4248 = vpack.c.bf16 %v4184, %v4184
    %v4249 = vpack.c.bf16 %v4185, %v4185
    %v4250 = vpack.c.bf16 %v4186, %v4186
    %v4251 = vpack.c.bf16 %v4187, %v4187
    %v4252 = vpack.c.bf16 %v4188, %v4188
    %v4253 = vpack.c.bf16 %v4189, %v4189
    %v4254 = vpack.c.bf16 %v4190, %v4190
    %v4255 = vpack.c.bf16 %v4191, %v4191
    %v4256 = vpack.c.bf16 %v4192, %v4192
    %v4257 = vpack.c.bf16 %v4193, %v4193
    %v4258 = vpack.c.bf16 %v4194, %v4194
    %v4259 = vpack.c.bf16 %v4195, %v4195
    %v4260 = vpack.c.bf16 %v4196, %v4196
    %v4261 = vpack.c.bf16 %v4197, %v4197
    %v4262 = vpack.c.bf16 %v4198, %v4198
    %v4263 = vpack.c.bf16 %v4199, %v4199
    %v4264 = vpack.c.bf16 %v4200, %v4200
    %v4265 = vunpack.c.l.bf16 %v4201
    %v4266 = vunpack.c.l.bf16 %v4202
    %v4267 = vunpack.c.l.bf16 %v4203
    %v4268 = vunpack.c.l.bf16 %v4204
    %v4269 = vunpack.c.l.bf16 %v4205
    %v4270 = vunpack.c.l.bf16 %v4206
    %v4271 = vunpack.c.l.bf16 %v4207
    %v4272 = vunpack.c.l.bf16 %v4208
    %v4273 = vunpack.c.l.bf16 %v4209
    %v4274 = vunpack.c.l.bf16 %v4210
    %v4275 = vunpack.c.l.bf16 %v4211
    %v4276 = vunpack.c.l.bf16 %v4212
    %v4277 = vunpack.c.l.bf16 %v4213
    %v4278 = vunpack.c.l.bf16 %v4214
    %v4279 = vunpack.c.l.bf16 %v4215
    %v4280 = vunpack.c.l.bf16 %v4216
    %v4281 = vunpack.c.l.bf16 %v4217
    %v4282 = vunpack.c.l.bf16 %v4218
    %v4283 = vunpack.c.l.bf16 %v4219
    %v4284 = vunpack.c.l.bf16 %v4220
    %v4285 = vunpack.c.l.bf16 %v4221
    %v4286 = vunpack.c.l.bf16 %v4222
    %v4287 = vunpack.c.l.bf16 %v4223
    %v4288 = vunpack.c.l.bf16 %v4224
    %v4289 = vunpack.c.l.bf16 %v4225
    %v4290 = vunpack.c.l.bf16 %v4226
    %v4291 = vunpack.c.l.bf16 %v4227
    %v4292 = vunpack.c.l.bf16 %v4228
    %v4293 = vunpack.c.l.bf16 %v4229
    %v4294 = vunpack.c.l.bf16 %v4230
    %v4295 = vunpack.c.l.bf16 %v4231
    %v4296 = vunpack.c.l.bf16 %v4232
    %v4297 = vunpack.c.l.bf16 %v4233
    %v4298 = vunpack.c.l.bf16 %v4234
    %v4299 = vunpack.c.l.bf16 %v4235
    %v4300 = vunpack.c.l.bf16 %v4236
    %v4301 = vunpack.c.l.bf16 %v4237
    %v4302 = vunpack.c.l.bf16 %v4238
    %v4303 = vunpack.c.l.bf16 %v4239
    %v4304 = vunpack.c.l.bf16 %v4240
    %v4305 = vunpack.c.l.bf16 %v4241
    %v4306 = vunpack.c.l.bf16 %v4242
    %v4307 = vunpack.c.l.bf16 %v4243
    %v4308 = vunpack.c.l.bf16 %v4244
    %v4309 = vunpack.c.l.bf16 %v4245
    %v4310 = vunpack.c.l.bf16 %v4246
    %v4311 = vunpack.c.l.bf16 %v4247
    %v4312 = vunpack.c.l.bf16 %v4248
    %v4313 = vunpack.c.l.bf16 %v4249
    %v4314 = vunpack.c.l.bf16 %v4250
    %v4315 = vunpack.c.l.bf16 %v4251
    %v4316 = vunpack.c.l.bf16 %v4252
    %v4317 = vunpack.c.l.bf16 %v4253
    %v4318 = vunpack.c.l.bf16 %v4254
    %v4319 = vunpack.c.l.bf16 %v4255
    %v4320 = vunpack.c.l.bf16 %v4256
    %v4321 = vunpack.c.l.bf16 %v4257
    %v4322 = vunpack.c.l.bf16 %v4258
    %v4323 = vunpack.c.l.bf16 %v4259
    %v4324 = vunpack.c.l.bf16 %v4260
    %v4325 = vunpack.c.l.bf16 %v4261
    %v4326 = vunpack.c.l.bf16 %v4262
    %v4327 = vunpack.c.l.bf16 %v4263
    %v4328 = vunpack.c.l.bf16 %v4264
    %vm4329 = vcmask 261120
    %v4330 = vsel %vm4329, %v4265, -inf
    %v4331 = vsel %vm4329, %v4267, -inf
    %v4332 = vmax.f32 %v4330, %v4331
    %v4333 = vsel %vm4329, %v4266, -inf
    %v4334 = vsel %vm4329, %v4268, -inf
    %v4335 = vmax.f32 %v4333, %v4334
    %v4336 = vsel %vm4329, %v4269, -inf
    %v4337 = vsel %vm4329, %v4271, -inf
    %v4338 = vmax.f32 %v4336, %v4337
    %v4339 = vsel %vm4329, %v4270, -inf
    %v4340 = vsel %vm4329, %v4272, -inf
    %v4341 = vmax.f32 %v4339, %v4340
    %v4342 = vsel %vm4329, %v4273, -inf
    %v4343 = vsel %vm4329, %v4275, -inf
    %v4344 = vmax.f32 %v4342, %v4343
    %v4345 = vsel %vm4329, %v4274, -inf
    %v4346 = vsel %vm4329, %v4276, -inf
    %v4347 = vmax.f32 %v4345, %v4346
    %v4348 = vsel %vm4329, %v4277, -inf
    %v4349 = vsel %vm4329, %v4279, -inf
    %v4350 = vmax.f32 %v4348, %v4349
    %v4351 = vsel %vm4329, %v4278, -inf
    %v4352 = vsel %vm4329, %v4280, -inf
    %v4353 = vmax.f32 %v4351, %v4352
    %v4354 = vsel %vm4329, %v4281, -inf
    %v4355 = vsel %vm4329, %v4283, -inf
    %v4356 = vmax.f32 %v4354, %v4355
    %v4357 = vsel %vm4329, %v4282, -inf
    %v4358 = vsel %vm4329, %v4284, -inf
    %v4359 = vmax.f32 %v4357, %v4358
    %v4360 = vsel %vm4329, %v4285, -inf
    %v4361 = vsel %vm4329, %v4287, -inf
    %v4362 = vmax.f32 %v4360, %v4361
    %v4363 = vsel %vm4329, %v4286, -inf
    %v4364 = vsel %vm4329, %v4288, -inf
    %v4365 = vmax.f32 %v4363, %v4364
    %v4366 = vsel %vm4329, %v4289, -inf
    %v4367 = vsel %vm4329, %v4291, -inf
    %v4368 = vmax.f32 %v4366, %v4367
    %v4369 = vsel %vm4329, %v4290, -inf
    %v4370 = vsel %vm4329, %v4292, -inf
    %v4371 = vmax.f32 %v4369, %v4370
    %v4372 = vsel %vm4329, %v4293, -inf
    %v4373 = vsel %vm4329, %v4295, -inf
    %v4374 = vmax.f32 %v4372, %v4373
    %v4375 = vsel %vm4329, %v4294, -inf
    %v4376 = vsel %vm4329, %v4296, -inf
    %v4377 = vmax.f32 %v4375, %v4376
    %v4378 = vsel %vm4329, %v4297, -inf
    %v4379 = vsel %vm4329, %v4299, -inf
    %v4380 = vmax.f32 %v4378, %v4379
    %v4381 = vsel %vm4329, %v4298, -inf
    %v4382 = vsel %vm4329, %v4300, -inf
    %v4383 = vmax.f32 %v4381, %v4382
    %v4384 = vsel %vm4329, %v4301, -inf
    %v4385 = vsel %vm4329, %v4303, -inf
    %v4386 = vmax.f32 %v4384, %v4385
    %v4387 = vsel %vm4329, %v4302, -inf
    %v4388 = vsel %vm4329, %v4304, -inf
    %v4389 = vmax.f32 %v4387, %v4388
    %v4390 = vsel %vm4329, %v4305, -inf
    %v4391 = vsel %vm4329, %v4307, -inf
    %v4392 = vmax.f32 %v4390, %v4391
    %v4393 = vsel %vm4329, %v4306, -inf
    %v4394 = vsel %vm4329, %v4308, -inf
    %v4395 = vmax.f32 %v4393, %v4394
    %v4396 = vsel %vm4329, %v4309, -inf
    %v4397 = vsel %vm4329, %v4311, -inf
    %v4398 = vmax.f32 %v4396, %v4397
    %v4399 = vsel %vm4329, %v4310, -inf
    %v4400 = vsel %vm4329, %v4312, -inf
    %v4401 = vmax.f32 %v4399, %v4400
    %v4402 = vsel %vm4329, %v4313, -inf
    %v4403 = vsel %vm4329, %v4315, -inf
    %v4404 = vmax.f32 %v4402, %v4403
    %v4405 = vsel %vm4329, %v4314, -inf
    %v4406 = vsel %vm4329, %v4316, -inf
    %v4407 = vmax.f32 %v4405, %v4406
    %v4408 = vsel %vm4329, %v4317, -inf
    %v4409 = vsel %vm4329, %v4319, -inf
    %v4410 = vmax.f32 %v4408, %v4409
    %v4411 = vsel %vm4329, %v4318, -inf
    %v4412 = vsel %vm4329, %v4320, -inf
    %v4413 = vmax.f32 %v4411, %v4412
    %v4414 = vsel %vm4329, %v4321, -inf
    %v4415 = vsel %vm4329, %v4323, -inf
    %v4416 = vmax.f32 %v4414, %v4415
    %v4417 = vsel %vm4329, %v4322, -inf
    %v4418 = vsel %vm4329, %v4324, -inf
    %v4419 = vmax.f32 %v4417, %v4418
    %v4420 = vsel %vm4329, %v4325, -inf
    %v4421 = vsel %vm4329, %v4327, -inf
    %v4422 = vmax.f32 %v4420, %v4421
    %v4423 = vsel %vm4329, %v4326, -inf
    %v4424 = vsel %vm4329, %v4328, -inf
    %v4425 = vmax.f32 %v4423, %v4424
    %v4426 = vpack.c.bf16 %v4332, %v4332
    %v4427 = vpack.c.bf16 %v4335, %v4335
    %v4428 = vpack.c.bf16 %v4338, %v4338
    %v4429 = vpack.c.bf16 %v4341, %v4341
    %v4430 = vpack.c.bf16 %v4344, %v4344
    %v4431 = vpack.c.bf16 %v4347, %v4347
    %v4432 = vpack.c.bf16 %v4350, %v4350
    %v4433 = vpack.c.bf16 %v4353, %v4353
    %v4434 = vpack.c.bf16 %v4356, %v4356
    %v4435 = vpack.c.bf16 %v4359, %v4359
    %v4436 = vpack.c.bf16 %v4362, %v4362
    %v4437 = vpack.c.bf16 %v4365, %v4365
    %v4438 = vpack.c.bf16 %v4368, %v4368
    %v4439 = vpack.c.bf16 %v4371, %v4371
    %v4440 = vpack.c.bf16 %v4374, %v4374
    %v4441 = vpack.c.bf16 %v4377, %v4377
    %v4442 = vpack.c.bf16 %v4380, %v4380
    %v4443 = vpack.c.bf16 %v4383, %v4383
    %v4444 = vpack.c.bf16 %v4386, %v4386
    %v4445 = vpack.c.bf16 %v4389, %v4389
    %v4446 = vpack.c.bf16 %v4392, %v4392
    %v4447 = vpack.c.bf16 %v4395, %v4395
    %v4448 = vpack.c.bf16 %v4398, %v4398
    %v4449 = vpack.c.bf16 %v4401, %v4401
    %v4450 = vpack.c.bf16 %v4404, %v4404
    %v4451 = vpack.c.bf16 %v4407, %v4407
    %v4452 = vpack.c.bf16 %v4410, %v4410
    %v4453 = vpack.c.bf16 %v4413, %v4413
    %v4454 = vpack.c.bf16 %v4416, %v4416
    %v4455 = vpack.c.bf16 %v4419, %v4419
    %v4456 = vpack.c.bf16 %v4422, %v4422
    %v4457 = vpack.c.bf16 %v4425, %v4425
    %v4490 = vrot.slane %v4426, 3
    %v4491 = vrot.slane %v4427, 3
    %v4492 = vrot.slane %v4428, 3
    %v4493 = vrot.slane %v4429, 3
    %v4494 = vrot.slane %v4430, 3
    %v4495 = vrot.slane %v4431, 3
    %v4496 = vrot.slane %v4432, 3
    %v4497 = vrot.slane %v4433, 3
    %v4498 = vrot.slane %v4434, 3
    %v4499 = vrot.slane %v4435, 3
    %v4500 = vrot.slane %v4436, 3
    %v4501 = vrot.slane %v4437, 3
    %v4502 = vrot.slane %v4438, 3
    %v4503 = vrot.slane %v4439, 3
    %v4504 = vrot.slane %v4440, 3
    %v4505 = vrot.slane %v4441, 3
    %v4506 = vrot.slane %v4442, 3
    %v4507 = vrot.slane %v4443, 3
    %v4508 = vrot.slane %v4444, 3
    %v4509 = vrot.slane %v4445, 3
    %v4510 = vrot.slane %v4446, 3
    %v4511 = vrot.slane %v4447, 3
    %v4512 = vrot.slane %v4448, 3
    %v4513 = vrot.slane %v4449, 3
    %v4514 = vrot.slane %v4450, 3
    %v4515 = vrot.slane %v4451, 3
    %v4516 = vrot.slane %v4452, 3
    %v4517 = vrot.slane %v4453, 3
    %v4518 = vrot.slane %v4454, 3
    %v4519 = vrot.slane %v4455, 3
    %v4520 = vrot.slane %v4456, 3
    %v4521 = vrot.slane %v4457, 3
    %vm4522 = vcmask 1040384
    %v4525 = vsel %vm4522, %v4426, %v4490
    %vm4526 = vcmask 1041409
    %v4527 = vsel %vm4526, %v4426, %v4490
    %v4529 = vrot.slane %v4527, 1
    %vm4530 = vcmask 1042434
    %v4531 = vsel %vm4530, %v4426, %v4490
    %v4533 = vrot.slane %v4531, 2
    %vm4534 = vcmask 1043459
    %v4535 = vsel %vm4534, %v4426, %v4490
    %v4537 = vrot.slane %v4535, 3
    %v4540 = vsel %vm4522, %v4427, %v4491
    %v4541 = vsel %vm4526, %v4427, %v4491
    %v4543 = vrot.slane %v4541, 1
    %v4544 = vsel %vm4530, %v4427, %v4491
    %v4546 = vrot.slane %v4544, 2
    %v4547 = vsel %vm4534, %v4427, %v4491
    %v4549 = vrot.slane %v4547, 3
    %v4552 = vsel %vm4522, %v4428, %v4492
    %v4553 = vsel %vm4526, %v4428, %v4492
    %v4555 = vrot.slane %v4553, 1
    %v4556 = vsel %vm4530, %v4428, %v4492
    %v4558 = vrot.slane %v4556, 2
    %v4559 = vsel %vm4534, %v4428, %v4492
    %v4561 = vrot.slane %v4559, 3
    %v4564 = vsel %vm4522, %v4429, %v4493
    %v4565 = vsel %vm4526, %v4429, %v4493
    %v4567 = vrot.slane %v4565, 1
    %v4568 = vsel %vm4530, %v4429, %v4493
    %v4570 = vrot.slane %v4568, 2
    %v4571 = vsel %vm4534, %v4429, %v4493
    %v4573 = vrot.slane %v4571, 3
    %v4576 = vsel %vm4522, %v4430, %v4494
    %v4577 = vsel %vm4526, %v4430, %v4494
    %v4579 = vrot.slane %v4577, 1
    %v4580 = vsel %vm4530, %v4430, %v4494
    %v4582 = vrot.slane %v4580, 2
    %v4583 = vsel %vm4534, %v4430, %v4494
    %v4585 = vrot.slane %v4583, 3
    %v4588 = vsel %vm4522, %v4431, %v4495
    %v4589 = vsel %vm4526, %v4431, %v4495
    %v4591 = vrot.slane %v4589, 1
    %v4592 = vsel %vm4530, %v4431, %v4495
    %v4594 = vrot.slane %v4592, 2
    %v4595 = vsel %vm4534, %v4431, %v4495
    %v4597 = vrot.slane %v4595, 3
    %v4600 = vsel %vm4522, %v4432, %v4496
    %v4601 = vsel %vm4526, %v4432, %v4496
    %v4603 = vrot.slane %v4601, 1
    %v4604 = vsel %vm4530, %v4432, %v4496
    %v4606 = vrot.slane %v4604, 2
    %v4607 = vsel %vm4534, %v4432, %v4496
    %v4609 = vrot.slane %v4607, 3
    %v4612 = vsel %vm4522, %v4433, %v4497
    %v4613 = vsel %vm4526, %v4433, %v4497
    %v4615 = vrot.slane %v4613, 1
    %v4616 = vsel %vm4530, %v4433, %v4497
    %v4618 = vrot.slane %v4616, 2
    %v4619 = vsel %vm4534, %v4433, %v4497
    %v4621 = vrot.slane %v4619, 3
    %v4624 = vsel %vm4522, %v4434, %v4498
    %v4625 = vsel %vm4526, %v4434, %v4498
    %v4627 = vrot.slane %v4625, 1
    %v4628 = vsel %vm4530, %v4434, %v4498
    %v4630 = vrot.slane %v4628, 2
    %v4631 = vsel %vm4534, %v4434, %v4498
    %v4633 = vrot.slane %v4631, 3
    %v4636 = vsel %vm4522, %v4435, %v4499
    %v4637 = vsel %vm4526, %v4435, %v4499
    %v4639 = vrot.slane %v4637, 1
    %v4640 = vsel %vm4530, %v4435, %v4499
    %v4642 = vrot.slane %v4640, 2
    %v4643 = vsel %vm4534, %v4435, %v4499
    %v4645 = vrot.slane %v4643, 3
    %v4648 = vsel %vm4522, %v4436, %v4500
    %v4649 = vsel %vm4526, %v4436, %v4500
    %v4651 = vrot.slane %v4649, 1
    %v4652 = vsel %vm4530, %v4436, %v4500
    %v4654 = vrot.slane %v4652, 2
    %v4655 = vsel %vm4534, %v4436, %v4500
    %v4657 = vrot.slane %v4655, 3
    %v4660 = vsel %vm4522, %v4437, %v4501
    %v4661 = vsel %vm4526, %v4437, %v4501
    %v4663 = vrot.slane %v4661, 1
    %v4664 = vsel %vm4530, %v4437, %v4501
    %v4666 = vrot.slane %v4664, 2
    %v4667 = vsel %vm4534, %v4437, %v4501
    %v4669 = vrot.slane %v4667, 3
    %v4672 = vsel %vm4522, %v4438, %v4502
    %v4673 = vsel %vm4526, %v4438, %v4502
    %v4675 = vrot.slane %v4673, 1
    %v4676 = vsel %vm4530, %v4438, %v4502
    %v4678 = vrot.slane %v4676, 2
    %v4679 = vsel %vm4534, %v4438, %v4502
    %v4681 = vrot.slane %v4679, 3
    %v4684 = vsel %vm4522, %v4439, %v4503
    %v4685 = vsel %vm4526, %v4439, %v4503
    %v4687 = vrot.slane %v4685, 1
    %v4688 = vsel %vm4530, %v4439, %v4503
    %v4690 = vrot.slane %v4688, 2
    %v4691 = vsel %vm4534, %v4439, %v4503
    %v4693 = vrot.slane %v4691, 3
    %v4696 = vsel %vm4522, %v4440, %v4504
    %v4697 = vsel %vm4526, %v4440, %v4504
    %v4699 = vrot.slane %v4697, 1
    %v4700 = vsel %vm4530, %v4440, %v4504
    %v4702 = vrot.slane %v4700, 2
    %v4703 = vsel %vm4534, %v4440, %v4504
    %v4705 = vrot.slane %v4703, 3
    %v4708 = vsel %vm4522, %v4441, %v4505
    %v4709 = vsel %vm4526, %v4441, %v4505
    %v4711 = vrot.slane %v4709, 1
    %v4712 = vsel %vm4530, %v4441, %v4505
    %v4714 = vrot.slane %v4712, 2
    %v4715 = vsel %vm4534, %v4441, %v4505
    %v4717 = vrot.slane %v4715, 3
    %v4720 = vsel %vm4522, %v4442, %v4506
    %v4721 = vsel %vm4526, %v4442, %v4506
    %v4723 = vrot.slane %v4721, 1
    %v4724 = vsel %vm4530, %v4442, %v4506
    %v4726 = vrot.slane %v4724, 2
    %v4727 = vsel %vm4534, %v4442, %v4506
    %v4729 = vrot.slane %v4727, 3
    %v4732 = vsel %vm4522, %v4443, %v4507
    %v4733 = vsel %vm4526, %v4443, %v4507
    %v4735 = vrot.slane %v4733, 1
    %v4736 = vsel %vm4530, %v4443, %v4507
    %v4738 = vrot.slane %v4736, 2
    %v4739 = vsel %vm4534, %v4443, %v4507
    %v4741 = vrot.slane %v4739, 3
    %v4744 = vsel %vm4522, %v4444, %v4508
    %v4745 = vsel %vm4526, %v4444, %v4508
    %v4747 = vrot.slane %v4745, 1
    %v4748 = vsel %vm4530, %v4444, %v4508
    %v4750 = vrot.slane %v4748, 2
    %v4751 = vsel %vm4534, %v4444, %v4508
    %v4753 = vrot.slane %v4751, 3
    %v4756 = vsel %vm4522, %v4445, %v4509
    %v4757 = vsel %vm4526, %v4445, %v4509
    %v4759 = vrot.slane %v4757, 1
    %v4760 = vsel %vm4530, %v4445, %v4509
    %v4762 = vrot.slane %v4760, 2
    %v4763 = vsel %vm4534, %v4445, %v4509
    %v4765 = vrot.slane %v4763, 3
    %v4768 = vsel %vm4522, %v4446, %v4510
    %v4769 = vsel %vm4526, %v4446, %v4510
    %v4771 = vrot.slane %v4769, 1
    %v4772 = vsel %vm4530, %v4446, %v4510
    %v4774 = vrot.slane %v4772, 2
    %v4775 = vsel %vm4534, %v4446, %v4510
    %v4777 = vrot.slane %v4775, 3
    %v4780 = vsel %vm4522, %v4447, %v4511
    %v4781 = vsel %vm4526, %v4447, %v4511
    %v4783 = vrot.slane %v4781, 1
    %v4784 = vsel %vm4530, %v4447, %v4511
    %v4786 = vrot.slane %v4784, 2
    %v4787 = vsel %vm4534, %v4447, %v4511
    %v4789 = vrot.slane %v4787, 3
    %v4792 = vsel %vm4522, %v4448, %v4512
    %v4793 = vsel %vm4526, %v4448, %v4512
    %v4795 = vrot.slane %v4793, 1
    %v4796 = vsel %vm4530, %v4448, %v4512
    %v4798 = vrot.slane %v4796, 2
    %v4799 = vsel %vm4534, %v4448, %v4512
    %v4801 = vrot.slane %v4799, 3
    %v4804 = vsel %vm4522, %v4449, %v4513
    %v4805 = vsel %vm4526, %v4449, %v4513
    %v4807 = vrot.slane %v4805, 1
    %v4808 = vsel %vm4530, %v4449, %v4513
    %v4810 = vrot.slane %v4808, 2
    %v4811 = vsel %vm4534, %v4449, %v4513
    %v4813 = vrot.slane %v4811, 3
    %v4816 = vsel %vm4522, %v4450, %v4514
    %v4817 = vsel %vm4526, %v4450, %v4514
    %v4819 = vrot.slane %v4817, 1
    %v4820 = vsel %vm4530, %v4450, %v4514
    %v4822 = vrot.slane %v4820, 2
    %v4823 = vsel %vm4534, %v4450, %v4514
    %v4825 = vrot.slane %v4823, 3
    %v4828 = vsel %vm4522, %v4451, %v4515
    %v4829 = vsel %vm4526, %v4451, %v4515
    %v4831 = vrot.slane %v4829, 1
    %v4832 = vsel %vm4530, %v4451, %v4515
    %v4834 = vrot.slane %v4832, 2
    %v4835 = vsel %vm4534, %v4451, %v4515
    %v4837 = vrot.slane %v4835, 3
    %v4840 = vsel %vm4522, %v4452, %v4516
    %v4841 = vsel %vm4526, %v4452, %v4516
    %v4843 = vrot.slane %v4841, 1
    %v4844 = vsel %vm4530, %v4452, %v4516
    %v4846 = vrot.slane %v4844, 2
    %v4847 = vsel %vm4534, %v4452, %v4516
    %v4849 = vrot.slane %v4847, 3
    %v4852 = vsel %vm4522, %v4453, %v4517
    %v4853 = vsel %vm4526, %v4453, %v4517
    %v4855 = vrot.slane %v4853, 1
    %v4856 = vsel %vm4530, %v4453, %v4517
    %v4858 = vrot.slane %v4856, 2
    %v4859 = vsel %vm4534, %v4453, %v4517
    %v4861 = vrot.slane %v4859, 3
    %v4864 = vsel %vm4522, %v4454, %v4518
    %v4865 = vsel %vm4526, %v4454, %v4518
    %v4867 = vrot.slane %v4865, 1
    %v4868 = vsel %vm4530, %v4454, %v4518
    %v4870 = vrot.slane %v4868, 2
    %v4871 = vsel %vm4534, %v4454, %v4518
    %v4873 = vrot.slane %v4871, 3
    %v4876 = vsel %vm4522, %v4455, %v4519
    %v4877 = vsel %vm4526, %v4455, %v4519
    %v4879 = vrot.slane %v4877, 1
    %v4880 = vsel %vm4530, %v4455, %v4519
    %v4882 = vrot.slane %v4880, 2
    %v4883 = vsel %vm4534, %v4455, %v4519
    %v4885 = vrot.slane %v4883, 3
    %v4888 = vsel %vm4522, %v4456, %v4520
    %v4889 = vsel %vm4526, %v4456, %v4520
    %v4891 = vrot.slane %v4889, 1
    %v4892 = vsel %vm4530, %v4456, %v4520
    %v4894 = vrot.slane %v4892, 2
    %v4895 = vsel %vm4534, %v4456, %v4520
    %v4897 = vrot.slane %v4895, 3
    %v4900 = vsel %vm4522, %v4457, %v4521
    %v4901 = vsel %vm4526, %v4457, %v4521
    %v4903 = vrot.slane %v4901, 1
    %v4904 = vsel %vm4530, %v4457, %v4521
    %v4906 = vrot.slane %v4904, 2
    %v4907 = vsel %vm4534, %v4457, %v4521
    %v4909 = vrot.slane %v4907, 3
    %v5038 = vunpack.c.l.bf16 %v4525
    %v5039 = vunpack.c.l.bf16 %v4529
    %v5040 = vunpack.c.l.bf16 %v4533
    %v5041 = vunpack.c.l.bf16 %v4537
    %v5042 = vunpack.c.l.bf16 %v4540
    %v5043 = vunpack.c.l.bf16 %v4543
    %v5044 = vunpack.c.l.bf16 %v4546
    %v5045 = vunpack.c.l.bf16 %v4549
    %v5046 = vunpack.c.l.bf16 %v4552
    %v5047 = vunpack.c.l.bf16 %v4555
    %v5048 = vunpack.c.l.bf16 %v4558
    %v5049 = vunpack.c.l.bf16 %v4561
    %v5050 = vunpack.c.l.bf16 %v4564
    %v5051 = vunpack.c.l.bf16 %v4567
    %v5052 = vunpack.c.l.bf16 %v4570
    %v5053 = vunpack.c.l.bf16 %v4573
    %v5054 = vunpack.c.l.bf16 %v4576
    %v5055 = vunpack.c.l.bf16 %v4579
    %v5056 = vunpack.c.l.bf16 %v4582
    %v5057 = vunpack.c.l.bf16 %v4585
    %v5058 = vunpack.c.l.bf16 %v4588
    %v5059 = vunpack.c.l.bf16 %v4591
    %v5060 = vunpack.c.l.bf16 %v4594
    %v5061 = vunpack.c.l.bf16 %v4597
    %v5062 = vunpack.c.l.bf16 %v4600
    %v5063 = vunpack.c.l.bf16 %v4603
    %v5064 = vunpack.c.l.bf16 %v4606
    %v5065 = vunpack.c.l.bf16 %v4609
    %v5066 = vunpack.c.l.bf16 %v4612
    %v5067 = vunpack.c.l.bf16 %v4615
    %v5068 = vunpack.c.l.bf16 %v4618
    %v5069 = vunpack.c.l.bf16 %v4621
    %v5070 = vunpack.c.l.bf16 %v4624
    %v5071 = vunpack.c.l.bf16 %v4627
    %v5072 = vunpack.c.l.bf16 %v4630
    %v5073 = vunpack.c.l.bf16 %v4633
    %v5074 = vunpack.c.l.bf16 %v4636
    %v5075 = vunpack.c.l.bf16 %v4639
    %v5076 = vunpack.c.l.bf16 %v4642
    %v5077 = vunpack.c.l.bf16 %v4645
    %v5078 = vunpack.c.l.bf16 %v4648
    %v5079 = vunpack.c.l.bf16 %v4651
    %v5080 = vunpack.c.l.bf16 %v4654
    %v5081 = vunpack.c.l.bf16 %v4657
    %v5082 = vunpack.c.l.bf16 %v4660
    %v5083 = vunpack.c.l.bf16 %v4663
    %v5084 = vunpack.c.l.bf16 %v4666
    %v5085 = vunpack.c.l.bf16 %v4669
    %v5086 = vunpack.c.l.bf16 %v4672
    %v5087 = vunpack.c.l.bf16 %v4675
    %v5088 = vunpack.c.l.bf16 %v4678
    %v5089 = vunpack.c.l.bf16 %v4681
    %v5090 = vunpack.c.l.bf16 %v4684
    %v5091 = vunpack.c.l.bf16 %v4687
    %v5092 = vunpack.c.l.bf16 %v4690
    %v5093 = vunpack.c.l.bf16 %v4693
    %v5094 = vunpack.c.l.bf16 %v4696
    %v5095 = vunpack.c.l.bf16 %v4699
    %v5096 = vunpack.c.l.bf16 %v4702
    %v5097 = vunpack.c.l.bf16 %v4705
    %v5098 = vunpack.c.l.bf16 %v4708
    %v5099 = vunpack.c.l.bf16 %v4711
    %v5100 = vunpack.c.l.bf16 %v4714
    %v5101 = vunpack.c.l.bf16 %v4717
    %v5102 = vunpack.c.l.bf16 %v4720
    %v5103 = vunpack.c.l.bf16 %v4723
    %v5104 = vunpack.c.l.bf16 %v4726
    %v5105 = vunpack.c.l.bf16 %v4729
    %v5106 = vunpack.c.l.bf16 %v4732
    %v5107 = vunpack.c.l.bf16 %v4735
    %v5108 = vunpack.c.l.bf16 %v4738
    %v5109 = vunpack.c.l.bf16 %v4741
    %v5110 = vunpack.c.l.bf16 %v4744
    %v5111 = vunpack.c.l.bf16 %v4747
    %v5112 = vunpack.c.l.bf16 %v4750
    %v5113 = vunpack.c.l.bf16 %v4753
    %v5114 = vunpack.c.l.bf16 %v4756
    %v5115 = vunpack.c.l.bf16 %v4759
    %v5116 = vunpack.c.l.bf16 %v4762
    %v5117 = vunpack.c.l.bf16 %v4765
    %v5118 = vunpack.c.l.bf16 %v4768
    %v5119 = vunpack.c.l.bf16 %v4771
    %v5120 = vunpack.c.l.bf16 %v4774
    %v5121 = vunpack.c.l.bf16 %v4777
    %v5122 = vunpack.c.l.bf16 %v4780
    %v5123 = vunpack.c.l.bf16 %v4783
    %v5124 = vunpack.c.l.bf16 %v4786
    %v5125 = vunpack.c.l.bf16 %v4789
    %v5126 = vunpack.c.l.bf16 %v4792
    %v5127 = vunpack.c.l.bf16 %v4795
    %v5128 = vunpack.c.l.bf16 %v4798
    %v5129 = vunpack.c.l.bf16 %v4801
    %v5130 = vunpack.c.l.bf16 %v4804
    %v5131 = vunpack.c.l.bf16 %v4807
    %v5132 = vunpack.c.l.bf16 %v4810
    %v5133 = vunpack.c.l.bf16 %v4813
    %v5134 = vunpack.c.l.bf16 %v4816
    %v5135 = vunpack.c.l.bf16 %v4819
    %v5136 = vunpack.c.l.bf16 %v4822
    %v5137 = vunpack.c.l.bf16 %v4825
    %v5138 = vunpack.c.l.bf16 %v4828
    %v5139 = vunpack.c.l.bf16 %v4831
    %v5140 = vunpack.c.l.bf16 %v4834
    %v5141 = vunpack.c.l.bf16 %v4837
    %v5142 = vunpack.c.l.bf16 %v4840
    %v5143 = vunpack.c.l.bf16 %v4843
    %v5144 = vunpack.c.l.bf16 %v4846
    %v5145 = vunpack.c.l.bf16 %v4849
    %v5146 = vunpack.c.l.bf16 %v4852
    %v5147 = vunpack.c.l.bf16 %v4855
    %v5148 = vunpack.c.l.bf16 %v4858
    %v5149 = vunpack.c.l.bf16 %v4861
    %v5150 = vunpack.c.l.bf16 %v4864
    %v5151 = vunpack.c.l.bf16 %v4867
    %v5152 = vunpack.c.l.bf16 %v4870
    %v5153 = vunpack.c.l.bf16 %v4873
    %v5154 = vunpack.c.l.bf16 %v4876
    %v5155 = vunpack.c.l.bf16 %v4879
    %v5156 = vunpack.c.l.bf16 %v4882
    %v5157 = vunpack.c.l.bf16 %v4885
    %v5158 = vunpack.c.l.bf16 %v4888
    %v5159 = vunpack.c.l.bf16 %v4891
    %v5160 = vunpack.c.l.bf16 %v4894
    %v5161 = vunpack.c.l.bf16 %v4897
    %v5162 = vunpack.c.l.bf16 %v4900
    %v5163 = vunpack.c.l.bf16 %v4903
    %v5164 = vunpack.c.l.bf16 %v4906
    %v5165 = vunpack.c.l.bf16 %v4909
    %vm5166 = vcmask 254976
    %v5167 = vsel %vm5166, %v5038, -inf
    %v5168 = vrot.slane %v5167, 4
    %v5169 = vmax.f32 %v5167, %v5168
    %v5170 = vrot.slane %v5169, 2
    %v5171 = vmax.f32 %v5169, %v5170
    %v5172 = vrot.slane %v5171, 1
    %v5173 = vmax.f32 %v5171, %v5172
    %v5174 = vsel %vm5166, %v5039, -inf
    %v5175 = vrot.slane %v5174, 4
    %v5176 = vmax.f32 %v5174, %v5175
    %v5177 = vrot.slane %v5176, 2
    %v5178 = vmax.f32 %v5176, %v5177
    %v5179 = vrot.slane %v5178, 1
    %v5180 = vmax.f32 %v5178, %v5179
    %v5181 = vsel %vm5166, %v5040, -inf
    %v5182 = vrot.slane %v5181, 4
    %v5183 = vmax.f32 %v5181, %v5182
    %v5184 = vrot.slane %v5183, 2
    %v5185 = vmax.f32 %v5183, %v5184
    %v5186 = vrot.slane %v5185, 1
    %v5187 = vmax.f32 %v5185, %v5186
    %v5188 = vsel %vm5166, %v5041, -inf
    %v5189 = vrot.slane %v5188, 4
    %v5190 = vmax.f32 %v5188, %v5189
    %v5191 = vrot.slane %v5190, 2
    %v5192 = vmax.f32 %v5190, %v5191
    %v5193 = vrot.slane %v5192, 1
    %v5194 = vmax.f32 %v5192, %v5193
    %v5195 = vsel %vm5166, %v5042, -inf
    %v5196 = vrot.slane %v5195, 4
    %v5197 = vmax.f32 %v5195, %v5196
    %v5198 = vrot.slane %v5197, 2
    %v5199 = vmax.f32 %v5197, %v5198
    %v5200 = vrot.slane %v5199, 1
    %v5201 = vmax.f32 %v5199, %v5200
    %v5202 = vsel %vm5166, %v5043, -inf
    %v5203 = vrot.slane %v5202, 4
    %v5204 = vmax.f32 %v5202, %v5203
    %v5205 = vrot.slane %v5204, 2
    %v5206 = vmax.f32 %v5204, %v5205
    %v5207 = vrot.slane %v5206, 1
    %v5208 = vmax.f32 %v5206, %v5207
    %v5209 = vsel %vm5166, %v5044, -inf
    %v5210 = vrot.slane %v5209, 4
    %v5211 = vmax.f32 %v5209, %v5210
    %v5212 = vrot.slane %v5211, 2
    %v5213 = vmax.f32 %v5211, %v5212
    %v5214 = vrot.slane %v5213, 1
    %v5215 = vmax.f32 %v5213, %v5214
    %v5216 = vsel %vm5166, %v5045, -inf
    %v5217 = vrot.slane %v5216, 4
    %v5218 = vmax.f32 %v5216, %v5217
    %v5219 = vrot.slane %v5218, 2
    %v5220 = vmax.f32 %v5218, %v5219
    %v5221 = vrot.slane %v5220, 1
    %v5222 = vmax.f32 %v5220, %v5221
    %v5223 = vsel %vm5166, %v5046, -inf
    %v5224 = vrot.slane %v5223, 4
    %v5225 = vmax.f32 %v5223, %v5224
    %v5226 = vrot.slane %v5225, 2
    %v5227 = vmax.f32 %v5225, %v5226
    %v5228 = vrot.slane %v5227, 1
    %v5229 = vmax.f32 %v5227, %v5228
    %v5230 = vsel %vm5166, %v5047, -inf
    %v5231 = vrot.slane %v5230, 4
    %v5232 = vmax.f32 %v5230, %v5231
    %v5233 = vrot.slane %v5232, 2
    %v5234 = vmax.f32 %v5232, %v5233
    %v5235 = vrot.slane %v5234, 1
    %v5236 = vmax.f32 %v5234, %v5235
    %v5237 = vsel %vm5166, %v5048, -inf
    %v5238 = vrot.slane %v5237, 4
    %v5239 = vmax.f32 %v5237, %v5238
    %v5240 = vrot.slane %v5239, 2
    %v5241 = vmax.f32 %v5239, %v5240
    %v5242 = vrot.slane %v5241, 1
    %v5243 = vmax.f32 %v5241, %v5242
    %v5244 = vsel %vm5166, %v5049, -inf
    %v5245 = vrot.slane %v5244, 4
    %v5246 = vmax.f32 %v5244, %v5245
    %v5247 = vrot.slane %v5246, 2
    %v5248 = vmax.f32 %v5246, %v5247
    %v5249 = vrot.slane %v5248, 1
    %v5250 = vmax.f32 %v5248, %v5249
    %v5251 = vsel %vm5166, %v5050, -inf
    %v5252 = vrot.slane %v5251, 4
    %v5253 = vmax.f32 %v5251, %v5252
    %v5254 = vrot.slane %v5253, 2
    %v5255 = vmax.f32 %v5253, %v5254
    %v5256 = vrot.slane %v5255, 1
    %v5257 = vmax.f32 %v5255, %v5256
    %v5258 = vsel %vm5166, %v5051, -inf
    %v5259 = vrot.slane %v5258, 4
    %v5260 = vmax.f32 %v5258, %v5259
    %v5261 = vrot.slane %v5260, 2
    %v5262 = vmax.f32 %v5260, %v5261
    %v5263 = vrot.slane %v5262, 1
    %v5264 = vmax.f32 %v5262, %v5263
    %v5265 = vsel %vm5166, %v5052, -inf
    %v5266 = vrot.slane %v5265, 4
    %v5267 = vmax.f32 %v5265, %v5266
    %v5268 = vrot.slane %v5267, 2
    %v5269 = vmax.f32 %v5267, %v5268
    %v5270 = vrot.slane %v5269, 1
    %v5271 = vmax.f32 %v5269, %v5270
    %v5272 = vsel %vm5166, %v5053, -inf
    %v5273 = vrot.slane %v5272, 4
    %v5274 = vmax.f32 %v5272, %v5273
    %v5275 = vrot.slane %v5274, 2
    %v5276 = vmax.f32 %v5274, %v5275
    %v5277 = vrot.slane %v5276, 1
    %v5278 = vmax.f32 %v5276, %v5277
    %v5279 = vsel %vm5166, %v5054, -inf
    %v5280 = vrot.slane %v5279, 4
    %v5281 = vmax.f32 %v5279, %v5280
    %v5282 = vrot.slane %v5281, 2
    %v5283 = vmax.f32 %v5281, %v5282
    %v5284 = vrot.slane %v5283, 1
    %v5285 = vmax.f32 %v5283, %v5284
    %v5286 = vsel %vm5166, %v5055, -inf
    %v5287 = vrot.slane %v5286, 4
    %v5288 = vmax.f32 %v5286, %v5287
    %v5289 = vrot.slane %v5288, 2
    %v5290 = vmax.f32 %v5288, %v5289
    %v5291 = vrot.slane %v5290, 1
    %v5292 = vmax.f32 %v5290, %v5291
    %v5293 = vsel %vm5166, %v5056, -inf
    %v5294 = vrot.slane %v5293, 4
    %v5295 = vmax.f32 %v5293, %v5294
    %v5296 = vrot.slane %v5295, 2
    %v5297 = vmax.f32 %v5295, %v5296
    %v5298 = vrot.slane %v5297, 1
    %v5299 = vmax.f32 %v5297, %v5298
    %v5300 = vsel %vm5166, %v5057, -inf
    %v5301 = vrot.slane %v5300, 4
    %v5302 = vmax.f32 %v5300, %v5301
    %v5303 = vrot.slane %v5302, 2
    %v5304 = vmax.f32 %v5302, %v5303
    %v5305 = vrot.slane %v5304, 1
    %v5306 = vmax.f32 %v5304, %v5305
    %v5307 = vsel %vm5166, %v5058, -inf
    %v5308 = vrot.slane %v5307, 4
    %v5309 = vmax.f32 %v5307, %v5308
    %v5310 = vrot.slane %v5309, 2
    %v5311 = vmax.f32 %v5309, %v5310
    %v5312 = vrot.slane %v5311, 1
    %v5313 = vmax.f32 %v5311, %v5312
    %v5314 = vsel %vm5166, %v5059, -inf
    %v5315 = vrot.slane %v5314, 4
    %v5316 = vmax.f32 %v5314, %v5315
    %v5317 = vrot.slane %v5316, 2
    %v5318 = vmax.f32 %v5316, %v5317
    %v5319 = vrot.slane %v5318, 1
    %v5320 = vmax.f32 %v5318, %v5319
    %v5321 = vsel %vm5166, %v5060, -inf
    %v5322 = vrot.slane %v5321, 4
    %v5323 = vmax.f32 %v5321, %v5322
    %v5324 = vrot.slane %v5323, 2
    %v5325 = vmax.f32 %v5323, %v5324
    %v5326 = vrot.slane %v5325, 1
    %v5327 = vmax.f32 %v5325, %v5326
    %v5328 = vsel %vm5166, %v5061, -inf
    %v5329 = vrot.slane %v5328, 4
    %v5330 = vmax.f32 %v5328, %v5329
    %v5331 = vrot.slane %v5330, 2
    %v5332 = vmax.f32 %v5330, %v5331
    %v5333 = vrot.slane %v5332, 1
    %v5334 = vmax.f32 %v5332, %v5333
    %v5335 = vsel %vm5166, %v5062, -inf
    %v5336 = vrot.slane %v5335, 4
    %v5337 = vmax.f32 %v5335, %v5336
    %v5338 = vrot.slane %v5337, 2
    %v5339 = vmax.f32 %v5337, %v5338
    %v5340 = vrot.slane %v5339, 1
    %v5341 = vmax.f32 %v5339, %v5340
    %v5342 = vsel %vm5166, %v5063, -inf
    %v5343 = vrot.slane %v5342, 4
    %v5344 = vmax.f32 %v5342, %v5343
    %v5345 = vrot.slane %v5344, 2
    %v5346 = vmax.f32 %v5344, %v5345
    %v5347 = vrot.slane %v5346, 1
    %v5348 = vmax.f32 %v5346, %v5347
    %v5349 = vsel %vm5166, %v5064, -inf
    %v5350 = vrot.slane %v5349, 4
    %v5351 = vmax.f32 %v5349, %v5350
    %v5352 = vrot.slane %v5351, 2
    %v5353 = vmax.f32 %v5351, %v5352
    %v5354 = vrot.slane %v5353, 1
    %v5355 = vmax.f32 %v5353, %v5354
    %v5356 = vsel %vm5166, %v5065, -inf
    %v5357 = vrot.slane %v5356, 4
    %v5358 = vmax.f32 %v5356, %v5357
    %v5359 = vrot.slane %v5358, 2
    %v5360 = vmax.f32 %v5358, %v5359
    %v5361 = vrot.slane %v5360, 1
    %v5362 = vmax.f32 %v5360, %v5361
    %v5363 = vsel %vm5166, %v5066, -inf
    %v5364 = vrot.slane %v5363, 4
    %v5365 = vmax.f32 %v5363, %v5364
    %v5366 = vrot.slane %v5365, 2
    %v5367 = vmax.f32 %v5365, %v5366
    %v5368 = vrot.slane %v5367, 1
    %v5369 = vmax.f32 %v5367, %v5368
    %v5370 = vsel %vm5166, %v5067, -inf
    %v5371 = vrot.slane %v5370, 4
    %v5372 = vmax.f32 %v5370, %v5371
    %v5373 = vrot.slane %v5372, 2
    %v5374 = vmax.f32 %v5372, %v5373
    %v5375 = vrot.slane %v5374, 1
    %v5376 = vmax.f32 %v5374, %v5375
    %v5377 = vsel %vm5166, %v5068, -inf
    %v5378 = vrot.slane %v5377, 4
    %v5379 = vmax.f32 %v5377, %v5378
    %v5380 = vrot.slane %v5379, 2
    %v5381 = vmax.f32 %v5379, %v5380
    %v5382 = vrot.slane %v5381, 1
    %v5383 = vmax.f32 %v5381, %v5382
    %v5384 = vsel %vm5166, %v5069, -inf
    %v5385 = vrot.slane %v5384, 4
    %v5386 = vmax.f32 %v5384, %v5385
    %v5387 = vrot.slane %v5386, 2
    %v5388 = vmax.f32 %v5386, %v5387
    %v5389 = vrot.slane %v5388, 1
    %v5390 = vmax.f32 %v5388, %v5389
    %v5391 = vsel %vm5166, %v5070, -inf
    %v5392 = vrot.slane %v5391, 4
    %v5393 = vmax.f32 %v5391, %v5392
    %v5394 = vrot.slane %v5393, 2
    %v5395 = vmax.f32 %v5393, %v5394
    %v5396 = vrot.slane %v5395, 1
    %v5397 = vmax.f32 %v5395, %v5396
    %v5398 = vsel %vm5166, %v5071, -inf
    %v5399 = vrot.slane %v5398, 4
    %v5400 = vmax.f32 %v5398, %v5399
    %v5401 = vrot.slane %v5400, 2
    %v5402 = vmax.f32 %v5400, %v5401
    %v5403 = vrot.slane %v5402, 1
    %v5404 = vmax.f32 %v5402, %v5403
    %v5405 = vsel %vm5166, %v5072, -inf
    %v5406 = vrot.slane %v5405, 4
    %v5407 = vmax.f32 %v5405, %v5406
    %v5408 = vrot.slane %v5407, 2
    %v5409 = vmax.f32 %v5407, %v5408
    %v5410 = vrot.slane %v5409, 1
    %v5411 = vmax.f32 %v5409, %v5410
    %v5412 = vsel %vm5166, %v5073, -inf
    %v5413 = vrot.slane %v5412, 4
    %v5414 = vmax.f32 %v5412, %v5413
    %v5415 = vrot.slane %v5414, 2
    %v5416 = vmax.f32 %v5414, %v5415
    %v5417 = vrot.slane %v5416, 1
    %v5418 = vmax.f32 %v5416, %v5417
    %v5419 = vsel %vm5166, %v5074, -inf
    %v5420 = vrot.slane %v5419, 4
    %v5421 = vmax.f32 %v5419, %v5420
    %v5422 = vrot.slane %v5421, 2
    %v5423 = vmax.f32 %v5421, %v5422
    %v5424 = vrot.slane %v5423, 1
    %v5425 = vmax.f32 %v5423, %v5424
    %v5426 = vsel %vm5166, %v5075, -inf
    %v5427 = vrot.slane %v5426, 4
    %v5428 = vmax.f32 %v5426, %v5427
    %v5429 = vrot.slane %v5428, 2
    %v5430 = vmax.f32 %v5428, %v5429
    %v5431 = vrot.slane %v5430, 1
    %v5432 = vmax.f32 %v5430, %v5431
    %v5433 = vsel %vm5166, %v5076, -inf
    %v5434 = vrot.slane %v5433, 4
    %v5435 = vmax.f32 %v5433, %v5434
    %v5436 = vrot.slane %v5435, 2
    %v5437 = vmax.f32 %v5435, %v5436
    %v5438 = vrot.slane %v5437, 1
    %v5439 = vmax.f32 %v5437, %v5438
    %v5440 = vsel %vm5166, %v5077, -inf
    %v5441 = vrot.slane %v5440, 4
    %v5442 = vmax.f32 %v5440, %v5441
    %v5443 = vrot.slane %v5442, 2
    %v5444 = vmax.f32 %v5442, %v5443
    %v5445 = vrot.slane %v5444, 1
    %v5446 = vmax.f32 %v5444, %v5445
    %v5447 = vsel %vm5166, %v5078, -inf
    %v5448 = vrot.slane %v5447, 4
    %v5449 = vmax.f32 %v5447, %v5448
    %v5450 = vrot.slane %v5449, 2
    %v5451 = vmax.f32 %v5449, %v5450
    %v5452 = vrot.slane %v5451, 1
    %v5453 = vmax.f32 %v5451, %v5452
    %v5454 = vsel %vm5166, %v5079, -inf
    %v5455 = vrot.slane %v5454, 4
    %v5456 = vmax.f32 %v5454, %v5455
    %v5457 = vrot.slane %v5456, 2
    %v5458 = vmax.f32 %v5456, %v5457
    %v5459 = vrot.slane %v5458, 1
    %v5460 = vmax.f32 %v5458, %v5459
    %v5461 = vsel %vm5166, %v5080, -inf
    %v5462 = vrot.slane %v5461, 4
    %v5463 = vmax.f32 %v5461, %v5462
    %v5464 = vrot.slane %v5463, 2
    %v5465 = vmax.f32 %v5463, %v5464
    %v5466 = vrot.slane %v5465, 1
    %v5467 = vmax.f32 %v5465, %v5466
    %v5468 = vsel %vm5166, %v5081, -inf
    %v5469 = vrot.slane %v5468, 4
    %v5470 = vmax.f32 %v5468, %v5469
    %v5471 = vrot.slane %v5470, 2
    %v5472 = vmax.f32 %v5470, %v5471
    %v5473 = vrot.slane %v5472, 1
    %v5474 = vmax.f32 %v5472, %v5473
    %v5475 = vsel %vm5166, %v5082, -inf
    %v5476 = vrot.slane %v5475, 4
    %v5477 = vmax.f32 %v5475, %v5476
    %v5478 = vrot.slane %v5477, 2
    %v5479 = vmax.f32 %v5477, %v5478
    %v5480 = vrot.slane %v5479, 1
    %v5481 = vmax.f32 %v5479, %v5480
    %v5482 = vsel %vm5166, %v5083, -inf
    %v5483 = vrot.slane %v5482, 4
    %v5484 = vmax.f32 %v5482, %v5483
    %v5485 = vrot.slane %v5484, 2
    %v5486 = vmax.f32 %v5484, %v5485
    %v5487 = vrot.slane %v5486, 1
    %v5488 = vmax.f32 %v5486, %v5487
    %v5489 = vsel %vm5166, %v5084, -inf
    %v5490 = vrot.slane %v5489, 4
    %v5491 = vmax.f32 %v5489, %v5490
    %v5492 = vrot.slane %v5491, 2
    %v5493 = vmax.f32 %v5491, %v5492
    %v5494 = vrot.slane %v5493, 1
    %v5495 = vmax.f32 %v5493, %v5494
    %v5496 = vsel %vm5166, %v5085, -inf
    %v5497 = vrot.slane %v5496, 4
    %v5498 = vmax.f32 %v5496, %v5497
    %v5499 = vrot.slane %v5498, 2
    %v5500 = vmax.f32 %v5498, %v5499
    %v5501 = vrot.slane %v5500, 1
    %v5502 = vmax.f32 %v5500, %v5501
    %v5503 = vsel %vm5166, %v5086, -inf
    %v5504 = vrot.slane %v5503, 4
    %v5505 = vmax.f32 %v5503, %v5504
    %v5506 = vrot.slane %v5505, 2
    %v5507 = vmax.f32 %v5505, %v5506
    %v5508 = vrot.slane %v5507, 1
    %v5509 = vmax.f32 %v5507, %v5508
    %v5510 = vsel %vm5166, %v5087, -inf
    %v5511 = vrot.slane %v5510, 4
    %v5512 = vmax.f32 %v5510, %v5511
    %v5513 = vrot.slane %v5512, 2
    %v5514 = vmax.f32 %v5512, %v5513
    %v5515 = vrot.slane %v5514, 1
    %v5516 = vmax.f32 %v5514, %v5515
    %v5517 = vsel %vm5166, %v5088, -inf
    %v5518 = vrot.slane %v5517, 4
    %v5519 = vmax.f32 %v5517, %v5518
    %v5520 = vrot.slane %v5519, 2
    %v5521 = vmax.f32 %v5519, %v5520
    %v5522 = vrot.slane %v5521, 1
    %v5523 = vmax.f32 %v5521, %v5522
    %v5524 = vsel %vm5166, %v5089, -inf
    %v5525 = vrot.slane %v5524, 4
    %v5526 = vmax.f32 %v5524, %v5525
    %v5527 = vrot.slane %v5526, 2
    %v5528 = vmax.f32 %v5526, %v5527
    %v5529 = vrot.slane %v5528, 1
    %v5530 = vmax.f32 %v5528, %v5529
    %v5531 = vsel %vm5166, %v5090, -inf
    %v5532 = vrot.slane %v5531, 4
    %v5533 = vmax.f32 %v5531, %v5532
    %v5534 = vrot.slane %v5533, 2
    %v5535 = vmax.f32 %v5533, %v5534
    %v5536 = vrot.slane %v5535, 1
    %v5537 = vmax.f32 %v5535, %v5536
    %v5538 = vsel %vm5166, %v5091, -inf
    %v5539 = vrot.slane %v5538, 4
    %v5540 = vmax.f32 %v5538, %v5539
    %v5541 = vrot.slane %v5540, 2
    %v5542 = vmax.f32 %v5540, %v5541
    %v5543 = vrot.slane %v5542, 1
    %v5544 = vmax.f32 %v5542, %v5543
    %v5545 = vsel %vm5166, %v5092, -inf
    %v5546 = vrot.slane %v5545, 4
    %v5547 = vmax.f32 %v5545, %v5546
    %v5548 = vrot.slane %v5547, 2
    %v5549 = vmax.f32 %v5547, %v5548
    %v5550 = vrot.slane %v5549, 1
    %v5551 = vmax.f32 %v5549, %v5550
    %v5552 = vsel %vm5166, %v5093, -inf
    %v5553 = vrot.slane %v5552, 4
    %v5554 = vmax.f32 %v5552, %v5553
    %v5555 = vrot.slane %v5554, 2
    %v5556 = vmax.f32 %v5554, %v5555
    %v5557 = vrot.slane %v5556, 1
    %v5558 = vmax.f32 %v5556, %v5557
    %v5559 = vsel %vm5166, %v5094, -inf
    %v5560 = vrot.slane %v5559, 4
    %v5561 = vmax.f32 %v5559, %v5560
    %v5562 = vrot.slane %v5561, 2
    %v5563 = vmax.f32 %v5561, %v5562
    %v5564 = vrot.slane %v5563, 1
    %v5565 = vmax.f32 %v5563, %v5564
    %v5566 = vsel %vm5166, %v5095, -inf
    %v5567 = vrot.slane %v5566, 4
    %v5568 = vmax.f32 %v5566, %v5567
    %v5569 = vrot.slane %v5568, 2
    %v5570 = vmax.f32 %v5568, %v5569
    %v5571 = vrot.slane %v5570, 1
    %v5572 = vmax.f32 %v5570, %v5571
    %v5573 = vsel %vm5166, %v5096, -inf
    %v5574 = vrot.slane %v5573, 4
    %v5575 = vmax.f32 %v5573, %v5574
    %v5576 = vrot.slane %v5575, 2
    %v5577 = vmax.f32 %v5575, %v5576
    %v5578 = vrot.slane %v5577, 1
    %v5579 = vmax.f32 %v5577, %v5578
    %v5580 = vsel %vm5166, %v5097, -inf
    %v5581 = vrot.slane %v5580, 4
    %v5582 = vmax.f32 %v5580, %v5581
    %v5583 = vrot.slane %v5582, 2
    %v5584 = vmax.f32 %v5582, %v5583
    %v5585 = vrot.slane %v5584, 1
    %v5586 = vmax.f32 %v5584, %v5585
    %v5587 = vsel %vm5166, %v5098, -inf
    %v5588 = vrot.slane %v5587, 4
    %v5589 = vmax.f32 %v5587, %v5588
    %v5590 = vrot.slane %v5589, 2
    %v5591 = vmax.f32 %v5589, %v5590
    %v5592 = vrot.slane %v5591, 1
    %v5593 = vmax.f32 %v5591, %v5592
    %v5594 = vsel %vm5166, %v5099, -inf
    %v5595 = vrot.slane %v5594, 4
    %v5596 = vmax.f32 %v5594, %v5595
    %v5597 = vrot.slane %v5596, 2
    %v5598 = vmax.f32 %v5596, %v5597
    %v5599 = vrot.slane %v5598, 1
    %v5600 = vmax.f32 %v5598, %v5599
    %v5601 = vsel %vm5166, %v5100, -inf
    %v5602 = vrot.slane %v5601, 4
    %v5603 = vmax.f32 %v5601, %v5602
    %v5604 = vrot.slane %v5603, 2
    %v5605 = vmax.f32 %v5603, %v5604
    %v5606 = vrot.slane %v5605, 1
    %v5607 = vmax.f32 %v5605, %v5606
    %v5608 = vsel %vm5166, %v5101, -inf
    %v5609 = vrot.slane %v5608, 4
    %v5610 = vmax.f32 %v5608, %v5609
    %v5611 = vrot.slane %v5610, 2
    %v5612 = vmax.f32 %v5610, %v5611
    %v5613 = vrot.slane %v5612, 1
    %v5614 = vmax.f32 %v5612, %v5613
    %v5615 = vsel %vm5166, %v5102, -inf
    %v5616 = vrot.slane %v5615, 4
    %v5617 = vmax.f32 %v5615, %v5616
    %v5618 = vrot.slane %v5617, 2
    %v5619 = vmax.f32 %v5617, %v5618
    %v5620 = vrot.slane %v5619, 1
    %v5621 = vmax.f32 %v5619, %v5620
    %v5622 = vsel %vm5166, %v5103, -inf
    %v5623 = vrot.slane %v5622, 4
    %v5624 = vmax.f32 %v5622, %v5623
    %v5625 = vrot.slane %v5624, 2
    %v5626 = vmax.f32 %v5624, %v5625
    %v5627 = vrot.slane %v5626, 1
    %v5628 = vmax.f32 %v5626, %v5627
    %v5629 = vsel %vm5166, %v5104, -inf
    %v5630 = vrot.slane %v5629, 4
    %v5631 = vmax.f32 %v5629, %v5630
    %v5632 = vrot.slane %v5631, 2
    %v5633 = vmax.f32 %v5631, %v5632
    %v5634 = vrot.slane %v5633, 1
    %v5635 = vmax.f32 %v5633, %v5634
    %v5636 = vsel %vm5166, %v5105, -inf
    %v5637 = vrot.slane %v5636, 4
    %v5638 = vmax.f32 %v5636, %v5637
    %v5639 = vrot.slane %v5638, 2
    %v5640 = vmax.f32 %v5638, %v5639
    %v5641 = vrot.slane %v5640, 1
    %v5642 = vmax.f32 %v5640, %v5641
    %v5643 = vsel %vm5166, %v5106, -inf
    %v5644 = vrot.slane %v5643, 4
    %v5645 = vmax.f32 %v5643, %v5644
    %v5646 = vrot.slane %v5645, 2
    %v5647 = vmax.f32 %v5645, %v5646
    %v5648 = vrot.slane %v5647, 1
    %v5649 = vmax.f32 %v5647, %v5648
    %v5650 = vsel %vm5166, %v5107, -inf
    %v5651 = vrot.slane %v5650, 4
    %v5652 = vmax.f32 %v5650, %v5651
    %v5653 = vrot.slane %v5652, 2
    %v5654 = vmax.f32 %v5652, %v5653
    %v5655 = vrot.slane %v5654, 1
    %v5656 = vmax.f32 %v5654, %v5655
    %v5657 = vsel %vm5166, %v5108, -inf
    %v5658 = vrot.slane %v5657, 4
    %v5659 = vmax.f32 %v5657, %v5658
    %v5660 = vrot.slane %v5659, 2
    %v5661 = vmax.f32 %v5659, %v5660
    %v5662 = vrot.slane %v5661, 1
    %v5663 = vmax.f32 %v5661, %v5662
    %v5664 = vsel %vm5166, %v5109, -inf
    %v5665 = vrot.slane %v5664, 4
    %v5666 = vmax.f32 %v5664, %v5665
    %v5667 = vrot.slane %v5666, 2
    %v5668 = vmax.f32 %v5666, %v5667
    %v5669 = vrot.slane %v5668, 1
    %v5670 = vmax.f32 %v5668, %v5669
    %v5671 = vsel %vm5166, %v5110, -inf
    %v5672 = vrot.slane %v5671, 4
    %v5673 = vmax.f32 %v5671, %v5672
    %v5674 = vrot.slane %v5673, 2
    %v5675 = vmax.f32 %v5673, %v5674
    %v5676 = vrot.slane %v5675, 1
    %v5677 = vmax.f32 %v5675, %v5676
    %v5678 = vsel %vm5166, %v5111, -inf
    %v5679 = vrot.slane %v5678, 4
    %v5680 = vmax.f32 %v5678, %v5679
    %v5681 = vrot.slane %v5680, 2
    %v5682 = vmax.f32 %v5680, %v5681
    %v5683 = vrot.slane %v5682, 1
    %v5684 = vmax.f32 %v5682, %v5683
    %v5685 = vsel %vm5166, %v5112, -inf
    %v5686 = vrot.slane %v5685, 4
    %v5687 = vmax.f32 %v5685, %v5686
    %v5688 = vrot.slane %v5687, 2
    %v5689 = vmax.f32 %v5687, %v5688
    %v5690 = vrot.slane %v5689, 1
    %v5691 = vmax.f32 %v5689, %v5690
    %v5692 = vsel %vm5166, %v5113, -inf
    %v5693 = vrot.slane %v5692, 4
    %v5694 = vmax.f32 %v5692, %v5693
    %v5695 = vrot.slane %v5694, 2
    %v5696 = vmax.f32 %v5694, %v5695
    %v5697 = vrot.slane %v5696, 1
    %v5698 = vmax.f32 %v5696, %v5697
    %v5699 = vsel %vm5166, %v5114, -inf
    %v5700 = vrot.slane %v5699, 4
    %v5701 = vmax.f32 %v5699, %v5700
    %v5702 = vrot.slane %v5701, 2
    %v5703 = vmax.f32 %v5701, %v5702
    %v5704 = vrot.slane %v5703, 1
    %v5705 = vmax.f32 %v5703, %v5704
    %v5706 = vsel %vm5166, %v5115, -inf
    %v5707 = vrot.slane %v5706, 4
    %v5708 = vmax.f32 %v5706, %v5707
    %v5709 = vrot.slane %v5708, 2
    %v5710 = vmax.f32 %v5708, %v5709
    %v5711 = vrot.slane %v5710, 1
    %v5712 = vmax.f32 %v5710, %v5711
    %v5713 = vsel %vm5166, %v5116, -inf
    %v5714 = vrot.slane %v5713, 4
    %v5715 = vmax.f32 %v5713, %v5714
    %v5716 = vrot.slane %v5715, 2
    %v5717 = vmax.f32 %v5715, %v5716
    %v5718 = vrot.slane %v5717, 1
    %v5719 = vmax.f32 %v5717, %v5718
    %v5720 = vsel %vm5166, %v5117, -inf
    %v5721 = vrot.slane %v5720, 4
    %v5722 = vmax.f32 %v5720, %v5721
    %v5723 = vrot.slane %v5722, 2
    %v5724 = vmax.f32 %v5722, %v5723
    %v5725 = vrot.slane %v5724, 1
    %v5726 = vmax.f32 %v5724, %v5725
    %v5727 = vsel %vm5166, %v5118, -inf
    %v5728 = vrot.slane %v5727, 4
    %v5729 = vmax.f32 %v5727, %v5728
    %v5730 = vrot.slane %v5729, 2
    %v5731 = vmax.f32 %v5729, %v5730
    %v5732 = vrot.slane %v5731, 1
    %v5733 = vmax.f32 %v5731, %v5732
    %v5734 = vsel %vm5166, %v5119, -inf
    %v5735 = vrot.slane %v5734, 4
    %v5736 = vmax.f32 %v5734, %v5735
    %v5737 = vrot.slane %v5736, 2
    %v5738 = vmax.f32 %v5736, %v5737
    %v5739 = vrot.slane %v5738, 1
    %v5740 = vmax.f32 %v5738, %v5739
    %v5741 = vsel %vm5166, %v5120, -inf
    %v5742 = vrot.slane %v5741, 4
    %v5743 = vmax.f32 %v5741, %v5742
    %v5744 = vrot.slane %v5743, 2
    %v5745 = vmax.f32 %v5743, %v5744
    %v5746 = vrot.slane %v5745, 1
    %v5747 = vmax.f32 %v5745, %v5746
    %v5748 = vsel %vm5166, %v5121, -inf
    %v5749 = vrot.slane %v5748, 4
    %v5750 = vmax.f32 %v5748, %v5749
    %v5751 = vrot.slane %v5750, 2
    %v5752 = vmax.f32 %v5750, %v5751
    %v5753 = vrot.slane %v5752, 1
    %v5754 = vmax.f32 %v5752, %v5753
    %v5755 = vsel %vm5166, %v5122, -inf
    %v5756 = vrot.slane %v5755, 4
    %v5757 = vmax.f32 %v5755, %v5756
    %v5758 = vrot.slane %v5757, 2
    %v5759 = vmax.f32 %v5757, %v5758
    %v5760 = vrot.slane %v5759, 1
    %v5761 = vmax.f32 %v5759, %v5760
    %v5762 = vsel %vm5166, %v5123, -inf
    %v5763 = vrot.slane %v5762, 4
    %v5764 = vmax.f32 %v5762, %v5763
    %v5765 = vrot.slane %v5764, 2
    %v5766 = vmax.f32 %v5764, %v5765
    %v5767 = vrot.slane %v5766, 1
    %v5768 = vmax.f32 %v5766, %v5767
    %v5769 = vsel %vm5166, %v5124, -inf
    %v5770 = vrot.slane %v5769, 4
    %v5771 = vmax.f32 %v5769, %v5770
    %v5772 = vrot.slane %v5771, 2
    %v5773 = vmax.f32 %v5771, %v5772
    %v5774 = vrot.slane %v5773, 1
    %v5775 = vmax.f32 %v5773, %v5774
    %v5776 = vsel %vm5166, %v5125, -inf
    %v5777 = vrot.slane %v5776, 4
    %v5778 = vmax.f32 %v5776, %v5777
    %v5779 = vrot.slane %v5778, 2
    %v5780 = vmax.f32 %v5778, %v5779
    %v5781 = vrot.slane %v5780, 1
    %v5782 = vmax.f32 %v5780, %v5781
    %v5783 = vsel %vm5166, %v5126, -inf
    %v5784 = vrot.slane %v5783, 4
    %v5785 = vmax.f32 %v5783, %v5784
    %v5786 = vrot.slane %v5785, 2
    %v5787 = vmax.f32 %v5785, %v5786
    %v5788 = vrot.slane %v5787, 1
    %v5789 = vmax.f32 %v5787, %v5788
    %v5790 = vsel %vm5166, %v5127, -inf
    %v5791 = vrot.slane %v5790, 4
    %v5792 = vmax.f32 %v5790, %v5791
    %v5793 = vrot.slane %v5792, 2
    %v5794 = vmax.f32 %v5792, %v5793
    %v5795 = vrot.slane %v5794, 1
    %v5796 = vmax.f32 %v5794, %v5795
    %v5797 = vsel %vm5166, %v5128, -inf
    %v5798 = vrot.slane %v5797, 4
    %v5799 = vmax.f32 %v5797, %v5798
    %v5800 = vrot.slane %v5799, 2
    %v5801 = vmax.f32 %v5799, %v5800
    %v5802 = vrot.slane %v5801, 1
    %v5803 = vmax.f32 %v5801, %v5802
    %v5804 = vsel %vm5166, %v5129, -inf
    %v5805 = vrot.slane %v5804, 4
    %v5806 = vmax.f32 %v5804, %v5805
    %v5807 = vrot.slane %v5806, 2
    %v5808 = vmax.f32 %v5806, %v5807
    %v5809 = vrot.slane %v5808, 1
    %v5810 = vmax.f32 %v5808, %v5809
    %v5811 = vsel %vm5166, %v5130, -inf
    %v5812 = vrot.slane %v5811, 4
    %v5813 = vmax.f32 %v5811, %v5812
    %v5814 = vrot.slane %v5813, 2
    %v5815 = vmax.f32 %v5813, %v5814
    %v5816 = vrot.slane %v5815, 1
    %v5817 = vmax.f32 %v5815, %v5816
    %v5818 = vsel %vm5166, %v5131, -inf
    %v5819 = vrot.slane %v5818, 4
    %v5820 = vmax.f32 %v5818, %v5819
    %v5821 = vrot.slane %v5820, 2
    %v5822 = vmax.f32 %v5820, %v5821
    %v5823 = vrot.slane %v5822, 1
    %v5824 = vmax.f32 %v5822, %v5823
    %v5825 = vsel %vm5166, %v5132, -inf
    %v5826 = vrot.slane %v5825, 4
    %v5827 = vmax.f32 %v5825, %v5826
    %v5828 = vrot.slane %v5827, 2
    %v5829 = vmax.f32 %v5827, %v5828
    %v5830 = vrot.slane %v5829, 1
    %v5831 = vmax.f32 %v5829, %v5830
    %v5832 = vsel %vm5166, %v5133, -inf
    %v5833 = vrot.slane %v5832, 4
    %v5834 = vmax.f32 %v5832, %v5833
    %v5835 = vrot.slane %v5834, 2
    %v5836 = vmax.f32 %v5834, %v5835
    %v5837 = vrot.slane %v5836, 1
    %v5838 = vmax.f32 %v5836, %v5837
    %v5839 = vsel %vm5166, %v5134, -inf
    %v5840 = vrot.slane %v5839, 4
    %v5841 = vmax.f32 %v5839, %v5840
    %v5842 = vrot.slane %v5841, 2
    %v5843 = vmax.f32 %v5841, %v5842
    %v5844 = vrot.slane %v5843, 1
    %v5845 = vmax.f32 %v5843, %v5844
    %v5846 = vsel %vm5166, %v5135, -inf
    %v5847 = vrot.slane %v5846, 4
    %v5848 = vmax.f32 %v5846, %v5847
    %v5849 = vrot.slane %v5848, 2
    %v5850 = vmax.f32 %v5848, %v5849
    %v5851 = vrot.slane %v5850, 1
    %v5852 = vmax.f32 %v5850, %v5851
    %v5853 = vsel %vm5166, %v5136, -inf
    %v5854 = vrot.slane %v5853, 4
    %v5855 = vmax.f32 %v5853, %v5854
    %v5856 = vrot.slane %v5855, 2
    %v5857 = vmax.f32 %v5855, %v5856
    %v5858 = vrot.slane %v5857, 1
    %v5859 = vmax.f32 %v5857, %v5858
    %v5860 = vsel %vm5166, %v5137, -inf
    %v5861 = vrot.slane %v5860, 4
    %v5862 = vmax.f32 %v5860, %v5861
    %v5863 = vrot.slane %v5862, 2
    %v5864 = vmax.f32 %v5862, %v5863
    %v5865 = vrot.slane %v5864, 1
    %v5866 = vmax.f32 %v5864, %v5865
    %v5867 = vsel %vm5166, %v5138, -inf
    %v5868 = vrot.slane %v5867, 4
    %v5869 = vmax.f32 %v5867, %v5868
    %v5870 = vrot.slane %v5869, 2
    %v5871 = vmax.f32 %v5869, %v5870
    %v5872 = vrot.slane %v5871, 1
    %v5873 = vmax.f32 %v5871, %v5872
    %v5874 = vsel %vm5166, %v5139, -inf
    %v5875 = vrot.slane %v5874, 4
    %v5876 = vmax.f32 %v5874, %v5875
    %v5877 = vrot.slane %v5876, 2
    %v5878 = vmax.f32 %v5876, %v5877
    %v5879 = vrot.slane %v5878, 1
    %v5880 = vmax.f32 %v5878, %v5879
    %v5881 = vsel %vm5166, %v5140, -inf
    %v5882 = vrot.slane %v5881, 4
    %v5883 = vmax.f32 %v5881, %v5882
    %v5884 = vrot.slane %v5883, 2
    %v5885 = vmax.f32 %v5883, %v5884
    %v5886 = vrot.slane %v5885, 1
    %v5887 = vmax.f32 %v5885, %v5886
    %v5888 = vsel %vm5166, %v5141, -inf
    %v5889 = vrot.slane %v5888, 4
    %v5890 = vmax.f32 %v5888, %v5889
    %v5891 = vrot.slane %v5890, 2
    %v5892 = vmax.f32 %v5890, %v5891
    %v5893 = vrot.slane %v5892, 1
    %v5894 = vmax.f32 %v5892, %v5893
    %v5895 = vsel %vm5166, %v5142, -inf
    %v5896 = vrot.slane %v5895, 4
    %v5897 = vmax.f32 %v5895, %v5896
    %v5898 = vrot.slane %v5897, 2
    %v5899 = vmax.f32 %v5897, %v5898
    %v5900 = vrot.slane %v5899, 1
    %v5901 = vmax.f32 %v5899, %v5900
    %v5902 = vsel %vm5166, %v5143, -inf
    %v5903 = vrot.slane %v5902, 4
    %v5904 = vmax.f32 %v5902, %v5903
    %v5905 = vrot.slane %v5904, 2
    %v5906 = vmax.f32 %v5904, %v5905
    %v5907 = vrot.slane %v5906, 1
    %v5908 = vmax.f32 %v5906, %v5907
    %v5909 = vsel %vm5166, %v5144, -inf
    %v5910 = vrot.slane %v5909, 4
    %v5911 = vmax.f32 %v5909, %v5910
    %v5912 = vrot.slane %v5911, 2
    %v5913 = vmax.f32 %v5911, %v5912
    %v5914 = vrot.slane %v5913, 1
    %v5915 = vmax.f32 %v5913, %v5914
    %v5916 = vsel %vm5166, %v5145, -inf
    %v5917 = vrot.slane %v5916, 4
    %v5918 = vmax.f32 %v5916, %v5917
    %v5919 = vrot.slane %v5918, 2
    %v5920 = vmax.f32 %v5918, %v5919
    %v5921 = vrot.slane %v5920, 1
    %v5922 = vmax.f32 %v5920, %v5921
    %v5923 = vsel %vm5166, %v5146, -inf
    %v5924 = vrot.slane %v5923, 4
    %v5925 = vmax.f32 %v5923, %v5924
    %v5926 = vrot.slane %v5925, 2
    %v5927 = vmax.f32 %v5925, %v5926
    %v5928 = vrot.slane %v5927, 1
    %v5929 = vmax.f32 %v5927, %v5928
    %v5930 = vsel %vm5166, %v5147, -inf
    %v5931 = vrot.slane %v5930, 4
    %v5932 = vmax.f32 %v5930, %v5931
    %v5933 = vrot.slane %v5932, 2
    %v5934 = vmax.f32 %v5932, %v5933
    %v5935 = vrot.slane %v5934, 1
    %v5936 = vmax.f32 %v5934, %v5935
    %v5937 = vsel %vm5166, %v5148, -inf
    %v5938 = vrot.slane %v5937, 4
    %v5939 = vmax.f32 %v5937, %v5938
    %v5940 = vrot.slane %v5939, 2
    %v5941 = vmax.f32 %v5939, %v5940
    %v5942 = vrot.slane %v5941, 1
    %v5943 = vmax.f32 %v5941, %v5942
    %v5944 = vsel %vm5166, %v5149, -inf
    %v5945 = vrot.slane %v5944, 4
    %v5946 = vmax.f32 %v5944, %v5945
    %v5947 = vrot.slane %v5946, 2
    %v5948 = vmax.f32 %v5946, %v5947
    %v5949 = vrot.slane %v5948, 1
    %v5950 = vmax.f32 %v5948, %v5949
    %v5951 = vsel %vm5166, %v5150, -inf
    %v5952 = vrot.slane %v5951, 4
    %v5953 = vmax.f32 %v5951, %v5952
    %v5954 = vrot.slane %v5953, 2
    %v5955 = vmax.f32 %v5953, %v5954
    %v5956 = vrot.slane %v5955, 1
    %v5957 = vmax.f32 %v5955, %v5956
    %v5958 = vsel %vm5166, %v5151, -inf
    %v5959 = vrot.slane %v5958, 4
    %v5960 = vmax.f32 %v5958, %v5959
    %v5961 = vrot.slane %v5960, 2
    %v5962 = vmax.f32 %v5960, %v5961
    %v5963 = vrot.slane %v5962, 1
    %v5964 = vmax.f32 %v5962, %v5963
    %v5965 = vsel %vm5166, %v5152, -inf
    %v5966 = vrot.slane %v5965, 4
    %v5967 = vmax.f32 %v5965, %v5966
    %v5968 = vrot.slane %v5967, 2
    %v5969 = vmax.f32 %v5967, %v5968
    %v5970 = vrot.slane %v5969, 1
    %v5971 = vmax.f32 %v5969, %v5970
    %v5972 = vsel %vm5166, %v5153, -inf
    %v5973 = vrot.slane %v5972, 4
    %v5974 = vmax.f32 %v5972, %v5973
    %v5975 = vrot.slane %v5974, 2
    %v5976 = vmax.f32 %v5974, %v5975
    %v5977 = vrot.slane %v5976, 1
    %v5978 = vmax.f32 %v5976, %v5977
    %v5979 = vsel %vm5166, %v5154, -inf
    %v5980 = vrot.slane %v5979, 4
    %v5981 = vmax.f32 %v5979, %v5980
    %v5982 = vrot.slane %v5981, 2
    %v5983 = vmax.f32 %v5981, %v5982
    %v5984 = vrot.slane %v5983, 1
    %v5985 = vmax.f32 %v5983, %v5984
    %v5986 = vsel %vm5166, %v5155, -inf
    %v5987 = vrot.slane %v5986, 4
    %v5988 = vmax.f32 %v5986, %v5987
    %v5989 = vrot.slane %v5988, 2
    %v5990 = vmax.f32 %v5988, %v5989
    %v5991 = vrot.slane %v5990, 1
    %v5992 = vmax.f32 %v5990, %v5991
    %v5993 = vsel %vm5166, %v5156, -inf
    %v5994 = vrot.slane %v5993, 4
    %v5995 = vmax.f32 %v5993, %v5994
    %v5996 = vrot.slane %v5995, 2
    %v5997 = vmax.f32 %v5995, %v5996
    %v5998 = vrot.slane %v5997, 1
    %v5999 = vmax.f32 %v5997, %v5998
    %v6000 = vsel %vm5166, %v5157, -inf
    %v6001 = vrot.slane %v6000, 4
    %v6002 = vmax.f32 %v6000, %v6001
    %v6003 = vrot.slane %v6002, 2
    %v6004 = vmax.f32 %v6002, %v6003
    %v6005 = vrot.slane %v6004, 1
    %v6006 = vmax.f32 %v6004, %v6005
    %v6007 = vsel %vm5166, %v5158, -inf
    %v6008 = vrot.slane %v6007, 4
    %v6009 = vmax.f32 %v6007, %v6008
    %v6010 = vrot.slane %v6009, 2
    %v6011 = vmax.f32 %v6009, %v6010
    %v6012 = vrot.slane %v6011, 1
    %v6013 = vmax.f32 %v6011, %v6012
    %v6014 = vsel %vm5166, %v5159, -inf
    %v6015 = vrot.slane %v6014, 4
    %v6016 = vmax.f32 %v6014, %v6015
    %v6017 = vrot.slane %v6016, 2
    %v6018 = vmax.f32 %v6016, %v6017
    %v6019 = vrot.slane %v6018, 1
    %v6020 = vmax.f32 %v6018, %v6019
    %v6021 = vsel %vm5166, %v5160, -inf
    %v6022 = vrot.slane %v6021, 4
    %v6023 = vmax.f32 %v6021, %v6022
    %v6024 = vrot.slane %v6023, 2
    %v6025 = vmax.f32 %v6023, %v6024
    %v6026 = vrot.slane %v6025, 1
    %v6027 = vmax.f32 %v6025, %v6026
    %v6028 = vsel %vm5166, %v5161, -inf
    %v6029 = vrot.slane %v6028, 4
    %v6030 = vmax.f32 %v6028, %v6029
    %v6031 = vrot.slane %v6030, 2
    %v6032 = vmax.f32 %v6030, %v6031
    %v6033 = vrot.slane %v6032, 1
    %v6034 = vmax.f32 %v6032, %v6033
    %v6035 = vsel %vm5166, %v5162, -inf
    %v6036 = vrot.slane %v6035, 4
    %v6037 = vmax.f32 %v6035, %v6036
    %v6038 = vrot.slane %v6037, 2
    %v6039 = vmax.f32 %v6037, %v6038
    %v6040 = vrot.slane %v6039, 1
    %v6041 = vmax.f32 %v6039, %v6040
    %v6042 = vsel %vm5166, %v5163, -inf
    %v6043 = vrot.slane %v6042, 4
    %v6044 = vmax.f32 %v6042, %v6043
    %v6045 = vrot.slane %v6044, 2
    %v6046 = vmax.f32 %v6044, %v6045
    %v6047 = vrot.slane %v6046, 1
    %v6048 = vmax.f32 %v6046, %v6047
    %v6049 = vsel %vm5166, %v5164, -inf
    %v6050 = vrot.slane %v6049, 4
    %v6051 = vmax.f32 %v6049, %v6050
    %v6052 = vrot.slane %v6051, 2
    %v6053 = vmax.f32 %v6051, %v6052
    %v6054 = vrot.slane %v6053, 1
    %v6055 = vmax.f32 %v6053, %v6054
    %v6056 = vsel %vm5166, %v5165, -inf
    %v6057 = vrot.slane %v6056, 4
    %v6058 = vmax.f32 %v6056, %v6057
    %v6059 = vrot.slane %v6058, 2
    %v6060 = vmax.f32 %v6058, %v6059
    %v6061 = vrot.slane %v6060, 1
    %v6062 = vmax.f32 %v6060, %v6061
    %v6063 = vpack.c.bf16 %v5173, %v5173
    %v6064 = vpack.c.bf16 %v5180, %v5180
    %v6065 = vpack.c.bf16 %v5187, %v5187
    %v6066 = vpack.c.bf16 %v5194, %v5194
    %v6067 = vpack.c.bf16 %v5201, %v5201
    %v6068 = vpack.c.bf16 %v5208, %v5208
    %v6069 = vpack.c.bf16 %v5215, %v5215
    %v6070 = vpack.c.bf16 %v5222, %v5222
    %v6071 = vpack.c.bf16 %v5229, %v5229
    %v6072 = vpack.c.bf16 %v5236, %v5236
    %v6073 = vpack.c.bf16 %v5243, %v5243
    %v6074 = vpack.c.bf16 %v5250, %v5250
    %v6075 = vpack.c.bf16 %v5257, %v5257
    %v6076 = vpack.c.bf16 %v5264, %v5264
    %v6077 = vpack.c.bf16 %v5271, %v5271
    %v6078 = vpack.c.bf16 %v5278, %v5278
    %v6079 = vpack.c.bf16 %v5285, %v5285
    %v6080 = vpack.c.bf16 %v5292, %v5292
    %v6081 = vpack.c.bf16 %v5299, %v5299
    %v6082 = vpack.c.bf16 %v5306, %v5306
    %v6083 = vpack.c.bf16 %v5313, %v5313
    %v6084 = vpack.c.bf16 %v5320, %v5320
    %v6085 = vpack.c.bf16 %v5327, %v5327
    %v6086 = vpack.c.bf16 %v5334, %v5334
    %v6087 = vpack.c.bf16 %v5341, %v5341
    %v6088 = vpack.c.bf16 %v5348, %v5348
    %v6089 = vpack.c.bf16 %v5355, %v5355
    %v6090 = vpack.c.bf16 %v5362, %v5362
    %v6091 = vpack.c.bf16 %v5369, %v5369
    %v6092 = vpack.c.bf16 %v5376, %v5376
    %v6093 = vpack.c.bf16 %v5383, %v5383
    %v6094 = vpack.c.bf16 %v5390, %v5390
    %v6095 = vpack.c.bf16 %v5397, %v5397
    %v6096 = vpack.c.bf16 %v5404, %v5404
    %v6097 = vpack.c.bf16 %v5411, %v5411
    %v6098 = vpack.c.bf16 %v5418, %v5418
    %v6099 = vpack.c.bf16 %v5425, %v5425
    %v6100 = vpack.c.bf16 %v5432, %v5432
    %v6101 = vpack.c.bf16 %v5439, %v5439
    %v6102 = vpack.c.bf16 %v5446, %v5446
    %v6103 = vpack.c.bf16 %v5453, %v5453
    %v6104 = vpack.c.bf16 %v5460, %v5460
    %v6105 = vpack.c.bf16 %v5467, %v5467
    %v6106 = vpack.c.bf16 %v5474, %v5474
    %v6107 = vpack.c.bf16 %v5481, %v5481
    %v6108 = vpack.c.bf16 %v5488, %v5488
    %v6109 = vpack.c.bf16 %v5495, %v5495
    %v6110 = vpack.c.bf16 %v5502, %v5502
    %v6111 = vpack.c.bf16 %v5509, %v5509
    %v6112 = vpack.c.bf16 %v5516, %v5516
    %v6113 = vpack.c.bf16 %v5523, %v5523
    %v6114 = vpack.c.bf16 %v5530, %v5530
    %v6115 = vpack.c.bf16 %v5537, %v5537
    %v6116 = vpack.c.bf16 %v5544, %v5544
    %v6117 = vpack.c.bf16 %v5551, %v5551
    %v6118 = vpack.c.bf16 %v5558, %v5558
    %v6119 = vpack.c.bf16 %v5565, %v5565
    %v6120 = vpack.c.bf16 %v5572, %v5572
    %v6121 = vpack.c.bf16 %v5579, %v5579
    %v6122 = vpack.c.bf16 %v5586, %v5586
    %v6123 = vpack.c.bf16 %v5593, %v5593
    %v6124 = vpack.c.bf16 %v5600, %v5600
    %v6125 = vpack.c.bf16 %v5607, %v5607
    %v6126 = vpack.c.bf16 %v5614, %v5614
    %v6127 = vpack.c.bf16 %v5621, %v5621
    %v6128 = vpack.c.bf16 %v5628, %v5628
    %v6129 = vpack.c.bf16 %v5635, %v5635
    %v6130 = vpack.c.bf16 %v5642, %v5642
    %v6131 = vpack.c.bf16 %v5649, %v5649
    %v6132 = vpack.c.bf16 %v5656, %v5656
    %v6133 = vpack.c.bf16 %v5663, %v5663
    %v6134 = vpack.c.bf16 %v5670, %v5670
    %v6135 = vpack.c.bf16 %v5677, %v5677
    %v6136 = vpack.c.bf16 %v5684, %v5684
    %v6137 = vpack.c.bf16 %v5691, %v5691
    %v6138 = vpack.c.bf16 %v5698, %v5698
    %v6139 = vpack.c.bf16 %v5705, %v5705
    %v6140 = vpack.c.bf16 %v5712, %v5712
    %v6141 = vpack.c.bf16 %v5719, %v5719
    %v6142 = vpack.c.bf16 %v5726, %v5726
    %v6143 = vpack.c.bf16 %v5733, %v5733
    %v6144 = vpack.c.bf16 %v5740, %v5740
    %v6145 = vpack.c.bf16 %v5747, %v5747
    %v6146 = vpack.c.bf16 %v5754, %v5754
    %v6147 = vpack.c.bf16 %v5761, %v5761
    %v6148 = vpack.c.bf16 %v5768, %v5768
    %v6149 = vpack.c.bf16 %v5775, %v5775
    %v6150 = vpack.c.bf16 %v5782, %v5782
    %v6151 = vpack.c.bf16 %v5789, %v5789
    %v6152 = vpack.c.bf16 %v5796, %v5796
    %v6153 = vpack.c.bf16 %v5803, %v5803
    %v6154 = vpack.c.bf16 %v5810, %v5810
    %v6155 = vpack.c.bf16 %v5817, %v5817
    %v6156 = vpack.c.bf16 %v5824, %v5824
    %v6157 = vpack.c.bf16 %v5831, %v5831
    %v6158 = vpack.c.bf16 %v5838, %v5838
    %v6159 = vpack.c.bf16 %v5845, %v5845
    %v6160 = vpack.c.bf16 %v5852, %v5852
    %v6161 = vpack.c.bf16 %v5859, %v5859
    %v6162 = vpack.c.bf16 %v5866, %v5866
    %v6163 = vpack.c.bf16 %v5873, %v5873
    %v6164 = vpack.c.bf16 %v5880, %v5880
    %v6165 = vpack.c.bf16 %v5887, %v5887
    %v6166 = vpack.c.bf16 %v5894, %v5894
    %v6167 = vpack.c.bf16 %v5901, %v5901
    %v6168 = vpack.c.bf16 %v5908, %v5908
    %v6169 = vpack.c.bf16 %v5915, %v5915
    %v6170 = vpack.c.bf16 %v5922, %v5922
    %v6171 = vpack.c.bf16 %v5929, %v5929
    %v6172 = vpack.c.bf16 %v5936, %v5936
    %v6173 = vpack.c.bf16 %v5943, %v5943
    %v6174 = vpack.c.bf16 %v5950, %v5950
    %v6175 = vpack.c.bf16 %v5957, %v5957
    %v6176 = vpack.c.bf16 %v5964, %v5964
    %v6177 = vpack.c.bf16 %v5971, %v5971
    %v6178 = vpack.c.bf16 %v5978, %v5978
    %v6179 = vpack.c.bf16 %v5985, %v5985
    %v6180 = vpack.c.bf16 %v5992, %v5992
    %v6181 = vpack.c.bf16 %v5999, %v5999
    %v6182 = vpack.c.bf16 %v6006, %v6006
    %v6183 = vpack.c.bf16 %v6013, %v6013
    %v6184 = vpack.c.bf16 %v6020, %v6020
    %v6185 = vpack.c.bf16 %v6027, %v6027
    %v6186 = vpack.c.bf16 %v6034, %v6034
    %v6187 = vpack.c.bf16 %v6041, %v6041
    %v6188 = vpack.c.bf16 %v6048, %v6048
    %v6189 = vpack.c.bf16 %v6055, %v6055
    %v6190 = vpack.c.bf16 %v6062, %v6062
    %vm6191 = vcmask 257024
    %6192 = vst.msk [vmem:[#allocation2] sm:$0xf] %vm6191, 0
    %6193 = vst.msk [vmem:[#allocation2 + $0x4] sm:$0xf] %vm6191, 0
    %vm6194 = vcmask 253952
    %vm6195 = vsmask.f32 256
    %vm6196 = vmand %vm6194, %vm6195
    %v6197 = vld [vmem:[#allocation2 + $0x8] sm:$0x1]
    %v6198 = vsel %vm6196, 0, %v6197
    %6199 = vst [vmem:[#allocation2 + $0x8] sm:$0x1] %v6198
    %6200 = vst.msk [vmem:[#allocation2 + $0xc] sm:$0xf] %vm6191, 0
    %6201 = vst.msk [vmem:[#allocation2 + $0x10] sm:$0xf] %vm6191, 0
    %v6202 = vld [vmem:[#allocation2 + $0x14] sm:$0x1]
    %v6203 = vsel %vm6196, 0, %v6202
    %6204 = vst [vmem:[#allocation2 + $0x14] sm:$0x1] %v6203
    %6205 = vst.msk [vmem:[#allocation2 + $0x18] sm:$0xf] %vm6191, 0
    %6206 = vst.msk [vmem:[#allocation2 + $0x1c] sm:$0xf] %vm6191, 0
    %v6207 = vld [vmem:[#allocation2 + $0x20] sm:$0x1]
    %v6208 = vsel %vm6196, 0, %v6207
    %6209 = vst [vmem:[#allocation2 + $0x20] sm:$0x1] %v6208
    %6210 = vst.msk [vmem:[#allocation2 + $0x24] sm:$0xf] %vm6191, 0
    %6211 = vst.msk [vmem:[#allocation2 + $0x28] sm:$0xf] %vm6191, 0
    %v6212 = vld [vmem:[#allocation2 + $0x2c] sm:$0x1]
    %v6213 = vsel %vm6196, 0, %v6212
    %6214 = vst [vmem:[#allocation2 + $0x2c] sm:$0x1] %v6213
    %6215 = vst.msk [vmem:[#allocation2 + $0x30] sm:$0xf] %vm6191, 0
    %6216 = vst.msk [vmem:[#allocation2 + $0x34] sm:$0xf] %vm6191, 0
    %v6217 = vld [vmem:[#allocation2 + $0x38] sm:$0x1]
    %v6218 = vsel %vm6196, 0, %v6217
    %6219 = vst [vmem:[#allocation2 + $0x38] sm:$0x1] %v6218
    %6220 = vst.msk [vmem:[#allocation2 + $0x3c] sm:$0xf] %vm6191, 0
    %6221 = vst.msk [vmem:[#allocation2 + $0x40] sm:$0xf] %vm6191, 0
    %v6222 = vld [vmem:[#allocation2 + $0x44] sm:$0x1]
    %v6223 = vsel %vm6196, 0, %v6222
    %6224 = vst [vmem:[#allocation2 + $0x44] sm:$0x1] %v6223
    %6225 = vst.msk [vmem:[#allocation2 + $0x48] sm:$0xf] %vm6191, 0
    %6226 = vst.msk [vmem:[#allocation2 + $0x4c] sm:$0xf] %vm6191, 0
    %v6227 = vld [vmem:[#allocation2 + $0x50] sm:$0x1]
    %v6228 = vsel %vm6196, 0, %v6227
    %6229 = vst [vmem:[#allocation2 + $0x50] sm:$0x1] %v6228
    %6230 = vst.msk [vmem:[#allocation2 + $0x54] sm:$0xf] %vm6191, 0
    %6231 = vst.msk [vmem:[#allocation2 + $0x58] sm:$0xf] %vm6191, 0
    %v6232 = vld [vmem:[#allocation2 + $0x5c] sm:$0x1]
    %v6233 = vsel %vm6196, 0, %v6232
    %6234 = vst [vmem:[#allocation2 + $0x5c] sm:$0x1] %v6233
    %6235 = vst.msk [vmem:[#allocation2 + $0x60] sm:$0xf] %vm6191, 0
    %6236 = vst.msk [vmem:[#allocation2 + $0x64] sm:$0xf] %vm6191, 0
    %v6237 = vld [vmem:[#allocation2 + $0x68] sm:$0x1]
    %v6238 = vsel %vm6196, 0, %v6237
    %6239 = vst [vmem:[#allocation2 + $0x68] sm:$0x1] %v6238
    %6240 = vst.msk [vmem:[#allocation2 + $0x6c] sm:$0xf] %vm6191, 0
    %6241 = vst.msk [vmem:[#allocation2 + $0x70] sm:$0xf] %vm6191, 0
    %v6242 = vld [vmem:[#allocation2 + $0x74] sm:$0x1]
    %v6243 = vsel %vm6196, 0, %v6242
    %6244 = vst [vmem:[#allocation2 + $0x74] sm:$0x1] %v6243
    %6245 = vst.msk [vmem:[#allocation2 + $0x78] sm:$0xf] %vm6191, 0
    %6246 = vst.msk [vmem:[#allocation2 + $0x7c] sm:$0xf] %vm6191, 0
    %v6247 = vld [vmem:[#allocation2 + $0x80] sm:$0x1]
    %v6248 = vsel %vm6196, 0, %v6247
    %6249 = vst [vmem:[#allocation2 + $0x80] sm:$0x1] %v6248
    %6250 = vst.msk [vmem:[#allocation2 + $0x84] sm:$0xf] %vm6191, 0
    %6251 = vst.msk [vmem:[#allocation2 + $0x88] sm:$0xf] %vm6191, 0
    %v6252 = vld [vmem:[#allocation2 + $0x8c] sm:$0x1]
    %v6253 = vsel %vm6196, 0, %v6252
    %6254 = vst [vmem:[#allocation2 + $0x8c] sm:$0x1] %v6253
    %6255 = vst.msk [vmem:[#allocation2 + $0x90] sm:$0xf] %vm6191, 0
    %6256 = vst.msk [vmem:[#allocation2 + $0x94] sm:$0xf] %vm6191, 0
    %v6257 = vld [vmem:[#allocation2 + $0x98] sm:$0x1]
    %v6258 = vsel %vm6196, 0, %v6257
    %6259 = vst [vmem:[#allocation2 + $0x98] sm:$0x1] %v6258
    %6260 = vst.msk [vmem:[#allocation2 + $0x9c] sm:$0xf] %vm6191, 0
    %6261 = vst.msk [vmem:[#allocation2 + $0xa0] sm:$0xf] %vm6191, 0
    %v6262 = vld [vmem:[#allocation2 + $0xa4] sm:$0x1]
    %v6263 = vsel %vm6196, 0, %v6262
    %6264 = vst [vmem:[#allocation2 + $0xa4] sm:$0x1] %v6263
    %6265 = vst.msk [vmem:[#allocation2 + $0xa8] sm:$0xf] %vm6191, 0
    %6266 = vst.msk [vmem:[#allocation2 + $0xac] sm:$0xf] %vm6191, 0
    %v6267 = vld [vmem:[#allocation2 + $0xb0] sm:$0x1]
    %v6268 = vsel %vm6196, 0, %v6267
    %6269 = vst [vmem:[#allocation2 + $0xb0] sm:$0x1] %v6268
    %6270 = vst.msk [vmem:[#allocation2 + $0xb4] sm:$0xf] %vm6191, 0
    %6271 = vst.msk [vmem:[#allocation2 + $0xb8] sm:$0xf] %vm6191, 0
    %v6272 = vld [vmem:[#allocation2 + $0xbc] sm:$0x1]
    %v6273 = vsel %vm6196, 0, %v6272
    %6274 = vst [vmem:[#allocation2 + $0xbc] sm:$0x1] %v6273
    %6275 = vst.msk [vmem:[#allocation2 + $0xc0] sm:$0xf] %vm6191, 0
    %6276 = vst.msk [vmem:[#allocation2 + $0xc4] sm:$0xf] %vm6191, 0
    %v6277 = vld [vmem:[#allocation2 + $0xc8] sm:$0x1]
    %v6278 = vsel %vm6196, 0, %v6277
    %6279 = vst [vmem:[#allocation2 + $0xc8] sm:$0x1] %v6278
    %6280 = vst.msk [vmem:[#allocation2 + $0xcc] sm:$0xf] %vm6191, 0
    %6281 = vst.msk [vmem:[#allocation2 + $0xd0] sm:$0xf] %vm6191, 0
    %v6282 = vld [vmem:[#allocation2 + $0xd4] sm:$0x1]
    %v6283 = vsel %vm6196, 0, %v6282
    %6284 = vst [vmem:[#allocation2 + $0xd4] sm:$0x1] %v6283
    %6285 = vst.msk [vmem:[#allocation2 + $0xd8] sm:$0xf] %vm6191, 0
    %6286 = vst.msk [vmem:[#allocation2 + $0xdc] sm:$0xf] %vm6191, 0
    %v6287 = vld [vmem:[#allocation2 + $0xe0] sm:$0x1]
    %v6288 = vsel %vm6196, 0, %v6287
    %6289 = vst [vmem:[#allocation2 + $0xe0] sm:$0x1] %v6288
    %6290 = vst.msk [vmem:[#allocation2 + $0xe4] sm:$0xf] %vm6191, 0
    %6291 = vst.msk [vmem:[#allocation2 + $0xe8] sm:$0xf] %vm6191, 0
    %v6292 = vld [vmem:[#allocation2 + $0xec] sm:$0x1]
    %v6293 = vsel %vm6196, 0, %v6292
    %6294 = vst [vmem:[#allocation2 + $0xec] sm:$0x1] %v6293
    %v6423 = vunpack.c.l.b16 %v6063
    %v6424 = vunpack.c.l.b16 %v6064
    %v6425 = vunpack.c.l.b16 %v6065
    %v6426 = vunpack.c.l.b16 %v6066
    %v6427 = vunpack.c.l.b16 %v6067
    %v6428 = vunpack.c.l.b16 %v6068
    %v6429 = vunpack.c.l.b16 %v6069
    %v6430 = vunpack.c.l.b16 %v6070
    %v6431 = vunpack.c.l.b16 %v6071
    %v6432 = vunpack.c.l.b16 %v6072
    %v6433 = vunpack.c.l.b16 %v6073
    %v6434 = vunpack.c.l.b16 %v6074
    %v6435 = vunpack.c.l.b16 %v6075
    %v6436 = vunpack.c.l.b16 %v6076
    %v6437 = vunpack.c.l.b16 %v6077
    %v6438 = vunpack.c.l.b16 %v6078
    %v6439 = vunpack.c.l.b16 %v6079
    %v6440 = vunpack.c.l.b16 %v6080
    %v6441 = vunpack.c.l.b16 %v6081
    %v6442 = vunpack.c.l.b16 %v6082
    %v6443 = vunpack.c.l.b16 %v6083
    %v6444 = vunpack.c.l.b16 %v6084
    %v6445 = vunpack.c.l.b16 %v6085
    %v6446 = vunpack.c.l.b16 %v6086
    %v6447 = vunpack.c.l.b16 %v6087
    %v6448 = vunpack.c.l.b16 %v6088
    %v6449 = vunpack.c.l.b16 %v6089
    %v6450 = vunpack.c.l.b16 %v6090
    %v6451 = vunpack.c.l.b16 %v6091
    %v6452 = vunpack.c.l.b16 %v6092
    %v6453 = vunpack.c.l.b16 %v6093
    %v6454 = vunpack.c.l.b16 %v6094
    %v6455 = vunpack.c.l.b16 %v6095
    %v6456 = vunpack.c.l.b16 %v6096
    %v6457 = vunpack.c.l.b16 %v6097
    %v6458 = vunpack.c.l.b16 %v6098
    %v6459 = vunpack.c.l.b16 %v6099
    %v6460 = vunpack.c.l.b16 %v6100
    %v6461 = vunpack.c.l.b16 %v6101
    %v6462 = vunpack.c.l.b16 %v6102
    %v6463 = vunpack.c.l.b16 %v6103
    %v6464 = vunpack.c.l.b16 %v6104
    %v6465 = vunpack.c.l.b16 %v6105
    %v6466 = vunpack.c.l.b16 %v6106
    %v6467 = vunpack.c.l.b16 %v6107
    %v6468 = vunpack.c.l.b16 %v6108
    %v6469 = vunpack.c.l.b16 %v6109
    %v6470 = vunpack.c.l.b16 %v6110
    %v6471 = vunpack.c.l.b16 %v6111
    %v6472 = vunpack.c.l.b16 %v6112
    %v6473 = vunpack.c.l.b16 %v6113
    %v6474 = vunpack.c.l.b16 %v6114
    %v6475 = vunpack.c.l.b16 %v6115
    %v6476 = vunpack.c.l.b16 %v6116
    %v6477 = vunpack.c.l.b16 %v6117
    %v6478 = vunpack.c.l.b16 %v6118
    %v6479 = vunpack.c.l.b16 %v6119
    %v6480 = vunpack.c.l.b16 %v6120
    %v6481 = vunpack.c.l.b16 %v6121
    %v6482 = vunpack.c.l.b16 %v6122
    %v6483 = vunpack.c.l.b16 %v6123
    %v6484 = vunpack.c.l.b16 %v6124
    %v6485 = vunpack.c.l.b16 %v6125
    %v6486 = vunpack.c.l.b16 %v6126
    %v6487 = vunpack.c.l.b16 %v6127
    %v6488 = vunpack.c.l.b16 %v6128
    %v6489 = vunpack.c.l.b16 %v6129
    %v6490 = vunpack.c.l.b16 %v6130
    %v6491 = vunpack.c.l.b16 %v6131
    %v6492 = vunpack.c.l.b16 %v6132
    %v6493 = vunpack.c.l.b16 %v6133
    %v6494 = vunpack.c.l.b16 %v6134
    %v6495 = vunpack.c.l.b16 %v6135
    %v6496 = vunpack.c.l.b16 %v6136
    %v6497 = vunpack.c.l.b16 %v6137
    %v6498 = vunpack.c.l.b16 %v6138
    %v6499 = vunpack.c.l.b16 %v6139
    %v6500 = vunpack.c.l.b16 %v6140
    %v6501 = vunpack.c.l.b16 %v6141
    %v6502 = vunpack.c.l.b16 %v6142
    %v6503 = vunpack.c.l.b16 %v6143
    %v6504 = vunpack.c.l.b16 %v6144
    %v6505 = vunpack.c.l.b16 %v6145
    %v6506 = vunpack.c.l.b16 %v6146
    %v6507 = vunpack.c.l.b16 %v6147
    %v6508 = vunpack.c.l.b16 %v6148
    %v6509 = vunpack.c.l.b16 %v6149
    %v6510 = vunpack.c.l.b16 %v6150
    %v6511 = vunpack.c.l.b16 %v6151
    %v6512 = vunpack.c.l.b16 %v6152
    %v6513 = vunpack.c.l.b16 %v6153
    %v6514 = vunpack.c.l.b16 %v6154
    %v6515 = vunpack.c.l.b16 %v6155
    %v6516 = vunpack.c.l.b16 %v6156
    %v6517 = vunpack.c.l.b16 %v6157
    %v6518 = vunpack.c.l.b16 %v6158
    %v6519 = vunpack.c.l.b16 %v6159
    %v6520 = vunpack.c.l.b16 %v6160
    %v6521 = vunpack.c.l.b16 %v6161
    %v6522 = vunpack.c.l.b16 %v6162
    %v6523 = vunpack.c.l.b16 %v6163
    %v6524 = vunpack.c.l.b16 %v6164
    %v6525 = vunpack.c.l.b16 %v6165
    %v6526 = vunpack.c.l.b16 %v6166
    %v6527 = vunpack.c.l.b16 %v6167
    %v6528 = vunpack.c.l.b16 %v6168
    %v6529 = vunpack.c.l.b16 %v6169
    %v6530 = vunpack.c.l.b16 %v6170
    %v6531 = vunpack.c.l.b16 %v6171
    %v6532 = vunpack.c.l.b16 %v6172
    %v6533 = vunpack.c.l.b16 %v6173
    %v6534 = vunpack.c.l.b16 %v6174
    %v6535 = vunpack.c.l.b16 %v6175
    %v6536 = vunpack.c.l.b16 %v6176
    %v6537 = vunpack.c.l.b16 %v6177
    %v6538 = vunpack.c.l.b16 %v6178
    %v6539 = vunpack.c.l.b16 %v6179
    %v6540 = vunpack.c.l.b16 %v6180
    %v6541 = vunpack.c.l.b16 %v6181
    %v6542 = vunpack.c.l.b16 %v6182
    %v6543 = vunpack.c.l.b16 %v6183
    %v6544 = vunpack.c.l.b16 %v6184
    %v6545 = vunpack.c.l.b16 %v6185
    %v6546 = vunpack.c.l.b16 %v6186
    %v6547 = vunpack.c.l.b16 %v6187
    %v6548 = vunpack.c.l.b16 %v6188
    %v6549 = vunpack.c.l.b16 %v6189
    %v6550 = vunpack.c.l.b16 %v6190
    %v6551 = vsel %vm4526, %v6424, %v6423
    %v6552 = vsel %vm4530, %v6425, %v6551
    %v6553 = vsel %vm4534, %v6426, %v6552
    %vm6554 = vcmask 1044484
    %v6555 = vsel %vm6554, %v6427, %v6553
    %vm6556 = vcmask 1045509
    %v6557 = vsel %vm6556, %v6428, %v6555
    %vm6558 = vcmask 1046534
    %v6559 = vsel %vm6558, %v6429, %v6557
    %vm6560 = vcmask 1047559
    %v6561 = vsel %vm6560, %v6430, %v6559
    %v6562 = vsel %vm4526, %v6432, %v6431
    %v6563 = vsel %vm4530, %v6433, %v6562
    %v6564 = vsel %vm4534, %v6434, %v6563
    %v6565 = vsel %vm6554, %v6435, %v6564
    %v6566 = vsel %vm6556, %v6436, %v6565
    %v6567 = vsel %vm6558, %v6437, %v6566
    %v6568 = vsel %vm6560, %v6438, %v6567
    %v6569 = vsel %vm4526, %v6440, %v6439
    %v6570 = vsel %vm4530, %v6441, %v6569
    %v6571 = vsel %vm4534, %v6442, %v6570
    %v6572 = vsel %vm6554, %v6443, %v6571
    %v6573 = vsel %vm6556, %v6444, %v6572
    %v6574 = vsel %vm6558, %v6445, %v6573
    %v6575 = vsel %vm6560, %v6446, %v6574
    %v6576 = vsel %vm4526, %v6448, %v6447
    %v6577 = vsel %vm4530, %v6449, %v6576
    %v6578 = vsel %vm4534, %v6450, %v6577
    %v6579 = vsel %vm6554, %v6451, %v6578
    %v6580 = vsel %vm6556, %v6452, %v6579
    %v6581 = vsel %vm6558, %v6453, %v6580
    %v6582 = vsel %vm6560, %v6454, %v6581
    %v6583 = vsel %vm4526, %v6456, %v6455
    %v6584 = vsel %vm4530, %v6457, %v6583
    %v6585 = vsel %vm4534, %v6458, %v6584
    %v6586 = vsel %vm6554, %v6459, %v6585
    %v6587 = vsel %vm6556, %v6460, %v6586
    %v6588 = vsel %vm6558, %v6461, %v6587
    %v6589 = vsel %vm6560, %v6462, %v6588
    %v6590 = vsel %vm4526, %v6464, %v6463
    %v6591 = vsel %vm4530, %v6465, %v6590
    %v6592 = vsel %vm4534, %v6466, %v6591
    %v6593 = vsel %vm6554, %v6467, %v6592
    %v6594 = vsel %vm6556, %v6468, %v6593
    %v6595 = vsel %vm6558, %v6469, %v6594
    %v6596 = vsel %vm6560, %v6470, %v6595
    %v6597 = vsel %vm4526, %v6472, %v6471
    %v6598 = vsel %vm4530, %v6473, %v6597
    %v6599 = vsel %vm4534, %v6474, %v6598
    %v6600 = vsel %vm6554, %v6475, %v6599
    %v6601 = vsel %vm6556, %v6476, %v6600
    %v6602 = vsel %vm6558, %v6477, %v6601
    %v6603 = vsel %vm6560, %v6478, %v6602
    %v6604 = vsel %vm4526, %v6480, %v6479
    %v6605 = vsel %vm4530, %v6481, %v6604
    %v6606 = vsel %vm4534, %v6482, %v6605
    %v6607 = vsel %vm6554, %v6483, %v6606
    %v6608 = vsel %vm6556, %v6484, %v6607
    %v6609 = vsel %vm6558, %v6485, %v6608
    %v6610 = vsel %vm6560, %v6486, %v6609
    %v6611 = vsel %vm4526, %v6488, %v6487
    %v6612 = vsel %vm4530, %v6489, %v6611
    %v6613 = vsel %vm4534, %v6490, %v6612
    %v6614 = vsel %vm6554, %v6491, %v6613
    %v6615 = vsel %vm6556, %v6492, %v6614
    %v6616 = vsel %vm6558, %v6493, %v6615
    %v6617 = vsel %vm6560, %v6494, %v6616
    %v6618 = vsel %vm4526, %v6496, %v6495
    %v6619 = vsel %vm4530, %v6497, %v6618
    %v6620 = vsel %vm4534, %v6498, %v6619
    %v6621 = vsel %vm6554, %v6499, %v6620
    %v6622 = vsel %vm6556, %v6500, %v6621
    %v6623 = vsel %vm6558, %v6501, %v6622
    %v6624 = vsel %vm6560, %v6502, %v6623
    %v6625 = vsel %vm4526, %v6504, %v6503
    %v6626 = vsel %vm4530, %v6505, %v6625
    %v6627 = vsel %vm4534, %v6506, %v6626
    %v6628 = vsel %vm6554, %v6507, %v6627
    %v6629 = vsel %vm6556, %v6508, %v6628
    %v6630 = vsel %vm6558, %v6509, %v6629
    %v6631 = vsel %vm6560, %v6510, %v6630
    %v6632 = vsel %vm4526, %v6512, %v6511
    %v6633 = vsel %vm4530, %v6513, %v6632
    %v6634 = vsel %vm4534, %v6514, %v6633
    %v6635 = vsel %vm6554, %v6515, %v6634
    %v6636 = vsel %vm6556, %v6516, %v6635
    %v6637 = vsel %vm6558, %v6517, %v6636
    %v6638 = vsel %vm6560, %v6518, %v6637
    %v6639 = vsel %vm4526, %v6520, %v6519
    %v6640 = vsel %vm4530, %v6521, %v6639
    %v6641 = vsel %vm4534, %v6522, %v6640
    %v6642 = vsel %vm6554, %v6523, %v6641
    %v6643 = vsel %vm6556, %v6524, %v6642
    %v6644 = vsel %vm6558, %v6525, %v6643
    %v6645 = vsel %vm6560, %v6526, %v6644
    %v6646 = vsel %vm4526, %v6528, %v6527
    %v6647 = vsel %vm4530, %v6529, %v6646
    %v6648 = vsel %vm4534, %v6530, %v6647
    %v6649 = vsel %vm6554, %v6531, %v6648
    %v6650 = vsel %vm6556, %v6532, %v6649
    %v6651 = vsel %vm6558, %v6533, %v6650
    %v6652 = vsel %vm6560, %v6534, %v6651
    %v6653 = vsel %vm4526, %v6536, %v6535
    %v6654 = vsel %vm4530, %v6537, %v6653
    %v6655 = vsel %vm4534, %v6538, %v6654
    %v6656 = vsel %vm6554, %v6539, %v6655
    %v6657 = vsel %vm6556, %v6540, %v6656
    %v6658 = vsel %vm6558, %v6541, %v6657
    %v6659 = vsel %vm6560, %v6542, %v6658
    %v6660 = vsel %vm4526, %v6544, %v6543
    %v6661 = vsel %vm4530, %v6545, %v6660
    %v6662 = vsel %vm4534, %v6546, %v6661
    %v6663 = vsel %vm6554, %v6547, %v6662
    %v6664 = vsel %vm6556, %v6548, %v6663
    %v6665 = vsel %vm6558, %v6549, %v6664
    %v6666 = vsel %vm6560, %v6550, %v6665
    %v6667 = vpack.c.b16 %v6561, %v6561
    %v6668 = vpack.c.b16 %v6568, %v6568
    %v6669 = vpack.c.b16 %v6575, %v6575
    %v6670 = vpack.c.b16 %v6582, %v6582
    %v6671 = vpack.c.b16 %v6589, %v6589
    %v6672 = vpack.c.b16 %v6596, %v6596
    %v6673 = vpack.c.b16 %v6603, %v6603
    %v6674 = vpack.c.b16 %v6610, %v6610
    %v6675 = vpack.c.b16 %v6617, %v6617
    %v6676 = vpack.c.b16 %v6624, %v6624
    %v6677 = vpack.c.b16 %v6631, %v6631
    %v6678 = vpack.c.b16 %v6638, %v6638
    %v6679 = vpack.c.b16 %v6645, %v6645
    %v6680 = vpack.c.b16 %v6652, %v6652
    %v6681 = vpack.c.b16 %v6659, %v6659
    %v6682 = vpack.c.b16 %v6666, %v6666
    %s6699 = scalar_lea.vmem [#allocation2], 12
    %6700 = vst.msk [vmem:[%s6699 + $0x4] sm:$0xf] %vm6191, %v6667
    %6701 = vst.msk [vmem:[%s6699 + $0x10] sm:$0xf] %vm6191, %v6668
    %6702 = vst.msk [vmem:[%s6699 + $0x1c] sm:$0xf] %vm6191, %v6669
    %6703 = vst.msk [vmem:[%s6699 + $0x28] sm:$0xf] %vm6191, %v6670
    %6704 = vst.msk [vmem:[%s6699 + $0x34] sm:$0xf] %vm6191, %v6671
    %6705 = vst.msk [vmem:[%s6699 + $0x40] sm:$0xf] %vm6191, %v6672
    %6706 = vst.msk [vmem:[%s6699 + $0x4c] sm:$0xf] %vm6191, %v6673
    %6707 = vst.msk [vmem:[%s6699 + $0x58] sm:$0xf] %vm6191, %v6674
    %6708 = vst.msk [vmem:[%s6699 + $0x7c] sm:$0xf] %vm6191, %v6675
    %6709 = vst.msk [vmem:[%s6699 + $0x88] sm:$0xf] %vm6191, %v6676
    %6710 = vst.msk [vmem:[%s6699 + $0x94] sm:$0xf] %vm6191, %v6677
    %6711 = vst.msk [vmem:[%s6699 + $0xa0] sm:$0xf] %vm6191, %v6678
    %6712 = vst.msk [vmem:[%s6699 + $0xac] sm:$0xf] %vm6191, %v6679
    %6713 = vst.msk [vmem:[%s6699 + $0xb8] sm:$0xf] %vm6191, %v6680
    %6714 = vst.msk [vmem:[%s6699 + $0xc4] sm:$0xf] %vm6191, %v6681
    %6715 = vst.msk [vmem:[%s6699 + $0xd0] sm:$0xf] %vm6191, %v6682
    %v6716 = vld [vmem:[#allocation2] sm:$0xf]
    %v6717 = vld [vmem:[#allocation2 + $0x4] sm:$0xf]
    %v6718 = vld [vmem:[#allocation2 + $0x8] sm:$0x1]
    %v6719 = vld [vmem:[#allocation2 + $0xc] sm:$0xf]
    %v6720 = vld [vmem:[#allocation2 + $0x10] sm:$0xf]
    %v6721 = vld [vmem:[#allocation2 + $0x14] sm:$0x1]
    %v6722 = vld [vmem:[#allocation2 + $0x18] sm:$0xf]
    %v6723 = vld [vmem:[#allocation2 + $0x1c] sm:$0xf]
    %v6724 = vld [vmem:[#allocation2 + $0x20] sm:$0x1]
    %v6725 = vld [vmem:[#allocation2 + $0x24] sm:$0xf]
    %v6726 = vld [vmem:[#allocation2 + $0x28] sm:$0xf]
    %v6727 = vld [vmem:[#allocation2 + $0x2c] sm:$0x1]
    %v6728 = vld [vmem:[#allocation2 + $0x30] sm:$0xf]
    %v6729 = vld [vmem:[#allocation2 + $0x34] sm:$0xf]
    %v6730 = vld [vmem:[#allocation2 + $0x38] sm:$0x1]
    %v6731 = vld [vmem:[#allocation2 + $0x3c] sm:$0xf]
    %v6732 = vld [vmem:[#allocation2 + $0x40] sm:$0xf]
    %v6733 = vld [vmem:[#allocation2 + $0x44] sm:$0x1]
    %v6734 = vld [vmem:[#allocation2 + $0x48] sm:$0xf]
    %v6735 = vld [vmem:[#allocation2 + $0x4c] sm:$0xf]
    %v6736 = vld [vmem:[#allocation2 + $0x50] sm:$0x1]
    %v6737 = vld [vmem:[#allocation2 + $0x54] sm:$0xf]
    %v6738 = vld [vmem:[#allocation2 + $0x58] sm:$0xf]
    %v6739 = vld [vmem:[#allocation2 + $0x5c] sm:$0x1]
    %v6740 = vld [vmem:[#allocation2 + $0x60] sm:$0xf]
    %v6741 = vld [vmem:[#allocation2 + $0x64] sm:$0xf]
    %v6742 = vld [vmem:[#allocation2 + $0x68] sm:$0x1]
    %v6743 = vld [vmem:[#allocation2 + $0x6c] sm:$0xf]
    %v6744 = vld [vmem:[#allocation2 + $0x70] sm:$0xf]
    %v6745 = vld [vmem:[#allocation2 + $0x74] sm:$0x1]
    %v6746 = vld [vmem:[#allocation2 + $0x78] sm:$0xf]
    %v6747 = vld [vmem:[#allocation2 + $0x7c] sm:$0xf]
    %v6748 = vld [vmem:[#allocation2 + $0x80] sm:$0x1]
    %v6749 = vld [vmem:[#allocation2 + $0x84] sm:$0xf]
    %v6750 = vld [vmem:[#allocation2 + $0x88] sm:$0xf]
    %v6751 = vld [vmem:[#allocation2 + $0x8c] sm:$0x1]
    %v6752 = vld [vmem:[#allocation2 + $0x90] sm:$0xf]
    %v6753 = vld [vmem:[#allocation2 + $0x94] sm:$0xf]
    %v6754 = vld [vmem:[#allocation2 + $0x98] sm:$0x1]
    %v6755 = vld [vmem:[#allocation2 + $0x9c] sm:$0xf]
    %v6756 = vld [vmem:[#allocation2 + $0xa0] sm:$0xf]
    %v6757 = vld [vmem:[#allocation2 + $0xa4] sm:$0x1]
    %v6758 = vld [vmem:[#allocation2 + $0xa8] sm:$0xf]
    %v6759 = vld [vmem:[#allocation2 + $0xac] sm:$0xf]
    %v6760 = vld [vmem:[#allocation2 + $0xb0] sm:$0x1]
    %v6761 = vld [vmem:[#allocation2 + $0xb4] sm:$0xf]
    %v6762 = vld [vmem:[#allocation2 + $0xb8] sm:$0xf]
    %v6763 = vld [vmem:[#allocation2 + $0xbc] sm:$0x1]
    %v6764 = vld [vmem:[#allocation2 + $0xc0] sm:$0xf]
    %v6765 = vld [vmem:[#allocation2 + $0xc4] sm:$0xf]
    %v6766 = vld [vmem:[#allocation2 + $0xc8] sm:$0x1]
    %v6767 = vld [vmem:[#allocation2 + $0xcc] sm:$0xf]
    %v6768 = vld [vmem:[#allocation2 + $0xd0] sm:$0xf]
    %v6769 = vld [vmem:[#allocation2 + $0xd4] sm:$0x1]
    %v6770 = vld [vmem:[#allocation2 + $0xd8] sm:$0xf]
    %v6771 = vld [vmem:[#allocation2 + $0xdc] sm:$0xf]
    %v6772 = vld [vmem:[#allocation2 + $0xe0] sm:$0x1]
    %v6773 = vld [vmem:[#allocation2 + $0xe4] sm:$0xf]
    %v6774 = vld [vmem:[#allocation2 + $0xe8] sm:$0xf]
    %v6775 = vld [vmem:[#allocation2 + $0xec] sm:$0x1]
    %vm6776 = vsmask.f32 4368
    %vm6777 = vmor %vm6195, %vm6776
    %v6779 = vshrl.u32 %v6716, 16
    %v6781 = vrot.slane %v6779, 7
    %v6782 = vrot.slane %v6781, 4
    %v6784 = vshrl.u32 %v6717, 16
    %v6786 = vrot.slane %v6784, 7
    %v6787 = vshll.u32 %v6717, 16
    %v6789 = vor.u32 %v6786, %v6787
    %v6790 = vsel %vm6777, %v6782, %v6789
    %v6792 = vshrl.u32 %v6719, 16
    %v6794 = vrot.slane %v6792, 7
    %v6795 = vrot.slane %v6794, 4
    %v6797 = vshrl.u32 %v6720, 16
    %v6799 = vrot.slane %v6797, 7
    %v6800 = vshll.u32 %v6720, 16
    %v6802 = vor.u32 %v6799, %v6800
    %v6803 = vsel %vm6777, %v6795, %v6802
    %v6805 = vshrl.u32 %v6722, 16
    %v6807 = vrot.slane %v6805, 7
    %v6808 = vrot.slane %v6807, 4
    %v6810 = vshrl.u32 %v6723, 16
    %v6812 = vrot.slane %v6810, 7
    %v6813 = vshll.u32 %v6723, 16
    %v6815 = vor.u32 %v6812, %v6813
    %v6816 = vsel %vm6777, %v6808, %v6815
    %v6818 = vshrl.u32 %v6725, 16
    %v6820 = vrot.slane %v6818, 7
    %v6821 = vrot.slane %v6820, 4
    %v6823 = vshrl.u32 %v6726, 16
    %v6825 = vrot.slane %v6823, 7
    %v6826 = vshll.u32 %v6726, 16
    %v6828 = vor.u32 %v6825, %v6826
    %v6829 = vsel %vm6777, %v6821, %v6828
    %v6831 = vshrl.u32 %v6728, 16
    %v6833 = vrot.slane %v6831, 7
    %v6834 = vrot.slane %v6833, 4
    %v6836 = vshrl.u32 %v6729, 16
    %v6838 = vrot.slane %v6836, 7
    %v6839 = vshll.u32 %v6729, 16
    %v6841 = vor.u32 %v6838, %v6839
    %v6842 = vsel %vm6777, %v6834, %v6841
    %v6844 = vshrl.u32 %v6731, 16
    %v6846 = vrot.slane %v6844, 7
    %v6847 = vrot.slane %v6846, 4
    %v6849 = vshrl.u32 %v6732, 16
    %v6851 = vrot.slane %v6849, 7
    %v6852 = vshll.u32 %v6732, 16
    %v6854 = vor.u32 %v6851, %v6852
    %v6855 = vsel %vm6777, %v6847, %v6854
    %v6857 = vshrl.u32 %v6734, 16
    %v6859 = vrot.slane %v6857, 7
    %v6860 = vrot.slane %v6859, 4
    %v6862 = vshrl.u32 %v6735, 16
    %v6864 = vrot.slane %v6862, 7
    %v6865 = vshll.u32 %v6735, 16
    %v6867 = vor.u32 %v6864, %v6865
    %v6868 = vsel %vm6777, %v6860, %v6867
    %v6870 = vshrl.u32 %v6737, 16
    %v6872 = vrot.slane %v6870, 7
    %v6873 = vrot.slane %v6872, 4
    %v6875 = vshrl.u32 %v6738, 16
    %v6877 = vrot.slane %v6875, 7
    %v6878 = vshll.u32 %v6738, 16
    %v6880 = vor.u32 %v6877, %v6878
    %v6881 = vsel %vm6777, %v6873, %v6880
    %v6883 = vshrl.u32 %v6746, 16
    %v6885 = vrot.slane %v6883, 7
    %v6886 = vrot.slane %v6885, 4
    %v6888 = vshrl.u32 %v6747, 16
    %v6890 = vrot.slane %v6888, 7
    %v6891 = vshll.u32 %v6747, 16
    %v6893 = vor.u32 %v6890, %v6891
    %v6894 = vsel %vm6777, %v6886, %v6893
    %v6896 = vshrl.u32 %v6749, 16
    %v6898 = vrot.slane %v6896, 7
    %v6899 = vrot.slane %v6898, 4
    %v6901 = vshrl.u32 %v6750, 16
    %v6903 = vrot.slane %v6901, 7
    %v6904 = vshll.u32 %v6750, 16
    %v6906 = vor.u32 %v6903, %v6904
    %v6907 = vsel %vm6777, %v6899, %v6906
    %v6909 = vshrl.u32 %v6752, 16
    %v6911 = vrot.slane %v6909, 7
    %v6912 = vrot.slane %v6911, 4
    %v6914 = vshrl.u32 %v6753, 16
    %v6916 = vrot.slane %v6914, 7
    %v6917 = vshll.u32 %v6753, 16
    %v6919 = vor.u32 %v6916, %v6917
    %v6920 = vsel %vm6777, %v6912, %v6919
    %v6922 = vshrl.u32 %v6755, 16
    %v6924 = vrot.slane %v6922, 7
    %v6925 = vrot.slane %v6924, 4
    %v6927 = vshrl.u32 %v6756, 16
    %v6929 = vrot.slane %v6927, 7
    %v6930 = vshll.u32 %v6756, 16
    %v6932 = vor.u32 %v6929, %v6930
    %v6933 = vsel %vm6777, %v6925, %v6932
    %v6935 = vshrl.u32 %v6758, 16
    %v6937 = vrot.slane %v6935, 7
    %v6938 = vrot.slane %v6937, 4
    %v6940 = vshrl.u32 %v6759, 16
    %v6942 = vrot.slane %v6940, 7
    %v6943 = vshll.u32 %v6759, 16
    %v6945 = vor.u32 %v6942, %v6943
    %v6946 = vsel %vm6777, %v6938, %v6945
    %v6948 = vshrl.u32 %v6761, 16
    %v6950 = vrot.slane %v6948, 7
    %v6951 = vrot.slane %v6950, 4
    %v6953 = vshrl.u32 %v6762, 16
    %v6955 = vrot.slane %v6953, 7
    %v6956 = vshll.u32 %v6762, 16
    %v6958 = vor.u32 %v6955, %v6956
    %v6959 = vsel %vm6777, %v6951, %v6958
    %v6961 = vshrl.u32 %v6764, 16
    %v6963 = vrot.slane %v6961, 7
    %v6964 = vrot.slane %v6963, 4
    %v6966 = vshrl.u32 %v6765, 16
    %v6968 = vrot.slane %v6966, 7
    %v6969 = vshll.u32 %v6765, 16
    %v6971 = vor.u32 %v6968, %v6969
    %v6972 = vsel %vm6777, %v6964, %v6971
    %v6974 = vshrl.u32 %v6767, 16
    %v6976 = vrot.slane %v6974, 7
    %v6977 = vrot.slane %v6976, 4
    %v6979 = vshrl.u32 %v6768, 16
    %v6981 = vrot.slane %v6979, 7
    %v6982 = vshll.u32 %v6768, 16
    %v6984 = vor.u32 %v6981, %v6982
    %v6985 = vsel %vm6777, %v6977, %v6984
    %v6986 = vld [vmem:[%s3] sm:$0xf]
    %v6987 = vld [vmem:[%s3 + $0x4] sm:$0xf]
    %v6988 = vld [vmem:[%s3 + $0x8] sm:$0xf]
    %v6989 = vld [vmem:[%s3 + $0xc] sm:$0xf]
    %s6990 = scalar_lea.vmem %s3, 16
    %v6991 = vld [vmem:[%s6990] sm:$0xf]
    %v6992 = vld [vmem:[%s6990 + $0x4] sm:$0xf]
    %v6993 = vld [vmem:[%s6990 + $0x8] sm:$0xf]
    %v6994 = vld [vmem:[%s6990 + $0xc] sm:$0xf]
    %v7011 = vunpack.c.l.b16 %v6717
    %v7012 = vunpack.c.l.b16 %v6720
    %v7013 = vunpack.c.l.b16 %v6723
    %v7014 = vunpack.c.l.b16 %v6726
    %v7015 = vunpack.c.l.b16 %v6729
    %v7016 = vunpack.c.l.b16 %v6732
    %v7017 = vunpack.c.l.b16 %v6735
    %v7018 = vunpack.c.l.b16 %v6738
    %v7019 = vunpack.c.l.b16 %v6747
    %v7020 = vunpack.c.l.b16 %v6750
    %v7021 = vunpack.c.l.b16 %v6753
    %v7022 = vunpack.c.l.b16 %v6756
    %v7023 = vunpack.c.l.b16 %v6759
    %v7024 = vunpack.c.l.b16 %v6762
    %v7025 = vunpack.c.l.b16 %v6765
    %v7026 = vunpack.c.l.b16 %v6768
    %v7027 = vpack.c.b16 %v7012, %v7011
    %v7028 = vpack.c.b16 %v7014, %v7013
    %v7029 = vpack.c.b16 %v7016, %v7015
    %v7030 = vpack.c.b16 %v7018, %v7017
    %v7031 = vpack.c.b16 %v7020, %v7019
    %v7032 = vpack.c.b16 %v7022, %v7021
    %v7033 = vpack.c.b16 %v7024, %v7023
    %v7034 = vpack.c.b16 %v7026, %v7025
    %v7039 = vunpack.c.l.b16 %v6991
    %v7040 = vunpack.c.l.b16 %v6992
    %v7041 = vunpack.c.l.b16 %v6993
    %v7042 = vunpack.c.l.b16 %v6994
    %v7043 = vpack.c.b16 %v7040, %v7039
    %v7044 = vpack.c.b16 %v7042, %v7041
    %v7048 = vsel %vm4329, %v7027, 0
    %v7051 = vsel %vm4329, %v7028, 0
    %v7054 = vsel %vm4329, %v7029, 0
    %v7057 = vsel %vm4329, %v7030, 0
    %v7060 = vsel %vm4329, %v7031, 0
    %v7063 = vsel %vm4329, %v7032, 0
    %v7066 = vsel %vm4329, %v7033, 0
    %v7069 = vsel %vm4329, %v7034, 0
    %7071 = vmatpush.bf16.msra.mxu0 0
    %7072 = vmatpush.bf16.msra.mxu0 0
    %7073 = vmatpush.bf16.msra.mxu0 0
    %7074 = vmatpush.bf16.msra.mxu0 0
    %7075 = vmatpush.bf16.msra.mxu0 0
    %7076 = vmatpush.bf16.msra.mxu0 0
    %7077 = vmatpush.bf16.msra.mxu0 %v7044
    %7078 = vmatpush.bf16.msra.mxu0 %v7043
    %7079 = vmatmul.bf16.gmra.mxu0 %v7048
    %v7080 = vpop.f32.mrf.mxu0
    %v7081 = vadd.f32 0.0, %v7080
    %v7082 = vpop.f32.mrf.mxu0
    %v7083 = vadd.f32 0.0, %v7082
    %7084 = vmatmul.bf16.gmra.mxu0 %v7051
    %v7085 = vpop.f32.mrf.mxu0
    %v7086 = vadd.f32 0.0, %v7085
    %v7087 = vpop.f32.mrf.mxu0
    %v7088 = vadd.f32 0.0, %v7087
    %7089 = vmatmul.bf16.gmra.mxu0 %v7054
    %v7090 = vpop.f32.mrf.mxu0
    %v7091 = vadd.f32 0.0, %v7090
    %v7092 = vpop.f32.mrf.mxu0
    %v7093 = vadd.f32 0.0, %v7092
    %7094 = vmatmul.bf16.gmra.mxu0 %v7057
    %v7095 = vpop.f32.mrf.mxu0
    %v7096 = vadd.f32 0.0, %v7095
    %v7097 = vpop.f32.mrf.mxu0
    %v7098 = vadd.f32 0.0, %v7097
    %7099 = vmatmul.bf16.gmra.mxu0 %v7060
    %v7100 = vpop.f32.mrf.mxu0
    %v7101 = vadd.f32 0.0, %v7100
    %v7102 = vpop.f32.mrf.mxu0
    %v7103 = vadd.f32 0.0, %v7102
    %7104 = vmatmul.bf16.gmra.mxu0 %v7063
    %v7105 = vpop.f32.mrf.mxu0
    %v7106 = vadd.f32 0.0, %v7105
    %v7107 = vpop.f32.mrf.mxu0
    %v7108 = vadd.f32 0.0, %v7107
    %7109 = vmatmul.bf16.gmra.mxu0 %v7066
    %v7110 = vpop.f32.mrf.mxu0
    %v7111 = vadd.f32 0.0, %v7110
    %v7112 = vpop.f32.mrf.mxu0
    %v7113 = vadd.f32 0.0, %v7112
    %7114 = vmatmul.bf16.gmra.mxu0 %v7069
    %v7115 = vpop.f32.mrf.mxu0
    %v7116 = vadd.f32 0.0, %v7115
    %v7117 = vpop.f32.mrf.mxu0
    %v7118 = vadd.f32 0.0, %v7117
    %7119 = vdwg.mxu0
    %v7120 = vunpack.c.l.b16 %v6790
    %v7121 = vunpack.c.l.b16 %v6803
    %v7122 = vunpack.c.l.b16 %v6816
    %v7123 = vunpack.c.l.b16 %v6829
    %v7124 = vunpack.c.l.b16 %v6842
    %v7125 = vunpack.c.l.b16 %v6855
    %v7126 = vunpack.c.l.b16 %v6868
    %v7127 = vunpack.c.l.b16 %v6881
    %v7128 = vunpack.c.l.b16 %v6894
    %v7129 = vunpack.c.l.b16 %v6907
    %v7130 = vunpack.c.l.b16 %v6920
    %v7131 = vunpack.c.l.b16 %v6933
    %v7132 = vunpack.c.l.b16 %v6946
    %v7133 = vunpack.c.l.b16 %v6959
    %v7134 = vunpack.c.l.b16 %v6972
    %v7135 = vunpack.c.l.b16 %v6985
    %v7136 = vpack.c.b16 %v7121, %v7120
    %v7137 = vpack.c.b16 %v7123, %v7122
    %v7138 = vpack.c.b16 %v7125, %v7124
    %v7139 = vpack.c.b16 %v7127, %v7126
    %v7140 = vpack.c.b16 %v7129, %v7128
    %v7141 = vpack.c.b16 %v7131, %v7130
    %v7142 = vpack.c.b16 %v7133, %v7132
    %v7143 = vpack.c.b16 %v7135, %v7134
    %v7148 = vunpack.c.l.b16 %v6986
    %v7149 = vunpack.c.l.b16 %v6987
    %v7150 = vunpack.c.l.b16 %v6988
    %v7151 = vunpack.c.l.b16 %v6989
    %v7152 = vpack.c.b16 %v7149, %v7148
    %v7153 = vpack.c.b16 %v7151, %v7150
    %v7157 = vsel %vm4329, %v7136, 0
    %v7160 = vsel %vm4329, %v7137, 0
    %v7163 = vsel %vm4329, %v7138, 0
    %v7166 = vsel %vm4329, %v7139, 0
    %v7169 = vsel %vm4329, %v7140, 0
    %v7172 = vsel %vm4329, %v7141, 0
    %v7175 = vsel %vm4329, %v7142, 0
    %v7178 = vsel %vm4329, %v7143, 0
    %7180 = vmatpush.bf16.msra.mxu0 0
    %7181 = vmatpush.bf16.msra.mxu0 0
    %7182 = vmatpush.bf16.msra.mxu0 0
    %7183 = vmatpush.bf16.msra.mxu0 0
    %7184 = vmatpush.bf16.msra.mxu0 0
    %7185 = vmatpush.bf16.msra.mxu0 0
    %7186 = vmatpush.bf16.msra.mxu0 %v7153
    %7187 = vmatpush.bf16.msra.mxu0 %v7152
    %7188 = vmatmul.bf16.gmra.mxu0 %v7157
    %v7189 = vpop.f32.mrf.mxu0
    %v7190 = vadd.f32 %v7081, %v7189
    %v7191 = vpop.f32.mrf.mxu0
    %v7192 = vadd.f32 %v7083, %v7191
    %7193 = vmatmul.bf16.gmra.mxu0 %v7160
    %v7194 = vpop.f32.mrf.mxu0
    %v7195 = vadd.f32 %v7086, %v7194
    %v7196 = vpop.f32.mrf.mxu0
    %v7197 = vadd.f32 %v7088, %v7196
    %7198 = vmatmul.bf16.gmra.mxu0 %v7163
    %v7199 = vpop.f32.mrf.mxu0
    %v7200 = vadd.f32 %v7091, %v7199
    %v7201 = vpop.f32.mrf.mxu0
    %v7202 = vadd.f32 %v7093, %v7201
    %7203 = vmatmul.bf16.gmra.mxu0 %v7166
    %v7204 = vpop.f32.mrf.mxu0
    %v7205 = vadd.f32 %v7096, %v7204
    %v7206 = vpop.f32.mrf.mxu0
    %v7207 = vadd.f32 %v7098, %v7206
    %7208 = vmatmul.bf16.gmra.mxu0 %v7169
    %v7209 = vpop.f32.mrf.mxu0
    %v7210 = vadd.f32 %v7101, %v7209
    %v7211 = vpop.f32.mrf.mxu0
    %v7212 = vadd.f32 %v7103, %v7211
    %7213 = vmatmul.bf16.gmra.mxu0 %v7172
    %v7214 = vpop.f32.mrf.mxu0
    %v7215 = vadd.f32 %v7106, %v7214
    %v7216 = vpop.f32.mrf.mxu0
    %v7217 = vadd.f32 %v7108, %v7216
    %7218 = vmatmul.bf16.gmra.mxu0 %v7175
    %v7219 = vpop.f32.mrf.mxu0
    %v7220 = vadd.f32 %v7111, %v7219
    %v7221 = vpop.f32.mrf.mxu0
    %v7222 = vadd.f32 %v7113, %v7221
    %7223 = vmatmul.bf16.gmra.mxu0 %v7178
    %v7224 = vpop.f32.mrf.mxu0
    %v7225 = vadd.f32 %v7116, %v7224
    %v7226 = vpop.f32.mrf.mxu0
    %v7227 = vadd.f32 %v7118, %v7226
    %7228 = vdwg.mxu0
    %vm7229 = vsmask.f32 3328
    %vm7230 = vsmask.f32 7440
    %vm7231 = vmor %vm7229, %vm7230
    %v7232 = vrot.slane %v6784, 4
    %v7233 = vrot.slane %v6787, 5
    %v7234 = vor.u32 %v7232, %v7233
    %v7235 = vrot.slane %v7234, 4
    %v7237 = vshll.u32 %v6718, 16
    %v7239 = vrot.slane %v7237, 5
    %v7240 = vsel %vm7231, %v7235, %v7239
    %v7241 = vrot.slane %v6797, 4
    %v7242 = vrot.slane %v6800, 5
    %v7243 = vor.u32 %v7241, %v7242
    %v7244 = vrot.slane %v7243, 4
    %v7246 = vshll.u32 %v6721, 16
    %v7248 = vrot.slane %v7246, 5
    %v7249 = vsel %vm7231, %v7244, %v7248
    %v7250 = vrot.slane %v6810, 4
    %v7251 = vrot.slane %v6813, 5
    %v7252 = vor.u32 %v7250, %v7251
    %v7253 = vrot.slane %v7252, 4
    %v7255 = vshll.u32 %v6724, 16
    %v7257 = vrot.slane %v7255, 5
    %v7258 = vsel %vm7231, %v7253, %v7257
    %v7259 = vrot.slane %v6823, 4
    %v7260 = vrot.slane %v6826, 5
    %v7261 = vor.u32 %v7259, %v7260
    %v7262 = vrot.slane %v7261, 4
    %v7264 = vshll.u32 %v6727, 16
    %v7266 = vrot.slane %v7264, 5
    %v7267 = vsel %vm7231, %v7262, %v7266
    %v7268 = vrot.slane %v6836, 4
    %v7269 = vrot.slane %v6839, 5
    %v7270 = vor.u32 %v7268, %v7269
    %v7271 = vrot.slane %v7270, 4
    %v7273 = vshll.u32 %v6730, 16
    %v7275 = vrot.slane %v7273, 5
    %v7276 = vsel %vm7231, %v7271, %v7275
    %v7277 = vrot.slane %v6849, 4
    %v7278 = vrot.slane %v6852, 5
    %v7279 = vor.u32 %v7277, %v7278
    %v7280 = vrot.slane %v7279, 4
    %v7282 = vshll.u32 %v6733, 16
    %v7284 = vrot.slane %v7282, 5
    %v7285 = vsel %vm7231, %v7280, %v7284
    %v7286 = vrot.slane %v6862, 4
    %v7287 = vrot.slane %v6865, 5
    %v7288 = vor.u32 %v7286, %v7287
    %v7289 = vrot.slane %v7288, 4
    %v7291 = vshll.u32 %v6736, 16
    %v7293 = vrot.slane %v7291, 5
    %v7294 = vsel %vm7231, %v7289, %v7293
    %v7295 = vrot.slane %v6875, 4
    %v7296 = vrot.slane %v6878, 5
    %v7297 = vor.u32 %v7295, %v7296
    %v7298 = vrot.slane %v7297, 4
    %v7300 = vshll.u32 %v6739, 16
    %v7302 = vrot.slane %v7300, 5
    %v7303 = vsel %vm7231, %v7298, %v7302
    %v7304 = vrot.slane %v6888, 4
    %v7305 = vrot.slane %v6891, 5
    %v7306 = vor.u32 %v7304, %v7305
    %v7307 = vrot.slane %v7306, 4
    %v7309 = vshll.u32 %v6748, 16
    %v7311 = vrot.slane %v7309, 5
    %v7312 = vsel %vm7231, %v7307, %v7311
    %v7313 = vrot.slane %v6901, 4
    %v7314 = vrot.slane %v6904, 5
    %v7315 = vor.u32 %v7313, %v7314
    %v7316 = vrot.slane %v7315, 4
    %v7318 = vshll.u32 %v6751, 16
    %v7320 = vrot.slane %v7318, 5
    %v7321 = vsel %vm7231, %v7316, %v7320
    %v7322 = vrot.slane %v6914, 4
    %v7323 = vrot.slane %v6917, 5
    %v7324 = vor.u32 %v7322, %v7323
    %v7325 = vrot.slane %v7324, 4
    %v7327 = vshll.u32 %v6754, 16
    %v7329 = vrot.slane %v7327, 5
    %v7330 = vsel %vm7231, %v7325, %v7329
    %v7331 = vrot.slane %v6927, 4
    %v7332 = vrot.slane %v6930, 5
    %v7333 = vor.u32 %v7331, %v7332
    %v7334 = vrot.slane %v7333, 4
    %v7336 = vshll.u32 %v6757, 16
    %v7338 = vrot.slane %v7336, 5
    %v7339 = vsel %vm7231, %v7334, %v7338
    %v7340 = vrot.slane %v6940, 4
    %v7341 = vrot.slane %v6943, 5
    %v7342 = vor.u32 %v7340, %v7341
    %v7343 = vrot.slane %v7342, 4
    %v7345 = vshll.u32 %v6760, 16
    %v7347 = vrot.slane %v7345, 5
    %v7348 = vsel %vm7231, %v7343, %v7347
    %v7349 = vrot.slane %v6953, 4
    %v7350 = vrot.slane %v6956, 5
    %v7351 = vor.u32 %v7349, %v7350
    %v7352 = vrot.slane %v7351, 4
    %v7354 = vshll.u32 %v6763, 16
    %v7356 = vrot.slane %v7354, 5
    %v7357 = vsel %vm7231, %v7352, %v7356
    %v7358 = vrot.slane %v6966, 4
    %v7359 = vrot.slane %v6969, 5
    %v7360 = vor.u32 %v7358, %v7359
    %v7361 = vrot.slane %v7360, 4
    %v7363 = vshll.u32 %v6766, 16
    %v7365 = vrot.slane %v7363, 5
    %v7366 = vsel %vm7231, %v7361, %v7365
    %v7367 = vrot.slane %v6979, 4
    %v7368 = vrot.slane %v6982, 5
    %v7369 = vor.u32 %v7367, %v7368
    %v7370 = vrot.slane %v7369, 4
    %v7372 = vshll.u32 %v6769, 16
    %v7374 = vrot.slane %v7372, 5
    %v7375 = vsel %vm7231, %v7370, %v7374
    %s7376 = scalar_lea.vmem %s3, 32
    %v7377 = vld [vmem:[%s7376] sm:$0xf]
    %v7378 = vld [vmem:[%s7376 + $0x4] sm:$0xf]
    %v7379 = vld [vmem:[%s7376 + $0x8] sm:$0xf]
    %v7380 = vld [vmem:[%s7376 + $0xc] sm:$0xf]
    %v7381 = vunpack.c.l.b16 %v7240
    %v7382 = vunpack.c.l.b16 %v7249
    %v7383 = vunpack.c.l.b16 %v7258
    %v7384 = vunpack.c.l.b16 %v7267
    %v7385 = vunpack.c.l.b16 %v7276
    %v7386 = vunpack.c.l.b16 %v7285
    %v7387 = vunpack.c.l.b16 %v7294
    %v7388 = vunpack.c.l.b16 %v7303
    %v7389 = vunpack.c.l.b16 %v7312
    %v7390 = vunpack.c.l.b16 %v7321
    %v7391 = vunpack.c.l.b16 %v7330
    %v7392 = vunpack.c.l.b16 %v7339
    %v7393 = vunpack.c.l.b16 %v7348
    %v7394 = vunpack.c.l.b16 %v7357
    %v7395 = vunpack.c.l.b16 %v7366
    %v7396 = vunpack.c.l.b16 %v7375
    %v7397 = vpack.c.b16 %v7382, %v7381
    %v7398 = vpack.c.b16 %v7384, %v7383
    %v7399 = vpack.c.b16 %v7386, %v7385
    %v7400 = vpack.c.b16 %v7388, %v7387
    %v7401 = vpack.c.b16 %v7390, %v7389
    %v7402 = vpack.c.b16 %v7392, %v7391
    %v7403 = vpack.c.b16 %v7394, %v7393
    %v7404 = vpack.c.b16 %v7396, %v7395
    %v7409 = vunpack.c.l.b16 %v7377
    %v7410 = vunpack.c.l.b16 %v7378
    %v7411 = vunpack.c.l.b16 %v7379
    %v7412 = vunpack.c.l.b16 %v7380
    %v7413 = vpack.c.b16 %v7410, %v7409
    %v7414 = vpack.c.b16 %v7412, %v7411
    %v7418 = vsel %vm4329, %v7397, 0
    %v7421 = vsel %vm4329, %v7398, 0
    %v7424 = vsel %vm4329, %v7399, 0
    %v7427 = vsel %vm4329, %v7400, 0
    %v7430 = vsel %vm4329, %v7401, 0
    %v7433 = vsel %vm4329, %v7402, 0
    %v7436 = vsel %vm4329, %v7403, 0
    %v7439 = vsel %vm4329, %v7404, 0
    %7441 = vmatpush.bf16.msra.mxu0 0
    %7442 = vmatpush.bf16.msra.mxu0 0
    %7443 = vmatpush.bf16.msra.mxu0 0
    %7444 = vmatpush.bf16.msra.mxu0 0
    %7445 = vmatpush.bf16.msra.mxu0 0
    %7446 = vmatpush.bf16.msra.mxu0 0
    %7447 = vmatpush.bf16.msra.mxu0 %v7414
    %7448 = vmatpush.bf16.msra.mxu0 %v7413
    %7449 = vmatmul.bf16.gmra.mxu0 %v7418
    %v7450 = vpop.f32.mrf.mxu0
    %v7451 = vadd.f32 0.0, %v7450
    %v7452 = vpop.f32.mrf.mxu0
    %v7453 = vadd.f32 0.0, %v7452
    %7454 = vmatmul.bf16.gmra.mxu0 %v7421
    %v7455 = vpop.f32.mrf.mxu0
    %v7456 = vadd.f32 0.0, %v7455
    %v7457 = vpop.f32.mrf.mxu0
    %v7458 = vadd.f32 0.0, %v7457
    %7459 = vmatmul.bf16.gmra.mxu0 %v7424
    %v7460 = vpop.f32.mrf.mxu0
    %v7461 = vadd.f32 0.0, %v7460
    %v7462 = vpop.f32.mrf.mxu0
    %v7463 = vadd.f32 0.0, %v7462
    %7464 = vmatmul.bf16.gmra.mxu0 %v7427
    %v7465 = vpop.f32.mrf.mxu0
    %v7466 = vadd.f32 0.0, %v7465
    %v7467 = vpop.f32.mrf.mxu0
    %v7468 = vadd.f32 0.0, %v7467
    %7469 = vmatmul.bf16.gmra.mxu0 %v7430
    %v7470 = vpop.f32.mrf.mxu0
    %v7471 = vadd.f32 0.0, %v7470
    %v7472 = vpop.f32.mrf.mxu0
    %v7473 = vadd.f32 0.0, %v7472
    %7474 = vmatmul.bf16.gmra.mxu0 %v7433
    %v7475 = vpop.f32.mrf.mxu0
    %v7476 = vadd.f32 0.0, %v7475
    %v7477 = vpop.f32.mrf.mxu0
    %v7478 = vadd.f32 0.0, %v7477
    %7479 = vmatmul.bf16.gmra.mxu0 %v7436
    %v7480 = vpop.f32.mrf.mxu0
    %v7481 = vadd.f32 0.0, %v7480
    %v7482 = vpop.f32.mrf.mxu0
    %v7483 = vadd.f32 0.0, %v7482
    %7484 = vmatmul.bf16.gmra.mxu0 %v7439
    %v7485 = vpop.f32.mrf.mxu0
    %v7486 = vadd.f32 0.0, %v7485
    %v7487 = vpop.f32.mrf.mxu0
    %v7488 = vadd.f32 0.0, %v7487
    %7489 = vdwg.mxu0
    %v7490 = vadd.f32 %v7190, %v7451
    %v7491 = vadd.f32 %v7192, %v7453
    %v7492 = vadd.f32 %v7195, %v7456
    %v7493 = vadd.f32 %v7197, %v7458
    %v7494 = vadd.f32 %v7200, %v7461
    %v7495 = vadd.f32 %v7202, %v7463
    %v7496 = vadd.f32 %v7205, %v7466
    %v7497 = vadd.f32 %v7207, %v7468
    %v7498 = vadd.f32 %v7210, %v7471
    %v7499 = vadd.f32 %v7212, %v7473
    %v7500 = vadd.f32 %v7215, %v7476
    %v7501 = vadd.f32 %v7217, %v7478
    %v7502 = vadd.f32 %v7220, %v7481
    %v7503 = vadd.f32 %v7222, %v7483
    %v7504 = vadd.f32 %v7225, %v7486
    %v7505 = vadd.f32 %v7227, %v7488
    %v7507 = vshrl.u32 %v6740, 16
    %v7509 = vrot.slane %v7507, 7
    %v7510 = vrot.slane %v7509, 4
    %v7512 = vshrl.u32 %v6741, 16
    %v7514 = vrot.slane %v7512, 7
    %v7515 = vshll.u32 %v6741, 16
    %v7517 = vor.u32 %v7514, %v7515
    %v7518 = vsel %vm6777, %v7510, %v7517
    %v7520 = vshrl.u32 %v6770, 16
    %v7522 = vrot.slane %v7520, 7
    %v7523 = vrot.slane %v7522, 4
    %v7525 = vshrl.u32 %v6771, 16
    %v7527 = vrot.slane %v7525, 7
    %v7528 = vshll.u32 %v6771, 16
    %v7530 = vor.u32 %v7527, %v7528
    %v7531 = vsel %vm6777, %v7523, %v7530
    %s7532 = scalar_lea.vmem %s3, 48
    %v7533 = vld [vmem:[%s7532] sm:$0xf]
    %v7534 = vld [vmem:[%s7532 + $0x4] sm:$0xf]
    %v7535 = vld [vmem:[%s7532 + $0x8] sm:$0xf]
    %v7536 = vld [vmem:[%s7532 + $0xc] sm:$0xf]
    %v7537 = vunpack.c.l.b16 %v7518
    %v7538 = vunpack.c.l.b16 %v7531
    %v7539 = vpack.c.b16 %v7122, %v7121
    %v7540 = vpack.c.b16 %v7124, %v7123
    %v7541 = vpack.c.b16 %v7126, %v7125
    %v7542 = vpack.c.b16 %v7537, %v7127
    %v7543 = vpack.c.b16 %v7130, %v7129
    %v7544 = vpack.c.b16 %v7132, %v7131
    %v7545 = vpack.c.b16 %v7134, %v7133
    %v7546 = vpack.c.b16 %v7538, %v7135
    %v7551 = vunpack.c.l.b16 %v7533
    %v7552 = vunpack.c.l.b16 %v7534
    %v7553 = vunpack.c.l.b16 %v7535
    %v7554 = vunpack.c.l.b16 %v7536
    %v7555 = vpack.c.b16 %v7552, %v7551
    %v7556 = vpack.c.b16 %v7554, %v7553
    %v7560 = vsel %vm4329, %v7539, 0
    %v7563 = vsel %vm4329, %v7540, 0
    %v7566 = vsel %vm4329, %v7541, 0
    %v7569 = vsel %vm4329, %v7542, 0
    %v7572 = vsel %vm4329, %v7543, 0
    %v7575 = vsel %vm4329, %v7544, 0
    %v7578 = vsel %vm4329, %v7545, 0
    %v7581 = vsel %vm4329, %v7546, 0
    %7583 = vmatpush.bf16.msra.mxu0 0
    %7584 = vmatpush.bf16.msra.mxu0 0
    %7585 = vmatpush.bf16.msra.mxu0 0
    %7586 = vmatpush.bf16.msra.mxu0 0
    %7587 = vmatpush.bf16.msra.mxu0 0
    %7588 = vmatpush.bf16.msra.mxu0 0
    %7589 = vmatpush.bf16.msra.mxu0 %v7556
    %7590 = vmatpush.bf16.msra.mxu0 %v7555
    %7591 = vmatmul.bf16.gmra.mxu0 %v7560
    %v7592 = vpop.f32.mrf.mxu0
    %v7593 = vadd.f32 0.0, %v7592
    %v7594 = vpop.f32.mrf.mxu0
    %v7595 = vadd.f32 0.0, %v7594
    %7596 = vmatmul.bf16.gmra.mxu0 %v7563
    %v7597 = vpop.f32.mrf.mxu0
    %v7598 = vadd.f32 0.0, %v7597
    %v7599 = vpop.f32.mrf.mxu0
    %v7600 = vadd.f32 0.0, %v7599
    %7601 = vmatmul.bf16.gmra.mxu0 %v7566
    %v7602 = vpop.f32.mrf.mxu0
    %v7603 = vadd.f32 0.0, %v7602
    %v7604 = vpop.f32.mrf.mxu0
    %v7605 = vadd.f32 0.0, %v7604
    %7606 = vmatmul.bf16.gmra.mxu0 %v7569
    %v7607 = vpop.f32.mrf.mxu0
    %v7608 = vadd.f32 0.0, %v7607
    %v7609 = vpop.f32.mrf.mxu0
    %v7610 = vadd.f32 0.0, %v7609
    %7611 = vmatmul.bf16.gmra.mxu0 %v7572
    %v7612 = vpop.f32.mrf.mxu0
    %v7613 = vadd.f32 0.0, %v7612
    %v7614 = vpop.f32.mrf.mxu0
    %v7615 = vadd.f32 0.0, %v7614
    %7616 = vmatmul.bf16.gmra.mxu0 %v7575
    %v7617 = vpop.f32.mrf.mxu0
    %v7618 = vadd.f32 0.0, %v7617
    %v7619 = vpop.f32.mrf.mxu0
    %v7620 = vadd.f32 0.0, %v7619
    %7621 = vmatmul.bf16.gmra.mxu0 %v7578
    %v7622 = vpop.f32.mrf.mxu0
    %v7623 = vadd.f32 0.0, %v7622
    %v7624 = vpop.f32.mrf.mxu0
    %v7625 = vadd.f32 0.0, %v7624
    %7626 = vmatmul.bf16.gmra.mxu0 %v7581
    %v7627 = vpop.f32.mrf.mxu0
    %v7628 = vadd.f32 0.0, %v7627
    %v7629 = vpop.f32.mrf.mxu0
    %v7630 = vadd.f32 0.0, %v7629
    %7631 = vdwg.mxu0
    %v7632 = vadd.f32 %v7490, %v7593
    %v7633 = vadd.f32 %v7491, %v7595
    %v7634 = vadd.f32 %v7492, %v7598
    %v7635 = vadd.f32 %v7493, %v7600
    %v7636 = vadd.f32 %v7494, %v7603
    %v7637 = vadd.f32 %v7495, %v7605
    %v7638 = vadd.f32 %v7496, %v7608
    %v7639 = vadd.f32 %v7497, %v7610
    %v7640 = vadd.f32 %v7498, %v7613
    %v7641 = vadd.f32 %v7499, %v7615
    %v7642 = vadd.f32 %v7500, %v7618
    %v7643 = vadd.f32 %v7501, %v7620
    %v7644 = vadd.f32 %v7502, %v7623
    %v7645 = vadd.f32 %v7503, %v7625
    %v7646 = vadd.f32 %v7504, %v7628
    %v7647 = vadd.f32 %v7505, %v7630
    %s7648 = scalar_lea.vmem %s3, 64
    %v7649 = vld [vmem:[%s7648] sm:$0xf]
    %v7650 = vld [vmem:[%s7648 + $0x4] sm:$0xf]
    %v7651 = vld [vmem:[%s7648 + $0x8] sm:$0xf]
    %v7652 = vld [vmem:[%s7648 + $0xc] sm:$0xf]
    %v7655 = vunpack.c.l.b16 %v6741
    %v7656 = vunpack.c.l.b16 %v6771
    %v7657 = vpack.c.b16 %v7013, %v7012
    %v7658 = vpack.c.b16 %v7015, %v7014
    %v7659 = vpack.c.b16 %v7017, %v7016
    %v7660 = vpack.c.b16 %v7655, %v7018
    %v7661 = vpack.c.b16 %v7021, %v7020
    %v7662 = vpack.c.b16 %v7023, %v7022
    %v7663 = vpack.c.b16 %v7025, %v7024
    %v7664 = vpack.c.b16 %v7656, %v7026
    %v7669 = vunpack.c.l.b16 %v7649
    %v7670 = vunpack.c.l.b16 %v7650
    %v7671 = vunpack.c.l.b16 %v7651
    %v7672 = vunpack.c.l.b16 %v7652
    %v7673 = vpack.c.b16 %v7670, %v7669
    %v7674 = vpack.c.b16 %v7672, %v7671
    %v7678 = vsel %vm4329, %v7657, 0
    %v7681 = vsel %vm4329, %v7658, 0
    %v7684 = vsel %vm4329, %v7659, 0
    %v7687 = vsel %vm4329, %v7660, 0
    %v7690 = vsel %vm4329, %v7661, 0
    %v7693 = vsel %vm4329, %v7662, 0
    %v7696 = vsel %vm4329, %v7663, 0
    %v7699 = vsel %vm4329, %v7664, 0
    %7701 = vmatpush.bf16.msra.mxu0 0
    %7702 = vmatpush.bf16.msra.mxu0 0
    %7703 = vmatpush.bf16.msra.mxu0 0
    %7704 = vmatpush.bf16.msra.mxu0 0
    %7705 = vmatpush.bf16.msra.mxu0 0
    %7706 = vmatpush.bf16.msra.mxu0 0
    %7707 = vmatpush.bf16.msra.mxu0 %v7674
    %7708 = vmatpush.bf16.msra.mxu0 %v7673
    %7709 = vmatmul.bf16.gmra.mxu0 %v7678
    %v7710 = vpop.f32.mrf.mxu0
    %v7711 = vadd.f32 0.0, %v7710
    %v7712 = vpop.f32.mrf.mxu0
    %v7713 = vadd.f32 0.0, %v7712
    %7714 = vmatmul.bf16.gmra.mxu0 %v7681
    %v7715 = vpop.f32.mrf.mxu0
    %v7716 = vadd.f32 0.0, %v7715
    %v7717 = vpop.f32.mrf.mxu0
    %v7718 = vadd.f32 0.0, %v7717
    %7719 = vmatmul.bf16.gmra.mxu0 %v7684
    %v7720 = vpop.f32.mrf.mxu0
    %v7721 = vadd.f32 0.0, %v7720
    %v7722 = vpop.f32.mrf.mxu0
    %v7723 = vadd.f32 0.0, %v7722
    %7724 = vmatmul.bf16.gmra.mxu0 %v7687
    %v7725 = vpop.f32.mrf.mxu0
    %v7726 = vadd.f32 0.0, %v7725
    %v7727 = vpop.f32.mrf.mxu0
    %v7728 = vadd.f32 0.0, %v7727
    %7729 = vmatmul.bf16.gmra.mxu0 %v7690
    %v7730 = vpop.f32.mrf.mxu0
    %v7731 = vadd.f32 0.0, %v7730
    %v7732 = vpop.f32.mrf.mxu0
    %v7733 = vadd.f32 0.0, %v7732
    %7734 = vmatmul.bf16.gmra.mxu0 %v7693
    %v7735 = vpop.f32.mrf.mxu0
    %v7736 = vadd.f32 0.0, %v7735
    %v7737 = vpop.f32.mrf.mxu0
    %v7738 = vadd.f32 0.0, %v7737
    %7739 = vmatmul.bf16.gmra.mxu0 %v7696
    %v7740 = vpop.f32.mrf.mxu0
    %v7741 = vadd.f32 0.0, %v7740
    %v7742 = vpop.f32.mrf.mxu0
    %v7743 = vadd.f32 0.0, %v7742
    %7744 = vmatmul.bf16.gmra.mxu0 %v7699
    %v7745 = vpop.f32.mrf.mxu0
    %v7746 = vadd.f32 0.0, %v7745
    %v7747 = vpop.f32.mrf.mxu0
    %v7748 = vadd.f32 0.0, %v7747
    %7749 = vdwg.mxu0
    %v7750 = vadd.f32 %v7632, %v7711
    %v7751 = vadd.f32 %v7633, %v7713
    %v7752 = vadd.f32 %v7634, %v7716
    %v7753 = vadd.f32 %v7635, %v7718
    %v7754 = vadd.f32 %v7636, %v7721
    %v7755 = vadd.f32 %v7637, %v7723
    %v7756 = vadd.f32 %v7638, %v7726
    %v7757 = vadd.f32 %v7639, %v7728
    %v7758 = vadd.f32 %v7640, %v7731
    %v7759 = vadd.f32 %v7641, %v7733
    %v7760 = vadd.f32 %v7642, %v7736
    %v7761 = vadd.f32 %v7643, %v7738
    %v7762 = vadd.f32 %v7644, %v7741
    %v7763 = vadd.f32 %v7645, %v7743
    %v7764 = vadd.f32 %v7646, %v7746
    %v7765 = vadd.f32 %v7647, %v7748
    %v7766 = vrot.slane %v7512, 4
    %v7767 = vrot.slane %v7515, 5
    %v7768 = vor.u32 %v7766, %v7767
    %v7769 = vrot.slane %v7768, 4
    %v7771 = vshll.u32 %v6742, 16
    %v7773 = vrot.slane %v7771, 5
    %v7774 = vsel %vm7231, %v7769, %v7773
    %v7775 = vrot.slane %v7525, 4
    %v7776 = vrot.slane %v7528, 5
    %v7777 = vor.u32 %v7775, %v7776
    %v7778 = vrot.slane %v7777, 4
    %v7780 = vshll.u32 %v6772, 16
    %v7782 = vrot.slane %v7780, 5
    %v7783 = vsel %vm7231, %v7778, %v7782
    %s7784 = scalar_lea.vmem %s3, 80
    %v7785 = vld [vmem:[%s7784] sm:$0xf]
    %v7786 = vld [vmem:[%s7784 + $0x4] sm:$0xf]
    %v7787 = vld [vmem:[%s7784 + $0x8] sm:$0xf]
    %v7788 = vld [vmem:[%s7784 + $0xc] sm:$0xf]
    %v7789 = vunpack.c.l.b16 %v7774
    %v7790 = vunpack.c.l.b16 %v7783
    %v7791 = vpack.c.b16 %v7383, %v7382
    %v7792 = vpack.c.b16 %v7385, %v7384
    %v7793 = vpack.c.b16 %v7387, %v7386
    %v7794 = vpack.c.b16 %v7789, %v7388
    %v7795 = vpack.c.b16 %v7391, %v7390
    %v7796 = vpack.c.b16 %v7393, %v7392
    %v7797 = vpack.c.b16 %v7395, %v7394
    %v7798 = vpack.c.b16 %v7790, %v7396
    %v7803 = vunpack.c.l.b16 %v7785
    %v7804 = vunpack.c.l.b16 %v7786
    %v7805 = vunpack.c.l.b16 %v7787
    %v7806 = vunpack.c.l.b16 %v7788
    %v7807 = vpack.c.b16 %v7804, %v7803
    %v7808 = vpack.c.b16 %v7806, %v7805
    %v7812 = vsel %vm4329, %v7791, 0
    %v7815 = vsel %vm4329, %v7792, 0
    %v7818 = vsel %vm4329, %v7793, 0
    %v7821 = vsel %vm4329, %v7794, 0
    %v7824 = vsel %vm4329, %v7795, 0
    %v7827 = vsel %vm4329, %v7796, 0
    %v7830 = vsel %vm4329, %v7797, 0
    %v7833 = vsel %vm4329, %v7798, 0
    %7835 = vmatpush.bf16.msra.mxu0 0
    %7836 = vmatpush.bf16.msra.mxu0 0
    %7837 = vmatpush.bf16.msra.mxu0 0
    %7838 = vmatpush.bf16.msra.mxu0 0
    %7839 = vmatpush.bf16.msra.mxu0 0
    %7840 = vmatpush.bf16.msra.mxu0 0
    %7841 = vmatpush.bf16.msra.mxu0 %v7808
    %7842 = vmatpush.bf16.msra.mxu0 %v7807
    %7843 = vmatmul.bf16.gmra.mxu0 %v7812
    %v7844 = vpop.f32.mrf.mxu0
    %v7845 = vadd.f32 0.0, %v7844
    %v7846 = vpop.f32.mrf.mxu0
    %v7847 = vadd.f32 0.0, %v7846
    %7848 = vmatmul.bf16.gmra.mxu0 %v7815
    %v7849 = vpop.f32.mrf.mxu0
    %v7850 = vadd.f32 0.0, %v7849
    %v7851 = vpop.f32.mrf.mxu0
    %v7852 = vadd.f32 0.0, %v7851
    %7853 = vmatmul.bf16.gmra.mxu0 %v7818
    %v7854 = vpop.f32.mrf.mxu0
    %v7855 = vadd.f32 0.0, %v7854
    %v7856 = vpop.f32.mrf.mxu0
    %v7857 = vadd.f32 0.0, %v7856
    %7858 = vmatmul.bf16.gmra.mxu0 %v7821
    %v7859 = vpop.f32.mrf.mxu0
    %v7860 = vadd.f32 0.0, %v7859
    %v7861 = vpop.f32.mrf.mxu0
    %v7862 = vadd.f32 0.0, %v7861
    %7863 = vmatmul.bf16.gmra.mxu0 %v7824
    %v7864 = vpop.f32.mrf.mxu0
    %v7865 = vadd.f32 0.0, %v7864
    %v7866 = vpop.f32.mrf.mxu0
    %v7867 = vadd.f32 0.0, %v7866
    %7868 = vmatmul.bf16.gmra.mxu0 %v7827
    %v7869 = vpop.f32.mrf.mxu0
    %v7870 = vadd.f32 0.0, %v7869
    %v7871 = vpop.f32.mrf.mxu0
    %v7872 = vadd.f32 0.0, %v7871
    %7873 = vmatmul.bf16.gmra.mxu0 %v7830
    %v7874 = vpop.f32.mrf.mxu0
    %v7875 = vadd.f32 0.0, %v7874
    %v7876 = vpop.f32.mrf.mxu0
    %v7877 = vadd.f32 0.0, %v7876
    %7878 = vmatmul.bf16.gmra.mxu0 %v7833
    %v7879 = vpop.f32.mrf.mxu0
    %v7880 = vadd.f32 0.0, %v7879
    %v7881 = vpop.f32.mrf.mxu0
    %v7882 = vadd.f32 0.0, %v7881
    %7883 = vdwg.mxu0
    %v7884 = vadd.f32 %v7750, %v7845
    %v7885 = vadd.f32 %v7751, %v7847
    %v7886 = vadd.f32 %v7752, %v7850
    %v7887 = vadd.f32 %v7753, %v7852
    %v7888 = vadd.f32 %v7754, %v7855
    %v7889 = vadd.f32 %v7755, %v7857
    %v7890 = vadd.f32 %v7756, %v7860
    %v7891 = vadd.f32 %v7757, %v7862
    %v7892 = vadd.f32 %v7758, %v7865
    %v7893 = vadd.f32 %v7759, %v7867
    %v7894 = vadd.f32 %v7760, %v7870
    %v7895 = vadd.f32 %v7761, %v7872
    %v7896 = vadd.f32 %v7762, %v7875
    %v7897 = vadd.f32 %v7763, %v7877
    %v7898 = vadd.f32 %v7764, %v7880
    %v7899 = vadd.f32 %v7765, %v7882
    %v7901 = vshrl.u32 %v6743, 16
    %v7903 = vrot.slane %v7901, 7
    %v7904 = vrot.slane %v7903, 4
    %v7906 = vshrl.u32 %v6744, 16
    %v7908 = vrot.slane %v7906, 7
    %v7909 = vshll.u32 %v6744, 16
    %v7911 = vor.u32 %v7908, %v7909
    %v7912 = vsel %vm6777, %v7904, %v7911
    %v7914 = vshrl.u32 %v6773, 16
    %v7916 = vrot.slane %v7914, 7
    %v7917 = vrot.slane %v7916, 4
    %v7919 = vshrl.u32 %v6774, 16
    %v7921 = vrot.slane %v7919, 7
    %v7922 = vshll.u32 %v6774, 16
    %v7924 = vor.u32 %v7921, %v7922
    %v7925 = vsel %vm6777, %v7917, %v7924
    %s7926 = scalar_lea.vmem %s3, 96
    %v7927 = vld [vmem:[%s7926] sm:$0xf]
    %v7928 = vld [vmem:[%s7926 + $0x4] sm:$0xf]
    %v7929 = vld [vmem:[%s7926 + $0x8] sm:$0xf]
    %v7930 = vld [vmem:[%s7926 + $0xc] sm:$0xf]
    %v7931 = vunpack.c.l.b16 %v7912
    %v7932 = vunpack.c.l.b16 %v7925
    %v7933 = vpack.c.b16 %v7931, %v7537
    %v7934 = vpack.c.b16 %v7932, %v7538
    %v7939 = vunpack.c.l.b16 %v7927
    %v7940 = vunpack.c.l.b16 %v7928
    %v7941 = vunpack.c.l.b16 %v7929
    %v7942 = vunpack.c.l.b16 %v7930
    %v7943 = vpack.c.b16 %v7940, %v7939
    %v7944 = vpack.c.b16 %v7942, %v7941
    %v7948 = vsel %vm4329, %v7933, 0
    %v7951 = vsel %vm4329, %v7934, 0
    %7953 = vmatpush.bf16.msra.mxu0 0
    %7954 = vmatpush.bf16.msra.mxu0 0
    %7955 = vmatpush.bf16.msra.mxu0 0
    %7956 = vmatpush.bf16.msra.mxu0 0
    %7957 = vmatpush.bf16.msra.mxu0 0
    %7958 = vmatpush.bf16.msra.mxu0 0
    %7959 = vmatpush.bf16.msra.mxu0 %v7944
    %7960 = vmatpush.bf16.msra.mxu0 %v7943
    %7961 = vmatmul.bf16.gmra.mxu0 %v7160
    %v7962 = vpop.f32.mrf.mxu0
    %v7963 = vadd.f32 0.0, %v7962
    %v7964 = vpop.f32.mrf.mxu0
    %v7965 = vadd.f32 0.0, %v7964
    %7966 = vmatmul.bf16.gmra.mxu0 %v7163
    %v7967 = vpop.f32.mrf.mxu0
    %v7968 = vadd.f32 0.0, %v7967
    %v7969 = vpop.f32.mrf.mxu0
    %v7970 = vadd.f32 0.0, %v7969
    %7971 = vmatmul.bf16.gmra.mxu0 %v7166
    %v7972 = vpop.f32.mrf.mxu0
    %v7973 = vadd.f32 0.0, %v7972
    %v7974 = vpop.f32.mrf.mxu0
    %v7975 = vadd.f32 0.0, %v7974
    %7976 = vmatmul.bf16.gmra.mxu0 %v7948
    %v7977 = vpop.f32.mrf.mxu0
    %v7978 = vadd.f32 0.0, %v7977
    %v7979 = vpop.f32.mrf.mxu0
    %v7980 = vadd.f32 0.0, %v7979
    %7981 = vmatmul.bf16.gmra.mxu0 %v7172
    %v7982 = vpop.f32.mrf.mxu0
    %v7983 = vadd.f32 0.0, %v7982
    %v7984 = vpop.f32.mrf.mxu0
    %v7985 = vadd.f32 0.0, %v7984
    %7986 = vmatmul.bf16.gmra.mxu0 %v7175
    %v7987 = vpop.f32.mrf.mxu0
    %v7988 = vadd.f32 0.0, %v7987
    %v7989 = vpop.f32.mrf.mxu0
    %v7990 = vadd.f32 0.0, %v7989
    %7991 = vmatmul.bf16.gmra.mxu0 %v7178
    %v7992 = vpop.f32.mrf.mxu0
    %v7993 = vadd.f32 0.0, %v7992
    %v7994 = vpop.f32.mrf.mxu0
    %v7995 = vadd.f32 0.0, %v7994
    %7996 = vmatmul.bf16.gmra.mxu0 %v7951
    %v7997 = vpop.f32.mrf.mxu0
    %v7998 = vadd.f32 0.0, %v7997
    %v7999 = vpop.f32.mrf.mxu0
    %v8000 = vadd.f32 0.0, %v7999
    %8001 = vdwg.mxu0
    %v8002 = vadd.f32 %v7884, %v7963
    %v8003 = vadd.f32 %v7885, %v7965
    %v8004 = vadd.f32 %v7886, %v7968
    %v8005 = vadd.f32 %v7887, %v7970
    %v8006 = vadd.f32 %v7888, %v7973
    %v8007 = vadd.f32 %v7889, %v7975
    %v8008 = vadd.f32 %v7890, %v7978
    %v8009 = vadd.f32 %v7891, %v7980
    %v8010 = vadd.f32 %v7892, %v7983
    %v8011 = vadd.f32 %v7893, %v7985
    %v8012 = vadd.f32 %v7894, %v7988
    %v8013 = vadd.f32 %v7895, %v7990
    %v8014 = vadd.f32 %v7896, %v7993
    %v8015 = vadd.f32 %v7897, %v7995
    %v8016 = vadd.f32 %v7898, %v7998
    %v8017 = vadd.f32 %v7899, %v8000
    %s8018 = scalar_lea.vmem %s3, 112
    %v8019 = vld [vmem:[%s8018] sm:$0xf]
    %v8020 = vld [vmem:[%s8018 + $0x4] sm:$0xf]
    %v8021 = vld [vmem:[%s8018 + $0x8] sm:$0xf]
    %v8022 = vld [vmem:[%s8018 + $0xc] sm:$0xf]
    %v8025 = vunpack.c.l.b16 %v6744
    %v8026 = vunpack.c.l.b16 %v6774
    %v8027 = vpack.c.b16 %v8025, %v7655
    %v8028 = vpack.c.b16 %v8026, %v7656
    %v8033 = vunpack.c.l.b16 %v8019
    %v8034 = vunpack.c.l.b16 %v8020
    %v8035 = vunpack.c.l.b16 %v8021
    %v8036 = vunpack.c.l.b16 %v8022
    %v8037 = vpack.c.b16 %v8034, %v8033
    %v8038 = vpack.c.b16 %v8036, %v8035
    %v8042 = vsel %vm4329, %v8027, 0
    %v8045 = vsel %vm4329, %v8028, 0
    %8047 = vmatpush.bf16.msra.mxu0 0
    %8048 = vmatpush.bf16.msra.mxu0 0
    %8049 = vmatpush.bf16.msra.mxu0 0
    %8050 = vmatpush.bf16.msra.mxu0 0
    %8051 = vmatpush.bf16.msra.mxu0 0
    %8052 = vmatpush.bf16.msra.mxu0 0
    %8053 = vmatpush.bf16.msra.mxu0 %v8038
    %8054 = vmatpush.bf16.msra.mxu0 %v8037
    %8055 = vmatmul.bf16.gmra.mxu0 %v7051
    %v8056 = vpop.f32.mrf.mxu0
    %v8057 = vadd.f32 0.0, %v8056
    %v8058 = vpop.f32.mrf.mxu0
    %v8059 = vadd.f32 0.0, %v8058
    %8060 = vmatmul.bf16.gmra.mxu0 %v7054
    %v8061 = vpop.f32.mrf.mxu0
    %v8062 = vadd.f32 0.0, %v8061
    %v8063 = vpop.f32.mrf.mxu0
    %v8064 = vadd.f32 0.0, %v8063
    %8065 = vmatmul.bf16.gmra.mxu0 %v7057
    %v8066 = vpop.f32.mrf.mxu0
    %v8067 = vadd.f32 0.0, %v8066
    %v8068 = vpop.f32.mrf.mxu0
    %v8069 = vadd.f32 0.0, %v8068
    %8070 = vmatmul.bf16.gmra.mxu0 %v8042
    %v8071 = vpop.f32.mrf.mxu0
    %v8072 = vadd.f32 0.0, %v8071
    %v8073 = vpop.f32.mrf.mxu0
    %v8074 = vadd.f32 0.0, %v8073
    %8075 = vmatmul.bf16.gmra.mxu0 %v7063
    %v8076 = vpop.f32.mrf.mxu0
    %v8077 = vadd.f32 0.0, %v8076
    %v8078 = vpop.f32.mrf.mxu0
    %v8079 = vadd.f32 0.0, %v8078
    %8080 = vmatmul.bf16.gmra.mxu0 %v7066
    %v8081 = vpop.f32.mrf.mxu0
    %v8082 = vadd.f32 0.0, %v8081
    %v8083 = vpop.f32.mrf.mxu0
    %v8084 = vadd.f32 0.0, %v8083
    %8085 = vmatmul.bf16.gmra.mxu0 %v7069
    %v8086 = vpop.f32.mrf.mxu0
    %v8087 = vadd.f32 0.0, %v8086
    %v8088 = vpop.f32.mrf.mxu0
    %v8089 = vadd.f32 0.0, %v8088
    %8090 = vmatmul.bf16.gmra.mxu0 %v8045
    %v8091 = vpop.f32.mrf.mxu0
    %v8092 = vadd.f32 0.0, %v8091
    %v8093 = vpop.f32.mrf.mxu0
    %v8094 = vadd.f32 0.0, %v8093
    %8095 = vdwg.mxu0
    %v8096 = vadd.f32 %v8002, %v8057
    %v8097 = vadd.f32 %v8003, %v8059
    %v8098 = vadd.f32 %v8004, %v8062
    %v8099 = vadd.f32 %v8005, %v8064
    %v8100 = vadd.f32 %v8006, %v8067
    %v8101 = vadd.f32 %v8007, %v8069
    %v8102 = vadd.f32 %v8008, %v8072
    %v8103 = vadd.f32 %v8009, %v8074
    %v8104 = vadd.f32 %v8010, %v8077
    %v8105 = vadd.f32 %v8011, %v8079
    %v8106 = vadd.f32 %v8012, %v8082
    %v8107 = vadd.f32 %v8013, %v8084
    %v8108 = vadd.f32 %v8014, %v8087
    %v8109 = vadd.f32 %v8015, %v8089
    %v8110 = vadd.f32 %v8016, %v8092
    %v8111 = vadd.f32 %v8017, %v8094
    %v8112 = vrot.slane %v7906, 4
    %v8113 = vrot.slane %v7909, 5
    %v8114 = vor.u32 %v8112, %v8113
    %v8115 = vrot.slane %v8114, 4
    %v8117 = vshll.u32 %v6745, 16
    %v8119 = vrot.slane %v8117, 5
    %v8120 = vsel %vm7231, %v8115, %v8119
    %v8121 = vrot.slane %v7919, 4
    %v8122 = vrot.slane %v7922, 5
    %v8123 = vor.u32 %v8121, %v8122
    %v8124 = vrot.slane %v8123, 4
    %v8126 = vshll.u32 %v6775, 16
    %v8128 = vrot.slane %v8126, 5
    %v8129 = vsel %vm7231, %v8124, %v8128
    %s8130 = scalar_lea.vmem %s3, 128
    %v8131 = vld [vmem:[%s8130] sm:$0xf]
    %v8132 = vld [vmem:[%s8130 + $0x4] sm:$0xf]
    %v8133 = vld [vmem:[%s8130 + $0x8] sm:$0xf]
    %v8134 = vld [vmem:[%s8130 + $0xc] sm:$0xf]
    %v8135 = vunpack.c.l.b16 %v8120
    %v8136 = vunpack.c.l.b16 %v8129
    %v8137 = vpack.c.b16 %v8135, %v7789
    %v8138 = vpack.c.b16 %v8136, %v7790
    %v8143 = vunpack.c.l.b16 %v8131
    %v8144 = vunpack.c.l.b16 %v8132
    %v8145 = vunpack.c.l.b16 %v8133
    %v8146 = vunpack.c.l.b16 %v8134
    %v8147 = vpack.c.b16 %v8144, %v8143
    %v8148 = vpack.c.b16 %v8146, %v8145
    %v8152 = vsel %vm4329, %v8137, 0
    %v8155 = vsel %vm4329, %v8138, 0
    %8157 = vmatpush.bf16.msra.mxu0 0
    %8158 = vmatpush.bf16.msra.mxu0 0
    %8159 = vmatpush.bf16.msra.mxu0 0
    %8160 = vmatpush.bf16.msra.mxu0 0
    %8161 = vmatpush.bf16.msra.mxu0 0
    %8162 = vmatpush.bf16.msra.mxu0 0
    %8163 = vmatpush.bf16.msra.mxu0 %v8148
    %8164 = vmatpush.bf16.msra.mxu0 %v8147
    %8165 = vmatmul.bf16.gmra.mxu0 %v7421
    %v8166 = vpop.f32.mrf.mxu0
    %v8167 = vadd.f32 0.0, %v8166
    %v8168 = vpop.f32.mrf.mxu0
    %v8169 = vadd.f32 0.0, %v8168
    %8170 = vmatmul.bf16.gmra.mxu0 %v7424
    %v8171 = vpop.f32.mrf.mxu0
    %v8172 = vadd.f32 0.0, %v8171
    %v8173 = vpop.f32.mrf.mxu0
    %v8174 = vadd.f32 0.0, %v8173
    %8175 = vmatmul.bf16.gmra.mxu0 %v7427
    %v8176 = vpop.f32.mrf.mxu0
    %v8177 = vadd.f32 0.0, %v8176
    %v8178 = vpop.f32.mrf.mxu0
    %v8179 = vadd.f32 0.0, %v8178
    %8180 = vmatmul.bf16.gmra.mxu0 %v8152
    %v8181 = vpop.f32.mrf.mxu0
    %v8182 = vadd.f32 0.0, %v8181
    %v8183 = vpop.f32.mrf.mxu0
    %v8184 = vadd.f32 0.0, %v8183
    %8185 = vmatmul.bf16.gmra.mxu0 %v7433
    %v8186 = vpop.f32.mrf.mxu0
    %v8187 = vadd.f32 0.0, %v8186
    %v8188 = vpop.f32.mrf.mxu0
    %v8189 = vadd.f32 0.0, %v8188
    %8190 = vmatmul.bf16.gmra.mxu0 %v7436
    %v8191 = vpop.f32.mrf.mxu0
    %v8192 = vadd.f32 0.0, %v8191
    %v8193 = vpop.f32.mrf.mxu0
    %v8194 = vadd.f32 0.0, %v8193
    %8195 = vmatmul.bf16.gmra.mxu0 %v7439
    %v8196 = vpop.f32.mrf.mxu0
    %v8197 = vadd.f32 0.0, %v8196
    %v8198 = vpop.f32.mrf.mxu0
    %v8199 = vadd.f32 0.0, %v8198
    %8200 = vmatmul.bf16.gmra.mxu0 %v8155
    %v8201 = vpop.f32.mrf.mxu0
    %v8202 = vadd.f32 0.0, %v8201
    %v8203 = vpop.f32.mrf.mxu0
    %v8204 = vadd.f32 0.0, %v8203
    %8205 = vdwg.mxu0
    %v8206 = vadd.f32 %v8096, %v8167
    %v8207 = vadd.f32 %v8097, %v8169
    %v8208 = vadd.f32 %v8098, %v8172
    %v8209 = vadd.f32 %v8099, %v8174
    %v8210 = vadd.f32 %v8100, %v8177
    %v8211 = vadd.f32 %v8101, %v8179
    %v8212 = vadd.f32 %v8102, %v8182
    %v8213 = vadd.f32 %v8103, %v8184
    %v8214 = vadd.f32 %v8104, %v8187
    %v8215 = vadd.f32 %v8105, %v8189
    %v8216 = vadd.f32 %v8106, %v8192
    %v8217 = vadd.f32 %v8107, %v8194
    %v8218 = vadd.f32 %v8108, %v8197
    %v8219 = vadd.f32 %v8109, %v8199
    %v8220 = vadd.f32 %v8110, %v8202
    %v8221 = vadd.f32 %v8111, %v8204
    %v8222 = vld [vmem:[%s4] sm:$0x1]
    %v8223 = vperm.slane %v8222, 0
    %v8224 = vmul.f32 %v8206, %v8223
    %v8225 = vmul.f32 %v8207, %v8223
    %v8226 = vmul.f32 %v8208, %v8223
    %v8227 = vmul.f32 %v8209, %v8223
    %v8228 = vmul.f32 %v8210, %v8223
    %v8229 = vmul.f32 %v8211, %v8223
    %v8230 = vmul.f32 %v8212, %v8223
    %v8231 = vmul.f32 %v8213, %v8223
    %v8232 = vmul.f32 %v8214, %v8223
    %v8233 = vmul.f32 %v8215, %v8223
    %v8234 = vmul.f32 %v8216, %v8223
    %v8235 = vmul.f32 %v8217, %v8223
    %v8236 = vmul.f32 %v8218, %v8223
    %v8237 = vmul.f32 %v8219, %v8223
    %v8238 = vmul.f32 %v8220, %v8223
    %v8239 = vmul.f32 %v8221, %v8223
    %v8240 = vld [vmem:[%s4 + $0x1] sm:$0x1]
    %v8241 = vperm.slane %v8240, 0
    %v8242 = vadd.f32 %v8224, %v8241
    %v8243 = vadd.f32 %v8225, %v8241
    %v8244 = vadd.f32 %v8226, %v8241
    %v8245 = vadd.f32 %v8227, %v8241
    %v8246 = vadd.f32 %v8228, %v8241
    %v8247 = vadd.f32 %v8229, %v8241
    %v8248 = vadd.f32 %v8230, %v8241
    %v8249 = vadd.f32 %v8231, %v8241
    %v8250 = vadd.f32 %v8232, %v8241
    %v8251 = vadd.f32 %v8233, %v8241
    %v8252 = vadd.f32 %v8234, %v8241
    %v8253 = vadd.f32 %v8235, %v8241
    %v8254 = vadd.f32 %v8236, %v8241
    %v8255 = vadd.f32 %v8237, %v8241
    %v8256 = vadd.f32 %v8238, %v8241
    %v8257 = vadd.f32 %v8239, %v8241
    %v8258 = vmax.f32 %v8242, 0.0
    %v8259 = vmax.f32 %v8243, 0.0
    %v8260 = vmax.f32 %v8244, 0.0
    %v8261 = vmax.f32 %v8245, 0.0
    %v8262 = vmax.f32 %v8246, 0.0
    %v8263 = vmax.f32 %v8247, 0.0
    %v8264 = vmax.f32 %v8248, 0.0
    %v8265 = vmax.f32 %v8249, 0.0
    %v8266 = vmax.f32 %v8250, 0.0
    %v8267 = vmax.f32 %v8251, 0.0
    %v8268 = vmax.f32 %v8252, 0.0
    %v8269 = vmax.f32 %v8253, 0.0
    %v8270 = vmax.f32 %v8254, 0.0
    %v8271 = vmax.f32 %v8255, 0.0
    %v8272 = vmax.f32 %v8256, 0.0
    %v8273 = vmax.f32 %v8257, 0.0
    %v8274 = vpack.c.bf16 %v8258, %v8258
    %v8275 = vpack.c.bf16 %v8259, %v8259
    %v8276 = vpack.c.bf16 %v8260, %v8260
    %v8277 = vpack.c.bf16 %v8261, %v8261
    %v8278 = vpack.c.bf16 %v8262, %v8262
    %v8279 = vpack.c.bf16 %v8263, %v8263
    %v8280 = vpack.c.bf16 %v8264, %v8264
    %v8281 = vpack.c.bf16 %v8265, %v8265
    %v8282 = vpack.c.bf16 %v8266, %v8266
    %v8283 = vpack.c.bf16 %v8267, %v8267
    %v8284 = vpack.c.bf16 %v8268, %v8268
    %v8285 = vpack.c.bf16 %v8269, %v8269
    %v8286 = vpack.c.bf16 %v8270, %v8270
    %v8287 = vpack.c.bf16 %v8271, %v8271
    %v8288 = vpack.c.bf16 %v8272, %v8272
    %v8289 = vpack.c.bf16 %v8273, %v8273
    %v8290 = vunpack.c.l.bf16 %v8274
    %v8291 = vunpack.c.l.bf16 %v8275
    %v8292 = vunpack.c.l.bf16 %v8276
    %v8293 = vunpack.c.l.bf16 %v8277
    %v8294 = vunpack.c.l.bf16 %v8278
    %v8295 = vunpack.c.l.bf16 %v8279
    %v8296 = vunpack.c.l.bf16 %v8280
    %v8297 = vunpack.c.l.bf16 %v8281
    %v8298 = vunpack.c.l.bf16 %v8282
    %v8299 = vunpack.c.l.bf16 %v8283
    %v8300 = vunpack.c.l.bf16 %v8284
    %v8301 = vunpack.c.l.bf16 %v8285
    %v8302 = vunpack.c.l.bf16 %v8286
    %v8303 = vunpack.c.l.bf16 %v8287
    %v8304 = vunpack.c.l.bf16 %v8288
    %v8305 = vunpack.c.l.bf16 %v8289
    %vm8306 = vcmask 523264
    %v8307 = vsel %vm8306, %v8290, -inf
    %v8308 = vsel %vm8306, %v8291, -inf
    %v8309 = vmax.f32 %v8307, %v8308
    %v8310 = vsel %vm8306, %v8292, -inf
    %v8311 = vsel %vm8306, %v8293, -inf
    %v8312 = vmax.f32 %v8310, %v8311
    %v8313 = vsel %vm8306, %v8294, -inf
    %v8314 = vsel %vm8306, %v8295, -inf
    %v8315 = vmax.f32 %v8313, %v8314
    %v8316 = vsel %vm8306, %v8296, -inf
    %v8317 = vsel %vm8306, %v8297, -inf
    %v8318 = vmax.f32 %v8316, %v8317
    %v8319 = vsel %vm8306, %v8298, -inf
    %v8320 = vsel %vm8306, %v8299, -inf
    %v8321 = vmax.f32 %v8319, %v8320
    %v8322 = vsel %vm8306, %v8300, -inf
    %v8323 = vsel %vm8306, %v8301, -inf
    %v8324 = vmax.f32 %v8322, %v8323
    %v8325 = vsel %vm8306, %v8302, -inf
    %v8326 = vsel %vm8306, %v8303, -inf
    %v8327 = vmax.f32 %v8325, %v8326
    %v8328 = vsel %vm8306, %v8304, -inf
    %v8329 = vsel %vm8306, %v8305, -inf
    %v8330 = vmax.f32 %v8328, %v8329
    %v8331 = vpack.c.bf16 %v8309, %v8309
    %v8332 = vpack.c.bf16 %v8312, %v8312
    %v8333 = vpack.c.bf16 %v8315, %v8315
    %v8334 = vpack.c.bf16 %v8318, %v8318
    %v8335 = vpack.c.bf16 %v8321, %v8321
    %v8336 = vpack.c.bf16 %v8324, %v8324
    %v8337 = vpack.c.bf16 %v8327, %v8327
    %v8338 = vpack.c.bf16 %v8330, %v8330
    %v8347 = vrot.slane %v8331, 3
    %v8348 = vrot.slane %v8332, 3
    %v8349 = vrot.slane %v8333, 3
    %v8350 = vrot.slane %v8334, 3
    %v8351 = vrot.slane %v8335, 3
    %v8352 = vrot.slane %v8336, 3
    %v8353 = vrot.slane %v8337, 3
    %v8354 = vrot.slane %v8338, 3
    %v8357 = vsel %vm4522, %v8331, %v8347
    %v8358 = vsel %vm4526, %v8331, %v8347
    %v8360 = vrot.slane %v8358, 1
    %v8361 = vsel %vm4530, %v8331, %v8347
    %v8363 = vrot.slane %v8361, 2
    %v8364 = vsel %vm4534, %v8331, %v8347
    %v8366 = vrot.slane %v8364, 3
    %v8369 = vsel %vm4522, %v8332, %v8348
    %v8370 = vsel %vm4526, %v8332, %v8348
    %v8372 = vrot.slane %v8370, 1
    %v8373 = vsel %vm4530, %v8332, %v8348
    %v8375 = vrot.slane %v8373, 2
    %v8376 = vsel %vm4534, %v8332, %v8348
    %v8378 = vrot.slane %v8376, 3
    %v8381 = vsel %vm4522, %v8333, %v8349
    %v8382 = vsel %vm4526, %v8333, %v8349
    %v8384 = vrot.slane %v8382, 1
    %v8385 = vsel %vm4530, %v8333, %v8349
    %v8387 = vrot.slane %v8385, 2
    %v8388 = vsel %vm4534, %v8333, %v8349
    %v8390 = vrot.slane %v8388, 3
    %v8393 = vsel %vm4522, %v8334, %v8350
    %v8394 = vsel %vm4526, %v8334, %v8350
    %v8396 = vrot.slane %v8394, 1
    %v8397 = vsel %vm4530, %v8334, %v8350
    %v8399 = vrot.slane %v8397, 2
    %v8400 = vsel %vm4534, %v8334, %v8350
    %v8402 = vrot.slane %v8400, 3
    %v8405 = vsel %vm4522, %v8335, %v8351
    %v8406 = vsel %vm4526, %v8335, %v8351
    %v8408 = vrot.slane %v8406, 1
    %v8409 = vsel %vm4530, %v8335, %v8351
    %v8411 = vrot.slane %v8409, 2
    %v8412 = vsel %vm4534, %v8335, %v8351
    %v8414 = vrot.slane %v8412, 3
    %v8417 = vsel %vm4522, %v8336, %v8352
    %v8418 = vsel %vm4526, %v8336, %v8352
    %v8420 = vrot.slane %v8418, 1
    %v8421 = vsel %vm4530, %v8336, %v8352
    %v8423 = vrot.slane %v8421, 2
    %v8424 = vsel %vm4534, %v8336, %v8352
    %v8426 = vrot.slane %v8424, 3
    %v8429 = vsel %vm4522, %v8337, %v8353
    %v8430 = vsel %vm4526, %v8337, %v8353
    %v8432 = vrot.slane %v8430, 1
    %v8433 = vsel %vm4530, %v8337, %v8353
    %v8435 = vrot.slane %v8433, 2
    %v8436 = vsel %vm4534, %v8337, %v8353
    %v8438 = vrot.slane %v8436, 3
    %v8441 = vsel %vm4522, %v8338, %v8354
    %v8442 = vsel %vm4526, %v8338, %v8354
    %v8444 = vrot.slane %v8442, 1
    %v8445 = vsel %vm4530, %v8338, %v8354
    %v8447 = vrot.slane %v8445, 2
    %v8448 = vsel %vm4534, %v8338, %v8354
    %v8450 = vrot.slane %v8448, 3
    %v8483 = vunpack.c.l.bf16 %v8357
    %v8484 = vunpack.c.l.bf16 %v8360
    %v8485 = vunpack.c.l.bf16 %v8363
    %v8486 = vunpack.c.l.bf16 %v8366
    %v8487 = vunpack.c.l.bf16 %v8369
    %v8488 = vunpack.c.l.bf16 %v8372
    %v8489 = vunpack.c.l.bf16 %v8375
    %v8490 = vunpack.c.l.bf16 %v8378
    %v8491 = vunpack.c.l.bf16 %v8381
    %v8492 = vunpack.c.l.bf16 %v8384
    %v8493 = vunpack.c.l.bf16 %v8387
    %v8494 = vunpack.c.l.bf16 %v8390
    %v8495 = vunpack.c.l.bf16 %v8393
    %v8496 = vunpack.c.l.bf16 %v8396
    %v8497 = vunpack.c.l.bf16 %v8399
    %v8498 = vunpack.c.l.bf16 %v8402
    %v8499 = vunpack.c.l.bf16 %v8405
    %v8500 = vunpack.c.l.bf16 %v8408
    %v8501 = vunpack.c.l.bf16 %v8411
    %v8502 = vunpack.c.l.bf16 %v8414
    %v8503 = vunpack.c.l.bf16 %v8417
    %v8504 = vunpack.c.l.bf16 %v8420
    %v8505 = vunpack.c.l.bf16 %v8423
    %v8506 = vunpack.c.l.bf16 %v8426
    %v8507 = vunpack.c.l.bf16 %v8429
    %v8508 = vunpack.c.l.bf16 %v8432
    %v8509 = vunpack.c.l.bf16 %v8435
    %v8510 = vunpack.c.l.bf16 %v8438
    %v8511 = vunpack.c.l.bf16 %v8441
    %v8512 = vunpack.c.l.bf16 %v8444
    %v8513 = vunpack.c.l.bf16 %v8447
    %v8514 = vunpack.c.l.bf16 %v8450
    %vm8515 = vcmask 517120
    %v8516 = vsel %vm8515, %v8483, -inf
    %v8517 = vrot.slane %v8516, 4
    %v8518 = vmax.f32 %v8516, %v8517
    %v8519 = vrot.slane %v8518, 2
    %v8520 = vmax.f32 %v8518, %v8519
    %v8521 = vrot.slane %v8520, 1
    %v8522 = vmax.f32 %v8520, %v8521
    %v8523 = vsel %vm8515, %v8484, -inf
    %v8524 = vrot.slane %v8523, 4
    %v8525 = vmax.f32 %v8523, %v8524
    %v8526 = vrot.slane %v8525, 2
    %v8527 = vmax.f32 %v8525, %v8526
    %v8528 = vrot.slane %v8527, 1
    %v8529 = vmax.f32 %v8527, %v8528
    %v8530 = vsel %vm8515, %v8485, -inf
    %v8531 = vrot.slane %v8530, 4
    %v8532 = vmax.f32 %v8530, %v8531
    %v8533 = vrot.slane %v8532, 2
    %v8534 = vmax.f32 %v8532, %v8533
    %v8535 = vrot.slane %v8534, 1
    %v8536 = vmax.f32 %v8534, %v8535
    %v8537 = vsel %vm8515, %v8486, -inf
    %v8538 = vrot.slane %v8537, 4
    %v8539 = vmax.f32 %v8537, %v8538
    %v8540 = vrot.slane %v8539, 2
    %v8541 = vmax.f32 %v8539, %v8540
    %v8542 = vrot.slane %v8541, 1
    %v8543 = vmax.f32 %v8541, %v8542
    %v8544 = vsel %vm8515, %v8487, -inf
    %v8545 = vrot.slane %v8544, 4
    %v8546 = vmax.f32 %v8544, %v8545
    %v8547 = vrot.slane %v8546, 2
    %v8548 = vmax.f32 %v8546, %v8547
    %v8549 = vrot.slane %v8548, 1
    %v8550 = vmax.f32 %v8548, %v8549
    %v8551 = vsel %vm8515, %v8488, -inf
    %v8552 = vrot.slane %v8551, 4
    %v8553 = vmax.f32 %v8551, %v8552
    %v8554 = vrot.slane %v8553, 2
    %v8555 = vmax.f32 %v8553, %v8554
    %v8556 = vrot.slane %v8555, 1
    %v8557 = vmax.f32 %v8555, %v8556
    %v8558 = vsel %vm8515, %v8489, -inf
    %v8559 = vrot.slane %v8558, 4
    %v8560 = vmax.f32 %v8558, %v8559
    %v8561 = vrot.slane %v8560, 2
    %v8562 = vmax.f32 %v8560, %v8561
    %v8563 = vrot.slane %v8562, 1
    %v8564 = vmax.f32 %v8562, %v8563
    %v8565 = vsel %vm8515, %v8490, -inf
    %v8566 = vrot.slane %v8565, 4
    %v8567 = vmax.f32 %v8565, %v8566
    %v8568 = vrot.slane %v8567, 2
    %v8569 = vmax.f32 %v8567, %v8568
    %v8570 = vrot.slane %v8569, 1
    %v8571 = vmax.f32 %v8569, %v8570
    %v8572 = vsel %vm8515, %v8491, -inf
    %v8573 = vrot.slane %v8572, 4
    %v8574 = vmax.f32 %v8572, %v8573
    %v8575 = vrot.slane %v8574, 2
    %v8576 = vmax.f32 %v8574, %v8575
    %v8577 = vrot.slane %v8576, 1
    %v8578 = vmax.f32 %v8576, %v8577
    %v8579 = vsel %vm8515, %v8492, -inf
    %v8580 = vrot.slane %v8579, 4
    %v8581 = vmax.f32 %v8579, %v8580
    %v8582 = vrot.slane %v8581, 2
    %v8583 = vmax.f32 %v8581, %v8582
    %v8584 = vrot.slane %v8583, 1
    %v8585 = vmax.f32 %v8583, %v8584
    %v8586 = vsel %vm8515, %v8493, -inf
    %v8587 = vrot.slane %v8586, 4
    %v8588 = vmax.f32 %v8586, %v8587
    %v8589 = vrot.slane %v8588, 2
    %v8590 = vmax.f32 %v8588, %v8589
    %v8591 = vrot.slane %v8590, 1
    %v8592 = vmax.f32 %v8590, %v8591
    %v8593 = vsel %vm8515, %v8494, -inf
    %v8594 = vrot.slane %v8593, 4
    %v8595 = vmax.f32 %v8593, %v8594
    %v8596 = vrot.slane %v8595, 2
    %v8597 = vmax.f32 %v8595, %v8596
    %v8598 = vrot.slane %v8597, 1
    %v8599 = vmax.f32 %v8597, %v8598
    %v8600 = vsel %vm8515, %v8495, -inf
    %v8601 = vrot.slane %v8600, 4
    %v8602 = vmax.f32 %v8600, %v8601
    %v8603 = vrot.slane %v8602, 2
    %v8604 = vmax.f32 %v8602, %v8603
    %v8605 = vrot.slane %v8604, 1
    %v8606 = vmax.f32 %v8604, %v8605
    %v8607 = vsel %vm8515, %v8496, -inf
    %v8608 = vrot.slane %v8607, 4
    %v8609 = vmax.f32 %v8607, %v8608
    %v8610 = vrot.slane %v8609, 2
    %v8611 = vmax.f32 %v8609, %v8610
    %v8612 = vrot.slane %v8611, 1
    %v8613 = vmax.f32 %v8611, %v8612
    %v8614 = vsel %vm8515, %v8497, -inf
    %v8615 = vrot.slane %v8614, 4
    %v8616 = vmax.f32 %v8614, %v8615
    %v8617 = vrot.slane %v8616, 2
    %v8618 = vmax.f32 %v8616, %v8617
    %v8619 = vrot.slane %v8618, 1
    %v8620 = vmax.f32 %v8618, %v8619
    %v8621 = vsel %vm8515, %v8498, -inf
    %v8622 = vrot.slane %v8621, 4
    %v8623 = vmax.f32 %v8621, %v8622
    %v8624 = vrot.slane %v8623, 2
    %v8625 = vmax.f32 %v8623, %v8624
    %v8626 = vrot.slane %v8625, 1
    %v8627 = vmax.f32 %v8625, %v8626
    %v8628 = vsel %vm8515, %v8499, -inf
    %v8629 = vrot.slane %v8628, 4
    %v8630 = vmax.f32 %v8628, %v8629
    %v8631 = vrot.slane %v8630, 2
    %v8632 = vmax.f32 %v8630, %v8631
    %v8633 = vrot.slane %v8632, 1
    %v8634 = vmax.f32 %v8632, %v8633
    %v8635 = vsel %vm8515, %v8500, -inf
    %v8636 = vrot.slane %v8635, 4
    %v8637 = vmax.f32 %v8635, %v8636
    %v8638 = vrot.slane %v8637, 2
    %v8639 = vmax.f32 %v8637, %v8638
    %v8640 = vrot.slane %v8639, 1
    %v8641 = vmax.f32 %v8639, %v8640
    %v8642 = vsel %vm8515, %v8501, -inf
    %v8643 = vrot.slane %v8642, 4
    %v8644 = vmax.f32 %v8642, %v8643
    %v8645 = vrot.slane %v8644, 2
    %v8646 = vmax.f32 %v8644, %v8645
    %v8647 = vrot.slane %v8646, 1
    %v8648 = vmax.f32 %v8646, %v8647
    %v8649 = vsel %vm8515, %v8502, -inf
    %v8650 = vrot.slane %v8649, 4
    %v8651 = vmax.f32 %v8649, %v8650
    %v8652 = vrot.slane %v8651, 2
    %v8653 = vmax.f32 %v8651, %v8652
    %v8654 = vrot.slane %v8653, 1
    %v8655 = vmax.f32 %v8653, %v8654
    %v8656 = vsel %vm8515, %v8503, -inf
    %v8657 = vrot.slane %v8656, 4
    %v8658 = vmax.f32 %v8656, %v8657
    %v8659 = vrot.slane %v8658, 2
    %v8660 = vmax.f32 %v8658, %v8659
    %v8661 = vrot.slane %v8660, 1
    %v8662 = vmax.f32 %v8660, %v8661
    %v8663 = vsel %vm8515, %v8504, -inf
    %v8664 = vrot.slane %v8663, 4
    %v8665 = vmax.f32 %v8663, %v8664
    %v8666 = vrot.slane %v8665, 2
    %v8667 = vmax.f32 %v8665, %v8666
    %v8668 = vrot.slane %v8667, 1
    %v8669 = vmax.f32 %v8667, %v8668
    %v8670 = vsel %vm8515, %v8505, -inf
    %v8671 = vrot.slane %v8670, 4
    %v8672 = vmax.f32 %v8670, %v8671
    %v8673 = vrot.slane %v8672, 2
    %v8674 = vmax.f32 %v8672, %v8673
    %v8675 = vrot.slane %v8674, 1
    %v8676 = vmax.f32 %v8674, %v8675
    %v8677 = vsel %vm8515, %v8506, -inf
    %v8678 = vrot.slane %v8677, 4
    %v8679 = vmax.f32 %v8677, %v8678
    %v8680 = vrot.slane %v8679, 2
    %v8681 = vmax.f32 %v8679, %v8680
    %v8682 = vrot.slane %v8681, 1
    %v8683 = vmax.f32 %v8681, %v8682
    %v8684 = vsel %vm8515, %v8507, -inf
    %v8685 = vrot.slane %v8684, 4
    %v8686 = vmax.f32 %v8684, %v8685
    %v8687 = vrot.slane %v8686, 2
    %v8688 = vmax.f32 %v8686, %v8687
    %v8689 = vrot.slane %v8688, 1
    %v8690 = vmax.f32 %v8688, %v8689
    %v8691 = vsel %vm8515, %v8508, -inf
    %v8692 = vrot.slane %v8691, 4
    %v8693 = vmax.f32 %v8691, %v8692
    %v8694 = vrot.slane %v8693, 2
    %v8695 = vmax.f32 %v8693, %v8694
    %v8696 = vrot.slane %v8695, 1
    %v8697 = vmax.f32 %v8695, %v8696
    %v8698 = vsel %vm8515, %v8509, -inf
    %v8699 = vrot.slane %v8698, 4
    %v8700 = vmax.f32 %v8698, %v8699
    %v8701 = vrot.slane %v8700, 2
    %v8702 = vmax.f32 %v8700, %v8701
    %v8703 = vrot.slane %v8702, 1
    %v8704 = vmax.f32 %v8702, %v8703
    %v8705 = vsel %vm8515, %v8510, -inf
    %v8706 = vrot.slane %v8705, 4
    %v8707 = vmax.f32 %v8705, %v8706
    %v8708 = vrot.slane %v8707, 2
    %v8709 = vmax.f32 %v8707, %v8708
    %v8710 = vrot.slane %v8709, 1
    %v8711 = vmax.f32 %v8709, %v8710
    %v8712 = vsel %vm8515, %v8511, -inf
    %v8713 = vrot.slane %v8712, 4
    %v8714 = vmax.f32 %v8712, %v8713
    %v8715 = vrot.slane %v8714, 2
    %v8716 = vmax.f32 %v8714, %v8715
    %v8717 = vrot.slane %v8716, 1
    %v8718 = vmax.f32 %v8716, %v8717
    %v8719 = vsel %vm8515, %v8512, -inf
    %v8720 = vrot.slane %v8719, 4
    %v8721 = vmax.f32 %v8719, %v8720
    %v8722 = vrot.slane %v8721, 2
    %v8723 = vmax.f32 %v8721, %v8722
    %v8724 = vrot.slane %v8723, 1
    %v8725 = vmax.f32 %v8723, %v8724
    %v8726 = vsel %vm8515, %v8513, -inf
    %v8727 = vrot.slane %v8726, 4
    %v8728 = vmax.f32 %v8726, %v8727
    %v8729 = vrot.slane %v8728, 2
    %v8730 = vmax.f32 %v8728, %v8729
    %v8731 = vrot.slane %v8730, 1
    %v8732 = vmax.f32 %v8730, %v8731
    %v8733 = vsel %vm8515, %v8514, -inf
    %v8734 = vrot.slane %v8733, 4
    %v8735 = vmax.f32 %v8733, %v8734
    %v8736 = vrot.slane %v8735, 2
    %v8737 = vmax.f32 %v8735, %v8736
    %v8738 = vrot.slane %v8737, 1
    %v8739 = vmax.f32 %v8737, %v8738
    %v8740 = vpack.c.bf16 %v8522, %v8522
    %v8741 = vpack.c.bf16 %v8529, %v8529
    %v8742 = vpack.c.bf16 %v8536, %v8536
    %v8743 = vpack.c.bf16 %v8543, %v8543
    %v8744 = vpack.c.bf16 %v8550, %v8550
    %v8745 = vpack.c.bf16 %v8557, %v8557
    %v8746 = vpack.c.bf16 %v8564, %v8564
    %v8747 = vpack.c.bf16 %v8571, %v8571
    %v8748 = vpack.c.bf16 %v8578, %v8578
    %v8749 = vpack.c.bf16 %v8585, %v8585
    %v8750 = vpack.c.bf16 %v8592, %v8592
    %v8751 = vpack.c.bf16 %v8599, %v8599
    %v8752 = vpack.c.bf16 %v8606, %v8606
    %v8753 = vpack.c.bf16 %v8613, %v8613
    %v8754 = vpack.c.bf16 %v8620, %v8620
    %v8755 = vpack.c.bf16 %v8627, %v8627
    %v8756 = vpack.c.bf16 %v8634, %v8634
    %v8757 = vpack.c.bf16 %v8641, %v8641
    %v8758 = vpack.c.bf16 %v8648, %v8648
    %v8759 = vpack.c.bf16 %v8655, %v8655
    %v8760 = vpack.c.bf16 %v8662, %v8662
    %v8761 = vpack.c.bf16 %v8669, %v8669
    %v8762 = vpack.c.bf16 %v8676, %v8676
    %v8763 = vpack.c.bf16 %v8683, %v8683
    %v8764 = vpack.c.bf16 %v8690, %v8690
    %v8765 = vpack.c.bf16 %v8697, %v8697
    %v8766 = vpack.c.bf16 %v8704, %v8704
    %v8767 = vpack.c.bf16 %v8711, %v8711
    %v8768 = vpack.c.bf16 %v8718, %v8718
    %v8769 = vpack.c.bf16 %v8725, %v8725
    %v8770 = vpack.c.bf16 %v8732, %v8732
    %v8771 = vpack.c.bf16 %v8739, %v8739
    %vm8772 = vcmask 519168
    %8773 = vst.msk [vmem:[#allocation3] sm:$0xf] %vm8772, 0
    %vm8774 = vcmask 518144
    %vm8775 = vsmask.f32 2304
    %vm8776 = vmand %vm8774, %vm8775
    %v8777 = vld [vmem:[#allocation3 + $0x4] sm:$0x7]
    %v8778 = vsel %vm8776, 0, %v8777
    %8779 = vst [vmem:[#allocation3 + $0x4] sm:$0x7] %v8778
    %8780 = vst.msk [vmem:[#allocation3 + $0x8] sm:$0xf] %vm8772, 0
    %v8781 = vld [vmem:[#allocation3 + $0xc] sm:$0x7]
    %v8782 = vsel %vm8776, 0, %v8781
    %8783 = vst [vmem:[#allocation3 + $0xc] sm:$0x7] %v8782
    %8784 = vst.msk [vmem:[#allocation3 + $0x10] sm:$0xf] %vm8772, 0
    %v8785 = vld [vmem:[#allocation3 + $0x14] sm:$0x7]
    %v8786 = vsel %vm8776, 0, %v8785
    %8787 = vst [vmem:[#allocation3 + $0x14] sm:$0x7] %v8786
    %8788 = vst.msk [vmem:[#allocation3 + $0x18] sm:$0xf] %vm8772, 0
    %v8789 = vld [vmem:[#allocation3 + $0x1c] sm:$0x7]
    %v8790 = vsel %vm8776, 0, %v8789
    %8791 = vst [vmem:[#allocation3 + $0x1c] sm:$0x7] %v8790
    %8792 = vst.msk [vmem:[#allocation3 + $0x20] sm:$0xf] %vm8772, 0
    %v8793 = vld [vmem:[#allocation3 + $0x24] sm:$0x7]
    %v8794 = vsel %vm8776, 0, %v8793
    %8795 = vst [vmem:[#allocation3 + $0x24] sm:$0x7] %v8794
    %8796 = vst.msk [vmem:[#allocation3 + $0x28] sm:$0xf] %vm8772, 0
    %v8797 = vld [vmem:[#allocation3 + $0x2c] sm:$0x7]
    %v8798 = vsel %vm8776, 0, %v8797
    %8799 = vst [vmem:[#allocation3 + $0x2c] sm:$0x7] %v8798
    %8800 = vst.msk [vmem:[#allocation3 + $0x30] sm:$0xf] %vm8772, 0
    %v8801 = vld [vmem:[#allocation3 + $0x34] sm:$0x7]
    %v8802 = vsel %vm8776, 0, %v8801
    %8803 = vst [vmem:[#allocation3 + $0x34] sm:$0x7] %v8802
    %8804 = vst.msk [vmem:[#allocation3 + $0x38] sm:$0xf] %vm8772, 0
    %v8805 = vld [vmem:[#allocation3 + $0x3c] sm:$0x7]
    %v8806 = vsel %vm8776, 0, %v8805
    %8807 = vst [vmem:[#allocation3 + $0x3c] sm:$0x7] %v8806
    %8808 = vst.msk [vmem:[#allocation3 + $0x40] sm:$0xf] %vm8772, 0
    %v8809 = vld [vmem:[#allocation3 + $0x44] sm:$0x7]
    %v8810 = vsel %vm8776, 0, %v8809
    %8811 = vst [vmem:[#allocation3 + $0x44] sm:$0x7] %v8810
    %8812 = vst.msk [vmem:[#allocation3 + $0x48] sm:$0xf] %vm8772, 0
    %v8813 = vld [vmem:[#allocation3 + $0x4c] sm:$0x7]
    %v8814 = vsel %vm8776, 0, %v8813
    %8815 = vst [vmem:[#allocation3 + $0x4c] sm:$0x7] %v8814
    %8816 = vst.msk [vmem:[#allocation3 + $0x50] sm:$0xf] %vm8772, 0
    %v8817 = vld [vmem:[#allocation3 + $0x54] sm:$0x7]
    %v8818 = vsel %vm8776, 0, %v8817
    %8819 = vst [vmem:[#allocation3 + $0x54] sm:$0x7] %v8818
    %8820 = vst.msk [vmem:[#allocation3 + $0x58] sm:$0xf] %vm8772, 0
    %v8821 = vld [vmem:[#allocation3 + $0x5c] sm:$0x7]
    %v8822 = vsel %vm8776, 0, %v8821
    %8823 = vst [vmem:[#allocation3 + $0x5c] sm:$0x7] %v8822
    %v8856 = vunpack.c.l.b16 %v8740
    %v8857 = vunpack.c.l.b16 %v8741
    %v8858 = vunpack.c.l.b16 %v8742
    %v8859 = vunpack.c.l.b16 %v8743
    %v8860 = vunpack.c.l.b16 %v8744
    %v8861 = vunpack.c.l.b16 %v8745
    %v8862 = vunpack.c.l.b16 %v8746
    %v8863 = vunpack.c.l.b16 %v8747
    %v8864 = vunpack.c.l.b16 %v8748
    %v8865 = vunpack.c.l.b16 %v8749
    %v8866 = vunpack.c.l.b16 %v8750
    %v8867 = vunpack.c.l.b16 %v8751
    %v8868 = vunpack.c.l.b16 %v8752
    %v8869 = vunpack.c.l.b16 %v8753
    %v8870 = vunpack.c.l.b16 %v8754
    %v8871 = vunpack.c.l.b16 %v8755
    %v8872 = vunpack.c.l.b16 %v8756
    %v8873 = vunpack.c.l.b16 %v8757
    %v8874 = vunpack.c.l.b16 %v8758
    %v8875 = vunpack.c.l.b16 %v8759
    %v8876 = vunpack.c.l.b16 %v8760
    %v8877 = vunpack.c.l.b16 %v8761
    %v8878 = vunpack.c.l.b16 %v8762
    %v8879 = vunpack.c.l.b16 %v8763
    %v8880 = vunpack.c.l.b16 %v8764
    %v8881 = vunpack.c.l.b16 %v8765
    %v8882 = vunpack.c.l.b16 %v8766
    %v8883 = vunpack.c.l.b16 %v8767
    %v8884 = vunpack.c.l.b16 %v8768
    %v8885 = vunpack.c.l.b16 %v8769
    %v8886 = vunpack.c.l.b16 %v8770
    %v8887 = vunpack.c.l.b16 %v8771
    %v8888 = vsel %vm4526, %v8857, %v8856
    %v8889 = vsel %vm4530, %v8858, %v8888
    %v8890 = vsel %vm4534, %v8859, %v8889
    %v8891 = vsel %vm4526, %v8861, %v8860
    %v8892 = vsel %vm4530, %v8862, %v8891
    %v8893 = vsel %vm4534, %v8863, %v8892
    %v8894 = vsel %vm4526, %v8865, %v8864
    %v8895 = vsel %vm4530, %v8866, %v8894
    %v8896 = vsel %vm4534, %v8867, %v8895
    %v8897 = vsel %vm4526, %v8869, %v8868
    %v8898 = vsel %vm4530, %v8870, %v8897
    %v8899 = vsel %vm4534, %v8871, %v8898
    %v8900 = vsel %vm4526, %v8873, %v8872
    %v8901 = vsel %vm4530, %v8874, %v8900
    %v8902 = vsel %vm4534, %v8875, %v8901
    %v8903 = vsel %vm4526, %v8877, %v8876
    %v8904 = vsel %vm4530, %v8878, %v8903
    %v8905 = vsel %vm4534, %v8879, %v8904
    %v8906 = vsel %vm4526, %v8881, %v8880
    %v8907 = vsel %vm4530, %v8882, %v8906
    %v8908 = vsel %vm4534, %v8883, %v8907
    %v8909 = vsel %vm4526, %v8885, %v8884
    %v8910 = vsel %vm4530, %v8886, %v8909
    %v8911 = vsel %vm4534, %v8887, %v8910
    %v8912 = vpack.c.b16 %v8890, %v8890
    %v8913 = vpack.c.b16 %v8893, %v8893
    %v8914 = vpack.c.b16 %v8896, %v8896
    %v8915 = vpack.c.b16 %v8899, %v8899
    %v8916 = vpack.c.b16 %v8902, %v8902
    %v8917 = vpack.c.b16 %v8905, %v8905
    %v8918 = vpack.c.b16 %v8908, %v8908
    %v8919 = vpack.c.b16 %v8911, %v8911
    %s8928 = scalar_lea.vmem [#allocation3], 8
    %8929 = vst.msk [vmem:[%s8928 + $0x4] sm:$0x3] %vm8515, %v8912
    %8930 = vst.msk [vmem:[%s8928 + $0xc] sm:$0x3] %vm8515, %v8913
    %8931 = vst.msk [vmem:[%s8928 + $0x14] sm:$0x3] %vm8515, %v8914
    %8932 = vst.msk [vmem:[%s8928 + $0x1c] sm:$0x3] %vm8515, %v8915
    %8933 = vst.msk [vmem:[%s8928 + $0x34] sm:$0x3] %vm8515, %v8916
    %8934 = vst.msk [vmem:[%s8928 + $0x3c] sm:$0x3] %vm8515, %v8917
    %8935 = vst.msk [vmem:[%s8928 + $0x44] sm:$0x3] %vm8515, %v8918
    %8936 = vst.msk [vmem:[%s8928 + $0x4c] sm:$0x3] %vm8515, %v8919
    %v8937 = vld [vmem:[#allocation3] sm:$0xf]
    %v8938 = vld [vmem:[#allocation3 + $0x4] sm:$0x7]
    %v8939 = vld [vmem:[#allocation3 + $0x8] sm:$0xf]
    %v8940 = vld [vmem:[#allocation3 + $0xc] sm:$0x7]
    %v8941 = vld [vmem:[#allocation3 + $0x10] sm:$0xf]
    %v8942 = vld [vmem:[#allocation3 + $0x14] sm:$0x7]
    %v8943 = vld [vmem:[#allocation3 + $0x18] sm:$0xf]
    %v8944 = vld [vmem:[#allocation3 + $0x1c] sm:$0x7]
    %v8945 = vld [vmem:[#allocation3 + $0x20] sm:$0xf]
    %v8946 = vld [vmem:[#allocation3 + $0x24] sm:$0x7]
    %v8947 = vld [vmem:[#allocation3 + $0x28] sm:$0xf]
    %v8948 = vld [vmem:[#allocation3 + $0x2c] sm:$0x7]
    %v8949 = vld [vmem:[#allocation3 + $0x30] sm:$0xf]
    %v8950 = vld [vmem:[#allocation3 + $0x34] sm:$0x7]
    %v8951 = vld [vmem:[#allocation3 + $0x38] sm:$0xf]
    %v8952 = vld [vmem:[#allocation3 + $0x3c] sm:$0x7]
    %v8953 = vld [vmem:[#allocation3 + $0x40] sm:$0xf]
    %v8954 = vld [vmem:[#allocation3 + $0x44] sm:$0x7]
    %v8955 = vld [vmem:[#allocation3 + $0x48] sm:$0xf]
    %v8956 = vld [vmem:[#allocation3 + $0x4c] sm:$0x7]
    %v8957 = vld [vmem:[#allocation3 + $0x50] sm:$0xf]
    %v8958 = vld [vmem:[#allocation3 + $0x54] sm:$0x7]
    %v8959 = vld [vmem:[#allocation3 + $0x58] sm:$0xf]
    %v8960 = vld [vmem:[#allocation3 + $0x5c] sm:$0x7]
    %8962 = vst.sshfl [vmem:[#allocation1] sm:$0xff pattern:$0x75643120] %v8937
    %8964 = vst.sshfl [vmem:[#allocation1 + $0x10] sm:$0xff pattern:$0x75643120] %v8938
    %s8965 = scalar_lea.vmem [#allocation1], 1
    %v8966 = vld [vmem:[%s8965] ss:$2 sm:$0xff]
    %s8967 = scalar_lea.vmem [#allocation1], 16
    %v8968 = vld [vmem:[%s8967] ss:$2 sm:$0xff]
    %8970 = vst.sshfl [vmem:[#allocation1 + $0x20] sm:$0xff pattern:$0x75643120] %v8939
    %8972 = vst.sshfl [vmem:[#allocation1 + $0x30] sm:$0xff pattern:$0x75643120] %v8940
    %s8973 = scalar_lea.vmem [#allocation1], 33
    %v8974 = vld [vmem:[%s8973] ss:$2 sm:$0xff]
    %s8975 = scalar_lea.vmem [#allocation1], 48
    %v8976 = vld [vmem:[%s8975] ss:$2 sm:$0xff]
    %8978 = vst.sshfl [vmem:[#allocation1] sm:$0xff pattern:$0x75643120] %v8941
    %8980 = vst.sshfl [vmem:[#allocation1 + $0x10] sm:$0xff pattern:$0x75643120] %v8942
    %v8981 = vld [vmem:[%s8965] ss:$2 sm:$0xff]
    %v8982 = vld [vmem:[%s8967] ss:$2 sm:$0xff]
    %8984 = vst.sshfl [vmem:[#allocation1 + $0x20] sm:$0xff pattern:$0x75643120] %v8943
    %8986 = vst.sshfl [vmem:[#allocation1 + $0x30] sm:$0xff pattern:$0x75643120] %v8944
    %v8987 = vld [vmem:[%s8973] ss:$2 sm:$0xff]
    %v8988 = vld [vmem:[%s8975] ss:$2 sm:$0xff]
    %8990 = vst.sshfl [vmem:[#allocation1] sm:$0xff pattern:$0x75643120] %v8949
    %8992 = vst.sshfl [vmem:[#allocation1 + $0x10] sm:$0xff pattern:$0x75643120] %v8950
    %v8993 = vld [vmem:[%s8965] ss:$2 sm:$0xff]
    %v8994 = vld [vmem:[%s8967] ss:$2 sm:$0xff]
    %8996 = vst.sshfl [vmem:[#allocation1 + $0x20] sm:$0xff pattern:$0x75643120] %v8951
    %8998 = vst.sshfl [vmem:[#allocation1 + $0x30] sm:$0xff pattern:$0x75643120] %v8952
    %v8999 = vld [vmem:[%s8973] ss:$2 sm:$0xff]
    %v9000 = vld [vmem:[%s8975] ss:$2 sm:$0xff]
    %9002 = vst.sshfl [vmem:[#allocation1] sm:$0xff pattern:$0x75643120] %v8953
    %9004 = vst.sshfl [vmem:[#allocation1 + $0x10] sm:$0xff pattern:$0x75643120] %v8954
    %v9005 = vld [vmem:[%s8965] ss:$2 sm:$0xff]
    %v9006 = vld [vmem:[%s8967] ss:$2 sm:$0xff]
    %9008 = vst.sshfl [vmem:[#allocation1 + $0x20] sm:$0xff pattern:$0x75643120] %v8955
    %9010 = vst.sshfl [vmem:[#allocation1 + $0x30] sm:$0xff pattern:$0x75643120] %v8956
    %v9011 = vld [vmem:[%s8973] ss:$2 sm:$0xff]
    %v9012 = vld [vmem:[%s8975] ss:$2 sm:$0xff]
    %vm9013 = vsmask.f32 2312
    %vm9014 = vmor %vm6195, %vm9013
    %vm9015 = vmor %vm9014, %vm6776
    %vm9016 = vsmask.f32 6424
    %vm9017 = vmor %vm9015, %vm9016
    %v9018 = vshrl.u32 %v8966, 16
    %v9020 = vrot.slane %v9018, 7
    %v9021 = vrot.slane %v9020, 2
    %v9022 = vshrl.u32 %v8968, 16
    %v9024 = vrot.slane %v9022, 7
    %v9025 = vshll.u32 %v8968, 16
    %v9027 = vor.u32 %v9024, %v9025
    %v9028 = vsel %vm9017, %v9021, %v9027
    %v9029 = vshrl.u32 %v8974, 16
    %v9031 = vrot.slane %v9029, 7
    %v9032 = vrot.slane %v9031, 2
    %v9033 = vshrl.u32 %v8976, 16
    %v9035 = vrot.slane %v9033, 7
    %v9036 = vshll.u32 %v8976, 16
    %v9038 = vor.u32 %v9035, %v9036
    %v9039 = vsel %vm9017, %v9032, %v9038
    %v9040 = vshrl.u32 %v8981, 16
    %v9042 = vrot.slane %v9040, 7
    %v9043 = vrot.slane %v9042, 2
    %v9044 = vshrl.u32 %v8982, 16
    %v9046 = vrot.slane %v9044, 7
    %v9047 = vshll.u32 %v8982, 16
    %v9049 = vor.u32 %v9046, %v9047
    %v9050 = vsel %vm9017, %v9043, %v9049
    %v9051 = vshrl.u32 %v8987, 16
    %v9053 = vrot.slane %v9051, 7
    %v9054 = vrot.slane %v9053, 2
    %v9055 = vshrl.u32 %v8988, 16
    %v9057 = vrot.slane %v9055, 7
    %v9058 = vshll.u32 %v8988, 16
    %v9060 = vor.u32 %v9057, %v9058
    %v9061 = vsel %vm9017, %v9054, %v9060
    %v9062 = vshrl.u32 %v8993, 16
    %v9064 = vrot.slane %v9062, 7
    %v9065 = vrot.slane %v9064, 2
    %v9066 = vshrl.u32 %v8994, 16
    %v9068 = vrot.slane %v9066, 7
    %v9069 = vshll.u32 %v8994, 16
    %v9071 = vor.u32 %v9068, %v9069
    %v9072 = vsel %vm9017, %v9065, %v9071
    %v9073 = vshrl.u32 %v8999, 16
    %v9075 = vrot.slane %v9073, 7
    %v9076 = vrot.slane %v9075, 2
    %v9077 = vshrl.u32 %v9000, 16
    %v9079 = vrot.slane %v9077, 7
    %v9080 = vshll.u32 %v9000, 16
    %v9082 = vor.u32 %v9079, %v9080
    %v9083 = vsel %vm9017, %v9076, %v9082
    %v9084 = vshrl.u32 %v9005, 16
    %v9086 = vrot.slane %v9084, 7
    %v9087 = vrot.slane %v9086, 2
    %v9088 = vshrl.u32 %v9006, 16
    %v9090 = vrot.slane %v9088, 7
    %v9091 = vshll.u32 %v9006, 16
    %v9093 = vor.u32 %v9090, %v9091
    %v9094 = vsel %vm9017, %v9087, %v9093
    %v9095 = vshrl.u32 %v9011, 16
    %v9097 = vrot.slane %v9095, 7
    %v9098 = vrot.slane %v9097, 2
    %v9099 = vshrl.u32 %v9012, 16
    %v9101 = vrot.slane %v9099, 7
    %v9102 = vshll.u32 %v9012, 16
    %v9104 = vor.u32 %v9101, %v9102
    %v9105 = vsel %vm9017, %v9098, %v9104
    %v9106 = vld [vmem:[%s5] sm:$0xf]
    %v9107 = vld [vmem:[%s5 + $0x4] sm:$0xf]
    %v9108 = vld [vmem:[%s5 + $0x8] sm:$0xf]
    %v9109 = vld [vmem:[%s5 + $0xc] sm:$0xf]
    %v9110 = vld [vmem:[%s5 + $0x10] sm:$0xf]
    %v9111 = vld [vmem:[%s5 + $0x14] sm:$0xf]
    %v9112 = vld [vmem:[%s5 + $0x18] sm:$0xf]
    %v9113 = vld [vmem:[%s5 + $0x1c] sm:$0xf]
    %s9114 = scalar_lea.vmem %s5, 32
    %v9115 = vld [vmem:[%s9114] sm:$0xf]
    %v9116 = vld [vmem:[%s9114 + $0x4] sm:$0xf]
    %v9117 = vld [vmem:[%s9114 + $0x8] sm:$0xf]
    %v9118 = vld [vmem:[%s9114 + $0xc] sm:$0xf]
    %v9119 = vld [vmem:[%s9114 + $0x10] sm:$0xf]
    %v9120 = vld [vmem:[%s9114 + $0x14] sm:$0xf]
    %v9121 = vld [vmem:[%s9114 + $0x18] sm:$0xf]
    %v9122 = vld [vmem:[%s9114 + $0x1c] sm:$0xf]
    %9123 = vst [vmem:[#allocation1] ss:$4 sm:$0xff] %v8938
    %s9124 = scalar_lea.vmem [#allocation1], 1
    %9125 = vst [vmem:[%s9124] ss:$4 sm:$0xff] %v8940
    %s9126 = scalar_lea.vmem [#allocation1], 2
    %9127 = vst [vmem:[%s9126] ss:$4 sm:$0xff] %v8942
    %s9128 = scalar_lea.vmem [#allocation1], 3
    %9129 = vst [vmem:[%s9128] ss:$4 sm:$0xff] %v8944
    %s9130 = scalar_lea.vmem [#allocation1], 32
    %9131 = vst [vmem:[%s9130] ss:$4 sm:$0xff] %v8950
    %s9132 = scalar_lea.vmem [#allocation1], 33
    %9133 = vst [vmem:[%s9132] ss:$4 sm:$0xff] %v8952
    %s9134 = scalar_lea.vmem [#allocation1], 34
    %9135 = vst [vmem:[%s9134] ss:$4 sm:$0xff] %v8954
    %s9136 = scalar_lea.vmem [#allocation1], 35
    %9137 = vst [vmem:[%s9136] ss:$4 sm:$0xff] %v8956
    %v9138 = vld.sshfl [vmem:[#allocation1] sm:$0xff pattern:$0x73625140]
    %v9139 = vld.sshfl [vmem:[#allocation1 + $0x20] sm:$0xff pattern:$0x73625140]
    %v9148 = vunpack.c.l.b16 %v9115
    %v9149 = vunpack.c.l.b16 %v9116
    %v9150 = vunpack.c.l.b16 %v9117
    %v9151 = vunpack.c.l.b16 %v9118
    %v9152 = vunpack.c.l.b16 %v9119
    %v9153 = vunpack.c.l.b16 %v9120
    %v9154 = vunpack.c.l.b16 %v9121
    %v9155 = vunpack.c.l.b16 %v9122
    %v9156 = vpack.c.b16 %v9149, %v9148
    %v9157 = vpack.c.b16 %v9151, %v9150
    %v9158 = vpack.c.b16 %v9153, %v9152
    %v9159 = vpack.c.b16 %v9155, %v9154
    %v9164 = vsel %vm8306, %v9138, 0
    %v9166 = vsel %vm8306, %v9139, 0
    %9168 = vmatpush.bf16.msra.mxu0 0
    %9169 = vmatpush.bf16.msra.mxu0 0
    %9170 = vmatpush.bf16.msra.mxu0 0
    %9171 = vmatpush.bf16.msra.mxu0 0
    %9172 = vmatpush.bf16.msra.mxu0 %v9159
    %9173 = vmatpush.bf16.msra.mxu0 %v9158
    %9174 = vmatpush.bf16.msra.mxu0 %v9157
    %9175 = vmatpush.bf16.msra.mxu0 %v9156
    %9176 = vmatmul.bf16.gmra.mxu0 %v9164
    %v9177 = vpop.f32.mrf.mxu0
    %v9178 = vadd.f32 0.0, %v9177
    %v9179 = vpop.f32.mrf.mxu0
    %v9180 = vadd.f32 0.0, %v9179
    %9181 = vmatmul.bf16.gmra.mxu0 %v9166
    %v9182 = vpop.f32.mrf.mxu0
    %v9183 = vadd.f32 0.0, %v9182
    %v9184 = vpop.f32.mrf.mxu0
    %v9185 = vadd.f32 0.0, %v9184
    %9186 = vdwg.mxu0
    %9188 = vst [vmem:[#allocation1] ss:$4 sm:$0xff] %v9028
    %s9190 = scalar_lea.vmem [#allocation1], 1
    %9191 = vst [vmem:[%s9190] ss:$4 sm:$0xff] %v9039
    %s9193 = scalar_lea.vmem [#allocation1], 2
    %9194 = vst [vmem:[%s9193] ss:$4 sm:$0xff] %v9050
    %s9196 = scalar_lea.vmem [#allocation1], 3
    %9197 = vst [vmem:[%s9196] ss:$4 sm:$0xff] %v9061
    %s9199 = scalar_lea.vmem [#allocation1], 32
    %9200 = vst [vmem:[%s9199] ss:$4 sm:$0xff] %v9072
    %s9202 = scalar_lea.vmem [#allocation1], 33
    %9203 = vst [vmem:[%s9202] ss:$4 sm:$0xff] %v9083
    %s9205 = scalar_lea.vmem [#allocation1], 34
    %9206 = vst [vmem:[%s9205] ss:$4 sm:$0xff] %v9094
    %s9208 = scalar_lea.vmem [#allocation1], 35
    %9209 = vst [vmem:[%s9208] ss:$4 sm:$0xff] %v9105
    %v9210 = vld.sshfl [vmem:[#allocation1] sm:$0xff pattern:$0x73625140]
    %v9211 = vld.sshfl [vmem:[#allocation1 + $0x20] sm:$0xff pattern:$0x73625140]
    %v9220 = vunpack.c.l.b16 %v9106
    %v9221 = vunpack.c.l.b16 %v9107
    %v9222 = vunpack.c.l.b16 %v9108
    %v9223 = vunpack.c.l.b16 %v9109
    %v9224 = vunpack.c.l.b16 %v9110
    %v9225 = vunpack.c.l.b16 %v9111
    %v9226 = vunpack.c.l.b16 %v9112
    %v9227 = vunpack.c.l.b16 %v9113
    %v9228 = vpack.c.b16 %v9221, %v9220
    %v9229 = vpack.c.b16 %v9223, %v9222
    %v9230 = vpack.c.b16 %v9225, %v9224
    %v9231 = vpack.c.b16 %v9227, %v9226
    %v9236 = vsel %vm8306, %v9210, 0
    %v9238 = vsel %vm8306, %v9211, 0
    %9240 = vmatpush.bf16.msra.mxu0 0
    %9241 = vmatpush.bf16.msra.mxu0 0
    %9242 = vmatpush.bf16.msra.mxu0 0
    %9243 = vmatpush.bf16.msra.mxu0 0
    %9244 = vmatpush.bf16.msra.mxu0 %v9231
    %9245 = vmatpush.bf16.msra.mxu0 %v9230
    %9246 = vmatpush.bf16.msra.mxu0 %v9229
    %9247 = vmatpush.bf16.msra.mxu0 %v9228
    %9248 = vmatmul.bf16.gmra.mxu0 %v9236
    %v9249 = vpop.f32.mrf.mxu0
    %v9250 = vadd.f32 %v9178, %v9249
    %v9251 = vpop.f32.mrf.mxu0
    %v9252 = vadd.f32 %v9180, %v9251
    %9253 = vmatmul.bf16.gmra.mxu0 %v9238
    %v9254 = vpop.f32.mrf.mxu0
    %v9255 = vadd.f32 %v9183, %v9254
    %v9256 = vpop.f32.mrf.mxu0
    %v9257 = vadd.f32 %v9185, %v9256
    %9258 = vdwg.mxu0
    %v9267 = vrot.slane %v8938, 2
    %v9268 = vrot.slane %v8940, 2
    %v9269 = vrot.slane %v8942, 2
    %v9270 = vrot.slane %v8944, 2
    %v9271 = vrot.slane %v8950, 2
    %v9272 = vrot.slane %v8952, 2
    %v9273 = vrot.slane %v8954, 2
    %v9274 = vrot.slane %v8956, 2
    %vm9275 = vcmask 1041408
    %v9277 = vsel %vm9275, %v8938, %v9267
    %vm9278 = vcmask 1043458
    %v9279 = vsel %vm9278, %v8938, %v9267
    %v9281 = vrot.slane %v9279, 2
    %v9283 = vsel %vm9275, %v8940, %v9268
    %v9284 = vsel %vm9278, %v8940, %v9268
    %v9286 = vrot.slane %v9284, 2
    %v9288 = vsel %vm9275, %v8942, %v9269
    %v9289 = vsel %vm9278, %v8942, %v9269
    %v9291 = vrot.slane %v9289, 2
    %v9293 = vsel %vm9275, %v8944, %v9270
    %v9294 = vsel %vm9278, %v8944, %v9270
    %v9296 = vrot.slane %v9294, 2
    %v9298 = vsel %vm9275, %v8950, %v9271
    %v9299 = vsel %vm9278, %v8950, %v9271
    %v9301 = vrot.slane %v9299, 2
    %v9303 = vsel %vm9275, %v8952, %v9272
    %v9304 = vsel %vm9278, %v8952, %v9272
    %v9306 = vrot.slane %v9304, 2
    %v9308 = vsel %vm9275, %v8954, %v9273
    %v9309 = vsel %vm9278, %v8954, %v9273
    %v9311 = vrot.slane %v9309, 2
    %v9313 = vsel %vm9275, %v8956, %v9274
    %v9314 = vsel %vm9278, %v8956, %v9274
    %v9316 = vrot.slane %v9314, 2
    %vm9317 = vsmask.f32 1280
    %vm9318 = vsmask.f32 3336
    %vm9319 = vmor %vm9317, %vm9318
    %vm9320 = vsmask.f32 5392
    %vm9321 = vmor %vm9319, %vm9320
    %vm9322 = vsmask.f32 7448
    %vm9323 = vmor %vm9321, %vm9322
    %v9324 = vshrl.u32 %v9277, 16
    %v9326 = vrot.slane %v9324, 6
    %v9327 = vshll.u32 %v9277, 16
    %v9329 = vrot.slane %v9327, 7
    %v9330 = vor.u32 %v9326, %v9329
    %v9331 = vrot.slane %v9330, 2
    %v9333 = vshll.u32 %v9281, 16
    %v9335 = vrot.slane %v9333, 7
    %v9336 = vsel %vm9323, %v9331, %v9335
    %v9337 = vshrl.u32 %v9283, 16
    %v9339 = vrot.slane %v9337, 6
    %v9340 = vshll.u32 %v9283, 16
    %v9342 = vrot.slane %v9340, 7
    %v9343 = vor.u32 %v9339, %v9342
    %v9344 = vrot.slane %v9343, 2
    %v9346 = vshll.u32 %v9286, 16
    %v9348 = vrot.slane %v9346, 7
    %v9349 = vsel %vm9323, %v9344, %v9348
    %v9350 = vshrl.u32 %v9288, 16
    %v9352 = vrot.slane %v9350, 6
    %v9353 = vshll.u32 %v9288, 16
    %v9355 = vrot.slane %v9353, 7
    %v9356 = vor.u32 %v9352, %v9355
    %v9357 = vrot.slane %v9356, 2
    %v9359 = vshll.u32 %v9291, 16
    %v9361 = vrot.slane %v9359, 7
    %v9362 = vsel %vm9323, %v9357, %v9361
    %v9363 = vshrl.u32 %v9293, 16
    %v9365 = vrot.slane %v9363, 6
    %v9366 = vshll.u32 %v9293, 16
    %v9368 = vrot.slane %v9366, 7
    %v9369 = vor.u32 %v9365, %v9368
    %v9370 = vrot.slane %v9369, 2
    %v9372 = vshll.u32 %v9296, 16
    %v9374 = vrot.slane %v9372, 7
    %v9375 = vsel %vm9323, %v9370, %v9374
    %v9376 = vshrl.u32 %v9298, 16
    %v9378 = vrot.slane %v9376, 6
    %v9379 = vshll.u32 %v9298, 16
    %v9381 = vrot.slane %v9379, 7
    %v9382 = vor.u32 %v9378, %v9381
    %v9383 = vrot.slane %v9382, 2
    %v9385 = vshll.u32 %v9301, 16
    %v9387 = vrot.slane %v9385, 7
    %v9388 = vsel %vm9323, %v9383, %v9387
    %v9389 = vshrl.u32 %v9303, 16
    %v9391 = vrot.slane %v9389, 6
    %v9392 = vshll.u32 %v9303, 16
    %v9394 = vrot.slane %v9392, 7
    %v9395 = vor.u32 %v9391, %v9394
    %v9396 = vrot.slane %v9395, 2
    %v9398 = vshll.u32 %v9306, 16
    %v9400 = vrot.slane %v9398, 7
    %v9401 = vsel %vm9323, %v9396, %v9400
    %v9402 = vshrl.u32 %v9308, 16
    %v9404 = vrot.slane %v9402, 6
    %v9405 = vshll.u32 %v9308, 16
    %v9407 = vrot.slane %v9405, 7
    %v9408 = vor.u32 %v9404, %v9407
    %v9409 = vrot.slane %v9408, 2
    %v9411 = vshll.u32 %v9311, 16
    %v9413 = vrot.slane %v9411, 7
    %v9414 = vsel %vm9323, %v9409, %v9413
    %v9415 = vshrl.u32 %v9313, 16
    %v9417 = vrot.slane %v9415, 6
    %v9418 = vshll.u32 %v9313, 16
    %v9420 = vrot.slane %v9418, 7
    %v9421 = vor.u32 %v9417, %v9420
    %v9422 = vrot.slane %v9421, 2
    %v9424 = vshll.u32 %v9316, 16
    %v9426 = vrot.slane %v9424, 7
    %v9427 = vsel %vm9323, %v9422, %v9426
    %s9428 = scalar_lea.vmem %s5, 64
    %v9429 = vld [vmem:[%s9428] sm:$0xf]
    %v9430 = vld [vmem:[%s9428 + $0x4] sm:$0xf]
    %v9431 = vld [vmem:[%s9428 + $0x8] sm:$0xf]
    %v9432 = vld [vmem:[%s9428 + $0xc] sm:$0xf]
    %v9433 = vld [vmem:[%s9428 + $0x10] sm:$0xf]
    %v9434 = vld [vmem:[%s9428 + $0x14] sm:$0xf]
    %v9435 = vld [vmem:[%s9428 + $0x18] sm:$0xf]
    %v9436 = vld [vmem:[%s9428 + $0x1c] sm:$0xf]
    %9438 = vst [vmem:[#allocation1] ss:$4 sm:$0xff] %v9336
    %s9440 = scalar_lea.vmem [#allocation1], 1
    %9441 = vst [vmem:[%s9440] ss:$4 sm:$0xff] %v9349
    %s9443 = scalar_lea.vmem [#allocation1], 2
    %9444 = vst [vmem:[%s9443] ss:$4 sm:$0xff] %v9362
    %s9446 = scalar_lea.vmem [#allocation1], 3
    %9447 = vst [vmem:[%s9446] ss:$4 sm:$0xff] %v9375
    %s9449 = scalar_lea.vmem [#allocation1], 32
    %9450 = vst [vmem:[%s9449] ss:$4 sm:$0xff] %v9388
    %s9452 = scalar_lea.vmem [#allocation1], 33
    %9453 = vst [vmem:[%s9452] ss:$4 sm:$0xff] %v9401
    %s9455 = scalar_lea.vmem [#allocation1], 34
    %9456 = vst [vmem:[%s9455] ss:$4 sm:$0xff] %v9414
    %s9458 = scalar_lea.vmem [#allocation1], 35
    %9459 = vst [vmem:[%s9458] ss:$4 sm:$0xff] %v9427
    %v9460 = vld.sshfl [vmem:[#allocation1] sm:$0xff pattern:$0x73625140]
    %v9461 = vld.sshfl [vmem:[#allocation1 + $0x20] sm:$0xff pattern:$0x73625140]
    %v9470 = vunpack.c.l.b16 %v9429
    %v9471 = vunpack.c.l.b16 %v9430
    %v9472 = vunpack.c.l.b16 %v9431
    %v9473 = vunpack.c.l.b16 %v9432
    %v9474 = vunpack.c.l.b16 %v9433
    %v9475 = vunpack.c.l.b16 %v9434
    %v9476 = vunpack.c.l.b16 %v9435
    %v9477 = vunpack.c.l.b16 %v9436
    %v9478 = vpack.c.b16 %v9471, %v9470
    %v9479 = vpack.c.b16 %v9473, %v9472
    %v9480 = vpack.c.b16 %v9475, %v9474
    %v9481 = vpack.c.b16 %v9477, %v9476
    %v9486 = vsel %vm8306, %v9460, 0
    %v9488 = vsel %vm8306, %v9461, 0
    %9490 = vmatpush.bf16.msra.mxu0 0
    %9491 = vmatpush.bf16.msra.mxu0 0
    %9492 = vmatpush.bf16.msra.mxu0 0
    %9493 = vmatpush.bf16.msra.mxu0 0
    %9494 = vmatpush.bf16.msra.mxu0 %v9481
    %9495 = vmatpush.bf16.msra.mxu0 %v9480
    %9496 = vmatpush.bf16.msra.mxu0 %v9479
    %9497 = vmatpush.bf16.msra.mxu0 %v9478
    %9498 = vmatmul.bf16.gmra.mxu0 %v9486
    %v9499 = vpop.f32.mrf.mxu0
    %v9500 = vadd.f32 0.0, %v9499
    %v9501 = vpop.f32.mrf.mxu0
    %v9502 = vadd.f32 0.0, %v9501
    %9503 = vmatmul.bf16.gmra.mxu0 %v9488
    %v9504 = vpop.f32.mrf.mxu0
    %v9505 = vadd.f32 0.0, %v9504
    %v9506 = vpop.f32.mrf.mxu0
    %v9507 = vadd.f32 0.0, %v9506
    %9508 = vdwg.mxu0
    %v9509 = vadd.f32 %v9250, %v9500
    %v9510 = vadd.f32 %v9252, %v9502
    %v9511 = vadd.f32 %v9255, %v9505
    %v9512 = vadd.f32 %v9257, %v9507
    %9513 = vst.sshfl [vmem:[#allocation1] sm:$0xff pattern:$0x75643120] %v8939
    %9514 = vst.sshfl [vmem:[#allocation1 + $0x10] sm:$0xff pattern:$0x75643120] %v8940
    %s9515 = scalar_lea.vmem [#allocation1], 1
    %v9516 = vld [vmem:[%s9515] ss:$2 sm:$0xff]
    %s9517 = scalar_lea.vmem [#allocation1], 16
    %v9518 = vld [vmem:[%s9517] ss:$2 sm:$0xff]
    %9519 = vst.sshfl [vmem:[#allocation1 + $0x20] sm:$0xff pattern:$0x75643120] %v8941
    %9520 = vst.sshfl [vmem:[#allocation1 + $0x30] sm:$0xff pattern:$0x75643120] %v8942
    %s9521 = scalar_lea.vmem [#allocation1], 33
    %v9522 = vld [vmem:[%s9521] ss:$2 sm:$0xff]
    %s9523 = scalar_lea.vmem [#allocation1], 48
    %v9524 = vld [vmem:[%s9523] ss:$2 sm:$0xff]
    %9525 = vst.sshfl [vmem:[#allocation1] sm:$0xff pattern:$0x75643120] %v8943
    %9526 = vst.sshfl [vmem:[#allocation1 + $0x10] sm:$0xff pattern:$0x75643120] %v8944
    %v9527 = vld [vmem:[%s9515] ss:$2 sm:$0xff]
    %v9528 = vld [vmem:[%s9517] ss:$2 sm:$0xff]
    %9530 = vst.sshfl [vmem:[#allocation1 + $0x20] sm:$0xff pattern:$0x75643120] %v8945
    %9532 = vst.sshfl [vmem:[#allocation1 + $0x30] sm:$0xff pattern:$0x75643120] %v8946
    %v9533 = vld [vmem:[%s9521] ss:$2 sm:$0xff]
    %v9534 = vld [vmem:[%s9523] ss:$2 sm:$0xff]
    %9535 = vst.sshfl [vmem:[#allocation1] sm:$0xff pattern:$0x75643120] %v8951
    %9536 = vst.sshfl [vmem:[#allocation1 + $0x10] sm:$0xff pattern:$0x75643120] %v8952
    %v9537 = vld [vmem:[%s9515] ss:$2 sm:$0xff]
    %v9538 = vld [vmem:[%s9517] ss:$2 sm:$0xff]
    %9539 = vst.sshfl [vmem:[#allocation1 + $0x20] sm:$0xff pattern:$0x75643120] %v8953
    %9540 = vst.sshfl [vmem:[#allocation1 + $0x30] sm:$0xff pattern:$0x75643120] %v8954
    %v9541 = vld [vmem:[%s9521] ss:$2 sm:$0xff]
    %v9542 = vld [vmem:[%s9523] ss:$2 sm:$0xff]
    %9543 = vst.sshfl [vmem:[#allocation1] sm:$0xff pattern:$0x75643120] %v8955
    %9544 = vst.sshfl [vmem:[#allocation1 + $0x10] sm:$0xff pattern:$0x75643120] %v8956
    %v9545 = vld [vmem:[%s9515] ss:$2 sm:$0xff]
    %v9546 = vld [vmem:[%s9517] ss:$2 sm:$0xff]
    %9548 = vst.sshfl [vmem:[#allocation1 + $0x20] sm:$0xff pattern:$0x75643120] %v8957
    %9550 = vst.sshfl [vmem:[#allocation1 + $0x30] sm:$0xff pattern:$0x75643120] %v8958
    %v9551 = vld [vmem:[%s9521] ss:$2 sm:$0xff]
    %v9552 = vld [vmem:[%s9523] ss:$2 sm:$0xff]
    %v9553 = vshrl.u32 %v9516, 16
    %v9555 = vrot.slane %v9553, 7
    %v9556 = vrot.slane %v9555, 2
    %v9557 = vshrl.u32 %v9518, 16
    %v9559 = vrot.slane %v9557, 7
    %v9560 = vshll.u32 %v9518, 16
    %v9562 = vor.u32 %v9559, %v9560
    %v9563 = vsel %vm9017, %v9556, %v9562
    %v9564 = vshrl.u32 %v9522, 16
    %v9566 = vrot.slane %v9564, 7
    %v9567 = vrot.slane %v9566, 2
    %v9568 = vshrl.u32 %v9524, 16
    %v9570 = vrot.slane %v9568, 7
    %v9571 = vshll.u32 %v9524, 16
    %v9573 = vor.u32 %v9570, %v9571
    %v9574 = vsel %vm9017, %v9567, %v9573
    %v9575 = vshrl.u32 %v9527, 16
    %v9577 = vrot.slane %v9575, 7
    %v9578 = vrot.slane %v9577, 2
    %v9579 = vshrl.u32 %v9528, 16
    %v9581 = vrot.slane %v9579, 7
    %v9582 = vshll.u32 %v9528, 16
    %v9584 = vor.u32 %v9581, %v9582
    %v9585 = vsel %vm9017, %v9578, %v9584
    %v9586 = vshrl.u32 %v9533, 16
    %v9588 = vrot.slane %v9586, 7
    %v9589 = vrot.slane %v9588, 2
    %v9590 = vshrl.u32 %v9534, 16
    %v9592 = vrot.slane %v9590, 7
    %v9593 = vshll.u32 %v9534, 16
    %v9595 = vor.u32 %v9592, %v9593
    %v9596 = vsel %vm9017, %v9589, %v9595
    %v9597 = vshrl.u32 %v9537, 16
    %v9599 = vrot.slane %v9597, 7
    %v9600 = vrot.slane %v9599, 2
    %v9601 = vshrl.u32 %v9538, 16
    %v9603 = vrot.slane %v9601, 7
    %v9604 = vshll.u32 %v9538, 16
    %v9606 = vor.u32 %v9603, %v9604
    %v9607 = vsel %vm9017, %v9600, %v9606
    %v9608 = vshrl.u32 %v9541, 16
    %v9610 = vrot.slane %v9608, 7
    %v9611 = vrot.slane %v9610, 2
    %v9612 = vshrl.u32 %v9542, 16
    %v9614 = vrot.slane %v9612, 7
    %v9615 = vshll.u32 %v9542, 16
    %v9617 = vor.u32 %v9614, %v9615
    %v9618 = vsel %vm9017, %v9611, %v9617
    %v9619 = vshrl.u32 %v9545, 16
    %v9621 = vrot.slane %v9619, 7
    %v9622 = vrot.slane %v9621, 2
    %v9623 = vshrl.u32 %v9546, 16
    %v9625 = vrot.slane %v9623, 7
    %v9626 = vshll.u32 %v9546, 16
    %v9628 = vor.u32 %v9625, %v9626
    %v9629 = vsel %vm9017, %v9622, %v9628
    %v9630 = vshrl.u32 %v9551, 16
    %v9632 = vrot.slane %v9630, 7
    %v9633 = vrot.slane %v9632, 2
    %v9634 = vshrl.u32 %v9552, 16
    %v9636 = vrot.slane %v9634, 7
    %v9637 = vshll.u32 %v9552, 16
    %v9639 = vor.u32 %v9636, %v9637
    %v9640 = vsel %vm9017, %v9633, %v9639
    %s9641 = scalar_lea.vmem %s5, 96
    %v9642 = vld [vmem:[%s9641] sm:$0xf]
    %v9643 = vld [vmem:[%s9641 + $0x4] sm:$0xf]
    %v9644 = vld [vmem:[%s9641 + $0x8] sm:$0xf]
    %v9645 = vld [vmem:[%s9641 + $0xc] sm:$0xf]
    %v9646 = vld [vmem:[%s9641 + $0x10] sm:$0xf]
    %v9647 = vld [vmem:[%s9641 + $0x14] sm:$0xf]
    %v9648 = vld [vmem:[%s9641 + $0x18] sm:$0xf]
    %v9649 = vld [vmem:[%s9641 + $0x1c] sm:$0xf]
    %9651 = vst [vmem:[#allocation1] ss:$4 sm:$0xff] %v9563
    %s9653 = scalar_lea.vmem [#allocation1], 1
    %9654 = vst [vmem:[%s9653] ss:$4 sm:$0xff] %v9574
    %s9656 = scalar_lea.vmem [#allocation1], 2
    %9657 = vst [vmem:[%s9656] ss:$4 sm:$0xff] %v9585
    %s9659 = scalar_lea.vmem [#allocation1], 3
    %9660 = vst [vmem:[%s9659] ss:$4 sm:$0xff] %v9596
    %s9662 = scalar_lea.vmem [#allocation1], 32
    %9663 = vst [vmem:[%s9662] ss:$4 sm:$0xff] %v9607
    %s9665 = scalar_lea.vmem [#allocation1], 33
    %9666 = vst [vmem:[%s9665] ss:$4 sm:$0xff] %v9618
    %s9668 = scalar_lea.vmem [#allocation1], 34
    %9669 = vst [vmem:[%s9668] ss:$4 sm:$0xff] %v9629
    %s9671 = scalar_lea.vmem [#allocation1], 35
    %9672 = vst [vmem:[%s9671] ss:$4 sm:$0xff] %v9640
    %v9673 = vld.sshfl [vmem:[#allocation1] sm:$0xff pattern:$0x73625140]
    %v9674 = vld.sshfl [vmem:[#allocation1 + $0x20] sm:$0xff pattern:$0x73625140]
    %v9683 = vunpack.c.l.b16 %v9642
    %v9684 = vunpack.c.l.b16 %v9643
    %v9685 = vunpack.c.l.b16 %v9644
    %v9686 = vunpack.c.l.b16 %v9645
    %v9687 = vunpack.c.l.b16 %v9646
    %v9688 = vunpack.c.l.b16 %v9647
    %v9689 = vunpack.c.l.b16 %v9648
    %v9690 = vunpack.c.l.b16 %v9649
    %v9691 = vpack.c.b16 %v9684, %v9683
    %v9692 = vpack.c.b16 %v9686, %v9685
    %v9693 = vpack.c.b16 %v9688, %v9687
    %v9694 = vpack.c.b16 %v9690, %v9689
    %v9699 = vsel %vm8306, %v9673, 0
    %v9701 = vsel %vm8306, %v9674, 0
    %9703 = vmatpush.bf16.msra.mxu0 0
    %9704 = vmatpush.bf16.msra.mxu0 0
    %9705 = vmatpush.bf16.msra.mxu0 0
    %9706 = vmatpush.bf16.msra.mxu0 0
    %9707 = vmatpush.bf16.msra.mxu0 %v9694
    %9708 = vmatpush.bf16.msra.mxu0 %v9693
    %9709 = vmatpush.bf16.msra.mxu0 %v9692
    %9710 = vmatpush.bf16.msra.mxu0 %v9691
    %9711 = vmatmul.bf16.gmra.mxu0 %v9699
    %v9712 = vpop.f32.mrf.mxu0
    %v9713 = vadd.f32 0.0, %v9712
    %v9714 = vpop.f32.mrf.mxu0
    %v9715 = vadd.f32 0.0, %v9714
    %9716 = vmatmul.bf16.gmra.mxu0 %v9701
    %v9717 = vpop.f32.mrf.mxu0
    %v9718 = vadd.f32 0.0, %v9717
    %v9719 = vpop.f32.mrf.mxu0
    %v9720 = vadd.f32 0.0, %v9719
    %9721 = vdwg.mxu0
    %v9722 = vadd.f32 %v9509, %v9713
    %v9723 = vadd.f32 %v9510, %v9715
    %v9724 = vadd.f32 %v9511, %v9718
    %v9725 = vadd.f32 %v9512, %v9720
    %s9726 = scalar_lea.vmem %s5, 128
    %v9727 = vld [vmem:[%s9726] sm:$0xf]
    %v9728 = vld [vmem:[%s9726 + $0x4] sm:$0xf]
    %v9729 = vld [vmem:[%s9726 + $0x8] sm:$0xf]
    %v9730 = vld [vmem:[%s9726 + $0xc] sm:$0xf]
    %v9731 = vld [vmem:[%s9726 + $0x10] sm:$0xf]
    %v9732 = vld [vmem:[%s9726 + $0x14] sm:$0xf]
    %v9733 = vld [vmem:[%s9726 + $0x18] sm:$0xf]
    %v9734 = vld [vmem:[%s9726 + $0x1c] sm:$0xf]
    %9735 = vst [vmem:[#allocation1] ss:$4 sm:$0xff] %v8940
    %s9736 = scalar_lea.vmem [#allocation1], 1
    %9737 = vst [vmem:[%s9736] ss:$4 sm:$0xff] %v8942
    %s9738 = scalar_lea.vmem [#allocation1], 2
    %9739 = vst [vmem:[%s9738] ss:$4 sm:$0xff] %v8944
    %s9740 = scalar_lea.vmem [#allocation1], 3
    %9741 = vst [vmem:[%s9740] ss:$4 sm:$0xff] %v8946
    %s9742 = scalar_lea.vmem [#allocation1], 32
    %9743 = vst [vmem:[%s9742] ss:$4 sm:$0xff] %v8952
    %s9744 = scalar_lea.vmem [#allocation1], 33
    %9745 = vst [vmem:[%s9744] ss:$4 sm:$0xff] %v8954
    %s9746 = scalar_lea.vmem [#allocation1], 34
    %9747 = vst [vmem:[%s9746] ss:$4 sm:$0xff] %v8956
    %s9748 = scalar_lea.vmem [#allocation1], 35
    %9749 = vst [vmem:[%s9748] ss:$4 sm:$0xff] %v8958
    %v9750 = vld.sshfl [vmem:[#allocation1] sm:$0xff pattern:$0x73625140]
    %v9751 = vld.sshfl [vmem:[#allocation1 + $0x20] sm:$0xff pattern:$0x73625140]
    %v9760 = vunpack.c.l.b16 %v9727
    %v9761 = vunpack.c.l.b16 %v9728
    %v9762 = vunpack.c.l.b16 %v9729
    %v9763 = vunpack.c.l.b16 %v9730
    %v9764 = vunpack.c.l.b16 %v9731
    %v9765 = vunpack.c.l.b16 %v9732
    %v9766 = vunpack.c.l.b16 %v9733
    %v9767 = vunpack.c.l.b16 %v9734
    %v9768 = vpack.c.b16 %v9761, %v9760
    %v9769 = vpack.c.b16 %v9763, %v9762
    %v9770 = vpack.c.b16 %v9765, %v9764
    %v9771 = vpack.c.b16 %v9767, %v9766
    %v9776 = vsel %vm8306, %v9750, 0
    %v9778 = vsel %vm8306, %v9751, 0
    %9780 = vmatpush.bf16.msra.mxu0 0
    %9781 = vmatpush.bf16.msra.mxu0 0
    %9782 = vmatpush.bf16.msra.mxu0 0
    %9783 = vmatpush.bf16.msra.mxu0 0
    %9784 = vmatpush.bf16.msra.mxu0 %v9771
    %9785 = vmatpush.bf16.msra.mxu0 %v9770
    %9786 = vmatpush.bf16.msra.mxu0 %v9769
    %9787 = vmatpush.bf16.msra.mxu0 %v9768
    %9788 = vmatmul.bf16.gmra.mxu0 %v9776
    %v9789 = vpop.f32.mrf.mxu0
    %v9790 = vadd.f32 0.0, %v9789
    %v9791 = vpop.f32.mrf.mxu0
    %v9792 = vadd.f32 0.0, %v9791
    %9793 = vmatmul.bf16.gmra.mxu0 %v9778
    %v9794 = vpop.f32.mrf.mxu0
    %v9795 = vadd.f32 0.0, %v9794
    %v9796 = vpop.f32.mrf.mxu0
    %v9797 = vadd.f32 0.0, %v9796
    %9798 = vdwg.mxu0
    %v9799 = vadd.f32 %v9722, %v9790
    %v9800 = vadd.f32 %v9723, %v9792
    %v9801 = vadd.f32 %v9724, %v9795
    %v9802 = vadd.f32 %v9725, %v9797
    %v9805 = vrot.slane %v8946, 2
    %v9806 = vrot.slane %v8958, 2
    %v9808 = vsel %vm9275, %v8946, %v9805
    %v9809 = vsel %vm9278, %v8946, %v9805
    %v9811 = vrot.slane %v9809, 2
    %v9813 = vsel %vm9275, %v8958, %v9806
    %v9814 = vsel %vm9278, %v8958, %v9806
    %v9816 = vrot.slane %v9814, 2
    %v9817 = vshrl.u32 %v9808, 16
    %v9819 = vrot.slane %v9817, 6
    %v9820 = vshll.u32 %v9808, 16
    %v9822 = vrot.slane %v9820, 7
    %v9823 = vor.u32 %v9819, %v9822
    %v9824 = vrot.slane %v9823, 2
    %v9826 = vshll.u32 %v9811, 16
    %v9828 = vrot.slane %v9826, 7
    %v9829 = vsel %vm9323, %v9824, %v9828
    %v9830 = vshrl.u32 %v9813, 16
    %v9832 = vrot.slane %v9830, 6
    %v9833 = vshll.u32 %v9813, 16
    %v9835 = vrot.slane %v9833, 7
    %v9836 = vor.u32 %v9832, %v9835
    %v9837 = vrot.slane %v9836, 2
    %v9839 = vshll.u32 %v9816, 16
    %v9841 = vrot.slane %v9839, 7
    %v9842 = vsel %vm9323, %v9837, %v9841
    %s9843 = scalar_lea.vmem %s5, 160
    %v9844 = vld [vmem:[%s9843] sm:$0xf]
    %v9845 = vld [vmem:[%s9843 + $0x4] sm:$0xf]
    %v9846 = vld [vmem:[%s9843 + $0x8] sm:$0xf]
    %v9847 = vld [vmem:[%s9843 + $0xc] sm:$0xf]
    %v9848 = vld [vmem:[%s9843 + $0x10] sm:$0xf]
    %v9849 = vld [vmem:[%s9843 + $0x14] sm:$0xf]
    %v9850 = vld [vmem:[%s9843 + $0x18] sm:$0xf]
    %v9851 = vld [vmem:[%s9843 + $0x1c] sm:$0xf]
    %9852 = vst [vmem:[#allocation1] ss:$4 sm:$0xff] %v9349
    %s9853 = scalar_lea.vmem [#allocation1], 1
    %9854 = vst [vmem:[%s9853] ss:$4 sm:$0xff] %v9362
    %s9855 = scalar_lea.vmem [#allocation1], 2
    %9856 = vst [vmem:[%s9855] ss:$4 sm:$0xff] %v9375
    %s9858 = scalar_lea.vmem [#allocation1], 3
    %9859 = vst [vmem:[%s9858] ss:$4 sm:$0xff] %v9829
    %s9860 = scalar_lea.vmem [#allocation1], 32
    %9861 = vst [vmem:[%s9860] ss:$4 sm:$0xff] %v9401
    %s9862 = scalar_lea.vmem [#allocation1], 33
    %9863 = vst [vmem:[%s9862] ss:$4 sm:$0xff] %v9414
    %s9864 = scalar_lea.vmem [#allocation1], 34
    %9865 = vst [vmem:[%s9864] ss:$4 sm:$0xff] %v9427
    %s9867 = scalar_lea.vmem [#allocation1], 35
    %9868 = vst [vmem:[%s9867] ss:$4 sm:$0xff] %v9842
    %v9869 = vld.sshfl [vmem:[#allocation1] sm:$0xff pattern:$0x73625140]
    %v9870 = vld.sshfl [vmem:[#allocation1 + $0x20] sm:$0xff pattern:$0x73625140]
    %v9879 = vunpack.c.l.b16 %v9844
    %v9880 = vunpack.c.l.b16 %v9845
    %v9881 = vunpack.c.l.b16 %v9846
    %v9882 = vunpack.c.l.b16 %v9847
    %v9883 = vunpack.c.l.b16 %v9848
    %v9884 = vunpack.c.l.b16 %v9849
    %v9885 = vunpack.c.l.b16 %v9850
    %v9886 = vunpack.c.l.b16 %v9851
    %v9887 = vpack.c.b16 %v9880, %v9879
    %v9888 = vpack.c.b16 %v9882, %v9881
    %v9889 = vpack.c.b16 %v9884, %v9883
    %v9890 = vpack.c.b16 %v9886, %v9885
    %v9895 = vsel %vm8306, %v9869, 0
    %v9897 = vsel %vm8306, %v9870, 0
    %9899 = vmatpush.bf16.msra.mxu0 0
    %9900 = vmatpush.bf16.msra.mxu0 0
    %9901 = vmatpush.bf16.msra.mxu0 0
    %9902 = vmatpush.bf16.msra.mxu0 0
    %9903 = vmatpush.bf16.msra.mxu0 %v9890
    %9904 = vmatpush.bf16.msra.mxu0 %v9889
    %9905 = vmatpush.bf16.msra.mxu0 %v9888
    %9906 = vmatpush.bf16.msra.mxu0 %v9887
    %9907 = vmatmul.bf16.gmra.mxu0 %v9895
    %v9908 = vpop.f32.mrf.mxu0
    %v9909 = vadd.f32 0.0, %v9908
    %v9910 = vpop.f32.mrf.mxu0
    %v9911 = vadd.f32 0.0, %v9910
    %9912 = vmatmul.bf16.gmra.mxu0 %v9897
    %v9913 = vpop.f32.mrf.mxu0
    %v9914 = vadd.f32 0.0, %v9913
    %v9915 = vpop.f32.mrf.mxu0
    %v9916 = vadd.f32 0.0, %v9915
    %9917 = vdwg.mxu0
    %v9918 = vadd.f32 %v9799, %v9909
    %v9919 = vadd.f32 %v9800, %v9911
    %v9920 = vadd.f32 %v9801, %v9914
    %v9921 = vadd.f32 %v9802, %v9916
    %9922 = vst.sshfl [vmem:[#allocation1] sm:$0xff pattern:$0x75643120] %v8941
    %9923 = vst.sshfl [vmem:[#allocation1 + $0x10] sm:$0xff pattern:$0x75643120] %v8942
    %s9924 = scalar_lea.vmem [#allocation1], 1
    %v9925 = vld [vmem:[%s9924] ss:$2 sm:$0xff]
    %s9926 = scalar_lea.vmem [#allocation1], 16
    %v9927 = vld [vmem:[%s9926] ss:$2 sm:$0xff]
    %9928 = vst.sshfl [vmem:[#allocation1 + $0x20] sm:$0xff pattern:$0x75643120] %v8943
    %9929 = vst.sshfl [vmem:[#allocation1 + $0x30] sm:$0xff pattern:$0x75643120] %v8944
    %s9930 = scalar_lea.vmem [#allocation1], 33
    %v9931 = vld [vmem:[%s9930] ss:$2 sm:$0xff]
    %s9932 = scalar_lea.vmem [#allocation1], 48
    %v9933 = vld [vmem:[%s9932] ss:$2 sm:$0xff]
    %9934 = vst.sshfl [vmem:[#allocation1] sm:$0xff pattern:$0x75643120] %v8945
    %9935 = vst.sshfl [vmem:[#allocation1 + $0x10] sm:$0xff pattern:$0x75643120] %v8946
    %v9936 = vld [vmem:[%s9924] ss:$2 sm:$0xff]
    %v9937 = vld [vmem:[%s9926] ss:$2 sm:$0xff]
    %9939 = vst.sshfl [vmem:[#allocation1 + $0x20] sm:$0xff pattern:$0x75643120] %v8947
    %9941 = vst.sshfl [vmem:[#allocation1 + $0x30] sm:$0xff pattern:$0x75643120] %v8948
    %v9942 = vld [vmem:[%s9930] ss:$2 sm:$0xff]
    %v9943 = vld [vmem:[%s9932] ss:$2 sm:$0xff]
    %9944 = vst.sshfl [vmem:[#allocation1] sm:$0xff pattern:$0x75643120] %v8953
    %9945 = vst.sshfl [vmem:[#allocation1 + $0x10] sm:$0xff pattern:$0x75643120] %v8954
    %v9946 = vld [vmem:[%s9924] ss:$2 sm:$0xff]
    %v9947 = vld [vmem:[%s9926] ss:$2 sm:$0xff]
    %9948 = vst.sshfl [vmem:[#allocation1 + $0x20] sm:$0xff pattern:$0x75643120] %v8955
    %9949 = vst.sshfl [vmem:[#allocation1 + $0x30] sm:$0xff pattern:$0x75643120] %v8956
    %v9950 = vld [vmem:[%s9930] ss:$2 sm:$0xff]
    %v9951 = vld [vmem:[%s9932] ss:$2 sm:$0xff]
    %9952 = vst.sshfl [vmem:[#allocation1] sm:$0xff pattern:$0x75643120] %v8957
    %9953 = vst.sshfl [vmem:[#allocation1 + $0x10] sm:$0xff pattern:$0x75643120] %v8958
    %v9954 = vld [vmem:[%s9924] ss:$2 sm:$0xff]
    %v9955 = vld [vmem:[%s9926] ss:$2 sm:$0xff]
    %9957 = vst.sshfl [vmem:[#allocation1 + $0x20] sm:$0xff pattern:$0x75643120] %v8959
    %9959 = vst.sshfl [vmem:[#allocation1 + $0x30] sm:$0xff pattern:$0x75643120] %v8960
    %v9960 = vld [vmem:[%s9930] ss:$2 sm:$0xff]
    %v9961 = vld [vmem:[%s9932] ss:$2 sm:$0xff]
    %v9962 = vshrl.u32 %v9925, 16
    %v9964 = vrot.slane %v9962, 7
    %v9965 = vrot.slane %v9964, 2
    %v9966 = vshrl.u32 %v9927, 16
    %v9968 = vrot.slane %v9966, 7
    %v9969 = vshll.u32 %v9927, 16
    %v9971 = vor.u32 %v9968, %v9969
    %v9972 = vsel %vm9017, %v9965, %v9971
    %v9973 = vshrl.u32 %v9931, 16
    %v9975 = vrot.slane %v9973, 7
    %v9976 = vrot.slane %v9975, 2
    %v9977 = vshrl.u32 %v9933, 16
    %v9979 = vrot.slane %v9977, 7
    %v9980 = vshll.u32 %v9933, 16
    %v9982 = vor.u32 %v9979, %v9980
    %v9983 = vsel %vm9017, %v9976, %v9982
    %v9984 = vshrl.u32 %v9936, 16
    %v9986 = vrot.slane %v9984, 7
    %v9987 = vrot.slane %v9986, 2
    %v9988 = vshrl.u32 %v9937, 16
    %v9990 = vrot.slane %v9988, 7
    %v9991 = vshll.u32 %v9937, 16
    %v9993 = vor.u32 %v9990, %v9991
    %v9994 = vsel %vm9017, %v9987, %v9993
    %v9995 = vshrl.u32 %v9942, 16
    %v9997 = vrot.slane %v9995, 7
    %v9998 = vrot.slane %v9997, 2
    %v9999 = vshrl.u32 %v9943, 16
    %v10001 = vrot.slane %v9999, 7
    %v10002 = vshll.u32 %v9943, 16
    %v10004 = vor.u32 %v10001, %v10002
    %v10005 = vsel %vm9017, %v9998, %v10004
    %v10006 = vshrl.u32 %v9946, 16
    %v10008 = vrot.slane %v10006, 7
    %v10009 = vrot.slane %v10008, 2
    %v10010 = vshrl.u32 %v9947, 16
    %v10012 = vrot.slane %v10010, 7
    %v10013 = vshll.u32 %v9947, 16
    %v10015 = vor.u32 %v10012, %v10013
    %v10016 = vsel %vm9017, %v10009, %v10015
    %v10017 = vshrl.u32 %v9950, 16
    %v10019 = vrot.slane %v10017, 7
    %v10020 = vrot.slane %v10019, 2
    %v10021 = vshrl.u32 %v9951, 16
    %v10023 = vrot.slane %v10021, 7
    %v10024 = vshll.u32 %v9951, 16
    %v10026 = vor.u32 %v10023, %v10024
    %v10027 = vsel %vm9017, %v10020, %v10026
    %v10028 = vshrl.u32 %v9954, 16
    %v10030 = vrot.slane %v10028, 7
    %v10031 = vrot.slane %v10030, 2
    %v10032 = vshrl.u32 %v9955, 16
    %v10034 = vrot.slane %v10032, 7
    %v10035 = vshll.u32 %v9955, 16
    %v10037 = vor.u32 %v10034, %v10035
    %v10038 = vsel %vm9017, %v10031, %v10037
    %v10039 = vshrl.u32 %v9960, 16
    %v10041 = vrot.slane %v10039, 7
    %v10042 = vrot.slane %v10041, 2
    %v10043 = vshrl.u32 %v9961, 16
    %v10045 = vrot.slane %v10043, 7
    %v10046 = vshll.u32 %v9961, 16
    %v10048 = vor.u32 %v10045, %v10046
    %v10049 = vsel %vm9017, %v10042, %v10048
    %s10050 = scalar_lea.vmem %s5, 192
    %v10051 = vld [vmem:[%s10050] sm:$0xf]
    %v10052 = vld [vmem:[%s10050 + $0x4] sm:$0xf]
    %v10053 = vld [vmem:[%s10050 + $0x8] sm:$0xf]
    %v10054 = vld [vmem:[%s10050 + $0xc] sm:$0xf]
    %v10055 = vld [vmem:[%s10050 + $0x10] sm:$0xf]
    %v10056 = vld [vmem:[%s10050 + $0x14] sm:$0xf]
    %v10057 = vld [vmem:[%s10050 + $0x18] sm:$0xf]
    %v10058 = vld [vmem:[%s10050 + $0x1c] sm:$0xf]
    %10060 = vst [vmem:[#allocation1] ss:$4 sm:$0xff] %v9972
    %s10062 = scalar_lea.vmem [#allocation1], 1
    %10063 = vst [vmem:[%s10062] ss:$4 sm:$0xff] %v9983
    %s10065 = scalar_lea.vmem [#allocation1], 2
    %10066 = vst [vmem:[%s10065] ss:$4 sm:$0xff] %v9994
    %s10068 = scalar_lea.vmem [#allocation1], 3
    %10069 = vst [vmem:[%s10068] ss:$4 sm:$0xff] %v10005
    %s10071 = scalar_lea.vmem [#allocation1], 32
    %10072 = vst [vmem:[%s10071] ss:$4 sm:$0xff] %v10016
    %s10074 = scalar_lea.vmem [#allocation1], 33
    %10075 = vst [vmem:[%s10074] ss:$4 sm:$0xff] %v10027
    %s10077 = scalar_lea.vmem [#allocation1], 34
    %10078 = vst [vmem:[%s10077] ss:$4 sm:$0xff] %v10038
    %s10080 = scalar_lea.vmem [#allocation1], 35
    %10081 = vst [vmem:[%s10080] ss:$4 sm:$0xff] %v10049
    %v10082 = vld.sshfl [vmem:[#allocation1] sm:$0xff pattern:$0x73625140]
    %v10083 = vld.sshfl [vmem:[#allocation1 + $0x20] sm:$0xff pattern:$0x73625140]
    %v10092 = vunpack.c.l.b16 %v10051
    %v10093 = vunpack.c.l.b16 %v10052
    %v10094 = vunpack.c.l.b16 %v10053
    %v10095 = vunpack.c.l.b16 %v10054
    %v10096 = vunpack.c.l.b16 %v10055
    %v10097 = vunpack.c.l.b16 %v10056
    %v10098 = vunpack.c.l.b16 %v10057
    %v10099 = vunpack.c.l.b16 %v10058
    %v10100 = vpack.c.b16 %v10093, %v10092
    %v10101 = vpack.c.b16 %v10095, %v10094
    %v10102 = vpack.c.b16 %v10097, %v10096
    %v10103 = vpack.c.b16 %v10099, %v10098
    %v10108 = vsel %vm8306, %v10082, 0
    %v10110 = vsel %vm8306, %v10083, 0
    %10112 = vmatpush.bf16.msra.mxu0 0
    %10113 = vmatpush.bf16.msra.mxu0 0
    %10114 = vmatpush.bf16.msra.mxu0 0
    %10115 = vmatpush.bf16.msra.mxu0 0
    %10116 = vmatpush.bf16.msra.mxu0 %v10103
    %10117 = vmatpush.bf16.msra.mxu0 %v10102
    %10118 = vmatpush.bf16.msra.mxu0 %v10101
    %10119 = vmatpush.bf16.msra.mxu0 %v10100
    %10120 = vmatmul.bf16.gmra.mxu0 %v10108
    %v10121 = vpop.f32.mrf.mxu0
    %v10122 = vadd.f32 0.0, %v10121
    %v10123 = vpop.f32.mrf.mxu0
    %v10124 = vadd.f32 0.0, %v10123
    %10125 = vmatmul.bf16.gmra.mxu0 %v10110
    %v10126 = vpop.f32.mrf.mxu0
    %v10127 = vadd.f32 0.0, %v10126
    %v10128 = vpop.f32.mrf.mxu0
    %v10129 = vadd.f32 0.0, %v10128
    %10130 = vdwg.mxu0
    %v10131 = vadd.f32 %v9918, %v10122
    %v10132 = vadd.f32 %v9919, %v10124
    %v10133 = vadd.f32 %v9920, %v10127
    %v10134 = vadd.f32 %v9921, %v10129
    %s10135 = scalar_lea.vmem %s5, 224
    %v10136 = vld [vmem:[%s10135] sm:$0xf]
    %v10137 = vld [vmem:[%s10135 + $0x4] sm:$0xf]
    %v10138 = vld [vmem:[%s10135 + $0x8] sm:$0xf]
    %v10139 = vld [vmem:[%s10135 + $0xc] sm:$0xf]
    %v10140 = vld [vmem:[%s10135 + $0x10] sm:$0xf]
    %v10141 = vld [vmem:[%s10135 + $0x14] sm:$0xf]
    %v10142 = vld [vmem:[%s10135 + $0x18] sm:$0xf]
    %v10143 = vld [vmem:[%s10135 + $0x1c] sm:$0xf]
    %10144 = vst [vmem:[#allocation1] ss:$4 sm:$0xff] %v8942
    %s10145 = scalar_lea.vmem [#allocation1], 1
    %10146 = vst [vmem:[%s10145] ss:$4 sm:$0xff] %v8944
    %s10147 = scalar_lea.vmem [#allocation1], 2
    %10148 = vst [vmem:[%s10147] ss:$4 sm:$0xff] %v8946
    %s10149 = scalar_lea.vmem [#allocation1], 3
    %10150 = vst [vmem:[%s10149] ss:$4 sm:$0xff] %v8948
    %s10151 = scalar_lea.vmem [#allocation1], 32
    %10152 = vst [vmem:[%s10151] ss:$4 sm:$0xff] %v8954
    %s10153 = scalar_lea.vmem [#allocation1], 33
    %10154 = vst [vmem:[%s10153] ss:$4 sm:$0xff] %v8956
    %s10155 = scalar_lea.vmem [#allocation1], 34
    %10156 = vst [vmem:[%s10155] ss:$4 sm:$0xff] %v8958
    %s10157 = scalar_lea.vmem [#allocation1], 35
    %10158 = vst [vmem:[%s10157] ss:$4 sm:$0xff] %v8960
    %v10159 = vld.sshfl [vmem:[#allocation1] sm:$0xff pattern:$0x73625140]
    %v10160 = vld.sshfl [vmem:[#allocation1 + $0x20] sm:$0xff pattern:$0x73625140]
    %v10169 = vunpack.c.l.b16 %v10136
    %v10170 = vunpack.c.l.b16 %v10137
    %v10171 = vunpack.c.l.b16 %v10138
    %v10172 = vunpack.c.l.b16 %v10139
    %v10173 = vunpack.c.l.b16 %v10140
    %v10174 = vunpack.c.l.b16 %v10141
    %v10175 = vunpack.c.l.b16 %v10142
    %v10176 = vunpack.c.l.b16 %v10143
    %v10177 = vpack.c.b16 %v10170, %v10169
    %v10178 = vpack.c.b16 %v10172, %v10171
    %v10179 = vpack.c.b16 %v10174, %v10173
    %v10180 = vpack.c.b16 %v10176, %v10175
    %v10185 = vsel %vm8306, %v10159, 0
    %v10187 = vsel %vm8306, %v10160, 0
    %10189 = vmatpush.bf16.msra.mxu0 0
    %10190 = vmatpush.bf16.msra.mxu0 0
    %10191 = vmatpush.bf16.msra.mxu0 0
    %10192 = vmatpush.bf16.msra.mxu0 0
    %10193 = vmatpush.bf16.msra.mxu0 %v10180
    %10194 = vmatpush.bf16.msra.mxu0 %v10179
    %10195 = vmatpush.bf16.msra.mxu0 %v10178
    %10196 = vmatpush.bf16.msra.mxu0 %v10177
    %10197 = vmatmul.bf16.gmra.mxu0 %v10185
    %v10198 = vpop.f32.mrf.mxu0
    %v10199 = vadd.f32 0.0, %v10198
    %v10200 = vpop.f32.mrf.mxu0
    %v10201 = vadd.f32 0.0, %v10200
    %10202 = vmatmul.bf16.gmra.mxu0 %v10187
    %v10203 = vpop.f32.mrf.mxu0
    %v10204 = vadd.f32 0.0, %v10203
    %v10205 = vpop.f32.mrf.mxu0
    %v10206 = vadd.f32 0.0, %v10205
    %10207 = vdwg.mxu0
    %v10208 = vadd.f32 %v10131, %v10199
    %v10209 = vadd.f32 %v10132, %v10201
    %v10210 = vadd.f32 %v10133, %v10204
    %v10211 = vadd.f32 %v10134, %v10206
    %v10214 = vrot.slane %v8948, 2
    %v10215 = vrot.slane %v8960, 2
    %v10217 = vsel %vm9275, %v8948, %v10214
    %v10218 = vsel %vm9278, %v8948, %v10214
    %v10220 = vrot.slane %v10218, 2
    %v10222 = vsel %vm9275, %v8960, %v10215
    %v10223 = vsel %vm9278, %v8960, %v10215
    %v10225 = vrot.slane %v10223, 2
    %v10226 = vshrl.u32 %v10217, 16
    %v10228 = vrot.slane %v10226, 6
    %v10229 = vshll.u32 %v10217, 16
    %v10231 = vrot.slane %v10229, 7
    %v10232 = vor.u32 %v10228, %v10231
    %v10233 = vrot.slane %v10232, 2
    %v10235 = vshll.u32 %v10220, 16
    %v10237 = vrot.slane %v10235, 7
    %v10238 = vsel %vm9323, %v10233, %v10237
    %v10239 = vshrl.u32 %v10222, 16
    %v10241 = vrot.slane %v10239, 6
    %v10242 = vshll.u32 %v10222, 16
    %v10244 = vrot.slane %v10242, 7
    %v10245 = vor.u32 %v10241, %v10244
    %v10246 = vrot.slane %v10245, 2
    %v10248 = vshll.u32 %v10225, 16
    %v10250 = vrot.slane %v10248, 7
    %v10251 = vsel %vm9323, %v10246, %v10250
    %s10252 = scalar_lea.vmem %s5, 256
    %v10253 = vld [vmem:[%s10252] sm:$0xf]
    %v10254 = vld [vmem:[%s10252 + $0x4] sm:$0xf]
    %v10255 = vld [vmem:[%s10252 + $0x8] sm:$0xf]
    %v10256 = vld [vmem:[%s10252 + $0xc] sm:$0xf]
    %v10257 = vld [vmem:[%s10252 + $0x10] sm:$0xf]
    %v10258 = vld [vmem:[%s10252 + $0x14] sm:$0xf]
    %v10259 = vld [vmem:[%s10252 + $0x18] sm:$0xf]
    %v10260 = vld [vmem:[%s10252 + $0x1c] sm:$0xf]
    %10261 = vst [vmem:[#allocation1] ss:$4 sm:$0xff] %v9362
    %s10262 = scalar_lea.vmem [#allocation1], 1
    %10263 = vst [vmem:[%s10262] ss:$4 sm:$0xff] %v9375
    %s10264 = scalar_lea.vmem [#allocation1], 2
    %10265 = vst [vmem:[%s10264] ss:$4 sm:$0xff] %v9829
    %s10267 = scalar_lea.vmem [#allocation1], 3
    %10268 = vst [vmem:[%s10267] ss:$4 sm:$0xff] %v10238
    %s10269 = scalar_lea.vmem [#allocation1], 32
    %10270 = vst [vmem:[%s10269] ss:$4 sm:$0xff] %v9414
    %s10271 = scalar_lea.vmem [#allocation1], 33
    %10272 = vst [vmem:[%s10271] ss:$4 sm:$0xff] %v9427
    %s10273 = scalar_lea.vmem [#allocation1], 34
    %10274 = vst [vmem:[%s10273] ss:$4 sm:$0xff] %v9842
    %s10276 = scalar_lea.vmem [#allocation1], 35
    %10277 = vst [vmem:[%s10276] ss:$4 sm:$0xff] %v10251
    %v10278 = vld.sshfl [vmem:[#allocation1] sm:$0xff pattern:$0x73625140]
    %v10279 = vld.sshfl [vmem:[#allocation1 + $0x20] sm:$0xff pattern:$0x73625140]
    %v10288 = vunpack.c.l.b16 %v10253
    %v10289 = vunpack.c.l.b16 %v10254
    %v10290 = vunpack.c.l.b16 %v10255
    %v10291 = vunpack.c.l.b16 %v10256
    %v10292 = vunpack.c.l.b16 %v10257
    %v10293 = vunpack.c.l.b16 %v10258
    %v10294 = vunpack.c.l.b16 %v10259
    %v10295 = vunpack.c.l.b16 %v10260
    %v10296 = vpack.c.b16 %v10289, %v10288
    %v10297 = vpack.c.b16 %v10291, %v10290
    %v10298 = vpack.c.b16 %v10293, %v10292
    %v10299 = vpack.c.b16 %v10295, %v10294
    %v10304 = vsel %vm8306, %v10278, 0
    %v10306 = vsel %vm8306, %v10279, 0
    %10308 = vmatpush.bf16.msra.mxu0 0
    %10309 = vmatpush.bf16.msra.mxu0 0
    %10310 = vmatpush.bf16.msra.mxu0 0
    %10311 = vmatpush.bf16.msra.mxu0 0
    %10312 = vmatpush.bf16.msra.mxu0 %v10299
    %10313 = vmatpush.bf16.msra.mxu0 %v10298
    %10314 = vmatpush.bf16.msra.mxu0 %v10297
    %10315 = vmatpush.bf16.msra.mxu0 %v10296
    %10316 = vmatmul.bf16.gmra.mxu0 %v10304
    %v10317 = vpop.f32.mrf.mxu0
    %v10318 = vadd.f32 0.0, %v10317
    %v10319 = vpop.f32.mrf.mxu0
    %v10320 = vadd.f32 0.0, %v10319
    %10321 = vmatmul.bf16.gmra.mxu0 %v10306
    %v10322 = vpop.f32.mrf.mxu0
    %v10323 = vadd.f32 0.0, %v10322
    %v10324 = vpop.f32.mrf.mxu0
    %v10325 = vadd.f32 0.0, %v10324
    %10326 = vdwg.mxu0
    %v10327 = vadd.f32 %v10208, %v10318
    %v10328 = vadd.f32 %v10209, %v10320
    %v10329 = vadd.f32 %v10210, %v10323
    %v10330 = vadd.f32 %v10211, %v10325
    %v10331 = vld [vmem:[%s6] sm:$0x1]
    %v10332 = vperm.slane %v10331, 0
    %v10333 = vmul.f32 %v10327, %v10332
    %v10334 = vmul.f32 %v10328, %v10332
    %v10335 = vmul.f32 %v10329, %v10332
    %v10336 = vmul.f32 %v10330, %v10332
    %v10337 = vld [vmem:[%s6 + $0x1] sm:$0x1]
    %v10338 = vperm.slane %v10337, 0
    %v10339 = vadd.f32 %v10333, %v10338
    %v10340 = vadd.f32 %v10334, %v10338
    %v10341 = vadd.f32 %v10335, %v10338
    %v10342 = vadd.f32 %v10336, %v10338
    %v10343 = vmax.f32 %v10339, 0.0
    %v10344 = vmax.f32 %v10340, 0.0
    %v10345 = vmax.f32 %v10341, 0.0
    %v10346 = vmax.f32 %v10342, 0.0
    %v10347 = vpack.c.bf16 %v10343, %v10343
    %v10348 = vpack.c.bf16 %v10344, %v10344
    %v10349 = vpack.c.bf16 %v10345, %v10345
    %v10350 = vpack.c.bf16 %v10346, %v10346
    %v10355 = vrot.slane %v10347, 2
    %v10356 = vrot.slane %v10348, 2
    %v10357 = vrot.slane %v10349, 2
    %v10358 = vrot.slane %v10350, 2
    %v10361 = vsel %vm9275, %v10347, %v10355
    %v10362 = vsel %vm9278, %v10347, %v10355
    %v10364 = vrot.slane %v10362, 2
    %v10367 = vsel %vm9275, %v10348, %v10356
    %v10368 = vsel %vm9278, %v10348, %v10356
    %v10370 = vrot.slane %v10368, 2
    %v10373 = vsel %vm9275, %v10349, %v10357
    %v10374 = vsel %vm9278, %v10349, %v10357
    %v10376 = vrot.slane %v10374, 2
    %v10379 = vsel %vm9275, %v10350, %v10358
    %v10380 = vsel %vm9278, %v10350, %v10358
    %v10382 = vrot.slane %v10380, 2
    %10383 = vst [vmem:[#allocation1] ss:$4 sm:$0xff] %v10361
    %v10384 = vld.sshfl [vmem:[#allocation1] sm:$0xff pattern:$0x73625140]
    %s10386 = scalar_lea.vmem [#allocation1], 32
    %10387 = vst [vmem:[%s10386] ss:$4 sm:$0xff] %v10373
    %v10388 = vld.sshfl [vmem:[#allocation1 + $0x20] sm:$0xff pattern:$0x73625140]
    %v10390 = vunpack.c.l.b16 %v10384
    %v10391 = vunpack.c.l.b16 %v10388
    %v10392 = vrot.slane %v10391, 7
    %v10393 = vsel %vm4526, %v10392, %v10390
    %v10394 = vpack.c.b16 %v10393, %v10393
    %10396 = vst [vmem:[#allocation1] ss:$4 sm:$0xff] %v10361
    %v10397 = vld.sshfl [vmem:[#allocation1] sm:$0xff pattern:$0x73625140]
    %s10399 = scalar_lea.vmem [#allocation1], 32
    %10400 = vst [vmem:[%s10399] ss:$4 sm:$0xff] %v10373
    %v10401 = vld.sshfl [vmem:[#allocation1 + $0x20] sm:$0xff pattern:$0x73625140]
    %v10403 = vunpack.c.l.b16 %v10397
    %v10404 = vunpack.c.l.b16 %v10401
    %v10405 = vrot.slane %v10403, 1
    %v10406 = vsel %vm4526, %v10404, %v10405
    %v10407 = vpack.c.b16 %v10406, %v10406
    %10409 = vst [vmem:[#allocation1] ss:$4 sm:$0xff] %v10361
    %v10410 = vld.sshfl [vmem:[#allocation1] sm:$0xff pattern:$0x73625140]
    %s10412 = scalar_lea.vmem [#allocation1], 32
    %10413 = vst [vmem:[%s10412] ss:$4 sm:$0xff] %v10373
    %v10414 = vld.sshfl [vmem:[#allocation1 + $0x20] sm:$0xff pattern:$0x73625140]
    %v10416 = vunpack.c.l.b16 %v10410
    %v10417 = vunpack.c.l.b16 %v10414
    %v10418 = vrot.slane %v10416, 2
    %v10419 = vrot.slane %v10417, 1
    %v10420 = vsel %vm4526, %v10419, %v10418
    %v10421 = vpack.c.b16 %v10420, %v10420
    %10423 = vst [vmem:[#allocation1] ss:$4 sm:$0xff] %v10361
    %v10424 = vld.sshfl [vmem:[#allocation1] sm:$0xff pattern:$0x73625140]
    %s10426 = scalar_lea.vmem [#allocation1], 32
    %10427 = vst [vmem:[%s10426] ss:$4 sm:$0xff] %v10373
    %v10428 = vld.sshfl [vmem:[#allocation1 + $0x20] sm:$0xff pattern:$0x73625140]
    %v10430 = vunpack.c.l.b16 %v10424
    %v10431 = vunpack.c.l.b16 %v10428
    %v10432 = vrot.slane %v10430, 3
    %v10433 = vrot.slane %v10431, 2
    %v10434 = vsel %vm4526, %v10433, %v10432
    %v10435 = vpack.c.b16 %v10434, %v10434
    %10438 = vst [vmem:[#allocation1] ss:$4 sm:$0xff] %v10364
    %v10439 = vld.sshfl [vmem:[#allocation1] sm:$0xff pattern:$0x73625140]
    %s10442 = scalar_lea.vmem [#allocation1], 32
    %10443 = vst [vmem:[%s10442] ss:$4 sm:$0xff] %v10376
    %v10444 = vld.sshfl [vmem:[#allocation1 + $0x20] sm:$0xff pattern:$0x73625140]
    %v10446 = vunpack.c.l.b16 %v10439
    %v10447 = vunpack.c.l.b16 %v10444
    %v10448 = vrot.slane %v10447, 7
    %v10449 = vsel %vm4526, %v10448, %v10446
    %v10450 = vpack.c.b16 %v10449, %v10449
    %10452 = vst [vmem:[#allocation1] ss:$4 sm:$0xff] %v10364
    %v10453 = vld.sshfl [vmem:[#allocation1] sm:$0xff pattern:$0x73625140]
    %s10455 = scalar_lea.vmem [#allocation1], 32
    %10456 = vst [vmem:[%s10455] ss:$4 sm:$0xff] %v10376
    %v10457 = vld.sshfl [vmem:[#allocation1 + $0x20] sm:$0xff pattern:$0x73625140]
    %v10459 = vunpack.c.l.b16 %v10453
    %v10460 = vunpack.c.l.b16 %v10457
    %v10461 = vrot.slane %v10459, 1
    %v10462 = vsel %vm4526, %v10460, %v10461
    %v10463 = vpack.c.b16 %v10462, %v10462
    %10465 = vst [vmem:[#allocation1] ss:$4 sm:$0xff] %v10364
    %v10466 = vld.sshfl [vmem:[#allocation1] sm:$0xff pattern:$0x73625140]
    %s10468 = scalar_lea.vmem [#allocation1], 32
    %10469 = vst [vmem:[%s10468] ss:$4 sm:$0xff] %v10376
    %v10470 = vld.sshfl [vmem:[#allocation1 + $0x20] sm:$0xff pattern:$0x73625140]
    %v10472 = vunpack.c.l.b16 %v10466
    %v10473 = vunpack.c.l.b16 %v10470
    %v10474 = vrot.slane %v10472, 2
    %v10475 = vrot.slane %v10473, 1
    %v10476 = vsel %vm4526, %v10475, %v10474
    %v10477 = vpack.c.b16 %v10476, %v10476
    %10479 = vst [vmem:[#allocation1] ss:$4 sm:$0xff] %v10364
    %v10480 = vld.sshfl [vmem:[#allocation1] sm:$0xff pattern:$0x73625140]
    %s10482 = scalar_lea.vmem [#allocation1], 32
    %10483 = vst [vmem:[%s10482] ss:$4 sm:$0xff] %v10376
    %v10484 = vld.sshfl [vmem:[#allocation1 + $0x20] sm:$0xff pattern:$0x73625140]
    %v10486 = vunpack.c.l.b16 %v10480
    %v10487 = vunpack.c.l.b16 %v10484
    %v10488 = vrot.slane %v10486, 3
    %v10489 = vrot.slane %v10487, 2
    %v10490 = vsel %vm4526, %v10489, %v10488
    %v10491 = vpack.c.b16 %v10490, %v10490
    %10493 = vst [vmem:[#allocation1] ss:$4 sm:$0xff] %v10367
    %v10494 = vld.sshfl [vmem:[#allocation1] sm:$0xff pattern:$0x73625140]
    %s10496 = scalar_lea.vmem [#allocation1], 32
    %10497 = vst [vmem:[%s10496] ss:$4 sm:$0xff] %v10379
    %v10498 = vld.sshfl [vmem:[#allocation1 + $0x20] sm:$0xff pattern:$0x73625140]
    %v10500 = vunpack.c.l.b16 %v10494
    %v10501 = vunpack.c.l.b16 %v10498
    %v10502 = vrot.slane %v10501, 7
    %v10503 = vsel %vm4526, %v10502, %v10500
    %v10504 = vpack.c.b16 %v10503, %v10503
    %10506 = vst [vmem:[#allocation1] ss:$4 sm:$0xff] %v10367
    %v10507 = vld.sshfl [vmem:[#allocation1] sm:$0xff pattern:$0x73625140]
    %s10509 = scalar_lea.vmem [#allocation1], 32
    %10510 = vst [vmem:[%s10509] ss:$4 sm:$0xff] %v10379
    %v10511 = vld.sshfl [vmem:[#allocation1 + $0x20] sm:$0xff pattern:$0x73625140]
    %v10513 = vunpack.c.l.b16 %v10507
    %v10514 = vunpack.c.l.b16 %v10511
    %v10515 = vrot.slane %v10513, 1
    %v10516 = vsel %vm4526, %v10514, %v10515
    %v10517 = vpack.c.b16 %v10516, %v10516
    %10519 = vst [vmem:[#allocation1] ss:$4 sm:$0xff] %v10367
    %v10520 = vld.sshfl [vmem:[#allocation1] sm:$0xff pattern:$0x73625140]
    %s10522 = scalar_lea.vmem [#allocation1], 32
    %10523 = vst [vmem:[%s10522] ss:$4 sm:$0xff] %v10379
    %v10524 = vld.sshfl [vmem:[#allocation1 + $0x20] sm:$0xff pattern:$0x73625140]
    %v10526 = vunpack.c.l.b16 %v10520
    %v10527 = vunpack.c.l.b16 %v10524
    %v10528 = vrot.slane %v10526, 2
    %v10529 = vrot.slane %v10527, 1
    %v10530 = vsel %vm4526, %v10529, %v10528
    %v10531 = vpack.c.b16 %v10530, %v10530
    %10533 = vst [vmem:[#allocation1] ss:$4 sm:$0xff] %v10367
    %v10534 = vld.sshfl [vmem:[#allocation1] sm:$0xff pattern:$0x73625140]
    %s10536 = scalar_lea.vmem [#allocation1], 32
    %10537 = vst [vmem:[%s10536] ss:$4 sm:$0xff] %v10379
    %v10538 = vld.sshfl [vmem:[#allocation1 + $0x20] sm:$0xff pattern:$0x73625140]
    %v10540 = vunpack.c.l.b16 %v10534
    %v10541 = vunpack.c.l.b16 %v10538
    %v10542 = vrot.slane %v10540, 3
    %v10543 = vrot.slane %v10541, 2
    %v10544 = vsel %vm4526, %v10543, %v10542
    %v10545 = vpack.c.b16 %v10544, %v10544
    %10548 = vst [vmem:[#allocation1] ss:$4 sm:$0xff] %v10370
    %v10549 = vld.sshfl [vmem:[#allocation1] sm:$0xff pattern:$0x73625140]
    %s10552 = scalar_lea.vmem [#allocation1], 32
    %10553 = vst [vmem:[%s10552] ss:$4 sm:$0xff] %v10382
    %v10554 = vld.sshfl [vmem:[#allocation1 + $0x20] sm:$0xff pattern:$0x73625140]
    %v10556 = vunpack.c.l.b16 %v10549
    %v10557 = vunpack.c.l.b16 %v10554
    %v10558 = vrot.slane %v10557, 7
    %v10559 = vsel %vm4526, %v10558, %v10556
    %v10560 = vpack.c.b16 %v10559, %v10559
    %10562 = vst [vmem:[#allocation1] ss:$4 sm:$0xff] %v10370
    %v10563 = vld.sshfl [vmem:[#allocation1] sm:$0xff pattern:$0x73625140]
    %s10565 = scalar_lea.vmem [#allocation1], 32
    %10566 = vst [vmem:[%s10565] ss:$4 sm:$0xff] %v10382
    %v10567 = vld.sshfl [vmem:[#allocation1 + $0x20] sm:$0xff pattern:$0x73625140]
    %v10569 = vunpack.c.l.b16 %v10563
    %v10570 = vunpack.c.l.b16 %v10567
    %v10571 = vrot.slane %v10569, 1
    %v10572 = vsel %vm4526, %v10570, %v10571
    %v10573 = vpack.c.b16 %v10572, %v10572
    %10575 = vst [vmem:[#allocation1] ss:$4 sm:$0xff] %v10370
    %v10576 = vld.sshfl [vmem:[#allocation1] sm:$0xff pattern:$0x73625140]
    %s10578 = scalar_lea.vmem [#allocation1], 32
    %10579 = vst [vmem:[%s10578] ss:$4 sm:$0xff] %v10382
    %v10580 = vld.sshfl [vmem:[#allocation1 + $0x20] sm:$0xff pattern:$0x73625140]
    %v10582 = vunpack.c.l.b16 %v10576
    %v10583 = vunpack.c.l.b16 %v10580
    %v10584 = vrot.slane %v10582, 2
    %v10585 = vrot.slane %v10583, 1
    %v10586 = vsel %vm4526, %v10585, %v10584
    %v10587 = vpack.c.b16 %v10586, %v10586
    %10589 = vst [vmem:[#allocation1] ss:$4 sm:$0xff] %v10370
    %v10590 = vld.sshfl [vmem:[#allocation1] sm:$0xff pattern:$0x73625140]
    %s10592 = scalar_lea.vmem [#allocation1], 32
    %10593 = vst [vmem:[%s10592] ss:$4 sm:$0xff] %v10382
    %v10594 = vld.sshfl [vmem:[#allocation1 + $0x20] sm:$0xff pattern:$0x73625140]
    %v10596 = vunpack.c.l.b16 %v10590
    %v10597 = vunpack.c.l.b16 %v10594
    %v10598 = vrot.slane %v10596, 3
    %v10599 = vrot.slane %v10597, 2
    %v10600 = vsel %vm4526, %v10599, %v10598
    %v10601 = vpack.c.b16 %v10600, %v10600
    %v10603 = vld [vmem:[#allocation4] sm:$0xff]
    %v10604 = vld [vmem:[#allocation4 + $0x8] sm:$0xff]
    %v10605 = vld [vmem:[#allocation4 + $0x10] sm:$0xff]
    %v10606 = vld [vmem:[#allocation4 + $0x18] sm:$0xff]
    %v10607 = vld [vmem:[#allocation4 + $0x20] sm:$0xff]
    %v10608 = vld [vmem:[#allocation4 + $0x28] sm:$0xff]
    %v10609 = vld [vmem:[#allocation4 + $0x30] sm:$0xff]
    %v10610 = vld [vmem:[#allocation4 + $0x38] sm:$0xff]
    %v10611 = vld [vmem:[#allocation4 + $0x40] sm:$0xff]
    %v10612 = vld [vmem:[#allocation4 + $0x48] sm:$0xff]
    %v10613 = vld [vmem:[#allocation4 + $0x50] sm:$0xff]
    %v10614 = vld [vmem:[#allocation4 + $0x58] sm:$0xff]
    %v10615 = vld [vmem:[#allocation4 + $0x60] sm:$0xff]
    %v10616 = vld [vmem:[#allocation4 + $0x68] sm:$0xff]
    %v10617 = vld [vmem:[#allocation4 + $0x70] sm:$0xff]
    %v10618 = vld [vmem:[#allocation4 + $0x78] sm:$0xff]
    %v10619 = vld [vmem:[#allocation4 + $0x80] sm:$0xff]
    %v10620 = vld [vmem:[#allocation4 + $0x88] sm:$0xff]
    %v10621 = vld [vmem:[#allocation4 + $0x90] sm:$0xff]
    %v10622 = vld [vmem:[#allocation4 + $0x98] sm:$0xff]
    %v10623 = vld [vmem:[#allocation4 + $0xa0] sm:$0xff]
    %v10624 = vld [vmem:[#allocation4 + $0xa8] sm:$0xff]
    %v10625 = vld [vmem:[#allocation4 + $0xb0] sm:$0xff]
    %v10626 = vld [vmem:[#allocation4 + $0xb8] sm:$0xff]
    %v10627 = vld [vmem:[#allocation4 + $0xc0] sm:$0xff]
    %v10628 = vld [vmem:[#allocation4 + $0xc8] sm:$0xff]
    %v10629 = vld [vmem:[#allocation4 + $0xd0] sm:$0xff]
    %v10630 = vld [vmem:[#allocation4 + $0xd8] sm:$0xff]
    %v10631 = vld [vmem:[#allocation4 + $0xe0] sm:$0xff]
    %v10632 = vld [vmem:[#allocation4 + $0xe8] sm:$0xff]
    %v10633 = vld [vmem:[#allocation4 + $0xf0] sm:$0xff]
    %v10634 = vld [vmem:[#allocation4 + $0xf8] sm:$0xff]
    %v10635 = vld [vmem:[#allocation4 + $0x100] sm:$0xff]
    %v10636 = vld [vmem:[#allocation4 + $0x108] sm:$0xff]
    %v10637 = vld [vmem:[#allocation4 + $0x110] sm:$0xff]
    %v10638 = vld [vmem:[#allocation4 + $0x118] sm:$0xff]
    %v10639 = vld [vmem:[#allocation4 + $0x120] sm:$0xff]
    %v10640 = vld [vmem:[#allocation4 + $0x128] sm:$0xff]
    %v10641 = vld [vmem:[#allocation4 + $0x130] sm:$0xff]
    %v10642 = vld [vmem:[#allocation4 + $0x138] sm:$0xff]
    %v10643 = vld [vmem:[#allocation4 + $0x140] sm:$0xff]
    %v10644 = vld [vmem:[#allocation4 + $0x148] sm:$0xff]
    %v10645 = vld [vmem:[#allocation4 + $0x150] sm:$0xff]
    %v10646 = vld [vmem:[#allocation4 + $0x158] sm:$0xff]
    %v10647 = vld [vmem:[#allocation4 + $0x160] sm:$0xff]
    %v10648 = vld [vmem:[#allocation4 + $0x168] sm:$0xff]
    %v10649 = vld [vmem:[#allocation4 + $0x170] sm:$0xff]
    %v10650 = vld [vmem:[#allocation4 + $0x178] sm:$0xff]
    %v10651 = vld [vmem:[#allocation4 + $0x180] sm:$0xff]
    %v10652 = vld [vmem:[#allocation4 + $0x188] sm:$0xff]
    %v10653 = vld [vmem:[#allocation4 + $0x190] sm:$0xff]
    %v10654 = vld [vmem:[#allocation4 + $0x198] sm:$0xff]
    %v10655 = vld [vmem:[#allocation4 + $0x1a0] sm:$0xff]
    %v10656 = vld [vmem:[#allocation4 + $0x1a8] sm:$0xff]
    %v10657 = vld [vmem:[#allocation4 + $0x1b0] sm:$0xff]
    %v10658 = vld [vmem:[#allocation4 + $0x1b8] sm:$0xff]
    %v10659 = vld [vmem:[#allocation4 + $0x1c0] sm:$0xff]
    %v10660 = vld [vmem:[#allocation4 + $0x1c8] sm:$0xff]
    %v10661 = vld [vmem:[#allocation4 + $0x1d0] sm:$0xff]
    %v10662 = vld [vmem:[#allocation4 + $0x1d8] sm:$0xff]
    %v10663 = vld [vmem:[#allocation4 + $0x1e0] sm:$0xff]
    %v10664 = vld [vmem:[#allocation4 + $0x1e8] sm:$0xff]
    %v10665 = vld [vmem:[#allocation4 + $0x1f0] sm:$0xff]
    %v10666 = vld [vmem:[#allocation4 + $0x1f8] sm:$0xff]
    %v10667 = vld [vmem:[#allocation4 + $0x200] sm:$0xff]
    %v10668 = vld [vmem:[#allocation4 + $0x208] sm:$0xff]
    %v10669 = vld [vmem:[#allocation4 + $0x210] sm:$0xff]
    %v10670 = vld [vmem:[#allocation4 + $0x218] sm:$0xff]
    %v10671 = vld [vmem:[#allocation4 + $0x220] sm:$0xff]
    %v10672 = vld [vmem:[#allocation4 + $0x228] sm:$0xff]
    %v10673 = vld [vmem:[#allocation4 + $0x230] sm:$0xff]
    %v10674 = vld [vmem:[#allocation4 + $0x238] sm:$0xff]
    %v10675 = vld [vmem:[#allocation4 + $0x240] sm:$0xff]
    %v10676 = vld [vmem:[#allocation4 + $0x248] sm:$0xff]
    %v10677 = vld [vmem:[#allocation4 + $0x250] sm:$0xff]
    %v10678 = vld [vmem:[#allocation4 + $0x258] sm:$0xff]
    %v10679 = vld [vmem:[#allocation4 + $0x260] sm:$0xff]
    %v10680 = vld [vmem:[#allocation4 + $0x268] sm:$0xff]
    %v10681 = vld [vmem:[#allocation4 + $0x270] sm:$0xff]
    %v10682 = vld [vmem:[#allocation4 + $0x278] sm:$0xff]
    %v10683 = vld [vmem:[#allocation4 + $0x280] sm:$0xff]
    %v10684 = vld [vmem:[#allocation4 + $0x288] sm:$0xff]
    %v10685 = vld [vmem:[#allocation4 + $0x290] sm:$0xff]
    %v10686 = vld [vmem:[#allocation4 + $0x298] sm:$0xff]
    %v10687 = vld [vmem:[#allocation4 + $0x2a0] sm:$0xff]
    %v10688 = vld [vmem:[#allocation4 + $0x2a8] sm:$0xff]
    %v10689 = vld [vmem:[#allocation4 + $0x2b0] sm:$0xff]
    %v10690 = vld [vmem:[#allocation4 + $0x2b8] sm:$0xff]
    %v10691 = vld [vmem:[#allocation4 + $0x2c0] sm:$0xff]
    %v10692 = vld [vmem:[#allocation4 + $0x2c8] sm:$0xff]
    %v10693 = vld [vmem:[#allocation4 + $0x2d0] sm:$0xff]
    %v10694 = vld [vmem:[#allocation4 + $0x2d8] sm:$0xff]
    %v10695 = vld [vmem:[#allocation4 + $0x2e0] sm:$0xff]
    %v10696 = vld [vmem:[#allocation4 + $0x2e8] sm:$0xff]
    %v10697 = vld [vmem:[#allocation4 + $0x2f0] sm:$0xff]
    %v10698 = vld [vmem:[#allocation4 + $0x2f8] sm:$0xff]
    %v10699 = vld [vmem:[#allocation4 + $0x300] sm:$0xff]
    %v10700 = vld [vmem:[#allocation4 + $0x308] sm:$0xff]
    %v10701 = vld [vmem:[#allocation4 + $0x310] sm:$0xff]
    %v10702 = vld [vmem:[#allocation4 + $0x318] sm:$0xff]
    %v10703 = vld [vmem:[#allocation4 + $0x320] sm:$0xff]
    %v10704 = vld [vmem:[#allocation4 + $0x328] sm:$0xff]
    %v10705 = vld [vmem:[#allocation4 + $0x330] sm:$0xff]
    %v10706 = vld [vmem:[#allocation4 + $0x338] sm:$0xff]
    %v10707 = vld [vmem:[#allocation4 + $0x340] sm:$0xff]
    %v10708 = vld [vmem:[#allocation4 + $0x348] sm:$0xff]
    %v10709 = vld [vmem:[#allocation4 + $0x350] sm:$0xff]
    %v10710 = vld [vmem:[#allocation4 + $0x358] sm:$0xff]
    %v10711 = vld [vmem:[#allocation4 + $0x360] sm:$0xff]
    %v10712 = vld [vmem:[#allocation4 + $0x368] sm:$0xff]
    %v10713 = vld [vmem:[#allocation4 + $0x370] sm:$0xff]
    %v10714 = vld [vmem:[#allocation4 + $0x378] sm:$0xff]
    %v10715 = vld [vmem:[#allocation4 + $0x380] sm:$0xff]
    %v10716 = vld [vmem:[#allocation4 + $0x388] sm:$0xff]
    %v10717 = vld [vmem:[#allocation4 + $0x390] sm:$0xff]
    %v10718 = vld [vmem:[#allocation4 + $0x398] sm:$0xff]
    %v10719 = vld [vmem:[#allocation4 + $0x3a0] sm:$0xff]
    %v10720 = vld [vmem:[#allocation4 + $0x3a8] sm:$0xff]
    %v10721 = vld [vmem:[#allocation4 + $0x3b0] sm:$0xff]
    %v10722 = vld [vmem:[#allocation4 + $0x3b8] sm:$0xff]
    %v10723 = vld [vmem:[#allocation4 + $0x3c0] sm:$0xff]
    %v10724 = vld [vmem:[#allocation4 + $0x3c8] sm:$0xff]
    %v10725 = vld [vmem:[#allocation4 + $0x3d0] sm:$0xff]
    %v10726 = vld [vmem:[#allocation4 + $0x3d8] sm:$0xff]
    %v10727 = vld [vmem:[#allocation4 + $0x3e0] sm:$0xff]
    %v10728 = vld [vmem:[#allocation4 + $0x3e8] sm:$0xff]
    %v10729 = vld [vmem:[#allocation4 + $0x3f0] sm:$0xff]
    %v10730 = vld [vmem:[#allocation4 + $0x3f8] sm:$0xff]
    %v10731 = vld [vmem:[#allocation4 + $0x400] sm:$0xff]
    %v10732 = vld [vmem:[#allocation4 + $0x408] sm:$0xff]
    %v10733 = vld [vmem:[#allocation4 + $0x410] sm:$0xff]
    %v10734 = vld [vmem:[#allocation4 + $0x418] sm:$0xff]
    %v10735 = vld [vmem:[#allocation4 + $0x420] sm:$0xff]
    %v10736 = vld [vmem:[#allocation4 + $0x428] sm:$0xff]
    %v10737 = vld [vmem:[#allocation4 + $0x430] sm:$0xff]
    %v10738 = vld [vmem:[#allocation4 + $0x438] sm:$0xff]
    %v10739 = vld [vmem:[#allocation4 + $0x440] sm:$0xff]
    %v10740 = vld [vmem:[#allocation4 + $0x448] sm:$0xff]
    %v10741 = vld [vmem:[#allocation4 + $0x450] sm:$0xff]
    %v10742 = vld [vmem:[#allocation4 + $0x458] sm:$0xff]
    %v10743 = vld [vmem:[#allocation4 + $0x460] sm:$0xff]
    %v10744 = vld [vmem:[#allocation4 + $0x468] sm:$0xff]
    %v10745 = vld [vmem:[#allocation4 + $0x470] sm:$0xff]
    %v10746 = vld [vmem:[#allocation4 + $0x478] sm:$0xff]
    %v10747 = vld [vmem:[#allocation4 + $0x480] sm:$0xff]
    %v10748 = vld [vmem:[#allocation4 + $0x488] sm:$0xff]
    %v10749 = vld [vmem:[#allocation4 + $0x490] sm:$0xff]
    %v10750 = vld [vmem:[#allocation4 + $0x498] sm:$0xff]
    %v10751 = vld [vmem:[#allocation4 + $0x4a0] sm:$0xff]
    %v10752 = vld [vmem:[#allocation4 + $0x4a8] sm:$0xff]
    %v10753 = vld [vmem:[#allocation4 + $0x4b0] sm:$0xff]
    %v10754 = vld [vmem:[#allocation4 + $0x4b8] sm:$0xff]
    %v10755 = vld [vmem:[#allocation4 + $0x4c0] sm:$0xff]
    %v10756 = vld [vmem:[#allocation4 + $0x4c8] sm:$0xff]
    %v10757 = vld [vmem:[#allocation4 + $0x4d0] sm:$0xff]
    %v10758 = vld [vmem:[#allocation4 + $0x4d8] sm:$0xff]
    %v10759 = vld [vmem:[#allocation4 + $0x4e0] sm:$0xff]
    %v10760 = vld [vmem:[#allocation4 + $0x4e8] sm:$0xff]
    %v10761 = vld [vmem:[#allocation4 + $0x4f0] sm:$0xff]
    %v10762 = vld [vmem:[#allocation4 + $0x4f8] sm:$0xff]
    %v10763 = vld [vmem:[#allocation4 + $0x500] sm:$0xff]
    %v10764 = vld [vmem:[#allocation4 + $0x508] sm:$0xff]
    %v10765 = vld [vmem:[#allocation4 + $0x510] sm:$0xff]
    %v10766 = vld [vmem:[#allocation4 + $0x518] sm:$0xff]
    %v10767 = vld [vmem:[#allocation4 + $0x520] sm:$0xff]
    %v10768 = vld [vmem:[#allocation4 + $0x528] sm:$0xff]
    %v10769 = vld [vmem:[#allocation4 + $0x530] sm:$0xff]
    %v10770 = vld [vmem:[#allocation4 + $0x538] sm:$0xff]
    %v10771 = vld [vmem:[#allocation4 + $0x540] sm:$0xff]
    %v10772 = vld [vmem:[#allocation4 + $0x548] sm:$0xff]
    %v10773 = vld [vmem:[#allocation4 + $0x550] sm:$0xff]
    %v10774 = vld [vmem:[#allocation4 + $0x558] sm:$0xff]
    %v10775 = vld [vmem:[#allocation4 + $0x560] sm:$0xff]
    %v10776 = vld [vmem:[#allocation4 + $0x568] sm:$0xff]
    %v10777 = vld [vmem:[#allocation4 + $0x570] sm:$0xff]
    %v10778 = vld [vmem:[#allocation4 + $0x578] sm:$0xff]
    %v10779 = vld [vmem:[#allocation4 + $0x580] sm:$0xff]
    %v10780 = vld [vmem:[#allocation4 + $0x588] sm:$0xff]
    %v10781 = vld [vmem:[#allocation4 + $0x590] sm:$0xff]
    %v10782 = vld [vmem:[#allocation4 + $0x598] sm:$0xff]
    %v10783 = vld [vmem:[#allocation4 + $0x5a0] sm:$0xff]
    %v10784 = vld [vmem:[#allocation4 + $0x5a8] sm:$0xff]
    %v10785 = vld [vmem:[#allocation4 + $0x5b0] sm:$0xff]
    %v10786 = vld [vmem:[#allocation4 + $0x5b8] sm:$0xff]
    %v10787 = vld [vmem:[#allocation4 + $0x5c0] sm:$0xff]
    %v10788 = vld [vmem:[#allocation4 + $0x5c8] sm:$0xff]
    %v10789 = vld [vmem:[#allocation4 + $0x5d0] sm:$0xff]
    %v10790 = vld [vmem:[#allocation4 + $0x5d8] sm:$0xff]
    %v10791 = vld [vmem:[#allocation4 + $0x5e0] sm:$0xff]
    %v10792 = vld [vmem:[#allocation4 + $0x5e8] sm:$0xff]
    %v10793 = vld [vmem:[#allocation4 + $0x5f0] sm:$0xff]
    %v10794 = vld [vmem:[#allocation4 + $0x5f8] sm:$0xff]
    %v10795 = vld [vmem:[#allocation4 + $0x600] sm:$0xff]
    %v10796 = vld [vmem:[#allocation4 + $0x608] sm:$0xff]
    %v10797 = vld [vmem:[#allocation4 + $0x610] sm:$0xff]
    %v10798 = vld [vmem:[#allocation4 + $0x618] sm:$0xff]
    %v10799 = vld [vmem:[#allocation4 + $0x620] sm:$0xff]
    %v10800 = vld [vmem:[#allocation4 + $0x628] sm:$0xff]
    %v10801 = vld [vmem:[#allocation4 + $0x630] sm:$0xff]
    %v10802 = vld [vmem:[#allocation4 + $0x638] sm:$0xff]
    %v10803 = vld [vmem:[#allocation4 + $0x640] sm:$0xff]
    %v10804 = vld [vmem:[#allocation4 + $0x648] sm:$0xff]
    %v10805 = vld [vmem:[#allocation4 + $0x650] sm:$0xff]
    %v10806 = vld [vmem:[#allocation4 + $0x658] sm:$0xff]
    %v10807 = vld [vmem:[#allocation4 + $0x660] sm:$0xff]
    %v10808 = vld [vmem:[#allocation4 + $0x668] sm:$0xff]
    %v10809 = vld [vmem:[#allocation4 + $0x670] sm:$0xff]
    %v10810 = vld [vmem:[#allocation4 + $0x678] sm:$0xff]
    %v10811 = vld [vmem:[#allocation4 + $0x680] sm:$0xff]
    %v10812 = vld [vmem:[#allocation4 + $0x688] sm:$0xff]
    %v10813 = vld [vmem:[#allocation4 + $0x690] sm:$0xff]
    %v10814 = vld [vmem:[#allocation4 + $0x698] sm:$0xff]
    %v10815 = vld [vmem:[#allocation4 + $0x6a0] sm:$0xff]
    %v10816 = vld [vmem:[#allocation4 + $0x6a8] sm:$0xff]
    %v10817 = vld [vmem:[#allocation4 + $0x6b0] sm:$0xff]
    %v10818 = vld [vmem:[#allocation4 + $0x6b8] sm:$0xff]
    %v10819 = vld [vmem:[#allocation4 + $0x6c0] sm:$0xff]
    %v10820 = vld [vmem:[#allocation4 + $0x6c8] sm:$0xff]
    %v10821 = vld [vmem:[#allocation4 + $0x6d0] sm:$0xff]
    %v10822 = vld [vmem:[#allocation4 + $0x6d8] sm:$0xff]
    %v10823 = vld [vmem:[#allocation4 + $0x6e0] sm:$0xff]
    %v10824 = vld [vmem:[#allocation4 + $0x6e8] sm:$0xff]
    %v10825 = vld [vmem:[#allocation4 + $0x6f0] sm:$0xff]
    %v10826 = vld [vmem:[#allocation4 + $0x6f8] sm:$0xff]
    %v10827 = vld [vmem:[#allocation4 + $0x700] sm:$0xff]
    %v10828 = vld [vmem:[#allocation4 + $0x708] sm:$0xff]
    %v10829 = vld [vmem:[#allocation4 + $0x710] sm:$0xff]
    %v10830 = vld [vmem:[#allocation4 + $0x718] sm:$0xff]
    %v10831 = vld [vmem:[#allocation4 + $0x720] sm:$0xff]
    %v10832 = vld [vmem:[#allocation4 + $0x728] sm:$0xff]
    %v10833 = vld [vmem:[#allocation4 + $0x730] sm:$0xff]
    %v10834 = vld [vmem:[#allocation4 + $0x738] sm:$0xff]
    %v10835 = vld [vmem:[#allocation4 + $0x740] sm:$0xff]
    %v10836 = vld [vmem:[#allocation4 + $0x748] sm:$0xff]
    %v10837 = vld [vmem:[#allocation4 + $0x750] sm:$0xff]
    %v10838 = vld [vmem:[#allocation4 + $0x758] sm:$0xff]
    %v10839 = vld [vmem:[#allocation4 + $0x760] sm:$0xff]
    %v10840 = vld [vmem:[#allocation4 + $0x768] sm:$0xff]
    %v10841 = vld [vmem:[#allocation4 + $0x770] sm:$0xff]
    %v10842 = vld [vmem:[#allocation4 + $0x778] sm:$0xff]
    %v10843 = vld [vmem:[#allocation4 + $0x780] sm:$0xff]
    %v10844 = vld [vmem:[#allocation4 + $0x788] sm:$0xff]
    %v10845 = vld [vmem:[#allocation4 + $0x790] sm:$0xff]
    %v10846 = vld [vmem:[#allocation4 + $0x798] sm:$0xff]
    %v10847 = vld [vmem:[#allocation4 + $0x7a0] sm:$0xff]
    %v10848 = vld [vmem:[#allocation4 + $0x7a8] sm:$0xff]
    %v10849 = vld [vmem:[#allocation4 + $0x7b0] sm:$0xff]
    %v10850 = vld [vmem:[#allocation4 + $0x7b8] sm:$0xff]
    %v10851 = vld [vmem:[#allocation4 + $0x7c0] sm:$0xff]
    %v10852 = vld [vmem:[#allocation4 + $0x7c8] sm:$0xff]
    %v10853 = vld [vmem:[#allocation4 + $0x7d0] sm:$0xff]
    %v10854 = vld [vmem:[#allocation4 + $0x7d8] sm:$0xff]
    %v10855 = vld [vmem:[#allocation4 + $0x7e0] sm:$0xff]
    %v10856 = vld [vmem:[#allocation4 + $0x7e8] sm:$0xff]
    %v10857 = vld [vmem:[#allocation4 + $0x7f0] sm:$0xff]
    %v10858 = vld [vmem:[#allocation4 + $0x7f8] sm:$0xff]
    %v10859 = vld [vmem:[%s8] sm:$0x3]
    %v10861 = vperm.slane %v10859, 0
    %v10862 = vperm.slane %v10859, 1
    %v11121 = vunpack.c.l.b16 %v10603
    %v11122 = vunpack.c.h.b16 %v10603
    %v11123 = vunpack.c.l.b16 %v10604
    %v11124 = vunpack.c.h.b16 %v10604
    %v11125 = vunpack.c.l.b16 %v10605
    %v11126 = vunpack.c.h.b16 %v10605
    %v11127 = vunpack.c.l.b16 %v10606
    %v11128 = vunpack.c.h.b16 %v10606
    %v11129 = vunpack.c.l.b16 %v10607
    %v11130 = vunpack.c.h.b16 %v10607
    %v11131 = vunpack.c.l.b16 %v10608
    %v11132 = vunpack.c.h.b16 %v10608
    %v11133 = vunpack.c.l.b16 %v10609
    %v11134 = vunpack.c.h.b16 %v10609
    %v11135 = vunpack.c.l.b16 %v10610
    %v11136 = vunpack.c.h.b16 %v10610
    %v11137 = vunpack.c.l.b16 %v10611
    %v11138 = vunpack.c.h.b16 %v10611
    %v11139 = vunpack.c.l.b16 %v10612
    %v11140 = vunpack.c.h.b16 %v10612
    %v11141 = vunpack.c.l.b16 %v10613
    %v11142 = vunpack.c.h.b16 %v10613
    %v11143 = vunpack.c.l.b16 %v10614
    %v11144 = vunpack.c.h.b16 %v10614
    %v11145 = vunpack.c.l.b16 %v10615
    %v11146 = vunpack.c.h.b16 %v10615
    %v11147 = vunpack.c.l.b16 %v10616
    %v11148 = vunpack.c.h.b16 %v10616
    %v11149 = vunpack.c.l.b16 %v10617
    %v11150 = vunpack.c.h.b16 %v10617
    %v11151 = vunpack.c.l.b16 %v10618
    %v11152 = vunpack.c.h.b16 %v10618
    %v11153 = vunpack.c.l.b16 %v10619
    %v11154 = vunpack.c.h.b16 %v10619
    %v11155 = vunpack.c.l.b16 %v10620
    %v11156 = vunpack.c.h.b16 %v10620
    %v11157 = vunpack.c.l.b16 %v10621
    %v11158 = vunpack.c.h.b16 %v10621
    %v11159 = vunpack.c.l.b16 %v10622
    %v11160 = vunpack.c.h.b16 %v10622
    %v11161 = vunpack.c.l.b16 %v10623
    %v11162 = vunpack.c.h.b16 %v10623
    %v11163 = vunpack.c.l.b16 %v10624
    %v11164 = vunpack.c.h.b16 %v10624
    %v11165 = vunpack.c.l.b16 %v10625
    %v11166 = vunpack.c.h.b16 %v10625
    %v11167 = vunpack.c.l.b16 %v10626
    %v11168 = vunpack.c.h.b16 %v10626
    %v11169 = vunpack.c.l.b16 %v10627
    %v11170 = vunpack.c.h.b16 %v10627
    %v11171 = vunpack.c.l.b16 %v10628
    %v11172 = vunpack.c.h.b16 %v10628
    %v11173 = vunpack.c.l.b16 %v10629
    %v11174 = vunpack.c.h.b16 %v10629
    %v11175 = vunpack.c.l.b16 %v10630
    %v11176 = vunpack.c.h.b16 %v10630
    %v11177 = vunpack.c.l.b16 %v10631
    %v11178 = vunpack.c.h.b16 %v10631
    %v11179 = vunpack.c.l.b16 %v10632
    %v11180 = vunpack.c.h.b16 %v10632
    %v11181 = vunpack.c.l.b16 %v10633
    %v11182 = vunpack.c.h.b16 %v10633
    %v11183 = vunpack.c.l.b16 %v10634
    %v11184 = vunpack.c.h.b16 %v10634
    %v11185 = vunpack.c.l.b16 %v10635
    %v11186 = vunpack.c.h.b16 %v10635
    %v11187 = vunpack.c.l.b16 %v10636
    %v11188 = vunpack.c.h.b16 %v10636
    %v11189 = vunpack.c.l.b16 %v10637
    %v11190 = vunpack.c.h.b16 %v10637
    %v11191 = vunpack.c.l.b16 %v10638
    %v11192 = vunpack.c.h.b16 %v10638
    %v11193 = vunpack.c.l.b16 %v10639
    %v11194 = vunpack.c.h.b16 %v10639
    %v11195 = vunpack.c.l.b16 %v10640
    %v11196 = vunpack.c.h.b16 %v10640
    %v11197 = vunpack.c.l.b16 %v10641
    %v11198 = vunpack.c.h.b16 %v10641
    %v11199 = vunpack.c.l.b16 %v10642
    %v11200 = vunpack.c.h.b16 %v10642
    %v11201 = vunpack.c.l.b16 %v10643
    %v11202 = vunpack.c.h.b16 %v10643
    %v11203 = vunpack.c.l.b16 %v10644
    %v11204 = vunpack.c.h.b16 %v10644
    %v11205 = vunpack.c.l.b16 %v10645
    %v11206 = vunpack.c.h.b16 %v10645
    %v11207 = vunpack.c.l.b16 %v10646
    %v11208 = vunpack.c.h.b16 %v10646
    %v11209 = vunpack.c.l.b16 %v10647
    %v11210 = vunpack.c.h.b16 %v10647
    %v11211 = vunpack.c.l.b16 %v10648
    %v11212 = vunpack.c.h.b16 %v10648
    %v11213 = vunpack.c.l.b16 %v10649
    %v11214 = vunpack.c.h.b16 %v10649
    %v11215 = vunpack.c.l.b16 %v10650
    %v11216 = vunpack.c.h.b16 %v10650
    %v11217 = vunpack.c.l.b16 %v10651
    %v11218 = vunpack.c.h.b16 %v10651
    %v11219 = vunpack.c.l.b16 %v10652
    %v11220 = vunpack.c.h.b16 %v10652
    %v11221 = vunpack.c.l.b16 %v10653
    %v11222 = vunpack.c.h.b16 %v10653
    %v11223 = vunpack.c.l.b16 %v10654
    %v11224 = vunpack.c.h.b16 %v10654
    %v11225 = vunpack.c.l.b16 %v10655
    %v11226 = vunpack.c.h.b16 %v10655
    %v11227 = vunpack.c.l.b16 %v10656
    %v11228 = vunpack.c.h.b16 %v10656
    %v11229 = vunpack.c.l.b16 %v10657
    %v11230 = vunpack.c.h.b16 %v10657
    %v11231 = vunpack.c.l.b16 %v10658
    %v11232 = vunpack.c.h.b16 %v10658
    %v11233 = vunpack.c.l.b16 %v10659
    %v11234 = vunpack.c.h.b16 %v10659
    %v11235 = vunpack.c.l.b16 %v10660
    %v11236 = vunpack.c.h.b16 %v10660
    %v11237 = vunpack.c.l.b16 %v10661
    %v11238 = vunpack.c.h.b16 %v10661
    %v11239 = vunpack.c.l.b16 %v10662
    %v11240 = vunpack.c.h.b16 %v10662
    %v11241 = vunpack.c.l.b16 %v10663
    %v11242 = vunpack.c.h.b16 %v10663
    %v11243 = vunpack.c.l.b16 %v10664
    %v11244 = vunpack.c.h.b16 %v10664
    %v11245 = vunpack.c.l.b16 %v10665
    %v11246 = vunpack.c.h.b16 %v10665
    %v11247 = vunpack.c.l.b16 %v10666
    %v11248 = vunpack.c.h.b16 %v10666
    %v11249 = vunpack.c.l.b16 %v10667
    %v11250 = vunpack.c.h.b16 %v10667
    %v11251 = vunpack.c.l.b16 %v10668
    %v11252 = vunpack.c.h.b16 %v10668
    %v11253 = vunpack.c.l.b16 %v10669
    %v11254 = vunpack.c.h.b16 %v10669
    %v11255 = vunpack.c.l.b16 %v10670
    %v11256 = vunpack.c.h.b16 %v10670
    %v11257 = vunpack.c.l.b16 %v10671
    %v11258 = vunpack.c.h.b16 %v10671
    %v11259 = vunpack.c.l.b16 %v10672
    %v11260 = vunpack.c.h.b16 %v10672
    %v11261 = vunpack.c.l.b16 %v10673
    %v11262 = vunpack.c.h.b16 %v10673
    %v11263 = vunpack.c.l.b16 %v10674
    %v11264 = vunpack.c.h.b16 %v10674
    %v11265 = vunpack.c.l.b16 %v10675
    %v11266 = vunpack.c.h.b16 %v10675
    %v11267 = vunpack.c.l.b16 %v10676
    %v11268 = vunpack.c.h.b16 %v10676
    %v11269 = vunpack.c.l.b16 %v10677
    %v11270 = vunpack.c.h.b16 %v10677
    %v11271 = vunpack.c.l.b16 %v10678
    %v11272 = vunpack.c.h.b16 %v10678
    %v11273 = vunpack.c.l.b16 %v10679
    %v11274 = vunpack.c.h.b16 %v10679
    %v11275 = vunpack.c.l.b16 %v10680
    %v11276 = vunpack.c.h.b16 %v10680
    %v11277 = vunpack.c.l.b16 %v10681
    %v11278 = vunpack.c.h.b16 %v10681
    %v11279 = vunpack.c.l.b16 %v10682
    %v11280 = vunpack.c.h.b16 %v10682
    %v11281 = vunpack.c.l.b16 %v10683
    %v11282 = vunpack.c.h.b16 %v10683
    %v11283 = vunpack.c.l.b16 %v10684
    %v11284 = vunpack.c.h.b16 %v10684
    %v11285 = vunpack.c.l.b16 %v10685
    %v11286 = vunpack.c.h.b16 %v10685
    %v11287 = vunpack.c.l.b16 %v10686
    %v11288 = vunpack.c.h.b16 %v10686
    %v11289 = vunpack.c.l.b16 %v10687
    %v11290 = vunpack.c.h.b16 %v10687
    %v11291 = vunpack.c.l.b16 %v10688
    %v11292 = vunpack.c.h.b16 %v10688
    %v11293 = vunpack.c.l.b16 %v10689
    %v11294 = vunpack.c.h.b16 %v10689
    %v11295 = vunpack.c.l.b16 %v10690
    %v11296 = vunpack.c.h.b16 %v10690
    %v11297 = vunpack.c.l.b16 %v10691
    %v11298 = vunpack.c.h.b16 %v10691
    %v11299 = vunpack.c.l.b16 %v10692
    %v11300 = vunpack.c.h.b16 %v10692
    %v11301 = vunpack.c.l.b16 %v10693
    %v11302 = vunpack.c.h.b16 %v10693
    %v11303 = vunpack.c.l.b16 %v10694
    %v11304 = vunpack.c.h.b16 %v10694
    %v11305 = vunpack.c.l.b16 %v10695
    %v11306 = vunpack.c.h.b16 %v10695
    %v11307 = vunpack.c.l.b16 %v10696
    %v11308 = vunpack.c.h.b16 %v10696
    %v11309 = vunpack.c.l.b16 %v10697
    %v11310 = vunpack.c.h.b16 %v10697
    %v11311 = vunpack.c.l.b16 %v10698
    %v11312 = vunpack.c.h.b16 %v10698
    %v11313 = vunpack.c.l.b16 %v10699
    %v11314 = vunpack.c.h.b16 %v10699
    %v11315 = vunpack.c.l.b16 %v10700
    %v11316 = vunpack.c.h.b16 %v10700
    %v11317 = vunpack.c.l.b16 %v10701
    %v11318 = vunpack.c.h.b16 %v10701
    %v11319 = vunpack.c.l.b16 %v10702
    %v11320 = vunpack.c.h.b16 %v10702
    %v11321 = vunpack.c.l.b16 %v10703
    %v11322 = vunpack.c.h.b16 %v10703
    %v11323 = vunpack.c.l.b16 %v10704
    %v11324 = vunpack.c.h.b16 %v10704
    %v11325 = vunpack.c.l.b16 %v10705
    %v11326 = vunpack.c.h.b16 %v10705
    %v11327 = vunpack.c.l.b16 %v10706
    %v11328 = vunpack.c.h.b16 %v10706
    %v11329 = vunpack.c.l.b16 %v10707
    %v11330 = vunpack.c.h.b16 %v10707
    %v11331 = vunpack.c.l.b16 %v10708
    %v11332 = vunpack.c.h.b16 %v10708
    %v11333 = vunpack.c.l.b16 %v10709
    %v11334 = vunpack.c.h.b16 %v10709
    %v11335 = vunpack.c.l.b16 %v10710
    %v11336 = vunpack.c.h.b16 %v10710
    %v11337 = vunpack.c.l.b16 %v10711
    %v11338 = vunpack.c.h.b16 %v10711
    %v11339 = vunpack.c.l.b16 %v10712
    %v11340 = vunpack.c.h.b16 %v10712
    %v11341 = vunpack.c.l.b16 %v10713
    %v11342 = vunpack.c.h.b16 %v10713
    %v11343 = vunpack.c.l.b16 %v10714
    %v11344 = vunpack.c.h.b16 %v10714
    %v11345 = vunpack.c.l.b16 %v10715
    %v11346 = vunpack.c.h.b16 %v10715
    %v11347 = vunpack.c.l.b16 %v10716
    %v11348 = vunpack.c.h.b16 %v10716
    %v11349 = vunpack.c.l.b16 %v10717
    %v11350 = vunpack.c.h.b16 %v10717
    %v11351 = vunpack.c.l.b16 %v10718
    %v11352 = vunpack.c.h.b16 %v10718
    %v11353 = vunpack.c.l.b16 %v10719
    %v11354 = vunpack.c.h.b16 %v10719
    %v11355 = vunpack.c.l.b16 %v10720
    %v11356 = vunpack.c.h.b16 %v10720
    %v11357 = vunpack.c.l.b16 %v10721
    %v11358 = vunpack.c.h.b16 %v10721
    %v11359 = vunpack.c.l.b16 %v10722
    %v11360 = vunpack.c.h.b16 %v10722
    %v11361 = vunpack.c.l.b16 %v10723
    %v11362 = vunpack.c.h.b16 %v10723
    %v11363 = vunpack.c.l.b16 %v10724
    %v11364 = vunpack.c.h.b16 %v10724
    %v11365 = vunpack.c.l.b16 %v10725
    %v11366 = vunpack.c.h.b16 %v10725
    %v11367 = vunpack.c.l.b16 %v10726
    %v11368 = vunpack.c.h.b16 %v10726
    %v11369 = vunpack.c.l.b16 %v10727
    %v11370 = vunpack.c.h.b16 %v10727
    %v11371 = vunpack.c.l.b16 %v10728
    %v11372 = vunpack.c.h.b16 %v10728
    %v11373 = vunpack.c.l.b16 %v10729
    %v11374 = vunpack.c.h.b16 %v10729
    %v11375 = vunpack.c.l.b16 %v10730
    %v11376 = vunpack.c.h.b16 %v10730
    %v11377 = vunpack.c.l.b16 %v10731
    %v11378 = vunpack.c.h.b16 %v10731
    %v11379 = vunpack.c.l.b16 %v10732
    %v11380 = vunpack.c.h.b16 %v10732
    %v11381 = vunpack.c.l.b16 %v10733
    %v11382 = vunpack.c.h.b16 %v10733
    %v11383 = vunpack.c.l.b16 %v10734
    %v11384 = vunpack.c.h.b16 %v10734
    %v11385 = vunpack.c.l.b16 %v10735
    %v11386 = vunpack.c.h.b16 %v10735
    %v11387 = vunpack.c.l.b16 %v10736
    %v11388 = vunpack.c.h.b16 %v10736
    %v11389 = vunpack.c.l.b16 %v10737
    %v11390 = vunpack.c.h.b16 %v10737
    %v11391 = vunpack.c.l.b16 %v10738
    %v11392 = vunpack.c.h.b16 %v10738
    %v11393 = vunpack.c.l.b16 %v10739
    %v11394 = vunpack.c.h.b16 %v10739
    %v11395 = vunpack.c.l.b16 %v10740
    %v11396 = vunpack.c.h.b16 %v10740
    %v11397 = vunpack.c.l.b16 %v10741
    %v11398 = vunpack.c.h.b16 %v10741
    %v11399 = vunpack.c.l.b16 %v10742
    %v11400 = vunpack.c.h.b16 %v10742
    %v11401 = vunpack.c.l.b16 %v10743
    %v11402 = vunpack.c.h.b16 %v10743
    %v11403 = vunpack.c.l.b16 %v10744
    %v11404 = vunpack.c.h.b16 %v10744
    %v11405 = vunpack.c.l.b16 %v10745
    %v11406 = vunpack.c.h.b16 %v10745
    %v11407 = vunpack.c.l.b16 %v10746
    %v11408 = vunpack.c.h.b16 %v10746
    %v11409 = vunpack.c.l.b16 %v10747
    %v11410 = vunpack.c.h.b16 %v10747
    %v11411 = vunpack.c.l.b16 %v10748
    %v11412 = vunpack.c.h.b16 %v10748
    %v11413 = vunpack.c.l.b16 %v10749
    %v11414 = vunpack.c.h.b16 %v10749
    %v11415 = vunpack.c.l.b16 %v10750
    %v11416 = vunpack.c.h.b16 %v10750
    %v11417 = vunpack.c.l.b16 %v10751
    %v11418 = vunpack.c.h.b16 %v10751
    %v11419 = vunpack.c.l.b16 %v10752
    %v11420 = vunpack.c.h.b16 %v10752
    %v11421 = vunpack.c.l.b16 %v10753
    %v11422 = vunpack.c.h.b16 %v10753
    %v11423 = vunpack.c.l.b16 %v10754
    %v11424 = vunpack.c.h.b16 %v10754
    %v11425 = vunpack.c.l.b16 %v10755
    %v11426 = vunpack.c.h.b16 %v10755
    %v11427 = vunpack.c.l.b16 %v10756
    %v11428 = vunpack.c.h.b16 %v10756
    %v11429 = vunpack.c.l.b16 %v10757
    %v11430 = vunpack.c.h.b16 %v10757
    %v11431 = vunpack.c.l.b16 %v10758
    %v11432 = vunpack.c.h.b16 %v10758
    %v11433 = vunpack.c.l.b16 %v10759
    %v11434 = vunpack.c.h.b16 %v10759
    %v11435 = vunpack.c.l.b16 %v10760
    %v11436 = vunpack.c.h.b16 %v10760
    %v11437 = vunpack.c.l.b16 %v10761
    %v11438 = vunpack.c.h.b16 %v10761
    %v11439 = vunpack.c.l.b16 %v10762
    %v11440 = vunpack.c.h.b16 %v10762
    %v11441 = vunpack.c.l.b16 %v10763
    %v11442 = vunpack.c.h.b16 %v10763
    %v11443 = vunpack.c.l.b16 %v10764
    %v11444 = vunpack.c.h.b16 %v10764
    %v11445 = vunpack.c.l.b16 %v10765
    %v11446 = vunpack.c.h.b16 %v10765
    %v11447 = vunpack.c.l.b16 %v10766
    %v11448 = vunpack.c.h.b16 %v10766
    %v11449 = vunpack.c.l.b16 %v10767
    %v11450 = vunpack.c.h.b16 %v10767
    %v11451 = vunpack.c.l.b16 %v10768
    %v11452 = vunpack.c.h.b16 %v10768
    %v11453 = vunpack.c.l.b16 %v10769
    %v11454 = vunpack.c.h.b16 %v10769
    %v11455 = vunpack.c.l.b16 %v10770
    %v11456 = vunpack.c.h.b16 %v10770
    %v11457 = vunpack.c.l.b16 %v10771
    %v11458 = vunpack.c.h.b16 %v10771
    %v11459 = vunpack.c.l.b16 %v10772
    %v11460 = vunpack.c.h.b16 %v10772
    %v11461 = vunpack.c.l.b16 %v10773
    %v11462 = vunpack.c.h.b16 %v10773
    %v11463 = vunpack.c.l.b16 %v10774
    %v11464 = vunpack.c.h.b16 %v10774
    %v11465 = vunpack.c.l.b16 %v10775
    %v11466 = vunpack.c.h.b16 %v10775
    %v11467 = vunpack.c.l.b16 %v10776
    %v11468 = vunpack.c.h.b16 %v10776
    %v11469 = vunpack.c.l.b16 %v10777
    %v11470 = vunpack.c.h.b16 %v10777
    %v11471 = vunpack.c.l.b16 %v10778
    %v11472 = vunpack.c.h.b16 %v10778
    %v11473 = vunpack.c.l.b16 %v10779
    %v11474 = vunpack.c.h.b16 %v10779
    %v11475 = vunpack.c.l.b16 %v10780
    %v11476 = vunpack.c.h.b16 %v10780
    %v11477 = vunpack.c.l.b16 %v10781
    %v11478 = vunpack.c.h.b16 %v10781
    %v11479 = vunpack.c.l.b16 %v10782
    %v11480 = vunpack.c.h.b16 %v10782
    %v11481 = vunpack.c.l.b16 %v10783
    %v11482 = vunpack.c.h.b16 %v10783
    %v11483 = vunpack.c.l.b16 %v10784
    %v11484 = vunpack.c.h.b16 %v10784
    %v11485 = vunpack.c.l.b16 %v10785
    %v11486 = vunpack.c.h.b16 %v10785
    %v11487 = vunpack.c.l.b16 %v10786
    %v11488 = vunpack.c.h.b16 %v10786
    %v11489 = vunpack.c.l.b16 %v10787
    %v11490 = vunpack.c.h.b16 %v10787
    %v11491 = vunpack.c.l.b16 %v10788
    %v11492 = vunpack.c.h.b16 %v10788
    %v11493 = vunpack.c.l.b16 %v10789
    %v11494 = vunpack.c.h.b16 %v10789
    %v11495 = vunpack.c.l.b16 %v10790
    %v11496 = vunpack.c.h.b16 %v10790
    %v11497 = vunpack.c.l.b16 %v10791
    %v11498 = vunpack.c.h.b16 %v10791
    %v11499 = vunpack.c.l.b16 %v10792
    %v11500 = vunpack.c.h.b16 %v10792
    %v11501 = vunpack.c.l.b16 %v10793
    %v11502 = vunpack.c.h.b16 %v10793
    %v11503 = vunpack.c.l.b16 %v10794
    %v11504 = vunpack.c.h.b16 %v10794
    %v11505 = vunpack.c.l.b16 %v10795
    %v11506 = vunpack.c.h.b16 %v10795
    %v11507 = vunpack.c.l.b16 %v10796
    %v11508 = vunpack.c.h.b16 %v10796
    %v11509 = vunpack.c.l.b16 %v10797
    %v11510 = vunpack.c.h.b16 %v10797
    %v11511 = vunpack.c.l.b16 %v10798
    %v11512 = vunpack.c.h.b16 %v10798
    %v11513 = vunpack.c.l.b16 %v10799
    %v11514 = vunpack.c.h.b16 %v10799
    %v11515 = vunpack.c.l.b16 %v10800
    %v11516 = vunpack.c.h.b16 %v10800
    %v11517 = vunpack.c.l.b16 %v10801
    %v11518 = vunpack.c.h.b16 %v10801
    %v11519 = vunpack.c.l.b16 %v10802
    %v11520 = vunpack.c.h.b16 %v10802
    %v11521 = vunpack.c.l.b16 %v10803
    %v11522 = vunpack.c.h.b16 %v10803
    %v11523 = vunpack.c.l.b16 %v10804
    %v11524 = vunpack.c.h.b16 %v10804
    %v11525 = vunpack.c.l.b16 %v10805
    %v11526 = vunpack.c.h.b16 %v10805
    %v11527 = vunpack.c.l.b16 %v10806
    %v11528 = vunpack.c.h.b16 %v10806
    %v11529 = vunpack.c.l.b16 %v10807
    %v11530 = vunpack.c.h.b16 %v10807
    %v11531 = vunpack.c.l.b16 %v10808
    %v11532 = vunpack.c.h.b16 %v10808
    %v11533 = vunpack.c.l.b16 %v10809
    %v11534 = vunpack.c.h.b16 %v10809
    %v11535 = vunpack.c.l.b16 %v10810
    %v11536 = vunpack.c.h.b16 %v10810
    %v11537 = vunpack.c.l.b16 %v10811
    %v11538 = vunpack.c.h.b16 %v10811
    %v11539 = vunpack.c.l.b16 %v10812
    %v11540 = vunpack.c.h.b16 %v10812
    %v11541 = vunpack.c.l.b16 %v10813
    %v11542 = vunpack.c.h.b16 %v10813
    %v11543 = vunpack.c.l.b16 %v10814
    %v11544 = vunpack.c.h.b16 %v10814
    %v11545 = vunpack.c.l.b16 %v10815
    %v11546 = vunpack.c.h.b16 %v10815
    %v11547 = vunpack.c.l.b16 %v10816
    %v11548 = vunpack.c.h.b16 %v10816
    %v11549 = vunpack.c.l.b16 %v10817
    %v11550 = vunpack.c.h.b16 %v10817
    %v11551 = vunpack.c.l.b16 %v10818
    %v11552 = vunpack.c.h.b16 %v10818
    %v11553 = vunpack.c.l.b16 %v10819
    %v11554 = vunpack.c.h.b16 %v10819
    %v11555 = vunpack.c.l.b16 %v10820
    %v11556 = vunpack.c.h.b16 %v10820
    %v11557 = vunpack.c.l.b16 %v10821
    %v11558 = vunpack.c.h.b16 %v10821
    %v11559 = vunpack.c.l.b16 %v10822
    %v11560 = vunpack.c.h.b16 %v10822
    %v11561 = vunpack.c.l.b16 %v10823
    %v11562 = vunpack.c.h.b16 %v10823
    %v11563 = vunpack.c.l.b16 %v10824
    %v11564 = vunpack.c.h.b16 %v10824
    %v11565 = vunpack.c.l.b16 %v10825
    %v11566 = vunpack.c.h.b16 %v10825
    %v11567 = vunpack.c.l.b16 %v10826
    %v11568 = vunpack.c.h.b16 %v10826
    %v11569 = vunpack.c.l.b16 %v10827
    %v11570 = vunpack.c.h.b16 %v10827
    %v11571 = vunpack.c.l.b16 %v10828
    %v11572 = vunpack.c.h.b16 %v10828
    %v11573 = vunpack.c.l.b16 %v10829
    %v11574 = vunpack.c.h.b16 %v10829
    %v11575 = vunpack.c.l.b16 %v10830
    %v11576 = vunpack.c.h.b16 %v10830
    %v11577 = vunpack.c.l.b16 %v10831
    %v11578 = vunpack.c.h.b16 %v10831
    %v11579 = vunpack.c.l.b16 %v10832
    %v11580 = vunpack.c.h.b16 %v10832
    %v11581 = vunpack.c.l.b16 %v10833
    %v11582 = vunpack.c.h.b16 %v10833
    %v11583 = vunpack.c.l.b16 %v10834
    %v11584 = vunpack.c.h.b16 %v10834
    %v11585 = vunpack.c.l.b16 %v10835
    %v11586 = vunpack.c.h.b16 %v10835
    %v11587 = vunpack.c.l.b16 %v10836
    %v11588 = vunpack.c.h.b16 %v10836
    %v11589 = vunpack.c.l.b16 %v10837
    %v11590 = vunpack.c.h.b16 %v10837
    %v11591 = vunpack.c.l.b16 %v10838
    %v11592 = vunpack.c.h.b16 %v10838
    %v11593 = vunpack.c.l.b16 %v10839
    %v11594 = vunpack.c.h.b16 %v10839
    %v11595 = vunpack.c.l.b16 %v10840
    %v11596 = vunpack.c.h.b16 %v10840
    %v11597 = vunpack.c.l.b16 %v10841
    %v11598 = vunpack.c.h.b16 %v10841
    %v11599 = vunpack.c.l.b16 %v10842
    %v11600 = vunpack.c.h.b16 %v10842
    %v11601 = vunpack.c.l.b16 %v10843
    %v11602 = vunpack.c.h.b16 %v10843
    %v11603 = vunpack.c.l.b16 %v10844
    %v11604 = vunpack.c.h.b16 %v10844
    %v11605 = vunpack.c.l.b16 %v10845
    %v11606 = vunpack.c.h.b16 %v10845
    %v11607 = vunpack.c.l.b16 %v10846
    %v11608 = vunpack.c.h.b16 %v10846
    %v11609 = vunpack.c.l.b16 %v10847
    %v11610 = vunpack.c.h.b16 %v10847
    %v11611 = vunpack.c.l.b16 %v10848
    %v11612 = vunpack.c.h.b16 %v10848
    %v11613 = vunpack.c.l.b16 %v10849
    %v11614 = vunpack.c.h.b16 %v10849
    %v11615 = vunpack.c.l.b16 %v10850
    %v11616 = vunpack.c.h.b16 %v10850
    %v11617 = vunpack.c.l.b16 %v10851
    %v11618 = vunpack.c.h.b16 %v10851
    %v11619 = vunpack.c.l.b16 %v10852
    %v11620 = vunpack.c.h.b16 %v10852
    %v11621 = vunpack.c.l.b16 %v10853
    %v11622 = vunpack.c.h.b16 %v10853
    %v11623 = vunpack.c.l.b16 %v10854
    %v11624 = vunpack.c.h.b16 %v10854
    %v11625 = vunpack.c.l.b16 %v10855
    %v11626 = vunpack.c.h.b16 %v10855
    %v11627 = vunpack.c.l.b16 %v10856
    %v11628 = vunpack.c.h.b16 %v10856
    %v11629 = vunpack.c.l.b16 %v10857
    %v11630 = vunpack.c.h.b16 %v10857
    %v11631 = vunpack.c.l.b16 %v10858
    %v11632 = vunpack.c.h.b16 %v10858
    %v11633 = vpack.c.b16 %v11123, %v11121
    %v11634 = vpack.c.b16 %v11124, %v11122
    %v11635 = vpack.c.b16 %v11127, %v11125
    %v11636 = vpack.c.b16 %v11128, %v11126
    %v11637 = vpack.c.b16 %v11131, %v11129
    %v11638 = vpack.c.b16 %v11132, %v11130
    %v11639 = vpack.c.b16 %v11135, %v11133
    %v11640 = vpack.c.b16 %v11136, %v11134
    %v11641 = vpack.c.b16 %v11139, %v11137
    %v11642 = vpack.c.b16 %v11140, %v11138
    %v11643 = vpack.c.b16 %v11143, %v11141
    %v11644 = vpack.c.b16 %v11144, %v11142
    %v11645 = vpack.c.b16 %v11147, %v11145
    %v11646 = vpack.c.b16 %v11148, %v11146
    %v11647 = vpack.c.b16 %v11151, %v11149
    %v11648 = vpack.c.b16 %v11152, %v11150
    %v11649 = vpack.c.b16 %v11155, %v11153
    %v11650 = vpack.c.b16 %v11156, %v11154
    %v11651 = vpack.c.b16 %v11159, %v11157
    %v11652 = vpack.c.b16 %v11160, %v11158
    %v11653 = vpack.c.b16 %v11163, %v11161
    %v11654 = vpack.c.b16 %v11164, %v11162
    %v11655 = vpack.c.b16 %v11167, %v11165
    %v11656 = vpack.c.b16 %v11168, %v11166
    %v11657 = vpack.c.b16 %v11171, %v11169
    %v11658 = vpack.c.b16 %v11172, %v11170
    %v11659 = vpack.c.b16 %v11175, %v11173
    %v11660 = vpack.c.b16 %v11176, %v11174
    %v11661 = vpack.c.b16 %v11179, %v11177
    %v11662 = vpack.c.b16 %v11180, %v11178
    %v11663 = vpack.c.b16 %v11183, %v11181
    %v11664 = vpack.c.b16 %v11184, %v11182
    %v11665 = vpack.c.b16 %v11187, %v11185
    %v11666 = vpack.c.b16 %v11188, %v11186
    %v11667 = vpack.c.b16 %v11191, %v11189
    %v11668 = vpack.c.b16 %v11192, %v11190
    %v11669 = vpack.c.b16 %v11195, %v11193
    %v11670 = vpack.c.b16 %v11196, %v11194
    %v11671 = vpack.c.b16 %v11199, %v11197
    %v11672 = vpack.c.b16 %v11200, %v11198
    %v11673 = vpack.c.b16 %v11203, %v11201
    %v11674 = vpack.c.b16 %v11204, %v11202
    %v11675 = vpack.c.b16 %v11207, %v11205
    %v11676 = vpack.c.b16 %v11208, %v11206
    %v11677 = vpack.c.b16 %v11211, %v11209
    %v11678 = vpack.c.b16 %v11212, %v11210
    %v11679 = vpack.c.b16 %v11215, %v11213
    %v11680 = vpack.c.b16 %v11216, %v11214
    %v11681 = vpack.c.b16 %v11219, %v11217
    %v11682 = vpack.c.b16 %v11220, %v11218
    %v11683 = vpack.c.b16 %v11223, %v11221
    %v11684 = vpack.c.b16 %v11224, %v11222
    %v11685 = vpack.c.b16 %v11227, %v11225
    %v11686 = vpack.c.b16 %v11228, %v11226
    %v11687 = vpack.c.b16 %v11231, %v11229
    %v11688 = vpack.c.b16 %v11232, %v11230
    %v11689 = vpack.c.b16 %v11235, %v11233
    %v11690 = vpack.c.b16 %v11236, %v11234
    %v11691 = vpack.c.b16 %v11239, %v11237
    %v11692 = vpack.c.b16 %v11240, %v11238
    %v11693 = vpack.c.b16 %v11243, %v11241
    %v11694 = vpack.c.b16 %v11244, %v11242
    %v11695 = vpack.c.b16 %v11247, %v11245
    %v11696 = vpack.c.b16 %v11248, %v11246
    %v11697 = vpack.c.b16 %v11251, %v11249
    %v11698 = vpack.c.b16 %v11252, %v11250
    %v11699 = vpack.c.b16 %v11255, %v11253
    %v11700 = vpack.c.b16 %v11256, %v11254
    %v11701 = vpack.c.b16 %v11259, %v11257
    %v11702 = vpack.c.b16 %v11260, %v11258
    %v11703 = vpack.c.b16 %v11263, %v11261
    %v11704 = vpack.c.b16 %v11264, %v11262
    %v11705 = vpack.c.b16 %v11267, %v11265
    %v11706 = vpack.c.b16 %v11268, %v11266
    %v11707 = vpack.c.b16 %v11271, %v11269
    %v11708 = vpack.c.b16 %v11272, %v11270
    %v11709 = vpack.c.b16 %v11275, %v11273
    %v11710 = vpack.c.b16 %v11276, %v11274
    %v11711 = vpack.c.b16 %v11279, %v11277
    %v11712 = vpack.c.b16 %v11280, %v11278
    %v11713 = vpack.c.b16 %v11283, %v11281
    %v11714 = vpack.c.b16 %v11284, %v11282
    %v11715 = vpack.c.b16 %v11287, %v11285
    %v11716 = vpack.c.b16 %v11288, %v11286
    %v11717 = vpack.c.b16 %v11291, %v11289
    %v11718 = vpack.c.b16 %v11292, %v11290
    %v11719 = vpack.c.b16 %v11295, %v11293
    %v11720 = vpack.c.b16 %v11296, %v11294
    %v11721 = vpack.c.b16 %v11299, %v11297
    %v11722 = vpack.c.b16 %v11300, %v11298
    %v11723 = vpack.c.b16 %v11303, %v11301
    %v11724 = vpack.c.b16 %v11304, %v11302
    %v11725 = vpack.c.b16 %v11307, %v11305
    %v11726 = vpack.c.b16 %v11308, %v11306
    %v11727 = vpack.c.b16 %v11311, %v11309
    %v11728 = vpack.c.b16 %v11312, %v11310
    %v11729 = vpack.c.b16 %v11315, %v11313
    %v11730 = vpack.c.b16 %v11316, %v11314
    %v11731 = vpack.c.b16 %v11319, %v11317
    %v11732 = vpack.c.b16 %v11320, %v11318
    %v11733 = vpack.c.b16 %v11323, %v11321
    %v11734 = vpack.c.b16 %v11324, %v11322
    %v11735 = vpack.c.b16 %v11327, %v11325
    %v11736 = vpack.c.b16 %v11328, %v11326
    %v11737 = vpack.c.b16 %v11331, %v11329
    %v11738 = vpack.c.b16 %v11332, %v11330
    %v11739 = vpack.c.b16 %v11335, %v11333
    %v11740 = vpack.c.b16 %v11336, %v11334
    %v11741 = vpack.c.b16 %v11339, %v11337
    %v11742 = vpack.c.b16 %v11340, %v11338
    %v11743 = vpack.c.b16 %v11343, %v11341
    %v11744 = vpack.c.b16 %v11344, %v11342
    %v11745 = vpack.c.b16 %v11347, %v11345
    %v11746 = vpack.c.b16 %v11348, %v11346
    %v11747 = vpack.c.b16 %v11351, %v11349
    %v11748 = vpack.c.b16 %v11352, %v11350
    %v11749 = vpack.c.b16 %v11355, %v11353
    %v11750 = vpack.c.b16 %v11356, %v11354
    %v11751 = vpack.c.b16 %v11359, %v11357
    %v11752 = vpack.c.b16 %v11360, %v11358
    %v11753 = vpack.c.b16 %v11363, %v11361
    %v11754 = vpack.c.b16 %v11364, %v11362
    %v11755 = vpack.c.b16 %v11367, %v11365
    %v11756 = vpack.c.b16 %v11368, %v11366
    %v11757 = vpack.c.b16 %v11371, %v11369
    %v11758 = vpack.c.b16 %v11372, %v11370
    %v11759 = vpack.c.b16 %v11375, %v11373
    %v11760 = vpack.c.b16 %v11376, %v11374
    %v11761 = vpack.c.b16 %v11379, %v11377
    %v11762 = vpack.c.b16 %v11380, %v11378
    %v11763 = vpack.c.b16 %v11383, %v11381
    %v11764 = vpack.c.b16 %v11384, %v11382
    %v11765 = vpack.c.b16 %v11387, %v11385
    %v11766 = vpack.c.b16 %v11388, %v11386
    %v11767 = vpack.c.b16 %v11391, %v11389
    %v11768 = vpack.c.b16 %v11392, %v11390
    %v11769 = vpack.c.b16 %v11395, %v11393
    %v11770 = vpack.c.b16 %v11396, %v11394
    %v11771 = vpack.c.b16 %v11399, %v11397
    %v11772 = vpack.c.b16 %v11400, %v11398
    %v11773 = vpack.c.b16 %v11403, %v11401
    %v11774 = vpack.c.b16 %v11404, %v11402
    %v11775 = vpack.c.b16 %v11407, %v11405
    %v11776 = vpack.c.b16 %v11408, %v11406
    %v11777 = vpack.c.b16 %v11411, %v11409
    %v11778 = vpack.c.b16 %v11412, %v11410
    %v11779 = vpack.c.b16 %v11415, %v11413
    %v11780 = vpack.c.b16 %v11416, %v11414
    %v11781 = vpack.c.b16 %v11419, %v11417
    %v11782 = vpack.c.b16 %v11420, %v11418
    %v11783 = vpack.c.b16 %v11423, %v11421
    %v11784 = vpack.c.b16 %v11424, %v11422
    %v11785 = vpack.c.b16 %v11427, %v11425
    %v11786 = vpack.c.b16 %v11428, %v11426
    %v11787 = vpack.c.b16 %v11431, %v11429
    %v11788 = vpack.c.b16 %v11432, %v11430
    %v11789 = vpack.c.b16 %v11435, %v11433
    %v11790 = vpack.c.b16 %v11436, %v11434
    %v11791 = vpack.c.b16 %v11439, %v11437
    %v11792 = vpack.c.b16 %v11440, %v11438
    %v11793 = vpack.c.b16 %v11443, %v11441
    %v11794 = vpack.c.b16 %v11444, %v11442
    %v11795 = vpack.c.b16 %v11447, %v11445
    %v11796 = vpack.c.b16 %v11448, %v11446
    %v11797 = vpack.c.b16 %v11451, %v11449
    %v11798 = vpack.c.b16 %v11452, %v11450
    %v11799 = vpack.c.b16 %v11455, %v11453
    %v11800 = vpack.c.b16 %v11456, %v11454
    %v11801 = vpack.c.b16 %v11459, %v11457
    %v11802 = vpack.c.b16 %v11460, %v11458
    %v11803 = vpack.c.b16 %v11463, %v11461
    %v11804 = vpack.c.b16 %v11464, %v11462
    %v11805 = vpack.c.b16 %v11467, %v11465
    %v11806 = vpack.c.b16 %v11468, %v11466
    %v11807 = vpack.c.b16 %v11471, %v11469
    %v11808 = vpack.c.b16 %v11472, %v11470
    %v11809 = vpack.c.b16 %v11475, %v11473
    %v11810 = vpack.c.b16 %v11476, %v11474
    %v11811 = vpack.c.b16 %v11479, %v11477
    %v11812 = vpack.c.b16 %v11480, %v11478
    %v11813 = vpack.c.b16 %v11483, %v11481
    %v11814 = vpack.c.b16 %v11484, %v11482
    %v11815 = vpack.c.b16 %v11487, %v11485
    %v11816 = vpack.c.b16 %v11488, %v11486
    %v11817 = vpack.c.b16 %v11491, %v11489
    %v11818 = vpack.c.b16 %v11492, %v11490
    %v11819 = vpack.c.b16 %v11495, %v11493
    %v11820 = vpack.c.b16 %v11496, %v11494
    %v11821 = vpack.c.b16 %v11499, %v11497
    %v11822 = vpack.c.b16 %v11500, %v11498
    %v11823 = vpack.c.b16 %v11503, %v11501
    %v11824 = vpack.c.b16 %v11504, %v11502
    %v11825 = vpack.c.b16 %v11507, %v11505
    %v11826 = vpack.c.b16 %v11508, %v11506
    %v11827 = vpack.c.b16 %v11511, %v11509
    %v11828 = vpack.c.b16 %v11512, %v11510
    %v11829 = vpack.c.b16 %v11515, %v11513
    %v11830 = vpack.c.b16 %v11516, %v11514
    %v11831 = vpack.c.b16 %v11519, %v11517
    %v11832 = vpack.c.b16 %v11520, %v11518
    %v11833 = vpack.c.b16 %v11523, %v11521
    %v11834 = vpack.c.b16 %v11524, %v11522
    %v11835 = vpack.c.b16 %v11527, %v11525
    %v11836 = vpack.c.b16 %v11528, %v11526
    %v11837 = vpack.c.b16 %v11531, %v11529
    %v11838 = vpack.c.b16 %v11532, %v11530
    %v11839 = vpack.c.b16 %v11535, %v11533
    %v11840 = vpack.c.b16 %v11536, %v11534
    %v11841 = vpack.c.b16 %v11539, %v11537
    %v11842 = vpack.c.b16 %v11540, %v11538
    %v11843 = vpack.c.b16 %v11543, %v11541
    %v11844 = vpack.c.b16 %v11544, %v11542
    %v11845 = vpack.c.b16 %v11547, %v11545
    %v11846 = vpack.c.b16 %v11548, %v11546
    %v11847 = vpack.c.b16 %v11551, %v11549
    %v11848 = vpack.c.b16 %v11552, %v11550
    %v11849 = vpack.c.b16 %v11555, %v11553
    %v11850 = vpack.c.b16 %v11556, %v11554
    %v11851 = vpack.c.b16 %v11559, %v11557
    %v11852 = vpack.c.b16 %v11560, %v11558
    %v11853 = vpack.c.b16 %v11563, %v11561
    %v11854 = vpack.c.b16 %v11564, %v11562
    %v11855 = vpack.c.b16 %v11567, %v11565
    %v11856 = vpack.c.b16 %v11568, %v11566
    %v11857 = vpack.c.b16 %v11571, %v11569
    %v11858 = vpack.c.b16 %v11572, %v11570
    %v11859 = vpack.c.b16 %v11575, %v11573
    %v11860 = vpack.c.b16 %v11576, %v11574
    %v11861 = vpack.c.b16 %v11579, %v11577
    %v11862 = vpack.c.b16 %v11580, %v11578
    %v11863 = vpack.c.b16 %v11583, %v11581
    %v11864 = vpack.c.b16 %v11584, %v11582
    %v11865 = vpack.c.b16 %v11587, %v11585
    %v11866 = vpack.c.b16 %v11588, %v11586
    %v11867 = vpack.c.b16 %v11591, %v11589
    %v11868 = vpack.c.b16 %v11592, %v11590
    %v11869 = vpack.c.b16 %v11595, %v11593
    %v11870 = vpack.c.b16 %v11596, %v11594
    %v11871 = vpack.c.b16 %v11599, %v11597
    %v11872 = vpack.c.b16 %v11600, %v11598
    %v11873 = vpack.c.b16 %v11603, %v11601
    %v11874 = vpack.c.b16 %v11604, %v11602
    %v11875 = vpack.c.b16 %v11607, %v11605
    %v11876 = vpack.c.b16 %v11608, %v11606
    %v11877 = vpack.c.b16 %v11611, %v11609
    %v11878 = vpack.c.b16 %v11612, %v11610
    %v11879 = vpack.c.b16 %v11615, %v11613
    %v11880 = vpack.c.b16 %v11616, %v11614
    %v11881 = vpack.c.b16 %v11619, %v11617
    %v11882 = vpack.c.b16 %v11620, %v11618
    %v11883 = vpack.c.b16 %v11623, %v11621
    %v11884 = vpack.c.b16 %v11624, %v11622
    %v11885 = vpack.c.b16 %v11627, %v11625
    %v11886 = vpack.c.b16 %v11628, %v11626
    %v11887 = vpack.c.b16 %v11631, %v11629
    %v11888 = vpack.c.b16 %v11632, %v11630
    %12145 = vmatpush.bf16.msra.mxu0 %v11647
    %12146 = vmatpush.bf16.msra.mxu0 %v11645
    %12147 = vmatpush.bf16.msra.mxu0 %v11643
    %12148 = vmatpush.bf16.msra.mxu0 %v11641
    %12149 = vmatpush.bf16.msra.mxu0 %v11639
    %12150 = vmatpush.bf16.msra.mxu0 %v11637
    %12151 = vmatpush.bf16.msra.mxu0 %v11635
    %12152 = vmatpush.bf16.msra.mxu0 %v11633
    %12153 = vmatmul.bf16.gmra.mxu0 %v10394
    %v12154 = vpop.f32.mrf.mxu0
    %v12155 = vadd.f32 %v10861, %v12154
    %v12156 = vpop.f32.mrf.mxu0
    %12157 = vdwg.mxu0
    %12158 = vmatpush.bf16.msra.mxu0 %v11663
    %12159 = vmatpush.bf16.msra.mxu0 %v11661
    %12160 = vmatpush.bf16.msra.mxu0 %v11659
    %12161 = vmatpush.bf16.msra.mxu0 %v11657
    %12162 = vmatpush.bf16.msra.mxu0 %v11655
    %12163 = vmatpush.bf16.msra.mxu0 %v11653
    %12164 = vmatpush.bf16.msra.mxu0 %v11651
    %12165 = vmatpush.bf16.msra.mxu0 %v11649
    %12166 = vmatmul.bf16.gmra.mxu0 %v10407
    %v12167 = vpop.f32.mrf.mxu0
    %v12168 = vadd.f32 %v12155, %v12167
    %v12169 = vpop.f32.mrf.mxu0
    %12170 = vdwg.mxu0
    %12171 = vmatpush.bf16.msra.mxu0 %v11679
    %12172 = vmatpush.bf16.msra.mxu0 %v11677
    %12173 = vmatpush.bf16.msra.mxu0 %v11675
    %12174 = vmatpush.bf16.msra.mxu0 %v11673
    %12175 = vmatpush.bf16.msra.mxu0 %v11671
    %12176 = vmatpush.bf16.msra.mxu0 %v11669
    %12177 = vmatpush.bf16.msra.mxu0 %v11667
    %12178 = vmatpush.bf16.msra.mxu0 %v11665
    %12179 = vmatmul.bf16.gmra.mxu0 %v10421
    %v12180 = vpop.f32.mrf.mxu0
    %v12181 = vadd.f32 %v12168, %v12180
    %v12182 = vpop.f32.mrf.mxu0
    %12183 = vdwg.mxu0
    %12184 = vmatpush.bf16.msra.mxu0 %v11695
    %12185 = vmatpush.bf16.msra.mxu0 %v11693
    %12186 = vmatpush.bf16.msra.mxu0 %v11691
    %12187 = vmatpush.bf16.msra.mxu0 %v11689
    %12188 = vmatpush.bf16.msra.mxu0 %v11687
    %12189 = vmatpush.bf16.msra.mxu0 %v11685
    %12190 = vmatpush.bf16.msra.mxu0 %v11683
    %12191 = vmatpush.bf16.msra.mxu0 %v11681
    %12192 = vmatmul.bf16.gmra.mxu0 %v10435
    %v12193 = vpop.f32.mrf.mxu0
    %v12194 = vadd.f32 %v12181, %v12193
    %v12195 = vpop.f32.mrf.mxu0
    %12196 = vdwg.mxu0
    %12197 = vmatpush.bf16.msra.mxu0 %v11711
    %12198 = vmatpush.bf16.msra.mxu0 %v11709
    %12199 = vmatpush.bf16.msra.mxu0 %v11707
    %12200 = vmatpush.bf16.msra.mxu0 %v11705
    %12201 = vmatpush.bf16.msra.mxu0 %v11703
    %12202 = vmatpush.bf16.msra.mxu0 %v11701
    %12203 = vmatpush.bf16.msra.mxu0 %v11699
    %12204 = vmatpush.bf16.msra.mxu0 %v11697
    %12205 = vmatmul.bf16.gmra.mxu0 %v10450
    %v12206 = vpop.f32.mrf.mxu0
    %v12207 = vadd.f32 %v12194, %v12206
    %v12208 = vpop.f32.mrf.mxu0
    %12209 = vdwg.mxu0
    %12210 = vmatpush.bf16.msra.mxu0 %v11727
    %12211 = vmatpush.bf16.msra.mxu0 %v11725
    %12212 = vmatpush.bf16.msra.mxu0 %v11723
    %12213 = vmatpush.bf16.msra.mxu0 %v11721
    %12214 = vmatpush.bf16.msra.mxu0 %v11719
    %12215 = vmatpush.bf16.msra.mxu0 %v11717
    %12216 = vmatpush.bf16.msra.mxu0 %v11715
    %12217 = vmatpush.bf16.msra.mxu0 %v11713
    %12218 = vmatmul.bf16.gmra.mxu0 %v10463
    %v12219 = vpop.f32.mrf.mxu0
    %v12220 = vadd.f32 %v12207, %v12219
    %v12221 = vpop.f32.mrf.mxu0
    %12222 = vdwg.mxu0
    %12223 = vmatpush.bf16.msra.mxu0 %v11743
    %12224 = vmatpush.bf16.msra.mxu0 %v11741
    %12225 = vmatpush.bf16.msra.mxu0 %v11739
    %12226 = vmatpush.bf16.msra.mxu0 %v11737
    %12227 = vmatpush.bf16.msra.mxu0 %v11735
    %12228 = vmatpush.bf16.msra.mxu0 %v11733
    %12229 = vmatpush.bf16.msra.mxu0 %v11731
    %12230 = vmatpush.bf16.msra.mxu0 %v11729
    %12231 = vmatmul.bf16.gmra.mxu0 %v10477
    %v12232 = vpop.f32.mrf.mxu0
    %v12233 = vadd.f32 %v12220, %v12232
    %v12234 = vpop.f32.mrf.mxu0
    %12235 = vdwg.mxu0
    %12236 = vmatpush.bf16.msra.mxu0 %v11759
    %12237 = vmatpush.bf16.msra.mxu0 %v11757
    %12238 = vmatpush.bf16.msra.mxu0 %v11755
    %12239 = vmatpush.bf16.msra.mxu0 %v11753
    %12240 = vmatpush.bf16.msra.mxu0 %v11751
    %12241 = vmatpush.bf16.msra.mxu0 %v11749
    %12242 = vmatpush.bf16.msra.mxu0 %v11747
    %12243 = vmatpush.bf16.msra.mxu0 %v11745
    %12244 = vmatmul.bf16.gmra.mxu0 %v10491
    %v12245 = vpop.f32.mrf.mxu0
    %v12246 = vadd.f32 %v12233, %v12245
    %v12247 = vpop.f32.mrf.mxu0
    %12248 = vdwg.mxu0
    %12249 = vmatpush.bf16.msra.mxu0 %v11775
    %12250 = vmatpush.bf16.msra.mxu0 %v11773
    %12251 = vmatpush.bf16.msra.mxu0 %v11771
    %12252 = vmatpush.bf16.msra.mxu0 %v11769
    %12253 = vmatpush.bf16.msra.mxu0 %v11767
    %12254 = vmatpush.bf16.msra.mxu0 %v11765
    %12255 = vmatpush.bf16.msra.mxu0 %v11763
    %12256 = vmatpush.bf16.msra.mxu0 %v11761
    %12257 = vmatmul.bf16.gmra.mxu0 %v10504
    %v12258 = vpop.f32.mrf.mxu0
    %v12259 = vadd.f32 %v12246, %v12258
    %v12260 = vpop.f32.mrf.mxu0
    %12261 = vdwg.mxu0
    %12262 = vmatpush.bf16.msra.mxu0 %v11791
    %12263 = vmatpush.bf16.msra.mxu0 %v11789
    %12264 = vmatpush.bf16.msra.mxu0 %v11787
    %12265 = vmatpush.bf16.msra.mxu0 %v11785
    %12266 = vmatpush.bf16.msra.mxu0 %v11783
    %12267 = vmatpush.bf16.msra.mxu0 %v11781
    %12268 = vmatpush.bf16.msra.mxu0 %v11779
    %12269 = vmatpush.bf16.msra.mxu0 %v11777
    %12270 = vmatmul.bf16.gmra.mxu0 %v10517
    %v12271 = vpop.f32.mrf.mxu0
    %v12272 = vadd.f32 %v12259, %v12271
    %v12273 = vpop.f32.mrf.mxu0
    %12274 = vdwg.mxu0
    %12275 = vmatpush.bf16.msra.mxu0 %v11807
    %12276 = vmatpush.bf16.msra.mxu0 %v11805
    %12277 = vmatpush.bf16.msra.mxu0 %v11803
    %12278 = vmatpush.bf16.msra.mxu0 %v11801
    %12279 = vmatpush.bf16.msra.mxu0 %v11799
    %12280 = vmatpush.bf16.msra.mxu0 %v11797
    %12281 = vmatpush.bf16.msra.mxu0 %v11795
    %12282 = vmatpush.bf16.msra.mxu0 %v11793
    %12283 = vmatmul.bf16.gmra.mxu0 %v10531
    %v12284 = vpop.f32.mrf.mxu0
    %v12285 = vadd.f32 %v12272, %v12284
    %v12286 = vpop.f32.mrf.mxu0
    %12287 = vdwg.mxu0
    %12288 = vmatpush.bf16.msra.mxu0 %v11823
    %12289 = vmatpush.bf16.msra.mxu0 %v11821
    %12290 = vmatpush.bf16.msra.mxu0 %v11819
    %12291 = vmatpush.bf16.msra.mxu0 %v11817
    %12292 = vmatpush.bf16.msra.mxu0 %v11815
    %12293 = vmatpush.bf16.msra.mxu0 %v11813
    %12294 = vmatpush.bf16.msra.mxu0 %v11811
    %12295 = vmatpush.bf16.msra.mxu0 %v11809
    %12296 = vmatmul.bf16.gmra.mxu0 %v10545
    %v12297 = vpop.f32.mrf.mxu0
    %v12298 = vadd.f32 %v12285, %v12297
    %v12299 = vpop.f32.mrf.mxu0
    %12300 = vdwg.mxu0
    %12301 = vmatpush.bf16.msra.mxu0 %v11839
    %12302 = vmatpush.bf16.msra.mxu0 %v11837
    %12303 = vmatpush.bf16.msra.mxu0 %v11835
    %12304 = vmatpush.bf16.msra.mxu0 %v11833
    %12305 = vmatpush.bf16.msra.mxu0 %v11831
    %12306 = vmatpush.bf16.msra.mxu0 %v11829
    %12307 = vmatpush.bf16.msra.mxu0 %v11827
    %12308 = vmatpush.bf16.msra.mxu0 %v11825
    %12309 = vmatmul.bf16.gmra.mxu0 %v10560
    %v12310 = vpop.f32.mrf.mxu0
    %v12311 = vadd.f32 %v12298, %v12310
    %v12312 = vpop.f32.mrf.mxu0
    %12313 = vdwg.mxu0
    %12314 = vmatpush.bf16.msra.mxu0 %v11855
    %12315 = vmatpush.bf16.msra.mxu0 %v11853
    %12316 = vmatpush.bf16.msra.mxu0 %v11851
    %12317 = vmatpush.bf16.msra.mxu0 %v11849
    %12318 = vmatpush.bf16.msra.mxu0 %v11847
    %12319 = vmatpush.bf16.msra.mxu0 %v11845
    %12320 = vmatpush.bf16.msra.mxu0 %v11843
    %12321 = vmatpush.bf16.msra.mxu0 %v11841
    %12322 = vmatmul.bf16.gmra.mxu0 %v10573
    %v12323 = vpop.f32.mrf.mxu0
    %v12324 = vadd.f32 %v12311, %v12323
    %v12325 = vpop.f32.mrf.mxu0
    %12326 = vdwg.mxu0
    %12327 = vmatpush.bf16.msra.mxu0 %v11871
    %12328 = vmatpush.bf16.msra.mxu0 %v11869
    %12329 = vmatpush.bf16.msra.mxu0 %v11867
    %12330 = vmatpush.bf16.msra.mxu0 %v11865
    %12331 = vmatpush.bf16.msra.mxu0 %v11863
    %12332 = vmatpush.bf16.msra.mxu0 %v11861
    %12333 = vmatpush.bf16.msra.mxu0 %v11859
    %12334 = vmatpush.bf16.msra.mxu0 %v11857
    %12335 = vmatmul.bf16.gmra.mxu0 %v10587
    %v12336 = vpop.f32.mrf.mxu0
    %v12337 = vadd.f32 %v12324, %v12336
    %v12338 = vpop.f32.mrf.mxu0
    %12339 = vdwg.mxu0
    %12340 = vmatpush.bf16.msra.mxu0 %v11887
    %12341 = vmatpush.bf16.msra.mxu0 %v11885
    %12342 = vmatpush.bf16.msra.mxu0 %v11883
    %12343 = vmatpush.bf16.msra.mxu0 %v11881
    %12344 = vmatpush.bf16.msra.mxu0 %v11879
    %12345 = vmatpush.bf16.msra.mxu0 %v11877
    %12346 = vmatpush.bf16.msra.mxu0 %v11875
    %12347 = vmatpush.bf16.msra.mxu0 %v11873
    %12348 = vmatmul.bf16.gmra.mxu0 %v10601
    %v12349 = vpop.f32.mrf.mxu0
    %v12350 = vadd.f32 %v12337, %v12349
    %v12351 = vpop.f32.mrf.mxu0
    %12352 = vdwg.mxu0
    %12353 = vmatpush.bf16.msra.mxu0 %v11648
    %12354 = vmatpush.bf16.msra.mxu0 %v11646
    %12355 = vmatpush.bf16.msra.mxu0 %v11644
    %12356 = vmatpush.bf16.msra.mxu0 %v11642
    %12357 = vmatpush.bf16.msra.mxu0 %v11640
    %12358 = vmatpush.bf16.msra.mxu0 %v11638
    %12359 = vmatpush.bf16.msra.mxu0 %v11636
    %12360 = vmatpush.bf16.msra.mxu0 %v11634
    %12361 = vmatmul.bf16.gmra.mxu0 %v10394
    %v12362 = vpop.f32.mrf.mxu0
    %v12363 = vadd.f32 %v10862, %v12362
    %v12364 = vpop.f32.mrf.mxu0
    %12365 = vdwg.mxu0
    %12366 = vmatpush.bf16.msra.mxu0 %v11664
    %12367 = vmatpush.bf16.msra.mxu0 %v11662
    %12368 = vmatpush.bf16.msra.mxu0 %v11660
    %12369 = vmatpush.bf16.msra.mxu0 %v11658
    %12370 = vmatpush.bf16.msra.mxu0 %v11656
    %12371 = vmatpush.bf16.msra.mxu0 %v11654
    %12372 = vmatpush.bf16.msra.mxu0 %v11652
    %12373 = vmatpush.bf16.msra.mxu0 %v11650
    %12374 = vmatmul.bf16.gmra.mxu0 %v10407
    %v12375 = vpop.f32.mrf.mxu0
    %v12376 = vadd.f32 %v12363, %v12375
    %v12377 = vpop.f32.mrf.mxu0
    %12378 = vdwg.mxu0
    %12379 = vmatpush.bf16.msra.mxu0 %v11680
    %12380 = vmatpush.bf16.msra.mxu0 %v11678
    %12381 = vmatpush.bf16.msra.mxu0 %v11676
    %12382 = vmatpush.bf16.msra.mxu0 %v11674
    %12383 = vmatpush.bf16.msra.mxu0 %v11672
    %12384 = vmatpush.bf16.msra.mxu0 %v11670
    %12385 = vmatpush.bf16.msra.mxu0 %v11668
    %12386 = vmatpush.bf16.msra.mxu0 %v11666
    %12387 = vmatmul.bf16.gmra.mxu0 %v10421
    %v12388 = vpop.f32.mrf.mxu0
    %v12389 = vadd.f32 %v12376, %v12388
    %v12390 = vpop.f32.mrf.mxu0
    %12391 = vdwg.mxu0
    %12392 = vmatpush.bf16.msra.mxu0 %v11696
    %12393 = vmatpush.bf16.msra.mxu0 %v11694
    %12394 = vmatpush.bf16.msra.mxu0 %v11692
    %12395 = vmatpush.bf16.msra.mxu0 %v11690
    %12396 = vmatpush.bf16.msra.mxu0 %v11688
    %12397 = vmatpush.bf16.msra.mxu0 %v11686
    %12398 = vmatpush.bf16.msra.mxu0 %v11684
    %12399 = vmatpush.bf16.msra.mxu0 %v11682
    %12400 = vmatmul.bf16.gmra.mxu0 %v10435
    %v12401 = vpop.f32.mrf.mxu0
    %v12402 = vadd.f32 %v12389, %v12401
    %v12403 = vpop.f32.mrf.mxu0
    %12404 = vdwg.mxu0
    %12405 = vmatpush.bf16.msra.mxu0 %v11712
    %12406 = vmatpush.bf16.msra.mxu0 %v11710
    %12407 = vmatpush.bf16.msra.mxu0 %v11708
    %12408 = vmatpush.bf16.msra.mxu0 %v11706
    %12409 = vmatpush.bf16.msra.mxu0 %v11704
    %12410 = vmatpush.bf16.msra.mxu0 %v11702
    %12411 = vmatpush.bf16.msra.mxu0 %v11700
    %12412 = vmatpush.bf16.msra.mxu0 %v11698
    %12413 = vmatmul.bf16.gmra.mxu0 %v10450
    %v12414 = vpop.f32.mrf.mxu0
    %v12415 = vadd.f32 %v12402, %v12414
    %v12416 = vpop.f32.mrf.mxu0
    %12417 = vdwg.mxu0
    %12418 = vmatpush.bf16.msra.mxu0 %v11728
    %12419 = vmatpush.bf16.msra.mxu0 %v11726
    %12420 = vmatpush.bf16.msra.mxu0 %v11724
    %12421 = vmatpush.bf16.msra.mxu0 %v11722
    %12422 = vmatpush.bf16.msra.mxu0 %v11720
    %12423 = vmatpush.bf16.msra.mxu0 %v11718
    %12424 = vmatpush.bf16.msra.mxu0 %v11716
    %12425 = vmatpush.bf16.msra.mxu0 %v11714
    %12426 = vmatmul.bf16.gmra.mxu0 %v10463
    %v12427 = vpop.f32.mrf.mxu0
    %v12428 = vadd.f32 %v12415, %v12427
    %v12429 = vpop.f32.mrf.mxu0
    %12430 = vdwg.mxu0
    %12431 = vmatpush.bf16.msra.mxu0 %v11744
    %12432 = vmatpush.bf16.msra.mxu0 %v11742
    %12433 = vmatpush.bf16.msra.mxu0 %v11740
    %12434 = vmatpush.bf16.msra.mxu0 %v11738
    %12435 = vmatpush.bf16.msra.mxu0 %v11736
    %12436 = vmatpush.bf16.msra.mxu0 %v11734
    %12437 = vmatpush.bf16.msra.mxu0 %v11732
    %12438 = vmatpush.bf16.msra.mxu0 %v11730
    %12439 = vmatmul.bf16.gmra.mxu0 %v10477
    %v12440 = vpop.f32.mrf.mxu0
    %v12441 = vadd.f32 %v12428, %v12440
    %v12442 = vpop.f32.mrf.mxu0
    %12443 = vdwg.mxu0
    %12444 = vmatpush.bf16.msra.mxu0 %v11760
    %12445 = vmatpush.bf16.msra.mxu0 %v11758
    %12446 = vmatpush.bf16.msra.mxu0 %v11756
    %12447 = vmatpush.bf16.msra.mxu0 %v11754
    %12448 = vmatpush.bf16.msra.mxu0 %v11752
    %12449 = vmatpush.bf16.msra.mxu0 %v11750
    %12450 = vmatpush.bf16.msra.mxu0 %v11748
    %12451 = vmatpush.bf16.msra.mxu0 %v11746
    %12452 = vmatmul.bf16.gmra.mxu0 %v10491
    %v12453 = vpop.f32.mrf.mxu0
    %v12454 = vadd.f32 %v12441, %v12453
    %v12455 = vpop.f32.mrf.mxu0
    %12456 = vdwg.mxu0
    %12457 = vmatpush.bf16.msra.mxu0 %v11776
    %12458 = vmatpush.bf16.msra.mxu0 %v11774
    %12459 = vmatpush.bf16.msra.mxu0 %v11772
    %12460 = vmatpush.bf16.msra.mxu0 %v11770
    %12461 = vmatpush.bf16.msra.mxu0 %v11768
    %12462 = vmatpush.bf16.msra.mxu0 %v11766
    %12463 = vmatpush.bf16.msra.mxu0 %v11764
    %12464 = vmatpush.bf16.msra.mxu0 %v11762
    %12465 = vmatmul.bf16.gmra.mxu0 %v10504
    %v12466 = vpop.f32.mrf.mxu0
    %v12467 = vadd.f32 %v12454, %v12466
    %v12468 = vpop.f32.mrf.mxu0
    %12469 = vdwg.mxu0
    %12470 = vmatpush.bf16.msra.mxu0 %v11792
    %12471 = vmatpush.bf16.msra.mxu0 %v11790
    %12472 = vmatpush.bf16.msra.mxu0 %v11788
    %12473 = vmatpush.bf16.msra.mxu0 %v11786
    %12474 = vmatpush.bf16.msra.mxu0 %v11784
    %12475 = vmatpush.bf16.msra.mxu0 %v11782
    %12476 = vmatpush.bf16.msra.mxu0 %v11780
    %12477 = vmatpush.bf16.msra.mxu0 %v11778
    %12478 = vmatmul.bf16.gmra.mxu0 %v10517
    %v12479 = vpop.f32.mrf.mxu0
    %v12480 = vadd.f32 %v12467, %v12479
    %v12481 = vpop.f32.mrf.mxu0
    %12482 = vdwg.mxu0
    %12483 = vmatpush.bf16.msra.mxu0 %v11808
    %12484 = vmatpush.bf16.msra.mxu0 %v11806
    %12485 = vmatpush.bf16.msra.mxu0 %v11804
    %12486 = vmatpush.bf16.msra.mxu0 %v11802
    %12487 = vmatpush.bf16.msra.mxu0 %v11800
    %12488 = vmatpush.bf16.msra.mxu0 %v11798
    %12489 = vmatpush.bf16.msra.mxu0 %v11796
    %12490 = vmatpush.bf16.msra.mxu0 %v11794
    %12491 = vmatmul.bf16.gmra.mxu0 %v10531
    %v12492 = vpop.f32.mrf.mxu0
    %v12493 = vadd.f32 %v12480, %v12492
    %v12494 = vpop.f32.mrf.mxu0
    %12495 = vdwg.mxu0
    %12496 = vmatpush.bf16.msra.mxu0 %v11824
    %12497 = vmatpush.bf16.msra.mxu0 %v11822
    %12498 = vmatpush.bf16.msra.mxu0 %v11820
    %12499 = vmatpush.bf16.msra.mxu0 %v11818
    %12500 = vmatpush.bf16.msra.mxu0 %v11816
    %12501 = vmatpush.bf16.msra.mxu0 %v11814
    %12502 = vmatpush.bf16.msra.mxu0 %v11812
    %12503 = vmatpush.bf16.msra.mxu0 %v11810
    %12504 = vmatmul.bf16.gmra.mxu0 %v10545
    %v12505 = vpop.f32.mrf.mxu0
    %v12506 = vadd.f32 %v12493, %v12505
    %v12507 = vpop.f32.mrf.mxu0
    %12508 = vdwg.mxu0
    %12509 = vmatpush.bf16.msra.mxu0 %v11840
    %12510 = vmatpush.bf16.msra.mxu0 %v11838
    %12511 = vmatpush.bf16.msra.mxu0 %v11836
    %12512 = vmatpush.bf16.msra.mxu0 %v11834
    %12513 = vmatpush.bf16.msra.mxu0 %v11832
    %12514 = vmatpush.bf16.msra.mxu0 %v11830
    %12515 = vmatpush.bf16.msra.mxu0 %v11828
    %12516 = vmatpush.bf16.msra.mxu0 %v11826
    %12517 = vmatmul.bf16.gmra.mxu0 %v10560
    %v12518 = vpop.f32.mrf.mxu0
    %v12519 = vadd.f32 %v12506, %v12518
    %v12520 = vpop.f32.mrf.mxu0
    %12521 = vdwg.mxu0
    %12522 = vmatpush.bf16.msra.mxu0 %v11856
    %12523 = vmatpush.bf16.msra.mxu0 %v11854
    %12524 = vmatpush.bf16.msra.mxu0 %v11852
    %12525 = vmatpush.bf16.msra.mxu0 %v11850
    %12526 = vmatpush.bf16.msra.mxu0 %v11848
    %12527 = vmatpush.bf16.msra.mxu0 %v11846
    %12528 = vmatpush.bf16.msra.mxu0 %v11844
    %12529 = vmatpush.bf16.msra.mxu0 %v11842
    %12530 = vmatmul.bf16.gmra.mxu0 %v10573
    %v12531 = vpop.f32.mrf.mxu0
    %v12532 = vadd.f32 %v12519, %v12531
    %v12533 = vpop.f32.mrf.mxu0
    %12534 = vdwg.mxu0
    %12535 = vmatpush.bf16.msra.mxu0 %v11872
    %12536 = vmatpush.bf16.msra.mxu0 %v11870
    %12537 = vmatpush.bf16.msra.mxu0 %v11868
    %12538 = vmatpush.bf16.msra.mxu0 %v11866
    %12539 = vmatpush.bf16.msra.mxu0 %v11864
    %12540 = vmatpush.bf16.msra.mxu0 %v11862
    %12541 = vmatpush.bf16.msra.mxu0 %v11860
    %12542 = vmatpush.bf16.msra.mxu0 %v11858
    %12543 = vmatmul.bf16.gmra.mxu0 %v10587
    %v12544 = vpop.f32.mrf.mxu0
    %v12545 = vadd.f32 %v12532, %v12544
    %v12546 = vpop.f32.mrf.mxu0
    %12547 = vdwg.mxu0
    %12548 = vmatpush.bf16.msra.mxu0 %v11888
    %12549 = vmatpush.bf16.msra.mxu0 %v11886
    %12550 = vmatpush.bf16.msra.mxu0 %v11884
    %12551 = vmatpush.bf16.msra.mxu0 %v11882
    %12552 = vmatpush.bf16.msra.mxu0 %v11880
    %12553 = vmatpush.bf16.msra.mxu0 %v11878
    %12554 = vmatpush.bf16.msra.mxu0 %v11876
    %12555 = vmatpush.bf16.msra.mxu0 %v11874
    %12556 = vmatmul.bf16.gmra.mxu0 %v10601
    %v12557 = vpop.f32.mrf.mxu0
    %v12558 = vadd.f32 %v12545, %v12557
    %v12559 = vpop.f32.mrf.mxu0
    %12560 = vdwg.mxu0
    %v12561 = vmax.f32 %v12350, 0.0
    %v12562 = vmax.f32 %v12558, 0.0
    %v12563 = vpack.c.bf16 %v12561, %v12561
    %v12564 = vpack.c.bf16 %v12562, %v12562
    %v12565 = vld [vmem:[%s9] sm:$0xf]
    %v12566 = vld [vmem:[%s9 + $0x4] sm:$0xf]
    %v12567 = vld [vmem:[%s9 + $0x8] sm:$0xf]
    %v12568 = vld [vmem:[%s9 + $0xc] sm:$0xf]
    %v12569 = vld [vmem:[%s9 + $0x10] sm:$0xf]
    %v12570 = vld [vmem:[%s9 + $0x14] sm:$0xf]
    %v12571 = vld [vmem:[%s9 + $0x18] sm:$0xf]
    %v12572 = vld [vmem:[%s9 + $0x1c] sm:$0xf]
    %v12573 = vld [vmem:[%s9 + $0x20] sm:$0xf]
    %v12574 = vld [vmem:[%s9 + $0x24] sm:$0xf]
    %v12575 = vld [vmem:[%s9 + $0x28] sm:$0xf]
    %v12576 = vld [vmem:[%s9 + $0x2c] sm:$0xf]
    %v12577 = vld [vmem:[%s9 + $0x30] sm:$0xf]
    %v12578 = vld [vmem:[%s9 + $0x34] sm:$0xf]
    %v12579 = vld [vmem:[%s9 + $0x38] sm:$0xf]
    %v12580 = vld [vmem:[%s9 + $0x3c] sm:$0xf]
    %v12581 = vld [vmem:[%s9 + $0x40] sm:$0xf]
    %v12582 = vld [vmem:[%s9 + $0x44] sm:$0xf]
    %v12583 = vld [vmem:[%s9 + $0x48] sm:$0xf]
    %v12584 = vld [vmem:[%s9 + $0x4c] sm:$0xf]
    %v12585 = vld [vmem:[%s9 + $0x50] sm:$0xf]
    %v12586 = vld [vmem:[%s9 + $0x54] sm:$0xf]
    %v12587 = vld [vmem:[%s9 + $0x58] sm:$0xf]
    %v12588 = vld [vmem:[%s9 + $0x5c] sm:$0xf]
    %v12589 = vld [vmem:[%s9 + $0x60] sm:$0xf]
    %v12590 = vld [vmem:[%s9 + $0x64] sm:$0xf]
    %v12591 = vld [vmem:[%s9 + $0x68] sm:$0xf]
    %v12592 = vld [vmem:[%s9 + $0x6c] sm:$0xf]
    %v12593 = vld [vmem:[%s9 + $0x70] sm:$0xf]
    %v12594 = vld [vmem:[%s9 + $0x74] sm:$0xf]
    %v12595 = vld [vmem:[%s9 + $0x78] sm:$0xf]
    %v12596 = vld [vmem:[%s9 + $0x7c] sm:$0xf]
    %v12597 = vld [vmem:[%s10] sm:$0x1]
    %v12599 = vperm.slane %v12597, 0
    %v12633 = vunpack.c.l.b16 %v12565
    %v12634 = vunpack.c.l.b16 %v12566
    %v12635 = vunpack.c.l.b16 %v12567
    %v12636 = vunpack.c.l.b16 %v12568
    %v12637 = vunpack.c.l.b16 %v12569
    %v12638 = vunpack.c.l.b16 %v12570
    %v12639 = vunpack.c.l.b16 %v12571
    %v12640 = vunpack.c.l.b16 %v12572
    %v12641 = vunpack.c.l.b16 %v12573
    %v12642 = vunpack.c.l.b16 %v12574
    %v12643 = vunpack.c.l.b16 %v12575
    %v12644 = vunpack.c.l.b16 %v12576
    %v12645 = vunpack.c.l.b16 %v12577
    %v12646 = vunpack.c.l.b16 %v12578
    %v12647 = vunpack.c.l.b16 %v12579
    %v12648 = vunpack.c.l.b16 %v12580
    %v12649 = vunpack.c.l.b16 %v12581
    %v12650 = vunpack.c.l.b16 %v12582
    %v12651 = vunpack.c.l.b16 %v12583
    %v12652 = vunpack.c.l.b16 %v12584
    %v12653 = vunpack.c.l.b16 %v12585
    %v12654 = vunpack.c.l.b16 %v12586
    %v12655 = vunpack.c.l.b16 %v12587
    %v12656 = vunpack.c.l.b16 %v12588
    %v12657 = vunpack.c.l.b16 %v12589
    %v12658 = vunpack.c.l.b16 %v12590
    %v12659 = vunpack.c.l.b16 %v12591
    %v12660 = vunpack.c.l.b16 %v12592
    %v12661 = vunpack.c.l.b16 %v12593
    %v12662 = vunpack.c.l.b16 %v12594
    %v12663 = vunpack.c.l.b16 %v12595
    %v12664 = vunpack.c.l.b16 %v12596
    %v12665 = vpack.c.b16 %v12634, %v12633
    %v12666 = vpack.c.b16 %v12636, %v12635
    %v12667 = vpack.c.b16 %v12638, %v12637
    %v12668 = vpack.c.b16 %v12640, %v12639
    %v12669 = vpack.c.b16 %v12642, %v12641
    %v12670 = vpack.c.b16 %v12644, %v12643
    %v12671 = vpack.c.b16 %v12646, %v12645
    %v12672 = vpack.c.b16 %v12648, %v12647
    %v12673 = vpack.c.b16 %v12650, %v12649
    %v12674 = vpack.c.b16 %v12652, %v12651
    %v12675 = vpack.c.b16 %v12654, %v12653
    %v12676 = vpack.c.b16 %v12656, %v12655
    %v12677 = vpack.c.b16 %v12658, %v12657
    %v12678 = vpack.c.b16 %v12660, %v12659
    %v12679 = vpack.c.b16 %v12662, %v12661
    %v12680 = vpack.c.b16 %v12664, %v12663
    %12697 = vmatpush.bf16.msra.mxu0 %v12672
    %12698 = vmatpush.bf16.msra.mxu0 %v12671
    %12699 = vmatpush.bf16.msra.mxu0 %v12670
    %12700 = vmatpush.bf16.msra.mxu0 %v12669
    %12701 = vmatpush.bf16.msra.mxu0 %v12668
    %12702 = vmatpush.bf16.msra.mxu0 %v12667
    %12703 = vmatpush.bf16.msra.mxu0 %v12666
    %12704 = vmatpush.bf16.msra.mxu0 %v12665
    %12705 = vmatmul.bf16.gmra.mxu0 %v12563
    %v12706 = vpop.f32.mrf.mxu0
    %v12707 = vadd.f32 %v12599, %v12706
    %v12708 = vpop.f32.mrf.mxu0
    %12709 = vdwg.mxu0
    %12710 = vmatpush.bf16.msra.mxu0 %v12680
    %12711 = vmatpush.bf16.msra.mxu0 %v12679
    %12712 = vmatpush.bf16.msra.mxu0 %v12678
    %12713 = vmatpush.bf16.msra.mxu0 %v12677
    %12714 = vmatpush.bf16.msra.mxu0 %v12676
    %12715 = vmatpush.bf16.msra.mxu0 %v12675
    %12716 = vmatpush.bf16.msra.mxu0 %v12674
    %12717 = vmatpush.bf16.msra.mxu0 %v12673
    %12718 = vmatmul.bf16.gmra.mxu0 %v12564
    %v12719 = vpop.f32.mrf.mxu0
    %v12720 = vadd.f32 %v12707, %v12719
    %v12721 = vpop.f32.mrf.mxu0
    %12722 = vdwg.mxu0
    %vm12723 = vcmask 17408
    %12724 = vst.msk [vmem:[#allocation7] sm:$0x3] %vm12723, %v12720
    // Predicated region
    $region50: #{simple_cnn_sb_forward.1} parent=1 // pred_check
      _
    $region51: #{simple_cnn_sb_forward.1} parent=1 // pred_check_branch
      %12726 = sbr.rel (0) target = $region53
    $region52: #{simple_cnn_sb_forward.1} parent=1 // pred_region
      %12728 = vsyncadd [#allocation6], 0
      %s12730 = sshll.u32 [#allocation7], 4
      %s12731 = int_to_ptr.vmem [resolvable:$true] %s12730
      %s12732 = sshll.u32 %s11, 4
      %s12733 = int_to_ptr.hbm [resolvable:$true] %s12732
      %12735 = dma.vmem_to_hbm [thread:$0]  %s12731, 32, %s12733, [#allocation6]
    $region53: #{simple_cnn_sb_forward.1} parent=1 // pred_fallthru
      _
    // Predicated region
    $region54: #{simple_cnn_sb_forward.1} parent=1 // pred_check
      _
    $region55: #{simple_cnn_sb_forward.1} parent=1 // pred_check_branch
      %12737 = sbr.rel (0) target = $region57
    $region56: #{simple_cnn_sb_forward.1} parent=1 // pred_region
      %12739 = dma.done [#allocation6], 32
    $region57: #{simple_cnn_sb_forward.1} parent=1 // pred_fallthru
      _
    %12740 = vsyncpa [#allocation5], 1
    %12741 = vsyncpa [#allocation6], 1

</llo_original>
